<compile_context>
chip_gen: v6e
topology: v6e:2x2x1
jax: 0.10.0
libtpu: 0.0.40
codegen_flags: <defaults>
</compile_context>

<pallas_src>
import math

import numpy as np

import jax
import jax.numpy as jnp
from jax.experimental import pallas as pl
from jax.experimental.pallas import tpu as pltpu

D = 128            # embedding_dim
NH = 4             # num_heads
HD = D // NH       # head dim = 32
FF = 2048          # PyTorch TransformerEncoderLayer default dim_feedforward
L = 2              # num_layers
EPS = 1e-5         # LayerNorm eps (PyTorch default)


def _layer_norm(v, g, b):
    mu = jnp.mean(v, axis=-1, keepdims=True)
    var = jnp.mean((v - mu) ** 2, axis=-1, keepdims=True)
    return (v - mu) * jax.lax.rsqrt(var + EPS) * g + b


def _make_kernel(tb, s, grp, ff_rows):
    n = tb * s               # GEMM rows per grid step
    gs = grp * s             # packed attention rows per group
    n_groups = tb // grp
    scale = 1.0 / math.sqrt(HD)
    bf16 = jnp.bfloat16

    def kernel(x_ref, bias_ref, we1_ref, be1_ref, we2_ref, be2_ref,
               wqkv_ref, bqkv_ref, wo_ref, bo_ref,
               g1_ref, b1_ref, wf1_ref, bf1_ref,
               wf2_ref, bf2_ref, g2_ref, b2_ref, out_ref):
        x = x_ref[...]                                   # (tb, s, 2) f32

        # --- embedding Linear(2, D): K=2 -> VPU broadcast FMA (no MXU) ---
        we1 = we1_ref[...]                               # (2, D)
        w0 = we1[0:1, :].reshape(1, 1, D)
        w1 = we1[1:2, :].reshape(1, 1, D)
        h3 = x[:, :, 0:1] * w0 + x[:, :, 1:2] * w1 + be1_ref[...].reshape(1, 1, D)
        h = jnp.maximum(h3, 0.0).reshape(n, D)           # flatten to (n, D) rows

        h = jnp.maximum(
            jnp.dot(h.astype(bf16), we2_ref[...],
                    preferred_element_type=jnp.float32) + be2_ref[...], 0.0)

        attn_bias = bias_ref[...]                        # (gs, gs) f32: 0 / -1e30

        for l in range(L):                               # static unrolled layer loop
            wqkv_l = wqkv_ref[l]                         # (D, 3D) bf16
            wo_l = wo_ref[l]                             # (D, D)  bf16

            # --- multi-head self attention (post-norm encoder layer) ---
            qkv = jnp.dot(h.astype(bf16), wqkv_l,
                          preferred_element_type=jnp.float32) + bqkv_ref[l]  # (n, 3D)
            q = qkv[:, :D]
            k = qkv[:, D:2 * D]
            v = qkv[:, 2 * D:]

            grp_outs = []
            for g in range(n_groups):                    # packed batch groups
                r0 = g * gs
                oh_heads = []
                for i in range(NH):                      # static unrolled head loop
                    off = i * HD
                    qh = q[r0:r0 + gs, off:off + HD].astype(bf16)   # (gs, HD)
                    kh = k[r0:r0 + gs, off:off + HD].astype(bf16)
                    vh = v[r0:r0 + gs, off:off + HD].astype(bf16)
                    # one (gs,HD)@(HD,gs) score matmul; block-diag mask kills
                    # cross-batch attention before the softmax
                    sc = jax.lax.dot_general(
                        qh, kh, (((1,), (1,)), ((), ())),
                        preferred_element_type=jnp.float32) * scale + attn_bias
                    sc = sc - jnp.max(sc, axis=-1, keepdims=True)
                    p = jnp.exp(sc)
                    p = p * pl.reciprocal(jnp.sum(p, axis=-1, keepdims=True),
                                          approx=True)
                    oh_heads.append(jnp.dot(p.astype(bf16), vh,
                                            preferred_element_type=jnp.float32))
                # head concat along lanes + single full-depth output projection
                oh = jnp.concatenate(oh_heads, axis=-1)              # (gs, D) f32
                grp_outs.append(jnp.dot(oh.astype(bf16), wo_l,
                                        preferred_element_type=jnp.float32))
            attn = grp_outs[0] if n_groups == 1 else jnp.concatenate(grp_outs, axis=0)
            attn = attn + bo_ref[l]
            h = _layer_norm(h + attn, g1_ref[l], b1_ref[l])

            # --- feed-forward: bf16 intermediate, row-chunked VMEM guard ---
            ff_outs = []
            for c0 in range(0, n, ff_rows):
                c1 = min(c0 + ff_rows, n)
                f = jnp.dot(h[c0:c1].astype(bf16), wf1_ref[l],
                            preferred_element_type=jnp.float32) + bf1_ref[l]
                f = jnp.maximum(f, 0.0).astype(bf16)                 # (rows, FF) bf16
                ff_outs.append(jnp.dot(f, wf2_ref[l],
                                       preferred_element_type=jnp.float32))
            ff = (ff_outs[0] if len(ff_outs) == 1
                  else jnp.concatenate(ff_outs, axis=0)) + bf2_ref[l]
            h = _layer_norm(h + ff, g2_ref[l], b2_ref[l])

        # --- AdaptiveAvgPool1d(1) over the sequence axis (lane-dense write) ---
        out_ref[...] = jnp.mean(h.reshape(tb, s, D), axis=1)

    return kernel


def path_encoder(x, params, *, tb=None):
    """x: (B, S, 2) float32 path points -> (B, D) pooled encoding."""
    B, S, _ = x.shape

    if tb is None:
        # target ~1024 GEMM rows per grid step; prefer tb dividing B so no
        # padded batch rows are computed.
        tb = max(1, min(B, 1024 // max(S, 1)))
        for cand in range(tb, 0, -1):
            if B % cand == 0:
                tb = cand
                break
        # v7x megacore: nudge to an even step count when it costs < 4x rows.
        nb0 = pl.cdiv(B, tb)
        if nb0 > 1 and nb0 % 2 == 1:
            for cand in range(tb, 0, -1):
                if B % cand == 0 and (B // cand) % 2 == 0 and cand * S >= 256:
                    tb = cand
                    break

    nb = pl.cdiv(B, tb)
    b_pad = nb * tb
    if b_pad != B:
        x = jnp.pad(x, ((0, b_pad - B), (0, 0), (0, 0)))

    # attention grouping: pack `grp` batch elements (grp*S <= 256 rows) per
    # score matmul; precompute the block-diagonal additive mask on the host.
    grp = max(1, min(tb, 256 // max(S, 1)))
    while tb % grp != 0:
        grp -= 1
    gs = grp * S
    bid = np.repeat(np.arange(grp), S)
    attn_bias = jnp.asarray(
        np.where(bid[:, None] == bid[None, :], 0.0, -1e30).astype(np.float32))

    ff_rows = min(tb * S, 1024)   # FF row-chunk size (guards long-S VMEM)

    def full(shape):
        # constant index_map -> Pallas does not re-DMA these across grid steps
        return pl.BlockSpec(shape, lambda b, _n=len(shape): (0,) * _n)

    in_specs = [
        pl.BlockSpec((tb, S, 2), lambda b: (b, 0, 0)),            # x (per-batch-tile slab)
        full((gs, gs)),                                           # attention mask bias
        full((2, D)), full((1, D)), full((D, D)), full((1, D)),   # embedding MLP
        full((L, D, 3 * D)), full((L, 1, 3 * D)),                 # in_proj (bf16)
        full((L, D, D)), full((L, 1, D)),                         # out_proj (bf16)
        full((L, 1, D)), full((L, 1, D)),                         # layernorm 1
        full((L, D, FF)), full((L, 1, FF)),                       # linear1 (bf16)
        full((L, FF, D)), full((L, 1, D)),                        # linear2 (bf16)
        full((L, 1, D)), full((L, 1, D)),                         # layernorm 2
    ]

    out = pl.pallas_call(
        _make_kernel(tb, S, grp, ff_rows),
        out_shape=jax.ShapeDtypeStruct((b_pad, D), jnp.float32),
        grid=(nb,),
        in_specs=in_specs,
        out_specs=pl.BlockSpec((tb, D), lambda b: (b, 0)),        # lane/sublane dense
        compiler_params=pltpu.CompilerParams(
            dimension_semantics=("parallel",),
            vmem_limit_bytes=48 * 1024 * 1024),   # < v7x 64 MiB/TC; plenty on v5e/v6e
    )(x, attn_bias, *params)
    return out[:B]


def init_params(key):
    keys = iter(jax.random.split(key, 16))

    def rnd(shape, scale=0.05, dtype=jnp.float32):
        return (scale * jax.random.normal(next(keys), shape)).astype(dtype)

    bf16 = jnp.bfloat16
    # embedding Linear(2, D): stored transposed (2, D), f32 (used on VPU)
    we1 = rnd((2, D))
    be1 = rnd((1, D))
    we2 = rnd((D, D), dtype=bf16)
    be2 = rnd((1, D))
    # stacked per-layer transformer params (weights stored transposed: x @ W)
    wqkv = rnd((L, D, 3 * D), dtype=bf16)
    bqkv = rnd((L, 1, 3 * D))
    wo = rnd((L, D, D), dtype=bf16)
    bo = rnd((L, 1, D))
    g1 = jnp.ones((L, 1, D), jnp.float32)
    b1 = jnp.zeros((L, 1, D), jnp.float32)
    wf1 = rnd((L, D, FF), dtype=bf16)
    bf1 = rnd((L, 1, FF))
    wf2 = rnd((L, FF, D), dtype=bf16)
    bf2 = rnd((L, 1, D))
    g2 = jnp.ones((L, 1, D), jnp.float32)
    b2 = jnp.zeros((L, 1, D), jnp.float32)
    return (we1, be1, we2, be2, wqkv, bqkv, wo, bo,
            g1, b1, wf1, bf1, wf2, bf2, g2, b2)


def reference(x, params):
    """Pure-JAX f32 reference for validation (upcasts the bf16 weights)."""
    (we1, be1, we2, be2, wqkv, bqkv, wo, bo,
     g1, b1, wf1, bf1, wf2, bf2, g2, b2) = params
    f32 = lambda a: a.astype(jnp.float32)
    B, S, _ = x.shape
    h = jnp.maximum(x @ f32(we1) + be1[0], 0.0)
    h = jnp.maximum(h @ f32(we2) + be2[0], 0.0)
    for l in range(L):
        qkv = h @ f32(wqkv[l]) + bqkv[l, 0]
        q, k, v = jnp.split(qkv, 3, axis=-1)
        qh = q.reshape(B, S, NH, HD).transpose(0, 2, 1, 3)
        kh = k.reshape(B, S, NH, HD).transpose(0, 2, 1, 3)
        vh = v.reshape(B, S, NH, HD).transpose(0, 2, 1, 3)
        s = jnp.einsum('bhqd,bhkd->bhqk', qh, kh) / math.sqrt(HD)
        p = jax.nn.softmax(s, axis=-1)
        a = jnp.einsum('bhqk,bhkd->bhqd', p, vh).transpose(0, 2, 1, 3).reshape(B, S, D)
        a = a @ f32(wo[l]) + bo[l, 0]
        h = _layer_norm(h + a, g1[l, 0], b1[l, 0])
        ff = jnp.maximum(h @ f32(wf1[l]) + bf1[l, 0], 0.0)
        ff = ff @ f32(wf2[l]) + bf2[l, 0]
        h = _layer_norm(h + ff, g2[l, 0], b2[l, 0])
    return jnp.mean(h, axis=1)


if __name__ == "__main__":
    key = jax.random.PRNGKey(0)
    k_x, k_p = jax.random.split(key)

    B, S = 4, 8
    x = jax.random.normal(k_x, (B, S, 2), dtype=jnp.float32)   # path points (x, y)
    params = init_params(k_p)

    out = path_encoder(x, params)
    out = jax.block_until_ready(out)

    ref = reference(x, params)
    assert out.shape == (B, D), out.shape
    assert bool(jnp.all(jnp.isfinite(out)))
    assert jnp.allclose(out, ref, atol=5e-2, rtol=5e-2), \
        f"max abs diff {jnp.max(jnp.abs(out - ref))}"
    print("KERNEL_OK")
</pallas_src>

<mosaic_0001>
module attributes {stable_mosaic.version = 11 : i64} {
  func.func @kernel(%arg0: i32, %arg1: memref<4x8x2xf32, #tpu.memory_space<vmem>>, %arg2: memref<32x32xf32, #tpu.memory_space<vmem>>, %arg3: memref<2x128xf32, #tpu.memory_space<vmem>>, %arg4: memref<1x128xf32, #tpu.memory_space<vmem>>, %arg5: memref<128x128xbf16, #tpu.memory_space<vmem>>, %arg6: memref<1x128xf32, #tpu.memory_space<vmem>>, %arg7: memref<2x128x384xbf16, #tpu.memory_space<vmem>>, %arg8: memref<2x1x384xf32, #tpu.memory_space<vmem>>, %arg9: memref<2x128x128xbf16, #tpu.memory_space<vmem>>, %arg10: memref<2x1x128xf32, #tpu.memory_space<vmem>>, %arg11: memref<2x1x128xf32, #tpu.memory_space<vmem>>, %arg12: memref<2x1x128xf32, #tpu.memory_space<vmem>>, %arg13: memref<2x128x2048xbf16, #tpu.memory_space<vmem>>, %arg14: memref<2x1x2048xf32, #tpu.memory_space<vmem>>, %arg15: memref<2x2048x128xbf16, #tpu.memory_space<vmem>>, %arg16: memref<2x1x128xf32, #tpu.memory_space<vmem>>, %arg17: memref<2x1x128xf32, #tpu.memory_space<vmem>>, %arg18: memref<2x1x128xf32, #tpu.memory_space<vmem>>, %arg19: memref<4x128xf32, #tpu.memory_space<vmem>>) attributes {dimension_semantics = [#tpu.dimension_semantics<parallel>], iteration_bounds = array<i64: 1>, scalar_prefetch = 0 : i64, scratch_operands = 0 : i64, tpu.core_type = #tpu.core_type<tc>, window_params = [{transform_indices = @transform_0, window_bounds = array<i64: 4, 8, 2>}, {pipeline_mode = #tpu.pipeline_mode<synchronous>, transform_indices = @transform_1, window_bounds = array<i64: 32, 32>}, {pipeline_mode = #tpu.pipeline_mode<synchronous>, transform_indices = @transform_2, window_bounds = array<i64: 2, 128>}, {pipeline_mode = #tpu.pipeline_mode<synchronous>, transform_indices = @transform_3, window_bounds = array<i64: 1, 128>}, {pipeline_mode = #tpu.pipeline_mode<synchronous>, transform_indices = @transform_4, window_bounds = array<i64: 128, 128>}, {pipeline_mode = #tpu.pipeline_mode<synchronous>, transform_indices = @transform_5, window_bounds = array<i64: 1, 128>}, {pipeline_mode = #tpu.pipeline_mode<synchronous>, transform_indices = @transform_6, window_bounds = array<i64: 2, 128, 384>}, {pipeline_mode = #tpu.pipeline_mode<synchronous>, transform_indices = @transform_7, window_bounds = array<i64: 2, 1, 384>}, {pipeline_mode = #tpu.pipeline_mode<synchronous>, transform_indices = @transform_8, window_bounds = array<i64: 2, 128, 128>}, {pipeline_mode = #tpu.pipeline_mode<synchronous>, transform_indices = @transform_9, window_bounds = array<i64: 2, 1, 128>}, {pipeline_mode = #tpu.pipeline_mode<synchronous>, transform_indices = @transform_10, window_bounds = array<i64: 2, 1, 128>}, {pipeline_mode = #tpu.pipeline_mode<synchronous>, transform_indices = @transform_11, window_bounds = array<i64: 2, 1, 128>}, {pipeline_mode = #tpu.pipeline_mode<synchronous>, transform_indices = @transform_12, window_bounds = array<i64: 2, 128, 2048>}, {pipeline_mode = #tpu.pipeline_mode<synchronous>, transform_indices = @transform_13, window_bounds = array<i64: 2, 1, 2048>}, {pipeline_mode = #tpu.pipeline_mode<synchronous>, transform_indices = @transform_14, window_bounds = array<i64: 2, 2048, 128>}, {pipeline_mode = #tpu.pipeline_mode<synchronous>, transform_indices = @transform_15, window_bounds = array<i64: 2, 1, 128>}, {pipeline_mode = #tpu.pipeline_mode<synchronous>, transform_indices = @transform_16, window_bounds = array<i64: 2, 1, 128>}, {pipeline_mode = #tpu.pipeline_mode<synchronous>, transform_indices = @transform_17, window_bounds = array<i64: 2, 1, 128>}, {transform_indices = @transform_18, window_bounds = array<i64: 4, 128>}]} {
    %c0 = arith.constant 0 : index
    %c0_0 = arith.constant 0 : index
    %c0_1 = arith.constant 0 : index
    %0 = vector.load %arg1[%c0, %c0_0, %c0_1] : memref<4x8x2xf32, #tpu.memory_space<vmem>>, vector<4x8x2xf32>
    %c0_2 = arith.constant 0 : index
    %c0_3 = arith.constant 0 : index
    %1 = vector.load %arg3[%c0_2, %c0_3] : memref<2x128xf32, #tpu.memory_space<vmem>>, vector<2x128xf32>
    %2 = vector.extract_strided_slice %1 {offsets = [0, 0], sizes = [1, 128], strides = [1, 1]} : vector<2x128xf32> to vector<1x128xf32>
    %3 = vector.shape_cast %2 : vector<1x128xf32> to vector<1x1x128xf32>
    %4 = vector.extract_strided_slice %1 {offsets = [1, 0], sizes = [1, 128], strides = [1, 1]} : vector<2x128xf32> to vector<1x128xf32>
    %5 = vector.shape_cast %4 : vector<1x128xf32> to vector<1x1x128xf32>
    %6 = vector.extract_strided_slice %0 {offsets = [0, 0, 0], sizes = [4, 8, 1], strides = [1, 1, 1]} : vector<4x8x2xf32> to vector<4x8x1xf32>
    %7 = vector.broadcast %6 : vector<4x8x1xf32> to vector<4x8x128xf32>
    %8 = vector.broadcast %3 : vector<1x1x128xf32> to vector<4x8x128xf32>
    %9 = arith.mulf %7, %8 : vector<4x8x128xf32>
    %10 = vector.extract_strided_slice %0 {offsets = [0, 0, 1], sizes = [4, 8, 1], strides = [1, 1, 1]} : vector<4x8x2xf32> to vector<4x8x1xf32>
    %11 = vector.broadcast %10 : vector<4x8x1xf32> to vector<4x8x128xf32>
    %12 = vector.broadcast %5 : vector<1x1x128xf32> to vector<4x8x128xf32>
    %13 = arith.mulf %11, %12 : vector<4x8x128xf32>
    %14 = arith.addf %9, %13 : vector<4x8x128xf32>
    %c0_4 = arith.constant 0 : index
    %c0_5 = arith.constant 0 : index
    %15 = vector.load %arg4[%c0_4, %c0_5] : memref<1x128xf32, #tpu.memory_space<vmem>>, vector<1x128xf32>
    %16 = vector.shape_cast %15 : vector<1x128xf32> to vector<1x1x128xf32>
    %17 = vector.broadcast %16 : vector<1x1x128xf32> to vector<4x8x128xf32>
    %18 = arith.addf %14, %17 : vector<4x8x128xf32>
    %cst = arith.constant 0.000000e+00 : f32
    %19 = vector.broadcast %cst : f32 to vector<4x8x128xf32>
    %20 = arith.maximumf %18, %19 : vector<4x8x128xf32>
    %21 = vector.shape_cast %20 : vector<4x8x128xf32> to vector<32x128xf32>
    %22 = arith.truncf %21 : vector<32x128xf32> to vector<32x128xbf16>
    %c0_6 = arith.constant 0 : index
    %c0_7 = arith.constant 0 : index
    %23 = vector.load %arg5[%c0_6, %c0_7] : memref<128x128xbf16, #tpu.memory_space<vmem>>, vector<128x128xbf16>
    %cst_8 = arith.constant dense<0.000000e+00> : vector<32x128xf32>
    %24 = tpu.matmul %22, %23, %cst_8 {dimension_numbers = #tpu.dot_dimension_numbers<[1], [0], [0], [1], [0, 0, 1, 1], [], []>} : vector<32x128xbf16>, vector<128x128xbf16>, vector<32x128xf32> -> vector<32x128xf32>
    %c0_9 = arith.constant 0 : index
    %c0_10 = arith.constant 0 : index
    %25 = vector.load %arg6[%c0_9, %c0_10] : memref<1x128xf32, #tpu.memory_space<vmem>>, vector<1x128xf32>
    %26 = vector.broadcast %25 : vector<1x128xf32> to vector<32x128xf32>
    %27 = arith.addf %24, %26 : vector<32x128xf32>
    %cst_11 = arith.constant 0.000000e+00 : f32
    %28 = vector.broadcast %cst_11 : f32 to vector<32x128xf32>
    %29 = arith.maximumf %27, %28 : vector<32x128xf32>
    %c0_12 = arith.constant 0 : index
    %c0_13 = arith.constant 0 : index
    %30 = vector.load %arg2[%c0_12, %c0_13] : memref<32x32xf32, #tpu.memory_space<vmem>>, vector<32x32xf32>
    %c0_14 = arith.constant 0 : index
    %c0_15 = arith.constant 0 : index
    %c0_16 = arith.constant 0 : index
    %31 = vector.load %arg7[%c0_14, %c0_15, %c0_16] : memref<2x128x384xbf16, #tpu.memory_space<vmem>>, vector<1x128x384xbf16>
    %32 = vector.shape_cast %31 : vector<1x128x384xbf16> to vector<128x384xbf16>
    %c0_17 = arith.constant 0 : index
    %c0_18 = arith.constant 0 : index
    %c0_19 = arith.constant 0 : index
    %33 = vector.load %arg9[%c0_17, %c0_18, %c0_19] : memref<2x128x128xbf16, #tpu.memory_space<vmem>>, vector<1x128x128xbf16>
    %34 = vector.shape_cast %33 : vector<1x128x128xbf16> to vector<128x128xbf16>
    %35 = arith.truncf %29 : vector<32x128xf32> to vector<32x128xbf16>
    %cst_20 = arith.constant dense<0.000000e+00> : vector<32x384xf32>
    %36 = tpu.matmul %35, %32, %cst_20 {dimension_numbers = #tpu.dot_dimension_numbers<[1], [0], [0], [1], [0, 0, 1, 1], [], []>} : vector<32x128xbf16>, vector<128x384xbf16>, vector<32x384xf32> -> vector<32x384xf32>
    %c0_21 = arith.constant 0 : index
    %c0_22 = arith.constant 0 : index
    %c0_23 = arith.constant 0 : index
    %37 = vector.load %arg8[%c0_21, %c0_22, %c0_23] : memref<2x1x384xf32, #tpu.memory_space<vmem>>, vector<1x1x384xf32>
    %38 = vector.shape_cast %37 : vector<1x1x384xf32> to vector<1x384xf32>
    %39 = vector.broadcast %38 : vector<1x384xf32> to vector<32x384xf32>
    %40 = arith.addf %36, %39 : vector<32x384xf32>
    %41 = vector.extract_strided_slice %40 {offsets = [0, 0], sizes = [32, 128], strides = [1, 1]} : vector<32x384xf32> to vector<32x128xf32>
    %42 = vector.extract_strided_slice %40 {offsets = [0, 128], sizes = [32, 128], strides = [1, 1]} : vector<32x384xf32> to vector<32x128xf32>
    %43 = vector.extract_strided_slice %40 {offsets = [0, 256], sizes = [32, 128], strides = [1, 1]} : vector<32x384xf32> to vector<32x128xf32>
    %44 = vector.extract_strided_slice %41 {offsets = [0, 0], sizes = [32, 32], strides = [1, 1]} : vector<32x128xf32> to vector<32x32xf32>
    %45 = arith.truncf %44 : vector<32x32xf32> to vector<32x32xbf16>
    %46 = vector.extract_strided_slice %42 {offsets = [0, 0], sizes = [32, 32], strides = [1, 1]} : vector<32x128xf32> to vector<32x32xf32>
    %47 = arith.truncf %46 : vector<32x32xf32> to vector<32x32xbf16>
    %48 = vector.extract_strided_slice %43 {offsets = [0, 0], sizes = [32, 32], strides = [1, 1]} : vector<32x128xf32> to vector<32x32xf32>
    %49 = arith.truncf %48 : vector<32x32xf32> to vector<32x32xbf16>
    %cst_24 = arith.constant dense<0.000000e+00> : vector<32x32xf32>
    %50 = tpu.matmul %45, %47, %cst_24 {dimension_numbers = #tpu.dot_dimension_numbers<[1], [1], [0], [0], [0, 0, 1, 0], [], []>} : vector<32x32xbf16>, vector<32x32xbf16>, vector<32x32xf32> -> vector<32x32xf32>
    %cst_25 = arith.constant 0.176776692 : f32
    %51 = vector.broadcast %cst_25 : f32 to vector<32x32xf32>
    %52 = arith.mulf %50, %51 : vector<32x32xf32>
    %53 = arith.addf %52, %30 : vector<32x32xf32>
    %cst_26 = arith.constant dense<0xFF800000> : vector<32xf32>
    %54 = vector.multi_reduction <maximumf>, %53, %cst_26 [1] : vector<32x32xf32> to vector<32xf32>
    %55 = vector.shape_cast %54 : vector<32xf32> to vector<32x1xf32>
    %56 = vector.broadcast %55 : vector<32x1xf32> to vector<32x32xf32>
    %57 = arith.subf %53, %56 : vector<32x32xf32>
    %58 = math.exp %57 : vector<32x32xf32>
    %cst_27 = arith.constant dense<0.000000e+00> : vector<32xf32>
    %59 = vector.multi_reduction <add>, %58, %cst_27 [1] : vector<32x32xf32> to vector<32xf32>
    %60 = vector.shape_cast %59 : vector<32xf32> to vector<32x1xf32>
    %61 = tpu.reciprocal %60 {approx = true} : vector<32x1xf32> -> vector<32x1xf32>
    %62 = vector.broadcast %61 : vector<32x1xf32> to vector<32x32xf32>
    %63 = arith.mulf %58, %62 : vector<32x32xf32>
    %64 = arith.truncf %63 : vector<32x32xf32> to vector<32x32xbf16>
    %cst_28 = arith.constant dense<0.000000e+00> : vector<32x32xf32>
    %65 = tpu.matmul %64, %49, %cst_28 {dimension_numbers = #tpu.dot_dimension_numbers<[1], [0], [0], [1], [0, 0, 1, 1], [], []>} : vector<32x32xbf16>, vector<32x32xbf16>, vector<32x32xf32> -> vector<32x32xf32>
    %66 = vector.extract_strided_slice %41 {offsets = [0, 32], sizes = [32, 32], strides = [1, 1]} : vector<32x128xf32> to vector<32x32xf32>
    %67 = arith.truncf %66 : vector<32x32xf32> to vector<32x32xbf16>
    %68 = vector.extract_strided_slice %42 {offsets = [0, 32], sizes = [32, 32], strides = [1, 1]} : vector<32x128xf32> to vector<32x32xf32>
    %69 = arith.truncf %68 : vector<32x32xf32> to vector<32x32xbf16>
    %70 = vector.extract_strided_slice %43 {offsets = [0, 32], sizes = [32, 32], strides = [1, 1]} : vector<32x128xf32> to vector<32x32xf32>
    %71 = arith.truncf %70 : vector<32x32xf32> to vector<32x32xbf16>
    %cst_29 = arith.constant dense<0.000000e+00> : vector<32x32xf32>
    %72 = tpu.matmul %67, %69, %cst_29 {dimension_numbers = #tpu.dot_dimension_numbers<[1], [1], [0], [0], [0, 0, 1, 0], [], []>} : vector<32x32xbf16>, vector<32x32xbf16>, vector<32x32xf32> -> vector<32x32xf32>
    %cst_30 = arith.constant 0.176776692 : f32
    %73 = vector.broadcast %cst_30 : f32 to vector<32x32xf32>
    %74 = arith.mulf %72, %73 : vector<32x32xf32>
    %75 = arith.addf %74, %30 : vector<32x32xf32>
    %cst_31 = arith.constant dense<0xFF800000> : vector<32xf32>
    %76 = vector.multi_reduction <maximumf>, %75, %cst_31 [1] : vector<32x32xf32> to vector<32xf32>
    %77 = vector.shape_cast %76 : vector<32xf32> to vector<32x1xf32>
    %78 = vector.broadcast %77 : vector<32x1xf32> to vector<32x32xf32>
    %79 = arith.subf %75, %78 : vector<32x32xf32>
    %80 = math.exp %79 : vector<32x32xf32>
    %cst_32 = arith.constant dense<0.000000e+00> : vector<32xf32>
    %81 = vector.multi_reduction <add>, %80, %cst_32 [1] : vector<32x32xf32> to vector<32xf32>
    %82 = vector.shape_cast %81 : vector<32xf32> to vector<32x1xf32>
    %83 = tpu.reciprocal %82 {approx = true} : vector<32x1xf32> -> vector<32x1xf32>
    %84 = vector.broadcast %83 : vector<32x1xf32> to vector<32x32xf32>
    %85 = arith.mulf %80, %84 : vector<32x32xf32>
    %86 = arith.truncf %85 : vector<32x32xf32> to vector<32x32xbf16>
    %cst_33 = arith.constant dense<0.000000e+00> : vector<32x32xf32>
    %87 = tpu.matmul %86, %71, %cst_33 {dimension_numbers = #tpu.dot_dimension_numbers<[1], [0], [0], [1], [0, 0, 1, 1], [], []>} : vector<32x32xbf16>, vector<32x32xbf16>, vector<32x32xf32> -> vector<32x32xf32>
    %88 = vector.extract_strided_slice %41 {offsets = [0, 64], sizes = [32, 32], strides = [1, 1]} : vector<32x128xf32> to vector<32x32xf32>
    %89 = arith.truncf %88 : vector<32x32xf32> to vector<32x32xbf16>
    %90 = vector.extract_strided_slice %42 {offsets = [0, 64], sizes = [32, 32], strides = [1, 1]} : vector<32x128xf32> to vector<32x32xf32>
    %91 = arith.truncf %90 : vector<32x32xf32> to vector<32x32xbf16>
    %92 = vector.extract_strided_slice %43 {offsets = [0, 64], sizes = [32, 32], strides = [1, 1]} : vector<32x128xf32> to vector<32x32xf32>
    %93 = arith.truncf %92 : vector<32x32xf32> to vector<32x32xbf16>
    %cst_34 = arith.constant dense<0.000000e+00> : vector<32x32xf32>
    %94 = tpu.matmul %89, %91, %cst_34 {dimension_numbers = #tpu.dot_dimension_numbers<[1], [1], [0], [0], [0, 0, 1, 0], [], []>} : vector<32x32xbf16>, vector<32x32xbf16>, vector<32x32xf32> -> vector<32x32xf32>
    %cst_35 = arith.constant 0.176776692 : f32
    %95 = vector.broadcast %cst_35 : f32 to vector<32x32xf32>
    %96 = arith.mulf %94, %95 : vector<32x32xf32>
    %97 = arith.addf %96, %30 : vector<32x32xf32>
    %cst_36 = arith.constant dense<0xFF800000> : vector<32xf32>
    %98 = vector.multi_reduction <maximumf>, %97, %cst_36 [1] : vector<32x32xf32> to vector<32xf32>
    %99 = vector.shape_cast %98 : vector<32xf32> to vector<32x1xf32>
    %100 = vector.broadcast %99 : vector<32x1xf32> to vector<32x32xf32>
    %101 = arith.subf %97, %100 : vector<32x32xf32>
    %102 = math.exp %101 : vector<32x32xf32>
    %cst_37 = arith.constant dense<0.000000e+00> : vector<32xf32>
    %103 = vector.multi_reduction <add>, %102, %cst_37 [1] : vector<32x32xf32> to vector<32xf32>
    %104 = vector.shape_cast %103 : vector<32xf32> to vector<32x1xf32>
    %105 = tpu.reciprocal %104 {approx = true} : vector<32x1xf32> -> vector<32x1xf32>
    %106 = vector.broadcast %105 : vector<32x1xf32> to vector<32x32xf32>
    %107 = arith.mulf %102, %106 : vector<32x32xf32>
    %108 = arith.truncf %107 : vector<32x32xf32> to vector<32x32xbf16>
    %cst_38 = arith.constant dense<0.000000e+00> : vector<32x32xf32>
    %109 = tpu.matmul %108, %93, %cst_38 {dimension_numbers = #tpu.dot_dimension_numbers<[1], [0], [0], [1], [0, 0, 1, 1], [], []>} : vector<32x32xbf16>, vector<32x32xbf16>, vector<32x32xf32> -> vector<32x32xf32>
    %110 = vector.extract_strided_slice %41 {offsets = [0, 96], sizes = [32, 32], strides = [1, 1]} : vector<32x128xf32> to vector<32x32xf32>
    %111 = arith.truncf %110 : vector<32x32xf32> to vector<32x32xbf16>
    %112 = vector.extract_strided_slice %42 {offsets = [0, 96], sizes = [32, 32], strides = [1, 1]} : vector<32x128xf32> to vector<32x32xf32>
    %113 = arith.truncf %112 : vector<32x32xf32> to vector<32x32xbf16>
    %114 = vector.extract_strided_slice %43 {offsets = [0, 96], sizes = [32, 32], strides = [1, 1]} : vector<32x128xf32> to vector<32x32xf32>
    %115 = arith.truncf %114 : vector<32x32xf32> to vector<32x32xbf16>
    %cst_39 = arith.constant dense<0.000000e+00> : vector<32x32xf32>
    %116 = tpu.matmul %111, %113, %cst_39 {dimension_numbers = #tpu.dot_dimension_numbers<[1], [1], [0], [0], [0, 0, 1, 0], [], []>} : vector<32x32xbf16>, vector<32x32xbf16>, vector<32x32xf32> -> vector<32x32xf32>
    %cst_40 = arith.constant 0.176776692 : f32
    %117 = vector.broadcast %cst_40 : f32 to vector<32x32xf32>
    %118 = arith.mulf %116, %117 : vector<32x32xf32>
    %119 = arith.addf %118, %30 : vector<32x32xf32>
    %cst_41 = arith.constant dense<0xFF800000> : vector<32xf32>
    %120 = vector.multi_reduction <maximumf>, %119, %cst_41 [1] : vector<32x32xf32> to vector<32xf32>
    %121 = vector.shape_cast %120 : vector<32xf32> to vector<32x1xf32>
    %122 = vector.broadcast %121 : vector<32x1xf32> to vector<32x32xf32>
    %123 = arith.subf %119, %122 : vector<32x32xf32>
    %124 = math.exp %123 : vector<32x32xf32>
    %cst_42 = arith.constant dense<0.000000e+00> : vector<32xf32>
    %125 = vector.multi_reduction <add>, %124, %cst_42 [1] : vector<32x32xf32> to vector<32xf32>
    %126 = vector.shape_cast %125 : vector<32xf32> to vector<32x1xf32>
    %127 = tpu.reciprocal %126 {approx = true} : vector<32x1xf32> -> vector<32x1xf32>
    %128 = vector.broadcast %127 : vector<32x1xf32> to vector<32x32xf32>
    %129 = arith.mulf %124, %128 : vector<32x32xf32>
    %130 = arith.truncf %129 : vector<32x32xf32> to vector<32x32xbf16>
    %cst_43 = arith.constant dense<0.000000e+00> : vector<32x32xf32>
    %131 = tpu.matmul %130, %115, %cst_43 {dimension_numbers = #tpu.dot_dimension_numbers<[1], [0], [0], [1], [0, 0, 1, 1], [], []>} : vector<32x32xbf16>, vector<32x32xbf16>, vector<32x32xf32> -> vector<32x32xf32>
    %132 = tpu.concatenate %65, %87, %109, %131 in 1 : vector<32x32xf32>, vector<32x32xf32>, vector<32x32xf32>, vector<32x32xf32> -> vector<32x128xf32>
    %133 = arith.truncf %132 : vector<32x128xf32> to vector<32x128xbf16>
    %cst_44 = arith.constant dense<0.000000e+00> : vector<32x128xf32>
    %134 = tpu.matmul %133, %34, %cst_44 {dimension_numbers = #tpu.dot_dimension_numbers<[1], [0], [0], [1], [0, 0, 1, 1], [], []>} : vector<32x128xbf16>, vector<128x128xbf16>, vector<32x128xf32> -> vector<32x128xf32>
    %c0_45 = arith.constant 0 : index
    %c0_46 = arith.constant 0 : index
    %c0_47 = arith.constant 0 : index
    %135 = vector.load %arg10[%c0_45, %c0_46, %c0_47] : memref<2x1x128xf32, #tpu.memory_space<vmem>>, vector<1x1x128xf32>
    %136 = vector.shape_cast %135 : vector<1x1x128xf32> to vector<1x128xf32>
    %137 = vector.broadcast %136 : vector<1x128xf32> to vector<32x128xf32>
    %138 = arith.addf %134, %137 : vector<32x128xf32>
    %139 = arith.addf %29, %138 : vector<32x128xf32>
    %c0_48 = arith.constant 0 : index
    %c0_49 = arith.constant 0 : index
    %c0_50 = arith.constant 0 : index
    %140 = vector.load %arg11[%c0_48, %c0_49, %c0_50] : memref<2x1x128xf32, #tpu.memory_space<vmem>>, vector<1x1x128xf32>
    %141 = vector.shape_cast %140 : vector<1x1x128xf32> to vector<1x128xf32>
    %c0_51 = arith.constant 0 : index
    %c0_52 = arith.constant 0 : index
    %c0_53 = arith.constant 0 : index
    %142 = vector.load %arg12[%c0_51, %c0_52, %c0_53] : memref<2x1x128xf32, #tpu.memory_space<vmem>>, vector<1x1x128xf32>
    %143 = vector.shape_cast %142 : vector<1x1x128xf32> to vector<1x128xf32>
    %cst_54 = arith.constant dense<0.000000e+00> : vector<32xf32>
    %144 = vector.multi_reduction <add>, %139, %cst_54 [1] : vector<32x128xf32> to vector<32xf32>
    %145 = vector.shape_cast %144 : vector<32xf32> to vector<32x1xf32>
    %cst_55 = arith.constant 1.280000e+02 : f32
    %146 = vector.broadcast %cst_55 : f32 to vector<32x1xf32>
    %147 = arith.divf %145, %146 : vector<32x1xf32>
    %148 = vector.broadcast %147 : vector<32x1xf32> to vector<32x128xf32>
    %149 = arith.subf %139, %148 : vector<32x128xf32>
    %150 = arith.mulf %149, %149 : vector<32x128xf32>
    %cst_56 = arith.constant dense<0.000000e+00> : vector<32xf32>
    %151 = vector.multi_reduction <add>, %150, %cst_56 [1] : vector<32x128xf32> to vector<32xf32>
    %152 = vector.shape_cast %151 : vector<32xf32> to vector<32x1xf32>
    %cst_57 = arith.constant 1.280000e+02 : f32
    %153 = vector.broadcast %cst_57 : f32 to vector<32x1xf32>
    %154 = arith.divf %152, %153 : vector<32x1xf32>
    %155 = vector.broadcast %147 : vector<32x1xf32> to vector<32x128xf32>
    %156 = arith.subf %139, %155 : vector<32x128xf32>
    %cst_58 = arith.constant 9.99999974E-6 : f32
    %157 = vector.broadcast %cst_58 : f32 to vector<32x1xf32>
    %158 = arith.addf %154, %157 : vector<32x1xf32>
    %159 = math.rsqrt %158 : vector<32x1xf32>
    %160 = vector.broadcast %159 : vector<32x1xf32> to vector<32x128xf32>
    %161 = arith.mulf %156, %160 : vector<32x128xf32>
    %162 = vector.broadcast %141 : vector<1x128xf32> to vector<32x128xf32>
    %163 = arith.mulf %161, %162 : vector<32x128xf32>
    %164 = vector.broadcast %143 : vector<1x128xf32> to vector<32x128xf32>
    %165 = arith.addf %163, %164 : vector<32x128xf32>
    %166 = arith.truncf %165 : vector<32x128xf32> to vector<32x128xbf16>
    %c0_59 = arith.constant 0 : index
    %c0_60 = arith.constant 0 : index
    %c0_61 = arith.constant 0 : index
    %167 = vector.load %arg13[%c0_59, %c0_60, %c0_61] : memref<2x128x2048xbf16, #tpu.memory_space<vmem>>, vector<1x128x2048xbf16>
    %168 = vector.shape_cast %167 : vector<1x128x2048xbf16> to vector<128x2048xbf16>
    %cst_62 = arith.constant dense<0.000000e+00> : vector<32x2048xf32>
    %169 = tpu.matmul %166, %168, %cst_62 {dimension_numbers = #tpu.dot_dimension_numbers<[1], [0], [0], [1], [0, 0, 1, 1], [], []>} : vector<32x128xbf16>, vector<128x2048xbf16>, vector<32x2048xf32> -> vector<32x2048xf32>
    %c0_63 = arith.constant 0 : index
    %c0_64 = arith.constant 0 : index
    %c0_65 = arith.constant 0 : index
    %170 = vector.load %arg14[%c0_63, %c0_64, %c0_65] : memref<2x1x2048xf32, #tpu.memory_space<vmem>>, vector<1x1x2048xf32>
    %171 = vector.shape_cast %170 : vector<1x1x2048xf32> to vector<1x2048xf32>
    %172 = vector.broadcast %171 : vector<1x2048xf32> to vector<32x2048xf32>
    %173 = arith.addf %169, %172 : vector<32x2048xf32>
    %cst_66 = arith.constant 0.000000e+00 : f32
    %174 = vector.broadcast %cst_66 : f32 to vector<32x2048xf32>
    %175 = arith.maximumf %173, %174 : vector<32x2048xf32>
    %176 = arith.truncf %175 : vector<32x2048xf32> to vector<32x2048xbf16>
    %c0_67 = arith.constant 0 : index
    %c0_68 = arith.constant 0 : index
    %c0_69 = arith.constant 0 : index
    %177 = vector.load %arg15[%c0_67, %c0_68, %c0_69] : memref<2x2048x128xbf16, #tpu.memory_space<vmem>>, vector<1x2048x128xbf16>
    %178 = vector.shape_cast %177 : vector<1x2048x128xbf16> to vector<2048x128xbf16>
    %cst_70 = arith.constant dense<0.000000e+00> : vector<32x128xf32>
    %179 = tpu.matmul %176, %178, %cst_70 {dimension_numbers = #tpu.dot_dimension_numbers<[1], [0], [0], [1], [0, 0, 1, 1], [], []>} : vector<32x2048xbf16>, vector<2048x128xbf16>, vector<32x128xf32> -> vector<32x128xf32>
    %c0_71 = arith.constant 0 : index
    %c0_72 = arith.constant 0 : index
    %c0_73 = arith.constant 0 : index
    %180 = vector.load %arg16[%c0_71, %c0_72, %c0_73] : memref<2x1x128xf32, #tpu.memory_space<vmem>>, vector<1x1x128xf32>
    %181 = vector.shape_cast %180 : vector<1x1x128xf32> to vector<1x128xf32>
    %182 = vector.broadcast %181 : vector<1x128xf32> to vector<32x128xf32>
    %183 = arith.addf %179, %182 : vector<32x128xf32>
    %184 = arith.addf %165, %183 : vector<32x128xf32>
    %c0_74 = arith.constant 0 : index
    %c0_75 = arith.constant 0 : index
    %c0_76 = arith.constant 0 : index
    %185 = vector.load %arg17[%c0_74, %c0_75, %c0_76] : memref<2x1x128xf32, #tpu.memory_space<vmem>>, vector<1x1x128xf32>
    %186 = vector.shape_cast %185 : vector<1x1x128xf32> to vector<1x128xf32>
    %c0_77 = arith.constant 0 : index
    %c0_78 = arith.constant 0 : index
    %c0_79 = arith.constant 0 : index
    %187 = vector.load %arg18[%c0_77, %c0_78, %c0_79] : memref<2x1x128xf32, #tpu.memory_space<vmem>>, vector<1x1x128xf32>
    %188 = vector.shape_cast %187 : vector<1x1x128xf32> to vector<1x128xf32>
    %cst_80 = arith.constant dense<0.000000e+00> : vector<32xf32>
    %189 = vector.multi_reduction <add>, %184, %cst_80 [1] : vector<32x128xf32> to vector<32xf32>
    %190 = vector.shape_cast %189 : vector<32xf32> to vector<32x1xf32>
    %cst_81 = arith.constant 1.280000e+02 : f32
    %191 = vector.broadcast %cst_81 : f32 to vector<32x1xf32>
    %192 = arith.divf %190, %191 : vector<32x1xf32>
    %193 = vector.broadcast %192 : vector<32x1xf32> to vector<32x128xf32>
    %194 = arith.subf %184, %193 : vector<32x128xf32>
    %195 = arith.mulf %194, %194 : vector<32x128xf32>
    %cst_82 = arith.constant dense<0.000000e+00> : vector<32xf32>
    %196 = vector.multi_reduction <add>, %195, %cst_82 [1] : vector<32x128xf32> to vector<32xf32>
    %197 = vector.shape_cast %196 : vector<32xf32> to vector<32x1xf32>
    %cst_83 = arith.constant 1.280000e+02 : f32
    %198 = vector.broadcast %cst_83 : f32 to vector<32x1xf32>
    %199 = arith.divf %197, %198 : vector<32x1xf32>
    %200 = vector.broadcast %192 : vector<32x1xf32> to vector<32x128xf32>
    %201 = arith.subf %184, %200 : vector<32x128xf32>
    %cst_84 = arith.constant 9.99999974E-6 : f32
    %202 = vector.broadcast %cst_84 : f32 to vector<32x1xf32>
    %203 = arith.addf %199, %202 : vector<32x1xf32>
    %204 = math.rsqrt %203 : vector<32x1xf32>
    %205 = vector.broadcast %204 : vector<32x1xf32> to vector<32x128xf32>
    %206 = arith.mulf %201, %205 : vector<32x128xf32>
    %207 = vector.broadcast %186 : vector<1x128xf32> to vector<32x128xf32>
    %208 = arith.mulf %206, %207 : vector<32x128xf32>
    %209 = vector.broadcast %188 : vector<1x128xf32> to vector<32x128xf32>
    %210 = arith.addf %208, %209 : vector<32x128xf32>
    %c1 = arith.constant 1 : index
    %c0_85 = arith.constant 0 : index
    %c0_86 = arith.constant 0 : index
    %211 = vector.load %arg7[%c1, %c0_85, %c0_86] : memref<2x128x384xbf16, #tpu.memory_space<vmem>>, vector<1x128x384xbf16>
    %212 = vector.shape_cast %211 : vector<1x128x384xbf16> to vector<128x384xbf16>
    %c1_87 = arith.constant 1 : index
    %c0_88 = arith.constant 0 : index
    %c0_89 = arith.constant 0 : index
    %213 = vector.load %arg9[%c1_87, %c0_88, %c0_89] : memref<2x128x128xbf16, #tpu.memory_space<vmem>>, vector<1x128x128xbf16>
    %214 = vector.shape_cast %213 : vector<1x128x128xbf16> to vector<128x128xbf16>
    %215 = arith.truncf %210 : vector<32x128xf32> to vector<32x128xbf16>
    %cst_90 = arith.constant dense<0.000000e+00> : vector<32x384xf32>
    %216 = tpu.matmul %215, %212, %cst_90 {dimension_numbers = #tpu.dot_dimension_numbers<[1], [0], [0], [1], [0, 0, 1, 1], [], []>} : vector<32x128xbf16>, vector<128x384xbf16>, vector<32x384xf32> -> vector<32x384xf32>
    %c1_91 = arith.constant 1 : index
    %c0_92 = arith.constant 0 : index
    %c0_93 = arith.constant 0 : index
    %217 = vector.load %arg8[%c1_91, %c0_92, %c0_93] : memref<2x1x384xf32, #tpu.memory_space<vmem>>, vector<1x1x384xf32>
    %218 = vector.shape_cast %217 : vector<1x1x384xf32> to vector<1x384xf32>
    %219 = vector.broadcast %218 : vector<1x384xf32> to vector<32x384xf32>
    %220 = arith.addf %216, %219 : vector<32x384xf32>
    %221 = vector.extract_strided_slice %220 {offsets = [0, 0], sizes = [32, 128], strides = [1, 1]} : vector<32x384xf32> to vector<32x128xf32>
    %222 = vector.extract_strided_slice %220 {offsets = [0, 128], sizes = [32, 128], strides = [1, 1]} : vector<32x384xf32> to vector<32x128xf32>
    %223 = vector.extract_strided_slice %220 {offsets = [0, 256], sizes = [32, 128], strides = [1, 1]} : vector<32x384xf32> to vector<32x128xf32>
    %224 = vector.extract_strided_slice %221 {offsets = [0, 0], sizes = [32, 32], strides = [1, 1]} : vector<32x128xf32> to vector<32x32xf32>
    %225 = arith.truncf %224 : vector<32x32xf32> to vector<32x32xbf16>
    %226 = vector.extract_strided_slice %222 {offsets = [0, 0], sizes = [32, 32], strides = [1, 1]} : vector<32x128xf32> to vector<32x32xf32>
    %227 = arith.truncf %226 : vector<32x32xf32> to vector<32x32xbf16>
    %228 = vector.extract_strided_slice %223 {offsets = [0, 0], sizes = [32, 32], strides = [1, 1]} : vector<32x128xf32> to vector<32x32xf32>
    %229 = arith.truncf %228 : vector<32x32xf32> to vector<32x32xbf16>
    %cst_94 = arith.constant dense<0.000000e+00> : vector<32x32xf32>
    %230 = tpu.matmul %225, %227, %cst_94 {dimension_numbers = #tpu.dot_dimension_numbers<[1], [1], [0], [0], [0, 0, 1, 0], [], []>} : vector<32x32xbf16>, vector<32x32xbf16>, vector<32x32xf32> -> vector<32x32xf32>
    %cst_95 = arith.constant 0.176776692 : f32
    %231 = vector.broadcast %cst_95 : f32 to vector<32x32xf32>
    %232 = arith.mulf %230, %231 : vector<32x32xf32>
    %233 = arith.addf %232, %30 : vector<32x32xf32>
    %cst_96 = arith.constant dense<0xFF800000> : vector<32xf32>
    %234 = vector.multi_reduction <maximumf>, %233, %cst_96 [1] : vector<32x32xf32> to vector<32xf32>
    %235 = vector.shape_cast %234 : vector<32xf32> to vector<32x1xf32>
    %236 = vector.broadcast %235 : vector<32x1xf32> to vector<32x32xf32>
    %237 = arith.subf %233, %236 : vector<32x32xf32>
    %238 = math.exp %237 : vector<32x32xf32>
    %cst_97 = arith.constant dense<0.000000e+00> : vector<32xf32>
    %239 = vector.multi_reduction <add>, %238, %cst_97 [1] : vector<32x32xf32> to vector<32xf32>
    %240 = vector.shape_cast %239 : vector<32xf32> to vector<32x1xf32>
    %241 = tpu.reciprocal %240 {approx = true} : vector<32x1xf32> -> vector<32x1xf32>
    %242 = vector.broadcast %241 : vector<32x1xf32> to vector<32x32xf32>
    %243 = arith.mulf %238, %242 : vector<32x32xf32>
    %244 = arith.truncf %243 : vector<32x32xf32> to vector<32x32xbf16>
    %cst_98 = arith.constant dense<0.000000e+00> : vector<32x32xf32>
    %245 = tpu.matmul %244, %229, %cst_98 {dimension_numbers = #tpu.dot_dimension_numbers<[1], [0], [0], [1], [0, 0, 1, 1], [], []>} : vector<32x32xbf16>, vector<32x32xbf16>, vector<32x32xf32> -> vector<32x32xf32>
    %246 = vector.extract_strided_slice %221 {offsets = [0, 32], sizes = [32, 32], strides = [1, 1]} : vector<32x128xf32> to vector<32x32xf32>
    %247 = arith.truncf %246 : vector<32x32xf32> to vector<32x32xbf16>
    %248 = vector.extract_strided_slice %222 {offsets = [0, 32], sizes = [32, 32], strides = [1, 1]} : vector<32x128xf32> to vector<32x32xf32>
    %249 = arith.truncf %248 : vector<32x32xf32> to vector<32x32xbf16>
    %250 = vector.extract_strided_slice %223 {offsets = [0, 32], sizes = [32, 32], strides = [1, 1]} : vector<32x128xf32> to vector<32x32xf32>
    %251 = arith.truncf %250 : vector<32x32xf32> to vector<32x32xbf16>
    %cst_99 = arith.constant dense<0.000000e+00> : vector<32x32xf32>
    %252 = tpu.matmul %247, %249, %cst_99 {dimension_numbers = #tpu.dot_dimension_numbers<[1], [1], [0], [0], [0, 0, 1, 0], [], []>} : vector<32x32xbf16>, vector<32x32xbf16>, vector<32x32xf32> -> vector<32x32xf32>
    %cst_100 = arith.constant 0.176776692 : f32
    %253 = vector.broadcast %cst_100 : f32 to vector<32x32xf32>
    %254 = arith.mulf %252, %253 : vector<32x32xf32>
    %255 = arith.addf %254, %30 : vector<32x32xf32>
    %cst_101 = arith.constant dense<0xFF800000> : vector<32xf32>
    %256 = vector.multi_reduction <maximumf>, %255, %cst_101 [1] : vector<32x32xf32> to vector<32xf32>
    %257 = vector.shape_cast %256 : vector<32xf32> to vector<32x1xf32>
    %258 = vector.broadcast %257 : vector<32x1xf32> to vector<32x32xf32>
    %259 = arith.subf %255, %258 : vector<32x32xf32>
    %260 = math.exp %259 : vector<32x32xf32>
    %cst_102 = arith.constant dense<0.000000e+00> : vector<32xf32>
    %261 = vector.multi_reduction <add>, %260, %cst_102 [1] : vector<32x32xf32> to vector<32xf32>
    %262 = vector.shape_cast %261 : vector<32xf32> to vector<32x1xf32>
    %263 = tpu.reciprocal %262 {approx = true} : vector<32x1xf32> -> vector<32x1xf32>
    %264 = vector.broadcast %263 : vector<32x1xf32> to vector<32x32xf32>
    %265 = arith.mulf %260, %264 : vector<32x32xf32>
    %266 = arith.truncf %265 : vector<32x32xf32> to vector<32x32xbf16>
    %cst_103 = arith.constant dense<0.000000e+00> : vector<32x32xf32>
    %267 = tpu.matmul %266, %251, %cst_103 {dimension_numbers = #tpu.dot_dimension_numbers<[1], [0], [0], [1], [0, 0, 1, 1], [], []>} : vector<32x32xbf16>, vector<32x32xbf16>, vector<32x32xf32> -> vector<32x32xf32>
    %268 = vector.extract_strided_slice %221 {offsets = [0, 64], sizes = [32, 32], strides = [1, 1]} : vector<32x128xf32> to vector<32x32xf32>
    %269 = arith.truncf %268 : vector<32x32xf32> to vector<32x32xbf16>
    %270 = vector.extract_strided_slice %222 {offsets = [0, 64], sizes = [32, 32], strides = [1, 1]} : vector<32x128xf32> to vector<32x32xf32>
    %271 = arith.truncf %270 : vector<32x32xf32> to vector<32x32xbf16>
    %272 = vector.extract_strided_slice %223 {offsets = [0, 64], sizes = [32, 32], strides = [1, 1]} : vector<32x128xf32> to vector<32x32xf32>
    %273 = arith.truncf %272 : vector<32x32xf32> to vector<32x32xbf16>
    %cst_104 = arith.constant dense<0.000000e+00> : vector<32x32xf32>
    %274 = tpu.matmul %269, %271, %cst_104 {dimension_numbers = #tpu.dot_dimension_numbers<[1], [1], [0], [0], [0, 0, 1, 0], [], []>} : vector<32x32xbf16>, vector<32x32xbf16>, vector<32x32xf32> -> vector<32x32xf32>
    %cst_105 = arith.constant 0.176776692 : f32
    %275 = vector.broadcast %cst_105 : f32 to vector<32x32xf32>
    %276 = arith.mulf %274, %275 : vector<32x32xf32>
    %277 = arith.addf %276, %30 : vector<32x32xf32>
    %cst_106 = arith.constant dense<0xFF800000> : vector<32xf32>
    %278 = vector.multi_reduction <maximumf>, %277, %cst_106 [1] : vector<32x32xf32> to vector<32xf32>
    %279 = vector.shape_cast %278 : vector<32xf32> to vector<32x1xf32>
    %280 = vector.broadcast %279 : vector<32x1xf32> to vector<32x32xf32>
    %281 = arith.subf %277, %280 : vector<32x32xf32>
    %282 = math.exp %281 : vector<32x32xf32>
    %cst_107 = arith.constant dense<0.000000e+00> : vector<32xf32>
    %283 = vector.multi_reduction <add>, %282, %cst_107 [1] : vector<32x32xf32> to vector<32xf32>
    %284 = vector.shape_cast %283 : vector<32xf32> to vector<32x1xf32>
    %285 = tpu.reciprocal %284 {approx = true} : vector<32x1xf32> -> vector<32x1xf32>
    %286 = vector.broadcast %285 : vector<32x1xf32> to vector<32x32xf32>
    %287 = arith.mulf %282, %286 : vector<32x32xf32>
    %288 = arith.truncf %287 : vector<32x32xf32> to vector<32x32xbf16>
    %cst_108 = arith.constant dense<0.000000e+00> : vector<32x32xf32>
    %289 = tpu.matmul %288, %273, %cst_108 {dimension_numbers = #tpu.dot_dimension_numbers<[1], [0], [0], [1], [0, 0, 1, 1], [], []>} : vector<32x32xbf16>, vector<32x32xbf16>, vector<32x32xf32> -> vector<32x32xf32>
    %290 = vector.extract_strided_slice %221 {offsets = [0, 96], sizes = [32, 32], strides = [1, 1]} : vector<32x128xf32> to vector<32x32xf32>
    %291 = arith.truncf %290 : vector<32x32xf32> to vector<32x32xbf16>
    %292 = vector.extract_strided_slice %222 {offsets = [0, 96], sizes = [32, 32], strides = [1, 1]} : vector<32x128xf32> to vector<32x32xf32>
    %293 = arith.truncf %292 : vector<32x32xf32> to vector<32x32xbf16>
    %294 = vector.extract_strided_slice %223 {offsets = [0, 96], sizes = [32, 32], strides = [1, 1]} : vector<32x128xf32> to vector<32x32xf32>
    %295 = arith.truncf %294 : vector<32x32xf32> to vector<32x32xbf16>
    %cst_109 = arith.constant dense<0.000000e+00> : vector<32x32xf32>
    %296 = tpu.matmul %291, %293, %cst_109 {dimension_numbers = #tpu.dot_dimension_numbers<[1], [1], [0], [0], [0, 0, 1, 0], [], []>} : vector<32x32xbf16>, vector<32x32xbf16>, vector<32x32xf32> -> vector<32x32xf32>
    %cst_110 = arith.constant 0.176776692 : f32
    %297 = vector.broadcast %cst_110 : f32 to vector<32x32xf32>
    %298 = arith.mulf %296, %297 : vector<32x32xf32>
    %299 = arith.addf %298, %30 : vector<32x32xf32>
    %cst_111 = arith.constant dense<0xFF800000> : vector<32xf32>
    %300 = vector.multi_reduction <maximumf>, %299, %cst_111 [1] : vector<32x32xf32> to vector<32xf32>
    %301 = vector.shape_cast %300 : vector<32xf32> to vector<32x1xf32>
    %302 = vector.broadcast %301 : vector<32x1xf32> to vector<32x32xf32>
    %303 = arith.subf %299, %302 : vector<32x32xf32>
    %304 = math.exp %303 : vector<32x32xf32>
    %cst_112 = arith.constant dense<0.000000e+00> : vector<32xf32>
    %305 = vector.multi_reduction <add>, %304, %cst_112 [1] : vector<32x32xf32> to vector<32xf32>
    %306 = vector.shape_cast %305 : vector<32xf32> to vector<32x1xf32>
    %307 = tpu.reciprocal %306 {approx = true} : vector<32x1xf32> -> vector<32x1xf32>
    %308 = vector.broadcast %307 : vector<32x1xf32> to vector<32x32xf32>
    %309 = arith.mulf %304, %308 : vector<32x32xf32>
    %310 = arith.truncf %309 : vector<32x32xf32> to vector<32x32xbf16>
    %cst_113 = arith.constant dense<0.000000e+00> : vector<32x32xf32>
    %311 = tpu.matmul %310, %295, %cst_113 {dimension_numbers = #tpu.dot_dimension_numbers<[1], [0], [0], [1], [0, 0, 1, 1], [], []>} : vector<32x32xbf16>, vector<32x32xbf16>, vector<32x32xf32> -> vector<32x32xf32>
    %312 = tpu.concatenate %245, %267, %289, %311 in 1 : vector<32x32xf32>, vector<32x32xf32>, vector<32x32xf32>, vector<32x32xf32> -> vector<32x128xf32>
    %313 = arith.truncf %312 : vector<32x128xf32> to vector<32x128xbf16>
    %cst_114 = arith.constant dense<0.000000e+00> : vector<32x128xf32>
    %314 = tpu.matmul %313, %214, %cst_114 {dimension_numbers = #tpu.dot_dimension_numbers<[1], [0], [0], [1], [0, 0, 1, 1], [], []>} : vector<32x128xbf16>, vector<128x128xbf16>, vector<32x128xf32> -> vector<32x128xf32>
    %c1_115 = arith.constant 1 : index
    %c0_116 = arith.constant 0 : index
    %c0_117 = arith.constant 0 : index
    %315 = vector.load %arg10[%c1_115, %c0_116, %c0_117] : memref<2x1x128xf32, #tpu.memory_space<vmem>>, vector<1x1x128xf32>
    %316 = vector.shape_cast %315 : vector<1x1x128xf32> to vector<1x128xf32>
    %317 = vector.broadcast %316 : vector<1x128xf32> to vector<32x128xf32>
    %318 = arith.addf %314, %317 : vector<32x128xf32>
    %319 = arith.addf %210, %318 : vector<32x128xf32>
    %c1_118 = arith.constant 1 : index
    %c0_119 = arith.constant 0 : index
    %c0_120 = arith.constant 0 : index
    %320 = vector.load %arg11[%c1_118, %c0_119, %c0_120] : memref<2x1x128xf32, #tpu.memory_space<vmem>>, vector<1x1x128xf32>
    %321 = vector.shape_cast %320 : vector<1x1x128xf32> to vector<1x128xf32>
    %c1_121 = arith.constant 1 : index
    %c0_122 = arith.constant 0 : index
    %c0_123 = arith.constant 0 : index
    %322 = vector.load %arg12[%c1_121, %c0_122, %c0_123] : memref<2x1x128xf32, #tpu.memory_space<vmem>>, vector<1x1x128xf32>
    %323 = vector.shape_cast %322 : vector<1x1x128xf32> to vector<1x128xf32>
    %cst_124 = arith.constant dense<0.000000e+00> : vector<32xf32>
    %324 = vector.multi_reduction <add>, %319, %cst_124 [1] : vector<32x128xf32> to vector<32xf32>
    %325 = vector.shape_cast %324 : vector<32xf32> to vector<32x1xf32>
    %cst_125 = arith.constant 1.280000e+02 : f32
    %326 = vector.broadcast %cst_125 : f32 to vector<32x1xf32>
    %327 = arith.divf %325, %326 : vector<32x1xf32>
    %328 = vector.broadcast %327 : vector<32x1xf32> to vector<32x128xf32>
    %329 = arith.subf %319, %328 : vector<32x128xf32>
    %330 = arith.mulf %329, %329 : vector<32x128xf32>
    %cst_126 = arith.constant dense<0.000000e+00> : vector<32xf32>
    %331 = vector.multi_reduction <add>, %330, %cst_126 [1] : vector<32x128xf32> to vector<32xf32>
    %332 = vector.shape_cast %331 : vector<32xf32> to vector<32x1xf32>
    %cst_127 = arith.constant 1.280000e+02 : f32
    %333 = vector.broadcast %cst_127 : f32 to vector<32x1xf32>
    %334 = arith.divf %332, %333 : vector<32x1xf32>
    %335 = vector.broadcast %327 : vector<32x1xf32> to vector<32x128xf32>
    %336 = arith.subf %319, %335 : vector<32x128xf32>
    %cst_128 = arith.constant 9.99999974E-6 : f32
    %337 = vector.broadcast %cst_128 : f32 to vector<32x1xf32>
    %338 = arith.addf %334, %337 : vector<32x1xf32>
    %339 = math.rsqrt %338 : vector<32x1xf32>
    %340 = vector.broadcast %339 : vector<32x1xf32> to vector<32x128xf32>
    %341 = arith.mulf %336, %340 : vector<32x128xf32>
    %342 = vector.broadcast %321 : vector<1x128xf32> to vector<32x128xf32>
    %343 = arith.mulf %341, %342 : vector<32x128xf32>
    %344 = vector.broadcast %323 : vector<1x128xf32> to vector<32x128xf32>
    %345 = arith.addf %343, %344 : vector<32x128xf32>
    %346 = arith.truncf %345 : vector<32x128xf32> to vector<32x128xbf16>
    %c1_129 = arith.constant 1 : index
    %c0_130 = arith.constant 0 : index
    %c0_131 = arith.constant 0 : index
    %347 = vector.load %arg13[%c1_129, %c0_130, %c0_131] : memref<2x128x2048xbf16, #tpu.memory_space<vmem>>, vector<1x128x2048xbf16>
    %348 = vector.shape_cast %347 : vector<1x128x2048xbf16> to vector<128x2048xbf16>
    %cst_132 = arith.constant dense<0.000000e+00> : vector<32x2048xf32>
    %349 = tpu.matmul %346, %348, %cst_132 {dimension_numbers = #tpu.dot_dimension_numbers<[1], [0], [0], [1], [0, 0, 1, 1], [], []>} : vector<32x128xbf16>, vector<128x2048xbf16>, vector<32x2048xf32> -> vector<32x2048xf32>
    %c1_133 = arith.constant 1 : index
    %c0_134 = arith.constant 0 : index
    %c0_135 = arith.constant 0 : index
    %350 = vector.load %arg14[%c1_133, %c0_134, %c0_135] : memref<2x1x2048xf32, #tpu.memory_space<vmem>>, vector<1x1x2048xf32>
    %351 = vector.shape_cast %350 : vector<1x1x2048xf32> to vector<1x2048xf32>
    %352 = vector.broadcast %351 : vector<1x2048xf32> to vector<32x2048xf32>
    %353 = arith.addf %349, %352 : vector<32x2048xf32>
    %cst_136 = arith.constant 0.000000e+00 : f32
    %354 = vector.broadcast %cst_136 : f32 to vector<32x2048xf32>
    %355 = arith.maximumf %353, %354 : vector<32x2048xf32>
    %356 = arith.truncf %355 : vector<32x2048xf32> to vector<32x2048xbf16>
    %c1_137 = arith.constant 1 : index
    %c0_138 = arith.constant 0 : index
    %c0_139 = arith.constant 0 : index
    %357 = vector.load %arg15[%c1_137, %c0_138, %c0_139] : memref<2x2048x128xbf16, #tpu.memory_space<vmem>>, vector<1x2048x128xbf16>
    %358 = vector.shape_cast %357 : vector<1x2048x128xbf16> to vector<2048x128xbf16>
    %cst_140 = arith.constant dense<0.000000e+00> : vector<32x128xf32>
    %359 = tpu.matmul %356, %358, %cst_140 {dimension_numbers = #tpu.dot_dimension_numbers<[1], [0], [0], [1], [0, 0, 1, 1], [], []>} : vector<32x2048xbf16>, vector<2048x128xbf16>, vector<32x128xf32> -> vector<32x128xf32>
    %c1_141 = arith.constant 1 : index
    %c0_142 = arith.constant 0 : index
    %c0_143 = arith.constant 0 : index
    %360 = vector.load %arg16[%c1_141, %c0_142, %c0_143] : memref<2x1x128xf32, #tpu.memory_space<vmem>>, vector<1x1x128xf32>
    %361 = vector.shape_cast %360 : vector<1x1x128xf32> to vector<1x128xf32>
    %362 = vector.broadcast %361 : vector<1x128xf32> to vector<32x128xf32>
    %363 = arith.addf %359, %362 : vector<32x128xf32>
    %364 = arith.addf %345, %363 : vector<32x128xf32>
    %c1_144 = arith.constant 1 : index
    %c0_145 = arith.constant 0 : index
    %c0_146 = arith.constant 0 : index
    %365 = vector.load %arg17[%c1_144, %c0_145, %c0_146] : memref<2x1x128xf32, #tpu.memory_space<vmem>>, vector<1x1x128xf32>
    %366 = vector.shape_cast %365 : vector<1x1x128xf32> to vector<1x128xf32>
    %c1_147 = arith.constant 1 : index
    %c0_148 = arith.constant 0 : index
    %c0_149 = arith.constant 0 : index
    %367 = vector.load %arg18[%c1_147, %c0_148, %c0_149] : memref<2x1x128xf32, #tpu.memory_space<vmem>>, vector<1x1x128xf32>
    %368 = vector.shape_cast %367 : vector<1x1x128xf32> to vector<1x128xf32>
    %cst_150 = arith.constant dense<0.000000e+00> : vector<32xf32>
    %369 = vector.multi_reduction <add>, %364, %cst_150 [1] : vector<32x128xf32> to vector<32xf32>
    %370 = vector.shape_cast %369 : vector<32xf32> to vector<32x1xf32>
    %cst_151 = arith.constant 1.280000e+02 : f32
    %371 = vector.broadcast %cst_151 : f32 to vector<32x1xf32>
    %372 = arith.divf %370, %371 : vector<32x1xf32>
    %373 = vector.broadcast %372 : vector<32x1xf32> to vector<32x128xf32>
    %374 = arith.subf %364, %373 : vector<32x128xf32>
    %375 = arith.mulf %374, %374 : vector<32x128xf32>
    %cst_152 = arith.constant dense<0.000000e+00> : vector<32xf32>
    %376 = vector.multi_reduction <add>, %375, %cst_152 [1] : vector<32x128xf32> to vector<32xf32>
    %377 = vector.shape_cast %376 : vector<32xf32> to vector<32x1xf32>
    %cst_153 = arith.constant 1.280000e+02 : f32
    %378 = vector.broadcast %cst_153 : f32 to vector<32x1xf32>
    %379 = arith.divf %377, %378 : vector<32x1xf32>
    %380 = vector.broadcast %372 : vector<32x1xf32> to vector<32x128xf32>
    %381 = arith.subf %364, %380 : vector<32x128xf32>
    %cst_154 = arith.constant 9.99999974E-6 : f32
    %382 = vector.broadcast %cst_154 : f32 to vector<32x1xf32>
    %383 = arith.addf %379, %382 : vector<32x1xf32>
    %384 = math.rsqrt %383 : vector<32x1xf32>
    %385 = vector.broadcast %384 : vector<32x1xf32> to vector<32x128xf32>
    %386 = arith.mulf %381, %385 : vector<32x128xf32>
    %387 = vector.broadcast %366 : vector<1x128xf32> to vector<32x128xf32>
    %388 = arith.mulf %386, %387 : vector<32x128xf32>
    %389 = vector.broadcast %368 : vector<1x128xf32> to vector<32x128xf32>
    %390 = arith.addf %388, %389 : vector<32x128xf32>
    %391 = vector.shape_cast %390 : vector<32x128xf32> to vector<4x8x128xf32>
    %cst_155 = arith.constant dense<0.000000e+00> : vector<4x128xf32>
    %392 = vector.multi_reduction <add>, %391, %cst_155 [1] : vector<4x8x128xf32> to vector<4x128xf32>
    %cst_156 = arith.constant 8.000000e+00 : f32
    %393 = vector.broadcast %cst_156 : f32 to vector<4x128xf32>
    %394 = arith.divf %392, %393 : vector<4x128xf32>
    %c0_157 = arith.constant 0 : index
    %c0_158 = arith.constant 0 : index
    %395 = vector.load %arg19[%c0_157, %c0_158] : memref<4x128xf32, #tpu.memory_space<vmem>>, vector<4x128xf32>
    tpu.vector_store %arg19[%c0_157, %c0_158], %394 {strides = array<i32>} : memref<4x128xf32, #tpu.memory_space<vmem>>, vector<4x128xf32>,
    return
  }
  func.func @transform_0(%arg0: i32) -> (i32, i32, i32) {
    %c0_i32 = arith.constant 0 : i32
    %c0_i32_0 = arith.constant 0 : i32
    %c0_i32_1 = arith.constant 0 : i32
    return %arg0, %c0_i32, %c0_i32_0 : i32, i32, i32
  }
  func.func @transform_1(%arg0: i32) -> (i32, i32) {
    %c0_i32 = arith.constant 0 : i32
    %c0_i32_0 = arith.constant 0 : i32
    %c0_i32_1 = arith.constant 0 : i32
    return %c0_i32, %c0_i32_0 : i32, i32
  }
  func.func @transform_2(%arg0: i32) -> (i32, i32) {
    %c0_i32 = arith.constant 0 : i32
    %c0_i32_0 = arith.constant 0 : i32
    %c0_i32_1 = arith.constant 0 : i32
    return %c0_i32, %c0_i32_0 : i32, i32
  }
  func.func @transform_3(%arg0: i32) -> (i32, i32) {
    %c0_i32 = arith.constant 0 : i32
    %c0_i32_0 = arith.constant 0 : i32
    %c0_i32_1 = arith.constant 0 : i32
    return %c0_i32, %c0_i32_0 : i32, i32
  }
  func.func @transform_4(%arg0: i32) -> (i32, i32) {
    %c0_i32 = arith.constant 0 : i32
    %c0_i32_0 = arith.constant 0 : i32
    %c0_i32_1 = arith.constant 0 : i32
    return %c0_i32, %c0_i32_0 : i32, i32
  }
  func.func @transform_5(%arg0: i32) -> (i32, i32) {
    %c0_i32 = arith.constant 0 : i32
    %c0_i32_0 = arith.constant 0 : i32
    %c0_i32_1 = arith.constant 0 : i32
    return %c0_i32, %c0_i32_0 : i32, i32
  }
  func.func @transform_6(%arg0: i32) -> (i32, i32, i32) {
    %c0_i32 = arith.constant 0 : i32
    %c0_i32_0 = arith.constant 0 : i32
    %c0_i32_1 = arith.constant 0 : i32
    %c0_i32_2 = arith.constant 0 : i32
    return %c0_i32, %c0_i32_0, %c0_i32_1 : i32, i32, i32
  }
  func.func @transform_7(%arg0: i32) -> (i32, i32, i32) {
    %c0_i32 = arith.constant 0 : i32
    %c0_i32_0 = arith.constant 0 : i32
    %c0_i32_1 = arith.constant 0 : i32
    %c0_i32_2 = arith.constant 0 : i32
    return %c0_i32, %c0_i32_0, %c0_i32_1 : i32, i32, i32
  }
  func.func @transform_8(%arg0: i32) -> (i32, i32, i32) {
    %c0_i32 = arith.constant 0 : i32
    %c0_i32_0 = arith.constant 0 : i32
    %c0_i32_1 = arith.constant 0 : i32
    %c0_i32_2 = arith.constant 0 : i32
    return %c0_i32, %c0_i32_0, %c0_i32_1 : i32, i32, i32
  }
  func.func @transform_9(%arg0: i32) -> (i32, i32, i32) {
    %c0_i32 = arith.constant 0 : i32
    %c0_i32_0 = arith.constant 0 : i32
    %c0_i32_1 = arith.constant 0 : i32
    %c0_i32_2 = arith.constant 0 : i32
    return %c0_i32, %c0_i32_0, %c0_i32_1 : i32, i32, i32
  }
  func.func @transform_10(%arg0: i32) -> (i32, i32, i32) {
    %c0_i32 = arith.constant 0 : i32
    %c0_i32_0 = arith.constant 0 : i32
    %c0_i32_1 = arith.constant 0 : i32
    %c0_i32_2 = arith.constant 0 : i32
    return %c0_i32, %c0_i32_0, %c0_i32_1 : i32, i32, i32
  }
  func.func @transform_11(%arg0: i32) -> (i32, i32, i32) {
    %c0_i32 = arith.constant 0 : i32
    %c0_i32_0 = arith.constant 0 : i32
    %c0_i32_1 = arith.constant 0 : i32
    %c0_i32_2 = arith.constant 0 : i32
    return %c0_i32, %c0_i32_0, %c0_i32_1 : i32, i32, i32
  }
  func.func @transform_12(%arg0: i32) -> (i32, i32, i32) {
    %c0_i32 = arith.constant 0 : i32
    %c0_i32_0 = arith.constant 0 : i32
    %c0_i32_1 = arith.constant 0 : i32
    %c0_i32_2 = arith.constant 0 : i32
    return %c0_i32, %c0_i32_0, %c0_i32_1 : i32, i32, i32
  }
  func.func @transform_13(%arg0: i32) -> (i32, i32, i32) {
    %c0_i32 = arith.constant 0 : i32
    %c0_i32_0 = arith.constant 0 : i32
    %c0_i32_1 = arith.constant 0 : i32
    %c0_i32_2 = arith.constant 0 : i32
    return %c0_i32, %c0_i32_0, %c0_i32_1 : i32, i32, i32
  }
  func.func @transform_14(%arg0: i32) -> (i32, i32, i32) {
    %c0_i32 = arith.constant 0 : i32
    %c0_i32_0 = arith.constant 0 : i32
    %c0_i32_1 = arith.constant 0 : i32
    %c0_i32_2 = arith.constant 0 : i32
    return %c0_i32, %c0_i32_0, %c0_i32_1 : i32, i32, i32
  }
  func.func @transform_15(%arg0: i32) -> (i32, i32, i32) {
    %c0_i32 = arith.constant 0 : i32
    %c0_i32_0 = arith.constant 0 : i32
    %c0_i32_1 = arith.constant 0 : i32
    %c0_i32_2 = arith.constant 0 : i32
    return %c0_i32, %c0_i32_0, %c0_i32_1 : i32, i32, i32
  }
  func.func @transform_16(%arg0: i32) -> (i32, i32, i32) {
    %c0_i32 = arith.constant 0 : i32
    %c0_i32_0 = arith.constant 0 : i32
    %c0_i32_1 = arith.constant 0 : i32
    %c0_i32_2 = arith.constant 0 : i32
    return %c0_i32, %c0_i32_0, %c0_i32_1 : i32, i32, i32
  }
  func.func @transform_17(%arg0: i32) -> (i32, i32, i32) {
    %c0_i32 = arith.constant 0 : i32
    %c0_i32_0 = arith.constant 0 : i32
    %c0_i32_1 = arith.constant 0 : i32
    %c0_i32_2 = arith.constant 0 : i32
    return %c0_i32, %c0_i32_0, %c0_i32_1 : i32, i32, i32
  }
  func.func @transform_18(%arg0: i32) -> (i32, i32) {
    %c0_i32 = arith.constant 0 : i32
    %c0_i32_0 = arith.constant 0 : i32
    return %arg0, %c0_i32 : i32, i32
  }
}

</mosaic_0001>

<llo_original>
// kernel: tpu_custom_call.1
$region0: #{tpu_custom_call.1}
  #allocation0 [shape = 'u32[]', space=smem, size = 0x4, offset = 0x4, fixed_abs, tag = 'smem constant byte address 0x4 - core index']
  #allocation1 [shape = 'u32[144,128]{1,0:T(1,128)}', space=vmem, size = 0x12000, scoped, tag = 'internal scratch']
  %s0 = inlined_call_operand.vmem [shape: f32[4,8,2], index: 0, kind: input, shape index: {}]
  %s1 = inlined_call_operand.vmem [shape: f32[32,32], index: 1, kind: input, shape index: {}]
  %s2 = inlined_call_operand.vmem [shape: f32[2,128], index: 2, kind: input, shape index: {}]
  %s3 = inlined_call_operand.hbm [shape: f32[1,128], index: 3, kind: input, shape index: {}]
  %s4 = inlined_call_operand.hbm [shape: bf16[128,128], index: 4, kind: input, shape index: {}]
  %s5 = inlined_call_operand.hbm [shape: f32[1,128], index: 5, kind: input, shape index: {}]
  %s6 = inlined_call_operand.hbm [shape: bf16[2,128,384], index: 6, kind: input, shape index: {}]
  %s7 = inlined_call_operand.vmem [shape: f32[2,1,384], index: 7, kind: input, shape index: {}]
  %s8 = inlined_call_operand.hbm [shape: bf16[2,128,128], index: 8, kind: input, shape index: {}]
  %s9 = inlined_call_operand.vmem [shape: f32[2,1,128], index: 9, kind: input, shape index: {}]
  %s10 = inlined_call_operand.vmem [shape: f32[2,1,128], index: 10, kind: input, shape index: {}]
  %s11 = inlined_call_operand.vmem [shape: f32[2,1,128], index: 11, kind: input, shape index: {}]
  %s12 = inlined_call_operand.hbm [shape: bf16[2,128,2048], index: 12, kind: input, shape index: {}]
  %s13 = inlined_call_operand.hbm [shape: f32[2,1,2048], index: 13, kind: input, shape index: {}]
  %s14 = inlined_call_operand.hbm [shape: bf16[2,2048,128], index: 14, kind: input, shape index: {}]
  %s15 = inlined_call_operand.vmem [shape: f32[2,1,128], index: 15, kind: input, shape index: {}]
  %s16 = inlined_call_operand.vmem [shape: f32[2,1,128], index: 16, kind: input, shape index: {}]
  %s17 = inlined_call_operand.vmem [shape: f32[2,1,128], index: 17, kind: input, shape index: {}]
  %s18 = inlined_call_operand.hbm [shape: f32[4,128], index: 18, kind: output, shape index: {}]
  %s19 = sld [smem:[#allocation0]]
  $region114: #{tpu_custom_call.1} parent=0
    _
  %s21 = ssub.s32 1, %s19
  %s22 = scalar_select 0, %s21, %s19
  $region1: #{tpu_custom_call.1} parent=0
    #allocation2 [shape = 'u8[512]{0}', space=vmem, size = 0x400, scoped, tag = 'input window, operand 3, single buffered']
    #allocation3 [shape = 's32[1]{0}', space=sflag, size = 0x4, scoped, tag = 'scoped memory for tpu_custom_call.1']
    #allocation4 [shape = 's32[1]{0}', space=sflag, size = 0x4, scoped, tag = 'scoped memory for tpu_custom_call.1']
    #allocation5 [shape = 'u8[32768]{0}', space=vmem, size = 0x8000, scoped, tag = 'input window, operand 4, single buffered']
    #allocation6 [shape = 's32[1]{0}', space=sflag, size = 0x4, scoped, tag = 'scoped memory for tpu_custom_call.1']
    #allocation7 [shape = 'u8[512]{0}', space=vmem, size = 0x400, scoped, tag = 'input window, operand 5, single buffered']
    #allocation8 [shape = 'u8[196608]{0}', space=vmem, size = 0x30000, scoped, tag = 'input window, operand 6, single buffered']
    #allocation9 [shape = 's32[1]{0}', space=sflag, size = 0x4, scoped, tag = 'scoped memory for tpu_custom_call.1']
    #allocation10 [shape = 'u8[65536]{0}', space=vmem, size = 0x10000, scoped, tag = 'input window, operand 8, single buffered']
    #allocation11 [shape = 'u8[1048576]{0}', space=vmem, size = 0x100000, scoped, tag = 'input window, operand 12, single buffered']
    #allocation12 [shape = 's32[1]{0}', space=sflag, size = 0x4, scoped, tag = 'scoped memory for tpu_custom_call.1']
    #allocation13 [shape = 'u8[16384]{0}', space=vmem, size = 0x4000, scoped, tag = 'input window, operand 13, single buffered']
    #allocation14 [shape = 'u8[1048576]{0}', space=vmem, size = 0x100000, scoped, tag = 'input window, operand 14, single buffered']
    #allocation15 [shape = 's32[1]{0}', space=sflag, size = 0x4, scoped, tag = 'scoped memory for tpu_custom_call.1']
    #allocation16 [shape = 'u8[2048]{0}', space=vmem, size = 0x800, scoped, tag = 'output window, operand 0, single buffered']
    %23 = vsyncpa [#allocation3], 0
    %24 = vsyncpa [#allocation6], 0
    %25 = vsyncpa [#allocation9], 0
    %26 = vsyncpa [#allocation12], 0
    %27 = vsyncpa [#allocation15], 0
    %28 = vsyncpa [#allocation4], 0
    // Predicated region
    $region2: #{tpu_custom_call.1} parent=1 // pred_check
      _
    $region3: #{tpu_custom_call.1} parent=1 // pred_check_branch
      %30 = sbr.rel (0) target = $region5
    $region4: #{tpu_custom_call.1} parent=1 // pred_region
      _
    $region5: #{tpu_custom_call.1} parent=1 // pred_fallthru
      _
    // Predicated region
    $region6: #{tpu_custom_call.1} parent=1 // pred_check
      _
    $region7: #{tpu_custom_call.1} parent=1 // pred_check_branch
      %32 = sbr.rel (0) target = $region9
    $region8: #{tpu_custom_call.1} parent=1 // pred_region
      _
    $region9: #{tpu_custom_call.1} parent=1 // pred_fallthru
      _
    // Predicated region
    $region10: #{tpu_custom_call.1} parent=1 // pred_check
      _
    $region11: #{tpu_custom_call.1} parent=1 // pred_check_branch
      %34 = sbr.rel (0) target = $region13
    $region12: #{tpu_custom_call.1} parent=1 // pred_region
      _
    $region13: #{tpu_custom_call.1} parent=1 // pred_fallthru
      _
    // Predicated region
    $region14: #{tpu_custom_call.1} parent=1 // pred_check
      _
    $region15: #{tpu_custom_call.1} parent=1 // pred_check_branch
      %36 = sbr.rel (0) target = $region17
    $region16: #{tpu_custom_call.1} parent=1 // pred_region
      %s38 = ssub.s32 16, 16
      %39 = vsyncadd [#allocation3], %s38
      %s41 = sshll.u32 [#allocation2], 4
      %s42 = int_to_ptr.vmem [resolvable:$true] %s41
      %44 = dma.hbm_to_vmem [thread:$0]  %s3, 16, %s42, [#allocation3]
    $region17: #{tpu_custom_call.1} parent=1 // pred_fallthru
      _
    // Predicated region
    $region18: #{tpu_custom_call.1} parent=1 // pred_check
      _
    $region19: #{tpu_custom_call.1} parent=1 // pred_check_branch
      %46 = sbr.rel (0) target = $region21
    $region20: #{tpu_custom_call.1} parent=1 // pred_region
      %s48 = ssub.s32 1024, 1024
      %49 = vsyncadd [#allocation6], %s48
      %s50 = sshll.u32 [#allocation5], 4
      %s51 = int_to_ptr.vmem [resolvable:$true] %s50
      %56 = dma.hbm_to_vmem [thread:$0]  %s4, 1024, %s51, [#allocation6], 64, 64, 4
    $region21: #{tpu_custom_call.1} parent=1 // pred_fallthru
      _
    // Predicated region
    $region22: #{tpu_custom_call.1} parent=1 // pred_check
      _
    $region23: #{tpu_custom_call.1} parent=1 // pred_check_branch
      %58 = sbr.rel (0) target = $region25
    $region24: #{tpu_custom_call.1} parent=1 // pred_region
      %s60 = ssub.s32 16, 16
      %61 = vsyncadd [#allocation6], %s60
      %s63 = sshll.u32 [#allocation7], 4
      %s64 = int_to_ptr.vmem [resolvable:$true] %s63
      %66 = dma.hbm_to_vmem [thread:$0]  %s5, 16, %s64, [#allocation6]
    $region25: #{tpu_custom_call.1} parent=1 // pred_fallthru
      _
    // Predicated region
    $region26: #{tpu_custom_call.1} parent=1 // pred_check
      _
    $region27: #{tpu_custom_call.1} parent=1 // pred_check_branch
      %68 = sbr.rel (0) target = $region29
    $region28: #{tpu_custom_call.1} parent=1 // pred_region
      %s70 = ssub.s32 6144, 6144
      %71 = vsyncadd [#allocation9], %s70
      %s72 = sshll.u32 [#allocation8], 4
      %s73 = int_to_ptr.vmem [resolvable:$true] %s72
      %78 = dma.hbm_to_vmem [thread:$0]  %s6, 6144, %s73, [#allocation9], 192, 192, 12
    $region29: #{tpu_custom_call.1} parent=1 // pred_fallthru
      _
    // Predicated region
    $region30: #{tpu_custom_call.1} parent=1 // pred_check
      _
    $region31: #{tpu_custom_call.1} parent=1 // pred_check_branch
      %80 = sbr.rel (0) target = $region33
    $region32: #{tpu_custom_call.1} parent=1 // pred_region
      _
    $region33: #{tpu_custom_call.1} parent=1 // pred_fallthru
      _
    // Predicated region
    $region34: #{tpu_custom_call.1} parent=1 // pred_check
      _
    $region35: #{tpu_custom_call.1} parent=1 // pred_check_branch
      %82 = sbr.rel (0) target = $region37
    $region36: #{tpu_custom_call.1} parent=1 // pred_region
      %s84 = ssub.s32 2048, 2048
      %85 = vsyncadd [#allocation9], %s84
      %s86 = sshll.u32 [#allocation10], 4
      %s87 = int_to_ptr.vmem [resolvable:$true] %s86
      %92 = dma.hbm_to_vmem [thread:$0]  %s8, 2048, %s87, [#allocation9], 64, 64, 4
    $region37: #{tpu_custom_call.1} parent=1 // pred_fallthru
      _
    // Predicated region
    $region38: #{tpu_custom_call.1} parent=1 // pred_check
      _
    $region39: #{tpu_custom_call.1} parent=1 // pred_check_branch
      %94 = sbr.rel (0) target = $region41
    $region40: #{tpu_custom_call.1} parent=1 // pred_region
      _
    $region41: #{tpu_custom_call.1} parent=1 // pred_fallthru
      _
    // Predicated region
    $region42: #{tpu_custom_call.1} parent=1 // pred_check
      _
    $region43: #{tpu_custom_call.1} parent=1 // pred_check_branch
      %96 = sbr.rel (0) target = $region45
    $region44: #{tpu_custom_call.1} parent=1 // pred_region
      _
    $region45: #{tpu_custom_call.1} parent=1 // pred_fallthru
      _
    // Predicated region
    $region46: #{tpu_custom_call.1} parent=1 // pred_check
      _
    $region47: #{tpu_custom_call.1} parent=1 // pred_check_branch
      %98 = sbr.rel (0) target = $region49
    $region48: #{tpu_custom_call.1} parent=1 // pred_region
      _
    $region49: #{tpu_custom_call.1} parent=1 // pred_fallthru
      _
    // Predicated region
    $region50: #{tpu_custom_call.1} parent=1 // pred_check
      _
    $region51: #{tpu_custom_call.1} parent=1 // pred_check_branch
      %100 = sbr.rel (0) target = $region53
    $region52: #{tpu_custom_call.1} parent=1 // pred_region
      %s102 = ssub.s32 32768, 32768
      %103 = vsyncadd [#allocation12], %s102
      %s104 = sshll.u32 [#allocation11], 4
      %s105 = int_to_ptr.vmem [resolvable:$true] %s104
      %110 = dma.hbm_to_vmem [thread:$0]  %s12, 32768, %s105, [#allocation12], 1024, 1024, 64
    $region53: #{tpu_custom_call.1} parent=1 // pred_fallthru
      _
    // Predicated region
    $region54: #{tpu_custom_call.1} parent=1 // pred_check
      _
    $region55: #{tpu_custom_call.1} parent=1 // pred_check_branch
      %112 = sbr.rel (0) target = $region57
    $region56: #{tpu_custom_call.1} parent=1 // pred_region
      %s114 = ssub.s32 512, 512
      %115 = vsyncadd [#allocation12], %s114
      %s116 = sshll.u32 [#allocation13], 4
      %s117 = int_to_ptr.vmem [resolvable:$true] %s116
      %122 = dma.hbm_to_vmem [thread:$0]  %s13, 512, %s117, [#allocation12], 256, 256, 16
    $region57: #{tpu_custom_call.1} parent=1 // pred_fallthru
      _
    // Predicated region
    $region58: #{tpu_custom_call.1} parent=1 // pred_check
      _
    $region59: #{tpu_custom_call.1} parent=1 // pred_check_branch
      %124 = sbr.rel (0) target = $region61
    $region60: #{tpu_custom_call.1} parent=1 // pred_region
      %s126 = ssub.s32 32768, 32768
      %127 = vsyncadd [#allocation15], %s126
      %s128 = sshll.u32 [#allocation14], 4
      %s129 = int_to_ptr.vmem [resolvable:$true] %s128
      %134 = dma.hbm_to_vmem [thread:$0]  %s14, 32768, %s129, [#allocation15], 64, 64, 4
    $region61: #{tpu_custom_call.1} parent=1 // pred_fallthru
      _
    // Predicated region
    $region62: #{tpu_custom_call.1} parent=1 // pred_check
      _
    $region63: #{tpu_custom_call.1} parent=1 // pred_check_branch
      %136 = sbr.rel (0) target = $region65
    $region64: #{tpu_custom_call.1} parent=1 // pred_region
      _
    $region65: #{tpu_custom_call.1} parent=1 // pred_fallthru
      _
    // Predicated region
    $region66: #{tpu_custom_call.1} parent=1 // pred_check
      _
    $region67: #{tpu_custom_call.1} parent=1 // pred_check_branch
      %138 = sbr.rel (0) target = $region69
    $region68: #{tpu_custom_call.1} parent=1 // pred_region
      _
    $region69: #{tpu_custom_call.1} parent=1 // pred_fallthru
      _
    // Predicated region
    $region70: #{tpu_custom_call.1} parent=1 // pred_check
      _
    $region71: #{tpu_custom_call.1} parent=1 // pred_check_branch
      %140 = sbr.rel (0) target = $region73
    $region72: #{tpu_custom_call.1} parent=1 // pred_region
      _
    $region73: #{tpu_custom_call.1} parent=1 // pred_fallthru
      _
    // Predicated region
    $region74: #{tpu_custom_call.1} parent=1 // pred_check
      _
    $region75: #{tpu_custom_call.1} parent=1 // pred_check_branch
      %142 = sbr.rel (0) target = $region77
    $region76: #{tpu_custom_call.1} parent=1 // pred_region
      %143 = dma.done [#allocation3], 16
    $region77: #{tpu_custom_call.1} parent=1 // pred_fallthru
      _
    // Predicated region
    $region78: #{tpu_custom_call.1} parent=1 // pred_check
      _
    $region79: #{tpu_custom_call.1} parent=1 // pred_check_branch
      %145 = sbr.rel (0) target = $region81
    $region80: #{tpu_custom_call.1} parent=1 // pred_region
      %146 = dma.done [#allocation6], 1024
    $region81: #{tpu_custom_call.1} parent=1 // pred_fallthru
      _
    // Predicated region
    $region82: #{tpu_custom_call.1} parent=1 // pred_check
      _
    $region83: #{tpu_custom_call.1} parent=1 // pred_check_branch
      %148 = sbr.rel (0) target = $region85
    $region84: #{tpu_custom_call.1} parent=1 // pred_region
      %149 = dma.done [#allocation6], 16
    $region85: #{tpu_custom_call.1} parent=1 // pred_fallthru
      _
    // Predicated region
    $region86: #{tpu_custom_call.1} parent=1 // pred_check
      _
    $region87: #{tpu_custom_call.1} parent=1 // pred_check_branch
      %151 = sbr.rel (0) target = $region89
    $region88: #{tpu_custom_call.1} parent=1 // pred_region
      %152 = dma.done [#allocation9], 6144
    $region89: #{tpu_custom_call.1} parent=1 // pred_fallthru
      _
    // Predicated region
    $region90: #{tpu_custom_call.1} parent=1 // pred_check
      _
    $region91: #{tpu_custom_call.1} parent=1 // pred_check_branch
      %154 = sbr.rel (0) target = $region93
    $region92: #{tpu_custom_call.1} parent=1 // pred_region
      %155 = dma.done [#allocation9], 2048
    $region93: #{tpu_custom_call.1} parent=1 // pred_fallthru
      _
    // Predicated region
    $region94: #{tpu_custom_call.1} parent=1 // pred_check
      _
    $region95: #{tpu_custom_call.1} parent=1 // pred_check_branch
      %157 = sbr.rel (0) target = $region97
    $region96: #{tpu_custom_call.1} parent=1 // pred_region
      %158 = dma.done [#allocation12], 32768
    $region97: #{tpu_custom_call.1} parent=1 // pred_fallthru
      _
    // Predicated region
    $region98: #{tpu_custom_call.1} parent=1 // pred_check
      _
    $region99: #{tpu_custom_call.1} parent=1 // pred_check_branch
      %160 = sbr.rel (0) target = $region101
    $region100: #{tpu_custom_call.1} parent=1 // pred_region
      %161 = dma.done [#allocation12], 512
    $region101: #{tpu_custom_call.1} parent=1 // pred_fallthru
      _
    // Predicated region
    $region102: #{tpu_custom_call.1} parent=1 // pred_check
      _
    $region103: #{tpu_custom_call.1} parent=1 // pred_check_branch
      %163 = sbr.rel (0) target = $region105
    $region104: #{tpu_custom_call.1} parent=1 // pred_region
      %164 = dma.done [#allocation15], 32768
    $region105: #{tpu_custom_call.1} parent=1 // pred_fallthru
      _
    %v166 = vld [vmem:[%s0] sm:$0xff]
    %v167 = vld [vmem:[%s0 + $0x8] sm:$0xff]
    %v168 = vld [vmem:[%s0 + $0x10] sm:$0xff]
    %v169 = vld [vmem:[%s0 + $0x18] sm:$0xff]
    %v170 = vld [vmem:[%s2] sm:$0x3]
    %172 = vset.pattern.permute.xlu0 0
    %173 = vperm.xlu0 %172, %v166
    %v174 = vpop.permute.xlu0 %173
    %177 = vset.pattern.permute.xlu0 0
    %178 = vperm.xlu0 %177, %v167
    %v179 = vpop.permute.xlu0 %178
    %182 = vset.pattern.permute.xlu0 0
    %183 = vperm.xlu0 %182, %v168
    %v184 = vpop.permute.xlu0 %183
    %187 = vset.pattern.permute.xlu0 0
    %188 = vperm.xlu0 %187, %v169
    %v189 = vpop.permute.xlu0 %188
    %v191 = vlaneseq
    %v192 = vshrl.u32 %v191, 7
    %v193 = vsub.s32 0, %v192
    %v194 = vrot.slane %v170, %v193
    %v195 = vmul.f32 %v174, %v194
    %v196 = vmul.f32 %v179, %v194
    %v197 = vmul.f32 %v184, %v194
    %v198 = vmul.f32 %v189, %v194
    %199 = vset.pattern.permute.xlu0 1
    %200 = vperm.xlu0 %199, %v166
    %v201 = vpop.permute.xlu0 %200
    %203 = vset.pattern.permute.xlu0 1
    %204 = vperm.xlu0 %203, %v167
    %v205 = vpop.permute.xlu0 %204
    %207 = vset.pattern.permute.xlu0 1
    %208 = vperm.xlu0 %207, %v168
    %v209 = vpop.permute.xlu0 %208
    %211 = vset.pattern.permute.xlu0 1
    %212 = vperm.xlu0 %211, %v169
    %v213 = vpop.permute.xlu0 %212
    %v215 = vlaneseq
    %v216 = vshrl.u32 %v215, 7
    %v217 = vsub.s32 1, %v216
    %v218 = vrot.slane %v170, %v217
    %v219 = vmul.f32 %v201, %v218
    %v220 = vmul.f32 %v205, %v218
    %v221 = vmul.f32 %v209, %v218
    %v222 = vmul.f32 %v213, %v218
    %v223 = vadd.f32 %v195, %v219
    %v224 = vadd.f32 %v196, %v220
    %v225 = vadd.f32 %v197, %v221
    %v226 = vadd.f32 %v198, %v222
    %v227 = vld [vmem:[#allocation2] sm:$0x1]
    %v229 = vlaneseq
    %v230 = vshrl.u32 %v229, 7
    %v231 = vsub.s32 0, %v230
    %v232 = vrot.slane %v227, %v231
    %v234 = vadd.f32 %v223, %v232
    %v235 = vadd.f32 %v224, %v232
    %v236 = vadd.f32 %v225, %v232
    %v237 = vadd.f32 %v226, %v232
    %v238 = vmax.f32 %v234, 0.0
    %v239 = vmax.f32 %v235, 0.0
    %v240 = vmax.f32 %v236, 0.0
    %v241 = vmax.f32 %v237, 0.0
    %v242 = vpack.c.bf16 %v239, %v238
    %v243 = vpack.c.bf16 %v241, %v240
    %v244 = vld [vmem:[#allocation5] sm:$0xf]
    %v245 = vld [vmem:[#allocation5 + $0x4] sm:$0xf]
    %v246 = vld [vmem:[#allocation5 + $0x8] sm:$0xf]
    %v247 = vld [vmem:[#allocation5 + $0xc] sm:$0xf]
    %v248 = vld [vmem:[#allocation5 + $0x10] sm:$0xf]
    %v249 = vld [vmem:[#allocation5 + $0x14] sm:$0xf]
    %v250 = vld [vmem:[#allocation5 + $0x18] sm:$0xf]
    %v251 = vld [vmem:[#allocation5 + $0x1c] sm:$0xf]
    %v252 = vld [vmem:[#allocation5 + $0x20] sm:$0xf]
    %v253 = vld [vmem:[#allocation5 + $0x24] sm:$0xf]
    %v254 = vld [vmem:[#allocation5 + $0x28] sm:$0xf]
    %v255 = vld [vmem:[#allocation5 + $0x2c] sm:$0xf]
    %v256 = vld [vmem:[#allocation5 + $0x30] sm:$0xf]
    %v257 = vld [vmem:[#allocation5 + $0x34] sm:$0xf]
    %v258 = vld [vmem:[#allocation5 + $0x38] sm:$0xf]
    %v259 = vld [vmem:[#allocation5 + $0x3c] sm:$0xf]
    %v260 = vld [vmem:[#allocation7] sm:$0x1]
    %v262 = vlaneseq
    %v263 = vshrl.u32 %v262, 7
    %v264 = vsub.s32 0, %v263
    %v265 = vrot.slane %v260, %v264
    %v283 = vunpack.c.l.b16 %v244
    %v284 = vunpack.c.l.b16 %v245
    %v285 = vunpack.c.l.b16 %v246
    %v286 = vunpack.c.l.b16 %v247
    %v287 = vunpack.c.l.b16 %v248
    %v288 = vunpack.c.l.b16 %v249
    %v289 = vunpack.c.l.b16 %v250
    %v290 = vunpack.c.l.b16 %v251
    %v291 = vunpack.c.l.b16 %v252
    %v292 = vunpack.c.l.b16 %v253
    %v293 = vunpack.c.l.b16 %v254
    %v294 = vunpack.c.l.b16 %v255
    %v295 = vunpack.c.l.b16 %v256
    %v296 = vunpack.c.l.b16 %v257
    %v297 = vunpack.c.l.b16 %v258
    %v298 = vunpack.c.l.b16 %v259
    %v299 = vpack.c.b16 %v284, %v283
    %v300 = vpack.c.b16 %v286, %v285
    %v301 = vpack.c.b16 %v288, %v287
    %v302 = vpack.c.b16 %v290, %v289
    %v303 = vpack.c.b16 %v292, %v291
    %v304 = vpack.c.b16 %v294, %v293
    %v305 = vpack.c.b16 %v296, %v295
    %v306 = vpack.c.b16 %v298, %v297
    %315 = vmatprep.subr.bf16.mxu0 0
    %316 = vmatpush1.bf16.msra.mxu0 %v306
    %317 = vmatprep.subr.bf16.mxu0 0
    %318 = vmatpush1.bf16.msra.mxu0 %v305
    %319 = vmatprep.subr.bf16.mxu0 0
    %320 = vmatpush1.bf16.msra.mxu0 %v304
    %321 = vmatprep.subr.bf16.mxu0 0
    %322 = vmatpush1.bf16.msra.mxu0 %v303
    %323 = vmatprep.subr.bf16.mxu0 0
    %324 = vmatpush1.bf16.msra.mxu0 %v302
    %325 = vmatprep.subr.bf16.mxu0 0
    %326 = vmatpush1.bf16.msra.mxu0 %v301
    %327 = vmatprep.subr.bf16.mxu0 0
    %328 = vmatpush1.bf16.msra.mxu0 %v300
    %329 = vmatprep.subr.bf16.mxu0 0
    %330 = vmatpush1.bf16.msra.mxu0 %v299
    %331 = vmatprep.subr.bf16.mxu0 0
    %332 = vmatpush2.bf16.msra.mxu0 0
    %333 = vmatprep.subr.bf16.mxu0 0
    %334 = vmatpush2.bf16.msra.mxu0 0
    %335 = vmatprep.subr.bf16.mxu0 0
    %336 = vmatpush2.bf16.msra.mxu0 0
    %337 = vmatprep.subr.bf16.mxu0 0
    %338 = vmatpush2.bf16.msra.mxu0 0
    %339 = vmatprep.subr.bf16.mxu0 0
    %340 = vmatpush2.bf16.msra.mxu0 0
    %341 = vmatprep.subr.bf16.mxu0 0
    %342 = vmatpush2.bf16.msra.mxu0 0
    %343 = vmatprep.subr.bf16.mxu0 0
    %344 = vmatpush2.bf16.msra.mxu0 0
    %345 = vmatprep.subr.bf16.mxu0 0
    %346 = vmatpush2.bf16.msra.mxu0 0
    %347 = vmatprep.mubr.bf16.mxu0 0
    %348 = vmatmul.mubr.bf16.gmra.mxu0 %v242
    %v349 = vpop.f32.mrf.mxu0
    %v350 = vadd.f32 %v265, %v349
    %v351 = vpop.f32.mrf.mxu0
    %v352 = vpop.f32.mrf.mxu0
    %v353 = vadd.f32 %v265, %v352
    %v354 = vpop.f32.mrf.mxu0
    %355 = vmatprep.mubr.bf16.mxu0 0
    %356 = vmatmul.mubr.bf16.gmra.mxu0 %v243
    %v357 = vpop.f32.mrf.mxu0
    %v358 = vadd.f32 %v265, %v357
    %v359 = vpop.f32.mrf.mxu0
    %v360 = vpop.f32.mrf.mxu0
    %v361 = vadd.f32 %v265, %v360
    %v362 = vpop.f32.mrf.mxu0
    %363 = vdwg.mxu0
    %v364 = vmax.f32 %v350, 0.0
    %v365 = vmax.f32 %v353, 0.0
    %v366 = vmax.f32 %v358, 0.0
    %v367 = vmax.f32 %v361, 0.0
    %v368 = vld [vmem:[%s1] sm:$0xff]
    %v369 = vld [vmem:[%s1 + $0x8] sm:$0xff]
    %v370 = vld [vmem:[%s1 + $0x10] sm:$0xff]
    %v371 = vld [vmem:[%s1 + $0x18] sm:$0xff]
    %v372 = vld [vmem:[#allocation8] sm:$0xff]
    %v373 = vld [vmem:[#allocation8 + $0x8] sm:$0xf]
    %v374 = vld [vmem:[#allocation8 + $0xc] sm:$0xff]
    %v375 = vld [vmem:[#allocation8 + $0x14] sm:$0xf]
    %v376 = vld [vmem:[#allocation8 + $0x18] sm:$0xff]
    %v377 = vld [vmem:[#allocation8 + $0x20] sm:$0xf]
    %v378 = vld [vmem:[#allocation8 + $0x24] sm:$0xff]
    %v379 = vld [vmem:[#allocation8 + $0x2c] sm:$0xf]
    %v380 = vld [vmem:[#allocation8 + $0x30] sm:$0xff]
    %v381 = vld [vmem:[#allocation8 + $0x38] sm:$0xf]
    %v382 = vld [vmem:[#allocation8 + $0x3c] sm:$0xff]
    %v383 = vld [vmem:[#allocation8 + $0x44] sm:$0xf]
    %v384 = vld [vmem:[#allocation8 + $0x48] sm:$0xff]
    %v385 = vld [vmem:[#allocation8 + $0x50] sm:$0xf]
    %v386 = vld [vmem:[#allocation8 + $0x54] sm:$0xff]
    %v387 = vld [vmem:[#allocation8 + $0x5c] sm:$0xf]
    %v388 = vld [vmem:[#allocation8 + $0x60] sm:$0xff]
    %v389 = vld [vmem:[#allocation8 + $0x68] sm:$0xf]
    %v390 = vld [vmem:[#allocation8 + $0x6c] sm:$0xff]
    %v391 = vld [vmem:[#allocation8 + $0x74] sm:$0xf]
    %v392 = vld [vmem:[#allocation8 + $0x78] sm:$0xff]
    %v393 = vld [vmem:[#allocation8 + $0x80] sm:$0xf]
    %v394 = vld [vmem:[#allocation8 + $0x84] sm:$0xff]
    %v395 = vld [vmem:[#allocation8 + $0x8c] sm:$0xf]
    %v396 = vld [vmem:[#allocation8 + $0x90] sm:$0xff]
    %v397 = vld [vmem:[#allocation8 + $0x98] sm:$0xf]
    %v398 = vld [vmem:[#allocation8 + $0x9c] sm:$0xff]
    %v399 = vld [vmem:[#allocation8 + $0xa4] sm:$0xf]
    %v400 = vld [vmem:[#allocation8 + $0xa8] sm:$0xff]
    %v401 = vld [vmem:[#allocation8 + $0xb0] sm:$0xf]
    %v402 = vld [vmem:[#allocation8 + $0xb4] sm:$0xff]
    %v403 = vld [vmem:[#allocation8 + $0xbc] sm:$0xf]
    %v404 = vld [vmem:[#allocation10] sm:$0xf]
    %v405 = vld [vmem:[#allocation10 + $0x4] sm:$0xf]
    %v406 = vld [vmem:[#allocation10 + $0x8] sm:$0xf]
    %v407 = vld [vmem:[#allocation10 + $0xc] sm:$0xf]
    %v408 = vld [vmem:[#allocation10 + $0x10] sm:$0xf]
    %v409 = vld [vmem:[#allocation10 + $0x14] sm:$0xf]
    %v410 = vld [vmem:[#allocation10 + $0x18] sm:$0xf]
    %v411 = vld [vmem:[#allocation10 + $0x1c] sm:$0xf]
    %v412 = vld [vmem:[#allocation10 + $0x20] sm:$0xf]
    %v413 = vld [vmem:[#allocation10 + $0x24] sm:$0xf]
    %v414 = vld [vmem:[#allocation10 + $0x28] sm:$0xf]
    %v415 = vld [vmem:[#allocation10 + $0x2c] sm:$0xf]
    %v416 = vld [vmem:[#allocation10 + $0x30] sm:$0xf]
    %v417 = vld [vmem:[#allocation10 + $0x34] sm:$0xf]
    %v418 = vld [vmem:[#allocation10 + $0x38] sm:$0xf]
    %v419 = vld [vmem:[#allocation10 + $0x3c] sm:$0xf]
    %v420 = vpack.c.bf16 %v365, %v364
    %v421 = vpack.c.bf16 %v367, %v366
    %v422 = vld [vmem:[%s7] sm:$0x7]
    %v424 = vlaneseq
    %v425 = vshrl.u32 %v424, 7
    %v426 = vsub.s32 0, %v425
    %v427 = vrot.slane %v422, %v426
    %v428 = vlaneseq
    %v429 = vshrl.u32 %v428, 7
    %v430 = vsub.s32 1, %v429
    %v431 = vrot.slane %v422, %v430
    %v432 = vlaneseq
    %v433 = vshrl.u32 %v432, 7
    %v434 = vsub.s32 2, %v433
    %v435 = vrot.slane %v422, %v434
    %v471 = vunpack.c.l.b16 %v372
    %v472 = vunpack.c.h.b16 %v372
    %v473 = vunpack.c.l.b16 %v373
    %v474 = vunpack.c.l.b16 %v374
    %v475 = vunpack.c.h.b16 %v374
    %v476 = vunpack.c.l.b16 %v375
    %v477 = vunpack.c.l.b16 %v376
    %v478 = vunpack.c.h.b16 %v376
    %v479 = vunpack.c.l.b16 %v377
    %v480 = vunpack.c.l.b16 %v378
    %v481 = vunpack.c.h.b16 %v378
    %v482 = vunpack.c.l.b16 %v379
    %v483 = vunpack.c.l.b16 %v380
    %v484 = vunpack.c.h.b16 %v380
    %v485 = vunpack.c.l.b16 %v381
    %v486 = vunpack.c.l.b16 %v382
    %v487 = vunpack.c.h.b16 %v382
    %v488 = vunpack.c.l.b16 %v383
    %v489 = vunpack.c.l.b16 %v384
    %v490 = vunpack.c.h.b16 %v384
    %v491 = vunpack.c.l.b16 %v385
    %v492 = vunpack.c.l.b16 %v386
    %v493 = vunpack.c.h.b16 %v386
    %v494 = vunpack.c.l.b16 %v387
    %v495 = vunpack.c.l.b16 %v388
    %v496 = vunpack.c.h.b16 %v388
    %v497 = vunpack.c.l.b16 %v389
    %v498 = vunpack.c.l.b16 %v390
    %v499 = vunpack.c.h.b16 %v390
    %v500 = vunpack.c.l.b16 %v391
    %v501 = vunpack.c.l.b16 %v392
    %v502 = vunpack.c.h.b16 %v392
    %v503 = vunpack.c.l.b16 %v393
    %v504 = vunpack.c.l.b16 %v394
    %v505 = vunpack.c.h.b16 %v394
    %v506 = vunpack.c.l.b16 %v395
    %v507 = vunpack.c.l.b16 %v396
    %v508 = vunpack.c.h.b16 %v396
    %v509 = vunpack.c.l.b16 %v397
    %v510 = vunpack.c.l.b16 %v398
    %v511 = vunpack.c.h.b16 %v398
    %v512 = vunpack.c.l.b16 %v399
    %v513 = vunpack.c.l.b16 %v400
    %v514 = vunpack.c.h.b16 %v400
    %v515 = vunpack.c.l.b16 %v401
    %v516 = vunpack.c.l.b16 %v402
    %v517 = vunpack.c.h.b16 %v402
    %v518 = vunpack.c.l.b16 %v403
    %v519 = vpack.c.b16 %v474, %v471
    %v520 = vpack.c.b16 %v475, %v472
    %v521 = vpack.c.b16 %v476, %v473
    %v522 = vpack.c.b16 %v480, %v477
    %v523 = vpack.c.b16 %v481, %v478
    %v524 = vpack.c.b16 %v482, %v479
    %v525 = vpack.c.b16 %v486, %v483
    %v526 = vpack.c.b16 %v487, %v484
    %v527 = vpack.c.b16 %v488, %v485
    %v528 = vpack.c.b16 %v492, %v489
    %v529 = vpack.c.b16 %v493, %v490
    %v530 = vpack.c.b16 %v494, %v491
    %v531 = vpack.c.b16 %v498, %v495
    %v532 = vpack.c.b16 %v499, %v496
    %v533 = vpack.c.b16 %v500, %v497
    %v534 = vpack.c.b16 %v504, %v501
    %v535 = vpack.c.b16 %v505, %v502
    %v536 = vpack.c.b16 %v506, %v503
    %v537 = vpack.c.b16 %v510, %v507
    %v538 = vpack.c.b16 %v511, %v508
    %v539 = vpack.c.b16 %v512, %v509
    %v540 = vpack.c.b16 %v516, %v513
    %v541 = vpack.c.b16 %v517, %v514
    %v542 = vpack.c.b16 %v518, %v515
    %567 = vmatprep.subr.bf16.mxu0 %v541
    %568 = vmatpush1.bf16.msra.mxu0 %v540
    %569 = vmatprep.subr.bf16.mxu0 %v538
    %570 = vmatpush1.bf16.msra.mxu0 %v537
    %571 = vmatprep.subr.bf16.mxu0 %v535
    %572 = vmatpush1.bf16.msra.mxu0 %v534
    %573 = vmatprep.subr.bf16.mxu0 %v532
    %574 = vmatpush1.bf16.msra.mxu0 %v531
    %575 = vmatprep.subr.bf16.mxu0 %v529
    %576 = vmatpush1.bf16.msra.mxu0 %v528
    %577 = vmatprep.subr.bf16.mxu0 %v526
    %578 = vmatpush1.bf16.msra.mxu0 %v525
    %579 = vmatprep.subr.bf16.mxu0 %v523
    %580 = vmatpush1.bf16.msra.mxu0 %v522
    %581 = vmatprep.subr.bf16.mxu0 %v520
    %582 = vmatpush1.bf16.msra.mxu0 %v519
    %583 = vmatprep.subr.bf16.mxu0 0
    %584 = vmatpush2.bf16.msra.mxu0 0
    %585 = vmatprep.subr.bf16.mxu0 0
    %586 = vmatpush2.bf16.msra.mxu0 0
    %587 = vmatprep.subr.bf16.mxu0 0
    %588 = vmatpush2.bf16.msra.mxu0 0
    %589 = vmatprep.subr.bf16.mxu0 0
    %590 = vmatpush2.bf16.msra.mxu0 0
    %591 = vmatprep.subr.bf16.mxu0 0
    %592 = vmatpush2.bf16.msra.mxu0 0
    %593 = vmatprep.subr.bf16.mxu0 0
    %594 = vmatpush2.bf16.msra.mxu0 0
    %595 = vmatprep.subr.bf16.mxu0 0
    %596 = vmatpush2.bf16.msra.mxu0 0
    %597 = vmatprep.subr.bf16.mxu0 0
    %598 = vmatpush2.bf16.msra.mxu0 0
    %599 = vmatprep.mubr.bf16.mxu0 0
    %600 = vmatmul.mubr.bf16.gmra.mxu0 %v420
    %v601 = vpop.f32.mrf.mxu0
    %v602 = vadd.f32 %v427, %v601
    %v603 = vpop.f32.mrf.mxu0
    %v604 = vadd.f32 %v431, %v603
    %v605 = vpop.f32.mrf.mxu0
    %v606 = vadd.f32 %v427, %v605
    %v607 = vpop.f32.mrf.mxu0
    %v608 = vadd.f32 %v431, %v607
    %609 = vmatprep.mubr.bf16.mxu0 0
    %610 = vmatmul.mubr.bf16.gmra.mxu0 %v421
    %v611 = vpop.f32.mrf.mxu0
    %v612 = vadd.f32 %v427, %v611
    %v613 = vpop.f32.mrf.mxu0
    %v614 = vadd.f32 %v431, %v613
    %v615 = vpop.f32.mrf.mxu0
    %v616 = vadd.f32 %v427, %v615
    %v617 = vpop.f32.mrf.mxu0
    %v618 = vadd.f32 %v431, %v617
    %619 = vdwg.mxu0
    %620 = vmatprep.subr.bf16.mxu0 0
    %621 = vmatpush1.bf16.msra.mxu0 %v542
    %622 = vmatprep.subr.bf16.mxu0 0
    %623 = vmatpush1.bf16.msra.mxu0 %v539
    %624 = vmatprep.subr.bf16.mxu0 0
    %625 = vmatpush1.bf16.msra.mxu0 %v536
    %626 = vmatprep.subr.bf16.mxu0 0
    %627 = vmatpush1.bf16.msra.mxu0 %v533
    %628 = vmatprep.subr.bf16.mxu0 0
    %629 = vmatpush1.bf16.msra.mxu0 %v530
    %630 = vmatprep.subr.bf16.mxu0 0
    %631 = vmatpush1.bf16.msra.mxu0 %v527
    %632 = vmatprep.subr.bf16.mxu0 0
    %633 = vmatpush1.bf16.msra.mxu0 %v524
    %634 = vmatprep.subr.bf16.mxu0 0
    %635 = vmatpush1.bf16.msra.mxu0 %v521
    %636 = vmatprep.subr.bf16.mxu0 0
    %637 = vmatpush2.bf16.msra.mxu0 0
    %638 = vmatprep.subr.bf16.mxu0 0
    %639 = vmatpush2.bf16.msra.mxu0 0
    %640 = vmatprep.subr.bf16.mxu0 0
    %641 = vmatpush2.bf16.msra.mxu0 0
    %642 = vmatprep.subr.bf16.mxu0 0
    %643 = vmatpush2.bf16.msra.mxu0 0
    %644 = vmatprep.subr.bf16.mxu0 0
    %645 = vmatpush2.bf16.msra.mxu0 0
    %646 = vmatprep.subr.bf16.mxu0 0
    %647 = vmatpush2.bf16.msra.mxu0 0
    %648 = vmatprep.subr.bf16.mxu0 0
    %649 = vmatpush2.bf16.msra.mxu0 0
    %650 = vmatprep.subr.bf16.mxu0 0
    %651 = vmatpush2.bf16.msra.mxu0 0
    %652 = vmatprep.mubr.bf16.mxu0 0
    %653 = vmatmul.mubr.bf16.gmra.mxu0 %v420
    %v654 = vpop.f32.mrf.mxu0
    %v655 = vadd.f32 %v435, %v654
    %v656 = vpop.f32.mrf.mxu0
    %v657 = vpop.f32.mrf.mxu0
    %v658 = vadd.f32 %v435, %v657
    %v659 = vpop.f32.mrf.mxu0
    %660 = vmatprep.mubr.bf16.mxu0 0
    %661 = vmatmul.mubr.bf16.gmra.mxu0 %v421
    %v662 = vpop.f32.mrf.mxu0
    %v663 = vadd.f32 %v435, %v662
    %v664 = vpop.f32.mrf.mxu0
    %v665 = vpop.f32.mrf.mxu0
    %v666 = vadd.f32 %v435, %v665
    %v667 = vpop.f32.mrf.mxu0
    %668 = vdwg.mxu0
    %v669 = vpack.c.bf16 %v606, %v602
    %v670 = vpack.c.bf16 %v616, %v612
    %v671 = vpack.c.bf16 %v608, %v604
    %v672 = vpack.c.bf16 %v618, %v614
    %v673 = vpack.c.bf16 %v658, %v655
    %v674 = vpack.c.bf16 %v666, %v663
    %vm675 = vcmask 261120
    %v677 = vsel %vm675, %v669, 0
    %v680 = vsel %vm675, %v670, 0
    %v683 = vsel %vm675, %v671, 0
    %v686 = vsel %vm675, %v672, 0
    %688 = vmatprep.subr.bf16.mxu0 0
    %689 = vmatpush1.bf16.xpose.msra.mxu0 0
    %690 = vmatprep.subr.bf16.mxu0 0
    %691 = vmatpush1.bf16.xpose.msra.mxu0 0
    %692 = vmatprep.subr.bf16.mxu0 0
    %693 = vmatpush1.bf16.xpose.msra.mxu0 0
    %694 = vmatprep.subr.bf16.mxu0 0
    %695 = vmatpush1.bf16.xpose.msra.mxu0 0
    %696 = vmatprep.subr.bf16.mxu0 0
    %697 = vmatpush1.bf16.xpose.msra.mxu0 0
    %698 = vmatprep.subr.bf16.mxu0 0
    %699 = vmatpush1.bf16.xpose.msra.mxu0 0
    %700 = vmatprep.subr.bf16.mxu0 0
    %701 = vmatpush1.bf16.xpose.msra.mxu0 %v686
    %702 = vmatprep.subr.bf16.mxu0 0
    %703 = vmatpush1.bf16.xpose.msra.mxu0 %v683
    %704 = vmatprep.subr.bf16.mxu0 0
    %705 = vmatpush2.bf16.xpose.msra.mxu0 0
    %706 = vmatprep.subr.bf16.mxu0 0
    %707 = vmatpush2.bf16.xpose.msra.mxu0 0
    %708 = vmatprep.subr.bf16.mxu0 0
    %709 = vmatpush2.bf16.xpose.msra.mxu0 0
    %710 = vmatprep.subr.bf16.mxu0 0
    %711 = vmatpush2.bf16.xpose.msra.mxu0 0
    %712 = vmatprep.subr.bf16.mxu0 0
    %713 = vmatpush2.bf16.xpose.msra.mxu0 0
    %714 = vmatprep.subr.bf16.mxu0 0
    %715 = vmatpush2.bf16.xpose.msra.mxu0 0
    %716 = vmatprep.subr.bf16.mxu0 0
    %717 = vmatpush2.bf16.xpose.msra.mxu0 0
    %718 = vmatprep.subr.bf16.mxu0 0
    %719 = vmatpush2.bf16.xpose.msra.mxu0 0
    %720 = vmatprep.mubr.bf16.mxu0 0
    %721 = vmatmul.mubr.bf16.gmra.mxu0 %v677
    %v722 = vpop.f32.mrf.mxu0
    %v723 = vadd.f32 0.0, %v722
    %v724 = vpop.f32.mrf.mxu0
    %v725 = vpop.f32.mrf.mxu0
    %v726 = vadd.f32 0.0, %v725
    %v727 = vpop.f32.mrf.mxu0
    %728 = vmatprep.mubr.bf16.mxu0 0
    %729 = vmatmul.mubr.bf16.gmra.mxu0 %v680
    %v730 = vpop.f32.mrf.mxu0
    %v731 = vadd.f32 0.0, %v730
    %v732 = vpop.f32.mrf.mxu0
    %v733 = vpop.f32.mrf.mxu0
    %v734 = vadd.f32 0.0, %v733
    %v735 = vpop.f32.mrf.mxu0
    %736 = vdwg.mxu0
    %v737 = vmul.f32 %v723, 0.17677669
    %v738 = vmul.f32 %v726, 0.17677669
    %v739 = vmul.f32 %v731, 0.17677669
    %v740 = vmul.f32 %v734, 0.17677669
    %v741 = vadd.f32 %v737, %v368
    %v742 = vadd.f32 %v738, %v369
    %v743 = vadd.f32 %v739, %v370
    %v744 = vadd.f32 %v740, %v371
    %v745 = vsel %vm675, %v741, -inf
    %746 = vmax.xlane.f32.xlu0 %v745
    %v747 = vpop.xlane.xlu0 %746
    %v748 = vsel %vm675, %v742, -inf
    %749 = vmax.xlane.f32.xlu0 %v748
    %v750 = vpop.xlane.xlu0 %749
    %v751 = vsel %vm675, %v743, -inf
    %752 = vmax.xlane.f32.xlu0 %v751
    %v753 = vpop.xlane.xlu0 %752
    %v754 = vsel %vm675, %v744, -inf
    %755 = vmax.xlane.f32.xlu0 %v754
    %v756 = vpop.xlane.xlu0 %755
    %v757 = vsub.f32 %v741, %v747
    %v758 = vsub.f32 %v742, %v750
    %v759 = vsub.f32 %v743, %v753
    %v760 = vsub.f32 %v744, %v756
    %v761 = vmul.f32 %v757, 1.442695
    %v762 = vpow.pop %v761
    %v763 = vmul.f32 %v758, 1.442695
    %v764 = vpow.pop %v763
    %v765 = vmul.f32 %v759, 1.442695
    %v766 = vpow.pop %v765
    %v767 = vmul.f32 %v760, 1.442695
    %v768 = vpow.pop %v767
    %v769 = vsel %vm675, %v762, 0.0
    %770 = vadd.xlane.f32.xlu0 %v769
    %v771 = vpop.xlane.xlu0 %770
    %v772 = vsel %vm675, %v764, 0.0
    %773 = vadd.xlane.f32.xlu0 %v772
    %v774 = vpop.xlane.xlu0 %773
    %v775 = vsel %vm675, %v766, 0.0
    %776 = vadd.xlane.f32.xlu0 %v775
    %v777 = vpop.xlane.xlu0 %776
    %v778 = vsel %vm675, %v768, 0.0
    %779 = vadd.xlane.f32.xlu0 %v778
    %v780 = vpop.xlane.xlu0 %779
    %v781 = vrcp.pop %v771
    %v782 = vrcp.pop %v774
    %v783 = vrcp.pop %v777
    %v784 = vrcp.pop %v780
    %v785 = vmul.f32 %v762, %v781
    %v786 = vmul.f32 %v764, %v782
    %v787 = vmul.f32 %v766, %v783
    %v788 = vmul.f32 %v768, %v784
    %v789 = vpack.c.bf16 %v786, %v785
    %v790 = vpack.c.bf16 %v788, %v787
    %v792 = vsel %vm675, %v789, 0
    %v795 = vsel %vm675, %v790, 0
    %797 = vmatprep.subr.bf16.mxu0 0
    %798 = vmatpush1.bf16.msra.mxu0 0
    %799 = vmatprep.subr.bf16.mxu0 0
    %800 = vmatpush1.bf16.msra.mxu0 0
    %801 = vmatprep.subr.bf16.mxu0 0
    %802 = vmatpush1.bf16.msra.mxu0 0
    %803 = vmatprep.subr.bf16.mxu0 0
    %804 = vmatpush1.bf16.msra.mxu0 0
    %805 = vmatprep.subr.bf16.mxu0 0
    %806 = vmatpush1.bf16.msra.mxu0 0
    %807 = vmatprep.subr.bf16.mxu0 0
    %808 = vmatpush1.bf16.msra.mxu0 0
    %809 = vmatprep.subr.bf16.mxu0 0
    %810 = vmatpush1.bf16.msra.mxu0 %v674
    %811 = vmatprep.subr.bf16.mxu0 0
    %812 = vmatpush1.bf16.msra.mxu0 %v673
    %813 = vmatprep.subr.bf16.mxu0 0
    %814 = vmatpush2.bf16.msra.mxu0 0
    %815 = vmatprep.subr.bf16.mxu0 0
    %816 = vmatpush2.bf16.msra.mxu0 0
    %817 = vmatprep.subr.bf16.mxu0 0
    %818 = vmatpush2.bf16.msra.mxu0 0
    %819 = vmatprep.subr.bf16.mxu0 0
    %820 = vmatpush2.bf16.msra.mxu0 0
    %821 = vmatprep.subr.bf16.mxu0 0
    %822 = vmatpush2.bf16.msra.mxu0 0
    %823 = vmatprep.subr.bf16.mxu0 0
    %824 = vmatpush2.bf16.msra.mxu0 0
    %825 = vmatprep.subr.bf16.mxu0 0
    %826 = vmatpush2.bf16.msra.mxu0 0
    %827 = vmatprep.subr.bf16.mxu0 0
    %828 = vmatpush2.bf16.msra.mxu0 0
    %829 = vmatprep.mubr.bf16.mxu0 0
    %830 = vmatmul.mubr.bf16.gmra.mxu0 %v792
    %v831 = vpop.f32.mrf.mxu0
    %v832 = vadd.f32 0.0, %v831
    %v833 = vpop.f32.mrf.mxu0
    %v834 = vpop.f32.mrf.mxu0
    %v835 = vadd.f32 0.0, %v834
    %v836 = vpop.f32.mrf.mxu0
    %837 = vmatprep.mubr.bf16.mxu0 0
    %838 = vmatmul.mubr.bf16.gmra.mxu0 %v795
    %v839 = vpop.f32.mrf.mxu0
    %v840 = vadd.f32 0.0, %v839
    %v841 = vpop.f32.mrf.mxu0
    %v842 = vpop.f32.mrf.mxu0
    %v843 = vadd.f32 0.0, %v842
    %v844 = vpop.f32.mrf.mxu0
    %845 = vdwg.mxu0
    %848 = vrot.lane.b32.xlu0 %v669, 96
    %v849 = vpop.permute.xlu0 %848
    %850 = vrot.lane.b32.xlu0 %v670, 96
    %v851 = vpop.permute.xlu0 %850
    %854 = vrot.lane.b32.xlu0 %v671, 96
    %v855 = vpop.permute.xlu0 %854
    %856 = vrot.lane.b32.xlu0 %v672, 96
    %v857 = vpop.permute.xlu0 %856
    %v859 = vsel %vm675, %v849, 0
    %v862 = vsel %vm675, %v851, 0
    %v865 = vsel %vm675, %v855, 0
    %v868 = vsel %vm675, %v857, 0
    %870 = vmatprep.subr.bf16.mxu0 0
    %871 = vmatpush1.bf16.xpose.msra.mxu0 0
    %872 = vmatprep.subr.bf16.mxu0 0
    %873 = vmatpush1.bf16.xpose.msra.mxu0 0
    %874 = vmatprep.subr.bf16.mxu0 0
    %875 = vmatpush1.bf16.xpose.msra.mxu0 0
    %876 = vmatprep.subr.bf16.mxu0 0
    %877 = vmatpush1.bf16.xpose.msra.mxu0 0
    %878 = vmatprep.subr.bf16.mxu0 0
    %879 = vmatpush1.bf16.xpose.msra.mxu0 0
    %880 = vmatprep.subr.bf16.mxu0 0
    %881 = vmatpush1.bf16.xpose.msra.mxu0 0
    %882 = vmatprep.subr.bf16.mxu0 0
    %883 = vmatpush1.bf16.xpose.msra.mxu0 %v868
    %884 = vmatprep.subr.bf16.mxu0 0
    %885 = vmatpush1.bf16.xpose.msra.mxu0 %v865
    %886 = vmatprep.subr.bf16.mxu0 0
    %887 = vmatpush2.bf16.xpose.msra.mxu0 0
    %888 = vmatprep.subr.bf16.mxu0 0
    %889 = vmatpush2.bf16.xpose.msra.mxu0 0
    %890 = vmatprep.subr.bf16.mxu0 0
    %891 = vmatpush2.bf16.xpose.msra.mxu0 0
    %892 = vmatprep.subr.bf16.mxu0 0
    %893 = vmatpush2.bf16.xpose.msra.mxu0 0
    %894 = vmatprep.subr.bf16.mxu0 0
    %895 = vmatpush2.bf16.xpose.msra.mxu0 0
    %896 = vmatprep.subr.bf16.mxu0 0
    %897 = vmatpush2.bf16.xpose.msra.mxu0 0
    %898 = vmatprep.subr.bf16.mxu0 0
    %899 = vmatpush2.bf16.xpose.msra.mxu0 0
    %900 = vmatprep.subr.bf16.mxu0 0
    %901 = vmatpush2.bf16.xpose.msra.mxu0 0
    %902 = vmatprep.mubr.bf16.mxu0 0
    %903 = vmatmul.mubr.bf16.gmra.mxu0 %v859
    %v904 = vpop.f32.mrf.mxu0
    %v905 = vadd.f32 0.0, %v904
    %v906 = vpop.f32.mrf.mxu0
    %v907 = vpop.f32.mrf.mxu0
    %v908 = vadd.f32 0.0, %v907
    %v909 = vpop.f32.mrf.mxu0
    %910 = vmatprep.mubr.bf16.mxu0 0
    %911 = vmatmul.mubr.bf16.gmra.mxu0 %v862
    %v912 = vpop.f32.mrf.mxu0
    %v913 = vadd.f32 0.0, %v912
    %v914 = vpop.f32.mrf.mxu0
    %v915 = vpop.f32.mrf.mxu0
    %v916 = vadd.f32 0.0, %v915
    %v917 = vpop.f32.mrf.mxu0
    %918 = vdwg.mxu0
    %v919 = vmul.f32 %v905, 0.17677669
    %v920 = vmul.f32 %v908, 0.17677669
    %v921 = vmul.f32 %v913, 0.17677669
    %v922 = vmul.f32 %v916, 0.17677669
    %v923 = vadd.f32 %v919, %v368
    %v924 = vadd.f32 %v920, %v369
    %v925 = vadd.f32 %v921, %v370
    %v926 = vadd.f32 %v922, %v371
    %v927 = vsel %vm675, %v923, -inf
    %928 = vmax.xlane.f32.xlu0 %v927
    %v929 = vpop.xlane.xlu0 %928
    %v930 = vsel %vm675, %v924, -inf
    %931 = vmax.xlane.f32.xlu0 %v930
    %v932 = vpop.xlane.xlu0 %931
    %v933 = vsel %vm675, %v925, -inf
    %934 = vmax.xlane.f32.xlu0 %v933
    %v935 = vpop.xlane.xlu0 %934
    %v936 = vsel %vm675, %v926, -inf
    %937 = vmax.xlane.f32.xlu0 %v936
    %v938 = vpop.xlane.xlu0 %937
    %v939 = vsub.f32 %v923, %v929
    %v940 = vsub.f32 %v924, %v932
    %v941 = vsub.f32 %v925, %v935
    %v942 = vsub.f32 %v926, %v938
    %v943 = vmul.f32 %v939, 1.442695
    %v944 = vpow.pop %v943
    %v945 = vmul.f32 %v940, 1.442695
    %v946 = vpow.pop %v945
    %v947 = vmul.f32 %v941, 1.442695
    %v948 = vpow.pop %v947
    %v949 = vmul.f32 %v942, 1.442695
    %v950 = vpow.pop %v949
    %v951 = vsel %vm675, %v944, 0.0
    %952 = vadd.xlane.f32.xlu0 %v951
    %v953 = vpop.xlane.xlu0 %952
    %v954 = vsel %vm675, %v946, 0.0
    %955 = vadd.xlane.f32.xlu0 %v954
    %v956 = vpop.xlane.xlu0 %955
    %v957 = vsel %vm675, %v948, 0.0
    %958 = vadd.xlane.f32.xlu0 %v957
    %v959 = vpop.xlane.xlu0 %958
    %v960 = vsel %vm675, %v950, 0.0
    %961 = vadd.xlane.f32.xlu0 %v960
    %v962 = vpop.xlane.xlu0 %961
    %v963 = vrcp.pop %v953
    %v964 = vrcp.pop %v956
    %v965 = vrcp.pop %v959
    %v966 = vrcp.pop %v962
    %v967 = vmul.f32 %v944, %v963
    %v968 = vmul.f32 %v946, %v964
    %v969 = vmul.f32 %v948, %v965
    %v970 = vmul.f32 %v950, %v966
    %v971 = vpack.c.bf16 %v968, %v967
    %v972 = vpack.c.bf16 %v970, %v969
    %975 = vrot.lane.b32.xlu0 %v673, 96
    %v976 = vpop.permute.xlu0 %975
    %977 = vrot.lane.b32.xlu0 %v674, 96
    %v978 = vpop.permute.xlu0 %977
    %v982 = vsel %vm675, %v971, 0
    %v985 = vsel %vm675, %v972, 0
    %987 = vmatprep.subr.bf16.mxu0 0
    %988 = vmatpush1.bf16.msra.mxu0 0
    %989 = vmatprep.subr.bf16.mxu0 0
    %990 = vmatpush1.bf16.msra.mxu0 0
    %991 = vmatprep.subr.bf16.mxu0 0
    %992 = vmatpush1.bf16.msra.mxu0 0
    %993 = vmatprep.subr.bf16.mxu0 0
    %994 = vmatpush1.bf16.msra.mxu0 0
    %995 = vmatprep.subr.bf16.mxu0 0
    %996 = vmatpush1.bf16.msra.mxu0 0
    %997 = vmatprep.subr.bf16.mxu0 0
    %998 = vmatpush1.bf16.msra.mxu0 0
    %999 = vmatprep.subr.bf16.mxu0 0
    %1000 = vmatpush1.bf16.msra.mxu0 %v978
    %1001 = vmatprep.subr.bf16.mxu0 0
    %1002 = vmatpush1.bf16.msra.mxu0 %v976
    %1003 = vmatprep.subr.bf16.mxu0 0
    %1004 = vmatpush2.bf16.msra.mxu0 0
    %1005 = vmatprep.subr.bf16.mxu0 0
    %1006 = vmatpush2.bf16.msra.mxu0 0
    %1007 = vmatprep.subr.bf16.mxu0 0
    %1008 = vmatpush2.bf16.msra.mxu0 0
    %1009 = vmatprep.subr.bf16.mxu0 0
    %1010 = vmatpush2.bf16.msra.mxu0 0
    %1011 = vmatprep.subr.bf16.mxu0 0
    %1012 = vmatpush2.bf16.msra.mxu0 0
    %1013 = vmatprep.subr.bf16.mxu0 0
    %1014 = vmatpush2.bf16.msra.mxu0 0
    %1015 = vmatprep.subr.bf16.mxu0 0
    %1016 = vmatpush2.bf16.msra.mxu0 0
    %1017 = vmatprep.subr.bf16.mxu0 0
    %1018 = vmatpush2.bf16.msra.mxu0 0
    %1019 = vmatprep.mubr.bf16.mxu0 0
    %1020 = vmatmul.mubr.bf16.gmra.mxu0 %v982
    %v1021 = vpop.f32.mrf.mxu0
    %v1022 = vadd.f32 0.0, %v1021
    %v1023 = vpop.f32.mrf.mxu0
    %v1024 = vpop.f32.mrf.mxu0
    %v1025 = vadd.f32 0.0, %v1024
    %v1026 = vpop.f32.mrf.mxu0
    %1027 = vmatprep.mubr.bf16.mxu0 0
    %1028 = vmatmul.mubr.bf16.gmra.mxu0 %v985
    %v1029 = vpop.f32.mrf.mxu0
    %v1030 = vadd.f32 0.0, %v1029
    %v1031 = vpop.f32.mrf.mxu0
    %v1032 = vpop.f32.mrf.mxu0
    %v1033 = vadd.f32 0.0, %v1032
    %v1034 = vpop.f32.mrf.mxu0
    %1035 = vdwg.mxu0
    %1036 = vrot.lane.b32.xlu0 %v669, 64
    %v1037 = vpop.permute.xlu0 %1036
    %1038 = vrot.lane.b32.xlu0 %v670, 64
    %v1039 = vpop.permute.xlu0 %1038
    %1040 = vrot.lane.b32.xlu0 %v671, 64
    %v1041 = vpop.permute.xlu0 %1040
    %1042 = vrot.lane.b32.xlu0 %v672, 64
    %v1043 = vpop.permute.xlu0 %1042
    %v1045 = vsel %vm675, %v1037, 0
    %v1048 = vsel %vm675, %v1039, 0
    %v1051 = vsel %vm675, %v1041, 0
    %v1054 = vsel %vm675, %v1043, 0
    %1056 = vmatprep.subr.bf16.mxu0 0
    %1057 = vmatpush1.bf16.xpose.msra.mxu0 0
    %1058 = vmatprep.subr.bf16.mxu0 0
    %1059 = vmatpush1.bf16.xpose.msra.mxu0 0
    %1060 = vmatprep.subr.bf16.mxu0 0
    %1061 = vmatpush1.bf16.xpose.msra.mxu0 0
    %1062 = vmatprep.subr.bf16.mxu0 0
    %1063 = vmatpush1.bf16.xpose.msra.mxu0 0
    %1064 = vmatprep.subr.bf16.mxu0 0
    %1065 = vmatpush1.bf16.xpose.msra.mxu0 0
    %1066 = vmatprep.subr.bf16.mxu0 0
    %1067 = vmatpush1.bf16.xpose.msra.mxu0 0
    %1068 = vmatprep.subr.bf16.mxu0 0
    %1069 = vmatpush1.bf16.xpose.msra.mxu0 %v1054
    %1070 = vmatprep.subr.bf16.mxu0 0
    %1071 = vmatpush1.bf16.xpose.msra.mxu0 %v1051
    %1072 = vmatprep.subr.bf16.mxu0 0
    %1073 = vmatpush2.bf16.xpose.msra.mxu0 0
    %1074 = vmatprep.subr.bf16.mxu0 0
    %1075 = vmatpush2.bf16.xpose.msra.mxu0 0
    %1076 = vmatprep.subr.bf16.mxu0 0
    %1077 = vmatpush2.bf16.xpose.msra.mxu0 0
    %1078 = vmatprep.subr.bf16.mxu0 0
    %1079 = vmatpush2.bf16.xpose.msra.mxu0 0
    %1080 = vmatprep.subr.bf16.mxu0 0
    %1081 = vmatpush2.bf16.xpose.msra.mxu0 0
    %1082 = vmatprep.subr.bf16.mxu0 0
    %1083 = vmatpush2.bf16.xpose.msra.mxu0 0
    %1084 = vmatprep.subr.bf16.mxu0 0
    %1085 = vmatpush2.bf16.xpose.msra.mxu0 0
    %1086 = vmatprep.subr.bf16.mxu0 0
    %1087 = vmatpush2.bf16.xpose.msra.mxu0 0
    %1088 = vmatprep.mubr.bf16.mxu0 0
    %1089 = vmatmul.mubr.bf16.gmra.mxu0 %v1045
    %v1090 = vpop.f32.mrf.mxu0
    %v1091 = vadd.f32 0.0, %v1090
    %v1092 = vpop.f32.mrf.mxu0
    %v1093 = vpop.f32.mrf.mxu0
    %v1094 = vadd.f32 0.0, %v1093
    %v1095 = vpop.f32.mrf.mxu0
    %1096 = vmatprep.mubr.bf16.mxu0 0
    %1097 = vmatmul.mubr.bf16.gmra.mxu0 %v1048
    %v1098 = vpop.f32.mrf.mxu0
    %v1099 = vadd.f32 0.0, %v1098
    %v1100 = vpop.f32.mrf.mxu0
    %v1101 = vpop.f32.mrf.mxu0
    %v1102 = vadd.f32 0.0, %v1101
    %v1103 = vpop.f32.mrf.mxu0
    %1104 = vdwg.mxu0
    %v1105 = vmul.f32 %v1091, 0.17677669
    %v1106 = vmul.f32 %v1094, 0.17677669
    %v1107 = vmul.f32 %v1099, 0.17677669
    %v1108 = vmul.f32 %v1102, 0.17677669
    %v1109 = vadd.f32 %v1105, %v368
    %v1110 = vadd.f32 %v1106, %v369
    %v1111 = vadd.f32 %v1107, %v370
    %v1112 = vadd.f32 %v1108, %v371
    %v1113 = vsel %vm675, %v1109, -inf
    %1114 = vmax.xlane.f32.xlu0 %v1113
    %v1115 = vpop.xlane.xlu0 %1114
    %v1116 = vsel %vm675, %v1110, -inf
    %1117 = vmax.xlane.f32.xlu0 %v1116
    %v1118 = vpop.xlane.xlu0 %1117
    %v1119 = vsel %vm675, %v1111, -inf
    %1120 = vmax.xlane.f32.xlu0 %v1119
    %v1121 = vpop.xlane.xlu0 %1120
    %v1122 = vsel %vm675, %v1112, -inf
    %1123 = vmax.xlane.f32.xlu0 %v1122
    %v1124 = vpop.xlane.xlu0 %1123
    %v1125 = vsub.f32 %v1109, %v1115
    %v1126 = vsub.f32 %v1110, %v1118
    %v1127 = vsub.f32 %v1111, %v1121
    %v1128 = vsub.f32 %v1112, %v1124
    %v1129 = vmul.f32 %v1125, 1.442695
    %v1130 = vpow.pop %v1129
    %v1131 = vmul.f32 %v1126, 1.442695
    %v1132 = vpow.pop %v1131
    %v1133 = vmul.f32 %v1127, 1.442695
    %v1134 = vpow.pop %v1133
    %v1135 = vmul.f32 %v1128, 1.442695
    %v1136 = vpow.pop %v1135
    %v1137 = vsel %vm675, %v1130, 0.0
    %1138 = vadd.xlane.f32.xlu0 %v1137
    %v1139 = vpop.xlane.xlu0 %1138
    %v1140 = vsel %vm675, %v1132, 0.0
    %1141 = vadd.xlane.f32.xlu0 %v1140
    %v1142 = vpop.xlane.xlu0 %1141
    %v1143 = vsel %vm675, %v1134, 0.0
    %1144 = vadd.xlane.f32.xlu0 %v1143
    %v1145 = vpop.xlane.xlu0 %1144
    %v1146 = vsel %vm675, %v1136, 0.0
    %1147 = vadd.xlane.f32.xlu0 %v1146
    %v1148 = vpop.xlane.xlu0 %1147
    %v1149 = vrcp.pop %v1139
    %v1150 = vrcp.pop %v1142
    %v1151 = vrcp.pop %v1145
    %v1152 = vrcp.pop %v1148
    %v1153 = vmul.f32 %v1130, %v1149
    %v1154 = vmul.f32 %v1132, %v1150
    %v1155 = vmul.f32 %v1134, %v1151
    %v1156 = vmul.f32 %v1136, %v1152
    %v1157 = vpack.c.bf16 %v1154, %v1153
    %v1158 = vpack.c.bf16 %v1156, %v1155
    %1159 = vrot.lane.b32.xlu0 %v673, 64
    %v1160 = vpop.permute.xlu0 %1159
    %1161 = vrot.lane.b32.xlu0 %v674, 64
    %v1162 = vpop.permute.xlu0 %1161
    %v1166 = vsel %vm675, %v1157, 0
    %v1169 = vsel %vm675, %v1158, 0
    %1171 = vmatprep.subr.bf16.mxu0 0
    %1172 = vmatpush1.bf16.msra.mxu0 0
    %1173 = vmatprep.subr.bf16.mxu0 0
    %1174 = vmatpush1.bf16.msra.mxu0 0
    %1175 = vmatprep.subr.bf16.mxu0 0
    %1176 = vmatpush1.bf16.msra.mxu0 0
    %1177 = vmatprep.subr.bf16.mxu0 0
    %1178 = vmatpush1.bf16.msra.mxu0 0
    %1179 = vmatprep.subr.bf16.mxu0 0
    %1180 = vmatpush1.bf16.msra.mxu0 0
    %1181 = vmatprep.subr.bf16.mxu0 0
    %1182 = vmatpush1.bf16.msra.mxu0 0
    %1183 = vmatprep.subr.bf16.mxu0 0
    %1184 = vmatpush1.bf16.msra.mxu0 %v1162
    %1185 = vmatprep.subr.bf16.mxu0 0
    %1186 = vmatpush1.bf16.msra.mxu0 %v1160
    %1187 = vmatprep.subr.bf16.mxu0 0
    %1188 = vmatpush2.bf16.msra.mxu0 0
    %1189 = vmatprep.subr.bf16.mxu0 0
    %1190 = vmatpush2.bf16.msra.mxu0 0
    %1191 = vmatprep.subr.bf16.mxu0 0
    %1192 = vmatpush2.bf16.msra.mxu0 0
    %1193 = vmatprep.subr.bf16.mxu0 0
    %1194 = vmatpush2.bf16.msra.mxu0 0
    %1195 = vmatprep.subr.bf16.mxu0 0
    %1196 = vmatpush2.bf16.msra.mxu0 0
    %1197 = vmatprep.subr.bf16.mxu0 0
    %1198 = vmatpush2.bf16.msra.mxu0 0
    %1199 = vmatprep.subr.bf16.mxu0 0
    %1200 = vmatpush2.bf16.msra.mxu0 0
    %1201 = vmatprep.subr.bf16.mxu0 0
    %1202 = vmatpush2.bf16.msra.mxu0 0
    %1203 = vmatprep.mubr.bf16.mxu0 0
    %1204 = vmatmul.mubr.bf16.gmra.mxu0 %v1166
    %v1205 = vpop.f32.mrf.mxu0
    %v1206 = vadd.f32 0.0, %v1205
    %v1207 = vpop.f32.mrf.mxu0
    %v1208 = vpop.f32.mrf.mxu0
    %v1209 = vadd.f32 0.0, %v1208
    %v1210 = vpop.f32.mrf.mxu0
    %1211 = vmatprep.mubr.bf16.mxu0 0
    %1212 = vmatmul.mubr.bf16.gmra.mxu0 %v1169
    %v1213 = vpop.f32.mrf.mxu0
    %v1214 = vadd.f32 0.0, %v1213
    %v1215 = vpop.f32.mrf.mxu0
    %v1216 = vpop.f32.mrf.mxu0
    %v1217 = vadd.f32 0.0, %v1216
    %v1218 = vpop.f32.mrf.mxu0
    %1219 = vdwg.mxu0
    %1220 = vrot.lane.b32.xlu0 %v669, 32
    %v1221 = vpop.permute.xlu0 %1220
    %1222 = vrot.lane.b32.xlu0 %v670, 32
    %v1223 = vpop.permute.xlu0 %1222
    %1224 = vrot.lane.b32.xlu0 %v671, 32
    %v1225 = vpop.permute.xlu0 %1224
    %1226 = vrot.lane.b32.xlu0 %v672, 32
    %v1227 = vpop.permute.xlu0 %1226
    %v1229 = vsel %vm675, %v1221, 0
    %v1232 = vsel %vm675, %v1223, 0
    %v1235 = vsel %vm675, %v1225, 0
    %v1238 = vsel %vm675, %v1227, 0
    %1240 = vmatprep.subr.bf16.mxu0 0
    %1241 = vmatpush1.bf16.xpose.msra.mxu0 0
    %1242 = vmatprep.subr.bf16.mxu0 0
    %1243 = vmatpush1.bf16.xpose.msra.mxu0 0
    %1244 = vmatprep.subr.bf16.mxu0 0
    %1245 = vmatpush1.bf16.xpose.msra.mxu0 0
    %1246 = vmatprep.subr.bf16.mxu0 0
    %1247 = vmatpush1.bf16.xpose.msra.mxu0 0
    %1248 = vmatprep.subr.bf16.mxu0 0
    %1249 = vmatpush1.bf16.xpose.msra.mxu0 0
    %1250 = vmatprep.subr.bf16.mxu0 0
    %1251 = vmatpush1.bf16.xpose.msra.mxu0 0
    %1252 = vmatprep.subr.bf16.mxu0 0
    %1253 = vmatpush1.bf16.xpose.msra.mxu0 %v1238
    %1254 = vmatprep.subr.bf16.mxu0 0
    %1255 = vmatpush1.bf16.xpose.msra.mxu0 %v1235
    %1256 = vmatprep.subr.bf16.mxu0 0
    %1257 = vmatpush2.bf16.xpose.msra.mxu0 0
    %1258 = vmatprep.subr.bf16.mxu0 0
    %1259 = vmatpush2.bf16.xpose.msra.mxu0 0
    %1260 = vmatprep.subr.bf16.mxu0 0
    %1261 = vmatpush2.bf16.xpose.msra.mxu0 0
    %1262 = vmatprep.subr.bf16.mxu0 0
    %1263 = vmatpush2.bf16.xpose.msra.mxu0 0
    %1264 = vmatprep.subr.bf16.mxu0 0
    %1265 = vmatpush2.bf16.xpose.msra.mxu0 0
    %1266 = vmatprep.subr.bf16.mxu0 0
    %1267 = vmatpush2.bf16.xpose.msra.mxu0 0
    %1268 = vmatprep.subr.bf16.mxu0 0
    %1269 = vmatpush2.bf16.xpose.msra.mxu0 0
    %1270 = vmatprep.subr.bf16.mxu0 0
    %1271 = vmatpush2.bf16.xpose.msra.mxu0 0
    %1272 = vmatprep.mubr.bf16.mxu0 0
    %1273 = vmatmul.mubr.bf16.gmra.mxu0 %v1229
    %v1274 = vpop.f32.mrf.mxu0
    %v1275 = vadd.f32 0.0, %v1274
    %v1276 = vpop.f32.mrf.mxu0
    %v1277 = vpop.f32.mrf.mxu0
    %v1278 = vadd.f32 0.0, %v1277
    %v1279 = vpop.f32.mrf.mxu0
    %1280 = vmatprep.mubr.bf16.mxu0 0
    %1281 = vmatmul.mubr.bf16.gmra.mxu0 %v1232
    %v1282 = vpop.f32.mrf.mxu0
    %v1283 = vadd.f32 0.0, %v1282
    %v1284 = vpop.f32.mrf.mxu0
    %v1285 = vpop.f32.mrf.mxu0
    %v1286 = vadd.f32 0.0, %v1285
    %v1287 = vpop.f32.mrf.mxu0
    %1288 = vdwg.mxu0
    %v1289 = vmul.f32 %v1275, 0.17677669
    %v1290 = vmul.f32 %v1278, 0.17677669
    %v1291 = vmul.f32 %v1283, 0.17677669
    %v1292 = vmul.f32 %v1286, 0.17677669
    %v1293 = vadd.f32 %v1289, %v368
    %v1294 = vadd.f32 %v1290, %v369
    %v1295 = vadd.f32 %v1291, %v370
    %v1296 = vadd.f32 %v1292, %v371
    %v1297 = vsel %vm675, %v1293, -inf
    %1298 = vmax.xlane.f32.xlu0 %v1297
    %v1299 = vpop.xlane.xlu0 %1298
    %v1300 = vsel %vm675, %v1294, -inf
    %1301 = vmax.xlane.f32.xlu0 %v1300
    %v1302 = vpop.xlane.xlu0 %1301
    %v1303 = vsel %vm675, %v1295, -inf
    %1304 = vmax.xlane.f32.xlu0 %v1303
    %v1305 = vpop.xlane.xlu0 %1304
    %v1306 = vsel %vm675, %v1296, -inf
    %1307 = vmax.xlane.f32.xlu0 %v1306
    %v1308 = vpop.xlane.xlu0 %1307
    %v1309 = vsub.f32 %v1293, %v1299
    %v1310 = vsub.f32 %v1294, %v1302
    %v1311 = vsub.f32 %v1295, %v1305
    %v1312 = vsub.f32 %v1296, %v1308
    %v1313 = vmul.f32 %v1309, 1.442695
    %v1314 = vpow.pop %v1313
    %v1315 = vmul.f32 %v1310, 1.442695
    %v1316 = vpow.pop %v1315
    %v1317 = vmul.f32 %v1311, 1.442695
    %v1318 = vpow.pop %v1317
    %v1319 = vmul.f32 %v1312, 1.442695
    %v1320 = vpow.pop %v1319
    %v1321 = vsel %vm675, %v1314, 0.0
    %1322 = vadd.xlane.f32.xlu0 %v1321
    %v1323 = vpop.xlane.xlu0 %1322
    %v1324 = vsel %vm675, %v1316, 0.0
    %1325 = vadd.xlane.f32.xlu0 %v1324
    %v1326 = vpop.xlane.xlu0 %1325
    %v1327 = vsel %vm675, %v1318, 0.0
    %1328 = vadd.xlane.f32.xlu0 %v1327
    %v1329 = vpop.xlane.xlu0 %1328
    %v1330 = vsel %vm675, %v1320, 0.0
    %1331 = vadd.xlane.f32.xlu0 %v1330
    %v1332 = vpop.xlane.xlu0 %1331
    %v1333 = vrcp.pop %v1323
    %v1334 = vrcp.pop %v1326
    %v1335 = vrcp.pop %v1329
    %v1336 = vrcp.pop %v1332
    %v1337 = vmul.f32 %v1314, %v1333
    %v1338 = vmul.f32 %v1316, %v1334
    %v1339 = vmul.f32 %v1318, %v1335
    %v1340 = vmul.f32 %v1320, %v1336
    %v1341 = vpack.c.bf16 %v1338, %v1337
    %v1342 = vpack.c.bf16 %v1340, %v1339
    %1343 = vrot.lane.b32.xlu0 %v673, 32
    %v1344 = vpop.permute.xlu0 %1343
    %1345 = vrot.lane.b32.xlu0 %v674, 32
    %v1346 = vpop.permute.xlu0 %1345
    %v1350 = vsel %vm675, %v1341, 0
    %v1353 = vsel %vm675, %v1342, 0
    %1355 = vmatprep.subr.bf16.mxu0 0
    %1356 = vmatpush1.bf16.msra.mxu0 0
    %1357 = vmatprep.subr.bf16.mxu0 0
    %1358 = vmatpush1.bf16.msra.mxu0 0
    %1359 = vmatprep.subr.bf16.mxu0 0
    %1360 = vmatpush1.bf16.msra.mxu0 0
    %1361 = vmatprep.subr.bf16.mxu0 0
    %1362 = vmatpush1.bf16.msra.mxu0 0
    %1363 = vmatprep.subr.bf16.mxu0 0
    %1364 = vmatpush1.bf16.msra.mxu0 0
    %1365 = vmatprep.subr.bf16.mxu0 0
    %1366 = vmatpush1.bf16.msra.mxu0 0
    %1367 = vmatprep.subr.bf16.mxu0 0
    %1368 = vmatpush1.bf16.msra.mxu0 %v1346
    %1369 = vmatprep.subr.bf16.mxu0 0
    %1370 = vmatpush1.bf16.msra.mxu0 %v1344
    %1371 = vmatprep.subr.bf16.mxu0 0
    %1372 = vmatpush2.bf16.msra.mxu0 0
    %1373 = vmatprep.subr.bf16.mxu0 0
    %1374 = vmatpush2.bf16.msra.mxu0 0
    %1375 = vmatprep.subr.bf16.mxu0 0
    %1376 = vmatpush2.bf16.msra.mxu0 0
    %1377 = vmatprep.subr.bf16.mxu0 0
    %1378 = vmatpush2.bf16.msra.mxu0 0
    %1379 = vmatprep.subr.bf16.mxu0 0
    %1380 = vmatpush2.bf16.msra.mxu0 0
    %1381 = vmatprep.subr.bf16.mxu0 0
    %1382 = vmatpush2.bf16.msra.mxu0 0
    %1383 = vmatprep.subr.bf16.mxu0 0
    %1384 = vmatpush2.bf16.msra.mxu0 0
    %1385 = vmatprep.subr.bf16.mxu0 0
    %1386 = vmatpush2.bf16.msra.mxu0 0
    %1387 = vmatprep.mubr.bf16.mxu0 0
    %1388 = vmatmul.mubr.bf16.gmra.mxu0 %v1350
    %v1389 = vpop.f32.mrf.mxu0
    %v1390 = vadd.f32 0.0, %v1389
    %v1391 = vpop.f32.mrf.mxu0
    %v1392 = vpop.f32.mrf.mxu0
    %v1393 = vadd.f32 0.0, %v1392
    %v1394 = vpop.f32.mrf.mxu0
    %1395 = vmatprep.mubr.bf16.mxu0 0
    %1396 = vmatmul.mubr.bf16.gmra.mxu0 %v1353
    %v1397 = vpop.f32.mrf.mxu0
    %v1398 = vadd.f32 0.0, %v1397
    %v1399 = vpop.f32.mrf.mxu0
    %v1400 = vpop.f32.mrf.mxu0
    %v1401 = vadd.f32 0.0, %v1400
    %v1402 = vpop.f32.mrf.mxu0
    %1403 = vdwg.mxu0
    %1408 = vrot.lane.b32.xlu0 %v1022, 32
    %v1409 = vpop.permute.xlu0 %1408
    %1410 = vrot.lane.b32.xlu0 %v1025, 32
    %v1411 = vpop.permute.xlu0 %1410
    %1412 = vrot.lane.b32.xlu0 %v1030, 32
    %v1413 = vpop.permute.xlu0 %1412
    %1414 = vrot.lane.b32.xlu0 %v1033, 32
    %v1415 = vpop.permute.xlu0 %1414
    %1424 = vrot.lane.b32.xlu0 %v1206, 64
    %v1425 = vpop.permute.xlu0 %1424
    %1426 = vrot.lane.b32.xlu0 %v1209, 64
    %v1427 = vpop.permute.xlu0 %1426
    %1428 = vrot.lane.b32.xlu0 %v1214, 64
    %v1429 = vpop.permute.xlu0 %1428
    %1430 = vrot.lane.b32.xlu0 %v1217, 64
    %v1431 = vpop.permute.xlu0 %1430
    %1440 = vrot.lane.b32.xlu0 %v1390, 96
    %v1441 = vpop.permute.xlu0 %1440
    %1442 = vrot.lane.b32.xlu0 %v1393, 96
    %v1443 = vpop.permute.xlu0 %1442
    %1444 = vrot.lane.b32.xlu0 %v1398, 96
    %v1445 = vpop.permute.xlu0 %1444
    %1446 = vrot.lane.b32.xlu0 %v1401, 96
    %v1447 = vpop.permute.xlu0 %1446
    %v1452 = vsel %vm675, %v832, %v1409
    %v1453 = vsel %vm675, %v835, %v1411
    %v1454 = vsel %vm675, %v840, %v1413
    %v1455 = vsel %vm675, %v843, %v1415
    %vm1456 = vcmask 523264
    %v1457 = vsel %vm1456, %v1452, %v1425
    %v1458 = vsel %vm1456, %v1453, %v1427
    %v1459 = vsel %vm1456, %v1454, %v1429
    %v1460 = vsel %vm1456, %v1455, %v1431
    %vm1461 = vcmask 785408
    %v1462 = vsel %vm1461, %v1457, %v1441
    %v1463 = vsel %vm1461, %v1458, %v1443
    %v1464 = vsel %vm1461, %v1459, %v1445
    %v1465 = vsel %vm1461, %v1460, %v1447
    %v1466 = vpack.c.bf16 %v1463, %v1462
    %v1467 = vpack.c.bf16 %v1465, %v1464
    %v1468 = vld [vmem:[%s9] sm:$0x1]
    %v1470 = vlaneseq
    %v1471 = vshrl.u32 %v1470, 7
    %v1472 = vsub.s32 0, %v1471
    %v1473 = vrot.slane %v1468, %v1472
    %v1491 = vunpack.c.l.b16 %v404
    %v1492 = vunpack.c.l.b16 %v405
    %v1493 = vunpack.c.l.b16 %v406
    %v1494 = vunpack.c.l.b16 %v407
    %v1495 = vunpack.c.l.b16 %v408
    %v1496 = vunpack.c.l.b16 %v409
    %v1497 = vunpack.c.l.b16 %v410
    %v1498 = vunpack.c.l.b16 %v411
    %v1499 = vunpack.c.l.b16 %v412
    %v1500 = vunpack.c.l.b16 %v413
    %v1501 = vunpack.c.l.b16 %v414
    %v1502 = vunpack.c.l.b16 %v415
    %v1503 = vunpack.c.l.b16 %v416
    %v1504 = vunpack.c.l.b16 %v417
    %v1505 = vunpack.c.l.b16 %v418
    %v1506 = vunpack.c.l.b16 %v419
    %v1507 = vpack.c.b16 %v1492, %v1491
    %v1508 = vpack.c.b16 %v1494, %v1493
    %v1509 = vpack.c.b16 %v1496, %v1495
    %v1510 = vpack.c.b16 %v1498, %v1497
    %v1511 = vpack.c.b16 %v1500, %v1499
    %v1512 = vpack.c.b16 %v1502, %v1501
    %v1513 = vpack.c.b16 %v1504, %v1503
    %v1514 = vpack.c.b16 %v1506, %v1505
    %1523 = vmatprep.subr.bf16.mxu0 0
    %1524 = vmatpush1.bf16.msra.mxu0 %v1514
    %1525 = vmatprep.subr.bf16.mxu0 0
    %1526 = vmatpush1.bf16.msra.mxu0 %v1513
    %1527 = vmatprep.subr.bf16.mxu0 0
    %1528 = vmatpush1.bf16.msra.mxu0 %v1512
    %1529 = vmatprep.subr.bf16.mxu0 0
    %1530 = vmatpush1.bf16.msra.mxu0 %v1511
    %1531 = vmatprep.subr.bf16.mxu0 0
    %1532 = vmatpush1.bf16.msra.mxu0 %v1510
    %1533 = vmatprep.subr.bf16.mxu0 0
    %1534 = vmatpush1.bf16.msra.mxu0 %v1509
    %1535 = vmatprep.subr.bf16.mxu0 0
    %1536 = vmatpush1.bf16.msra.mxu0 %v1508
    %1537 = vmatprep.subr.bf16.mxu0 0
    %1538 = vmatpush1.bf16.msra.mxu0 %v1507
    %1539 = vmatprep.subr.bf16.mxu0 0
    %1540 = vmatpush2.bf16.msra.mxu0 0
    %1541 = vmatprep.subr.bf16.mxu0 0
    %1542 = vmatpush2.bf16.msra.mxu0 0
    %1543 = vmatprep.subr.bf16.mxu0 0
    %1544 = vmatpush2.bf16.msra.mxu0 0
    %1545 = vmatprep.subr.bf16.mxu0 0
    %1546 = vmatpush2.bf16.msra.mxu0 0
    %1547 = vmatprep.subr.bf16.mxu0 0
    %1548 = vmatpush2.bf16.msra.mxu0 0
    %1549 = vmatprep.subr.bf16.mxu0 0
    %1550 = vmatpush2.bf16.msra.mxu0 0
    %1551 = vmatprep.subr.bf16.mxu0 0
    %1552 = vmatpush2.bf16.msra.mxu0 0
    %1553 = vmatprep.subr.bf16.mxu0 0
    %1554 = vmatpush2.bf16.msra.mxu0 0
    %1555 = vmatprep.mubr.bf16.mxu0 0
    %1556 = vmatmul.mubr.bf16.gmra.mxu0 %v1466
    %v1557 = vpop.f32.mrf.mxu0
    %v1558 = vadd.f32 %v1473, %v1557
    %v1559 = vpop.f32.mrf.mxu0
    %v1560 = vpop.f32.mrf.mxu0
    %v1561 = vadd.f32 %v1473, %v1560
    %v1562 = vpop.f32.mrf.mxu0
    %1563 = vmatprep.mubr.bf16.mxu0 0
    %1564 = vmatmul.mubr.bf16.gmra.mxu0 %v1467
    %v1565 = vpop.f32.mrf.mxu0
    %v1566 = vadd.f32 %v1473, %v1565
    %v1567 = vpop.f32.mrf.mxu0
    %v1568 = vpop.f32.mrf.mxu0
    %v1569 = vadd.f32 %v1473, %v1568
    %v1570 = vpop.f32.mrf.mxu0
    %1571 = vdwg.mxu0
    %v1572 = vadd.f32 %v364, %v1558
    %v1573 = vadd.f32 %v365, %v1561
    %v1574 = vadd.f32 %v366, %v1566
    %v1575 = vadd.f32 %v367, %v1569
    %v1576 = vld [vmem:[%s10] sm:$0x1]
    %v1577 = vld [vmem:[%s11] sm:$0x1]
    %1578 = vadd.xlane.f32.xlu0 %v1572
    %v1579 = vpop.xlane.xlu0 %1578
    %1580 = vadd.xlane.f32.xlu0 %v1573
    %v1581 = vpop.xlane.xlu0 %1580
    %1582 = vadd.xlane.f32.xlu0 %v1574
    %v1583 = vpop.xlane.xlu0 %1582
    %1584 = vadd.xlane.f32.xlu0 %v1575
    %v1585 = vpop.xlane.xlu0 %1584
    %v1586 = vrcp.pop 128.0
    %v1587 = vmul.f32 %v1579, %v1586
    %v1588 = vmul.f32 %v1581, %v1586
    %v1589 = vmul.f32 %v1583, %v1586
    %v1590 = vmul.f32 %v1585, %v1586
    %v1591 = vsub.f32 %v1572, %v1587
    %v1592 = vsub.f32 %v1573, %v1588
    %v1593 = vsub.f32 %v1574, %v1589
    %v1594 = vsub.f32 %v1575, %v1590
    %v1595 = vmul.f32 %v1591, %v1591
    %v1596 = vmul.f32 %v1592, %v1592
    %v1597 = vmul.f32 %v1593, %v1593
    %v1598 = vmul.f32 %v1594, %v1594
    %1599 = vadd.xlane.f32.xlu0 %v1595
    %v1600 = vpop.xlane.xlu0 %1599
    %1601 = vadd.xlane.f32.xlu0 %v1596
    %v1602 = vpop.xlane.xlu0 %1601
    %1603 = vadd.xlane.f32.xlu0 %v1597
    %v1604 = vpop.xlane.xlu0 %1603
    %1605 = vadd.xlane.f32.xlu0 %v1598
    %v1606 = vpop.xlane.xlu0 %1605
    %v1607 = vmul.f32 %v1600, %v1586
    %v1608 = vmul.f32 %v1602, %v1586
    %v1609 = vmul.f32 %v1604, %v1586
    %v1610 = vmul.f32 %v1606, %v1586
    %v1611 = vadd.f32 %v1607, 1e-05
    %v1612 = vadd.f32 %v1608, 1e-05
    %v1613 = vadd.f32 %v1609, 1e-05
    %v1614 = vadd.f32 %v1610, 1e-05
    %v1615 = vrsqrt.pop %v1611
    %v1616 = vrsqrt.pop %v1612
    %v1617 = vrsqrt.pop %v1613
    %v1618 = vrsqrt.pop %v1614
    %v1619 = vmul.f32 %v1591, %v1615
    %v1620 = vmul.f32 %v1592, %v1616
    %v1621 = vmul.f32 %v1593, %v1617
    %v1622 = vmul.f32 %v1594, %v1618
    %v1624 = vlaneseq
    %v1625 = vshrl.u32 %v1624, 7
    %v1626 = vsub.s32 0, %v1625
    %v1627 = vrot.slane %v1576, %v1626
    %v1629 = vmul.f32 %v1619, %v1627
    %v1630 = vmul.f32 %v1620, %v1627
    %v1631 = vmul.f32 %v1621, %v1627
    %v1632 = vmul.f32 %v1622, %v1627
    %v1634 = vlaneseq
    %v1635 = vshrl.u32 %v1634, 7
    %v1636 = vsub.s32 0, %v1635
    %v1637 = vrot.slane %v1577, %v1636
    %v1639 = vadd.f32 %v1629, %v1637
    %v1640 = vadd.f32 %v1630, %v1637
    %v1641 = vadd.f32 %v1631, %v1637
    %v1642 = vadd.f32 %v1632, %v1637
    %v1643 = vpack.c.bf16 %v1640, %v1639
    %v1644 = vpack.c.bf16 %v1642, %v1641
    %v1645 = vld [vmem:[#allocation11] sm:$0xff]
    %v1646 = vld [vmem:[#allocation11 + $0x8] sm:$0xff]
    %v1647 = vld [vmem:[#allocation11 + $0x10] sm:$0xff]
    %v1648 = vld [vmem:[#allocation11 + $0x18] sm:$0xff]
    %v1649 = vld [vmem:[#allocation11 + $0x20] sm:$0xff]
    %v1650 = vld [vmem:[#allocation11 + $0x28] sm:$0xff]
    %v1651 = vld [vmem:[#allocation11 + $0x30] sm:$0xff]
    %v1652 = vld [vmem:[#allocation11 + $0x38] sm:$0xff]
    %v1653 = vld [vmem:[#allocation11 + $0x40] sm:$0xff]
    %v1654 = vld [vmem:[#allocation11 + $0x48] sm:$0xff]
    %v1655 = vld [vmem:[#allocation11 + $0x50] sm:$0xff]
    %v1656 = vld [vmem:[#allocation11 + $0x58] sm:$0xff]
    %v1657 = vld [vmem:[#allocation11 + $0x60] sm:$0xff]
    %v1658 = vld [vmem:[#allocation11 + $0x68] sm:$0xff]
    %v1659 = vld [vmem:[#allocation11 + $0x70] sm:$0xff]
    %v1660 = vld [vmem:[#allocation11 + $0x78] sm:$0xff]
    %v1661 = vld [vmem:[#allocation11 + $0x80] sm:$0xff]
    %v1662 = vld [vmem:[#allocation11 + $0x88] sm:$0xff]
    %v1663 = vld [vmem:[#allocation11 + $0x90] sm:$0xff]
    %v1664 = vld [vmem:[#allocation11 + $0x98] sm:$0xff]
    %v1665 = vld [vmem:[#allocation11 + $0xa0] sm:$0xff]
    %v1666 = vld [vmem:[#allocation11 + $0xa8] sm:$0xff]
    %v1667 = vld [vmem:[#allocation11 + $0xb0] sm:$0xff]
    %v1668 = vld [vmem:[#allocation11 + $0xb8] sm:$0xff]
    %v1669 = vld [vmem:[#allocation11 + $0xc0] sm:$0xff]
    %v1670 = vld [vmem:[#allocation11 + $0xc8] sm:$0xff]
    %v1671 = vld [vmem:[#allocation11 + $0xd0] sm:$0xff]
    %v1672 = vld [vmem:[#allocation11 + $0xd8] sm:$0xff]
    %v1673 = vld [vmem:[#allocation11 + $0xe0] sm:$0xff]
    %v1674 = vld [vmem:[#allocation11 + $0xe8] sm:$0xff]
    %v1675 = vld [vmem:[#allocation11 + $0xf0] sm:$0xff]
    %v1676 = vld [vmem:[#allocation11 + $0xf8] sm:$0xff]
    %v1677 = vld [vmem:[#allocation11 + $0x100] sm:$0xff]
    %v1678 = vld [vmem:[#allocation11 + $0x108] sm:$0xff]
    %v1679 = vld [vmem:[#allocation11 + $0x110] sm:$0xff]
    %v1680 = vld [vmem:[#allocation11 + $0x118] sm:$0xff]
    %v1681 = vld [vmem:[#allocation11 + $0x120] sm:$0xff]
    %v1682 = vld [vmem:[#allocation11 + $0x128] sm:$0xff]
    %v1683 = vld [vmem:[#allocation11 + $0x130] sm:$0xff]
    %v1684 = vld [vmem:[#allocation11 + $0x138] sm:$0xff]
    %v1685 = vld [vmem:[#allocation11 + $0x140] sm:$0xff]
    %v1686 = vld [vmem:[#allocation11 + $0x148] sm:$0xff]
    %v1687 = vld [vmem:[#allocation11 + $0x150] sm:$0xff]
    %v1688 = vld [vmem:[#allocation11 + $0x158] sm:$0xff]
    %v1689 = vld [vmem:[#allocation11 + $0x160] sm:$0xff]
    %v1690 = vld [vmem:[#allocation11 + $0x168] sm:$0xff]
    %v1691 = vld [vmem:[#allocation11 + $0x170] sm:$0xff]
    %v1692 = vld [vmem:[#allocation11 + $0x178] sm:$0xff]
    %v1693 = vld [vmem:[#allocation11 + $0x180] sm:$0xff]
    %v1694 = vld [vmem:[#allocation11 + $0x188] sm:$0xff]
    %v1695 = vld [vmem:[#allocation11 + $0x190] sm:$0xff]
    %v1696 = vld [vmem:[#allocation11 + $0x198] sm:$0xff]
    %v1697 = vld [vmem:[#allocation11 + $0x1a0] sm:$0xff]
    %v1698 = vld [vmem:[#allocation11 + $0x1a8] sm:$0xff]
    %v1699 = vld [vmem:[#allocation11 + $0x1b0] sm:$0xff]
    %v1700 = vld [vmem:[#allocation11 + $0x1b8] sm:$0xff]
    %v1701 = vld [vmem:[#allocation11 + $0x1c0] sm:$0xff]
    %v1702 = vld [vmem:[#allocation11 + $0x1c8] sm:$0xff]
    %v1703 = vld [vmem:[#allocation11 + $0x1d0] sm:$0xff]
    %v1704 = vld [vmem:[#allocation11 + $0x1d8] sm:$0xff]
    %v1705 = vld [vmem:[#allocation11 + $0x1e0] sm:$0xff]
    %v1706 = vld [vmem:[#allocation11 + $0x1e8] sm:$0xff]
    %v1707 = vld [vmem:[#allocation11 + $0x1f0] sm:$0xff]
    %v1708 = vld [vmem:[#allocation11 + $0x1f8] sm:$0xff]
    %v1709 = vld [vmem:[#allocation11 + $0x200] sm:$0xff]
    %v1710 = vld [vmem:[#allocation11 + $0x208] sm:$0xff]
    %v1711 = vld [vmem:[#allocation11 + $0x210] sm:$0xff]
    %v1712 = vld [vmem:[#allocation11 + $0x218] sm:$0xff]
    %v1713 = vld [vmem:[#allocation11 + $0x220] sm:$0xff]
    %v1714 = vld [vmem:[#allocation11 + $0x228] sm:$0xff]
    %v1715 = vld [vmem:[#allocation11 + $0x230] sm:$0xff]
    %v1716 = vld [vmem:[#allocation11 + $0x238] sm:$0xff]
    %v1717 = vld [vmem:[#allocation11 + $0x240] sm:$0xff]
    %v1718 = vld [vmem:[#allocation11 + $0x248] sm:$0xff]
    %v1719 = vld [vmem:[#allocation11 + $0x250] sm:$0xff]
    %v1720 = vld [vmem:[#allocation11 + $0x258] sm:$0xff]
    %v1721 = vld [vmem:[#allocation11 + $0x260] sm:$0xff]
    %v1722 = vld [vmem:[#allocation11 + $0x268] sm:$0xff]
    %v1723 = vld [vmem:[#allocation11 + $0x270] sm:$0xff]
    %v1724 = vld [vmem:[#allocation11 + $0x278] sm:$0xff]
    %v1725 = vld [vmem:[#allocation11 + $0x280] sm:$0xff]
    %v1726 = vld [vmem:[#allocation11 + $0x288] sm:$0xff]
    %v1727 = vld [vmem:[#allocation11 + $0x290] sm:$0xff]
    %v1728 = vld [vmem:[#allocation11 + $0x298] sm:$0xff]
    %v1729 = vld [vmem:[#allocation11 + $0x2a0] sm:$0xff]
    %v1730 = vld [vmem:[#allocation11 + $0x2a8] sm:$0xff]
    %v1731 = vld [vmem:[#allocation11 + $0x2b0] sm:$0xff]
    %v1732 = vld [vmem:[#allocation11 + $0x2b8] sm:$0xff]
    %v1733 = vld [vmem:[#allocation11 + $0x2c0] sm:$0xff]
    %v1734 = vld [vmem:[#allocation11 + $0x2c8] sm:$0xff]
    %v1735 = vld [vmem:[#allocation11 + $0x2d0] sm:$0xff]
    %v1736 = vld [vmem:[#allocation11 + $0x2d8] sm:$0xff]
    %v1737 = vld [vmem:[#allocation11 + $0x2e0] sm:$0xff]
    %v1738 = vld [vmem:[#allocation11 + $0x2e8] sm:$0xff]
    %v1739 = vld [vmem:[#allocation11 + $0x2f0] sm:$0xff]
    %v1740 = vld [vmem:[#allocation11 + $0x2f8] sm:$0xff]
    %v1741 = vld [vmem:[#allocation11 + $0x300] sm:$0xff]
    %v1742 = vld [vmem:[#allocation11 + $0x308] sm:$0xff]
    %v1743 = vld [vmem:[#allocation11 + $0x310] sm:$0xff]
    %v1744 = vld [vmem:[#allocation11 + $0x318] sm:$0xff]
    %v1745 = vld [vmem:[#allocation11 + $0x320] sm:$0xff]
    %v1746 = vld [vmem:[#allocation11 + $0x328] sm:$0xff]
    %v1747 = vld [vmem:[#allocation11 + $0x330] sm:$0xff]
    %v1748 = vld [vmem:[#allocation11 + $0x338] sm:$0xff]
    %v1749 = vld [vmem:[#allocation11 + $0x340] sm:$0xff]
    %v1750 = vld [vmem:[#allocation11 + $0x348] sm:$0xff]
    %v1751 = vld [vmem:[#allocation11 + $0x350] sm:$0xff]
    %v1752 = vld [vmem:[#allocation11 + $0x358] sm:$0xff]
    %v1753 = vld [vmem:[#allocation11 + $0x360] sm:$0xff]
    %v1754 = vld [vmem:[#allocation11 + $0x368] sm:$0xff]
    %v1755 = vld [vmem:[#allocation11 + $0x370] sm:$0xff]
    %v1756 = vld [vmem:[#allocation11 + $0x378] sm:$0xff]
    %v1757 = vld [vmem:[#allocation11 + $0x380] sm:$0xff]
    %v1758 = vld [vmem:[#allocation11 + $0x388] sm:$0xff]
    %v1759 = vld [vmem:[#allocation11 + $0x390] sm:$0xff]
    %v1760 = vld [vmem:[#allocation11 + $0x398] sm:$0xff]
    %v1761 = vld [vmem:[#allocation11 + $0x3a0] sm:$0xff]
    %v1762 = vld [vmem:[#allocation11 + $0x3a8] sm:$0xff]
    %v1763 = vld [vmem:[#allocation11 + $0x3b0] sm:$0xff]
    %v1764 = vld [vmem:[#allocation11 + $0x3b8] sm:$0xff]
    %v1765 = vld [vmem:[#allocation11 + $0x3c0] sm:$0xff]
    %v1766 = vld [vmem:[#allocation11 + $0x3c8] sm:$0xff]
    %v1767 = vld [vmem:[#allocation11 + $0x3d0] sm:$0xff]
    %v1768 = vld [vmem:[#allocation11 + $0x3d8] sm:$0xff]
    %v1769 = vld [vmem:[#allocation11 + $0x3e0] sm:$0xff]
    %v1770 = vld [vmem:[#allocation11 + $0x3e8] sm:$0xff]
    %v1771 = vld [vmem:[#allocation11 + $0x3f0] sm:$0xff]
    %v1772 = vld [vmem:[#allocation11 + $0x3f8] sm:$0xff]
    %v1773 = vld [vmem:[#allocation13] sm:$0xff]
    %v1774 = vld [vmem:[#allocation13 + $0x8] sm:$0xff]
    %v1777 = vlaneseq
    %v1778 = vshrl.u32 %v1777, 7
    %v1779 = vsub.s32 0, %v1778
    %v1780 = vrot.slane %v1773, %v1779
    %v1781 = vlaneseq
    %v1782 = vshrl.u32 %v1781, 7
    %v1783 = vsub.s32 1, %v1782
    %v1784 = vrot.slane %v1773, %v1783
    %v1785 = vlaneseq
    %v1786 = vshrl.u32 %v1785, 7
    %v1787 = vsub.s32 2, %v1786
    %v1788 = vrot.slane %v1773, %v1787
    %v1789 = vlaneseq
    %v1790 = vshrl.u32 %v1789, 7
    %v1791 = vsub.s32 3, %v1790
    %v1792 = vrot.slane %v1773, %v1791
    %v1793 = vlaneseq
    %v1794 = vshrl.u32 %v1793, 7
    %v1795 = vsub.s32 4, %v1794
    %v1796 = vrot.slane %v1773, %v1795
    %v1797 = vlaneseq
    %v1798 = vshrl.u32 %v1797, 7
    %v1799 = vsub.s32 5, %v1798
    %v1800 = vrot.slane %v1773, %v1799
    %v1801 = vlaneseq
    %v1802 = vshrl.u32 %v1801, 7
    %v1803 = vsub.s32 6, %v1802
    %v1804 = vrot.slane %v1773, %v1803
    %v1805 = vlaneseq
    %v1806 = vshrl.u32 %v1805, 7
    %v1807 = vsub.s32 7, %v1806
    %v1808 = vrot.slane %v1773, %v1807
    %v1809 = vlaneseq
    %v1810 = vshrl.u32 %v1809, 7
    %v1811 = vsub.s32 0, %v1810
    %v1812 = vrot.slane %v1774, %v1811
    %v1813 = vlaneseq
    %v1814 = vshrl.u32 %v1813, 7
    %v1815 = vsub.s32 1, %v1814
    %v1816 = vrot.slane %v1774, %v1815
    %v1817 = vlaneseq
    %v1818 = vshrl.u32 %v1817, 7
    %v1819 = vsub.s32 2, %v1818
    %v1820 = vrot.slane %v1774, %v1819
    %v1821 = vlaneseq
    %v1822 = vshrl.u32 %v1821, 7
    %v1823 = vsub.s32 3, %v1822
    %v1824 = vrot.slane %v1774, %v1823
    %v1825 = vlaneseq
    %v1826 = vshrl.u32 %v1825, 7
    %v1827 = vsub.s32 4, %v1826
    %v1828 = vrot.slane %v1774, %v1827
    %v1829 = vlaneseq
    %v1830 = vshrl.u32 %v1829, 7
    %v1831 = vsub.s32 5, %v1830
    %v1832 = vrot.slane %v1774, %v1831
    %v1833 = vlaneseq
    %v1834 = vshrl.u32 %v1833, 7
    %v1835 = vsub.s32 6, %v1834
    %v1836 = vrot.slane %v1774, %v1835
    %v1837 = vlaneseq
    %v1838 = vshrl.u32 %v1837, 7
    %v1839 = vsub.s32 7, %v1838
    %v1840 = vrot.slane %v1774, %v1839
    %v1985 = vunpack.c.l.b16 %v1645
    %v1986 = vunpack.c.h.b16 %v1645
    %v1987 = vunpack.c.l.b16 %v1646
    %v1988 = vunpack.c.h.b16 %v1646
    %v1989 = vunpack.c.l.b16 %v1647
    %v1990 = vunpack.c.h.b16 %v1647
    %v1991 = vunpack.c.l.b16 %v1648
    %v1992 = vunpack.c.h.b16 %v1648
    %v1993 = vunpack.c.l.b16 %v1649
    %v1994 = vunpack.c.h.b16 %v1649
    %v1995 = vunpack.c.l.b16 %v1650
    %v1996 = vunpack.c.h.b16 %v1650
    %v1997 = vunpack.c.l.b16 %v1651
    %v1998 = vunpack.c.h.b16 %v1651
    %v1999 = vunpack.c.l.b16 %v1652
    %v2000 = vunpack.c.h.b16 %v1652
    %v2001 = vunpack.c.l.b16 %v1653
    %v2002 = vunpack.c.h.b16 %v1653
    %v2003 = vunpack.c.l.b16 %v1654
    %v2004 = vunpack.c.h.b16 %v1654
    %v2005 = vunpack.c.l.b16 %v1655
    %v2006 = vunpack.c.h.b16 %v1655
    %v2007 = vunpack.c.l.b16 %v1656
    %v2008 = vunpack.c.h.b16 %v1656
    %v2009 = vunpack.c.l.b16 %v1657
    %v2010 = vunpack.c.h.b16 %v1657
    %v2011 = vunpack.c.l.b16 %v1658
    %v2012 = vunpack.c.h.b16 %v1658
    %v2013 = vunpack.c.l.b16 %v1659
    %v2014 = vunpack.c.h.b16 %v1659
    %v2015 = vunpack.c.l.b16 %v1660
    %v2016 = vunpack.c.h.b16 %v1660
    %v2017 = vunpack.c.l.b16 %v1661
    %v2018 = vunpack.c.h.b16 %v1661
    %v2019 = vunpack.c.l.b16 %v1662
    %v2020 = vunpack.c.h.b16 %v1662
    %v2021 = vunpack.c.l.b16 %v1663
    %v2022 = vunpack.c.h.b16 %v1663
    %v2023 = vunpack.c.l.b16 %v1664
    %v2024 = vunpack.c.h.b16 %v1664
    %v2025 = vunpack.c.l.b16 %v1665
    %v2026 = vunpack.c.h.b16 %v1665
    %v2027 = vunpack.c.l.b16 %v1666
    %v2028 = vunpack.c.h.b16 %v1666
    %v2029 = vunpack.c.l.b16 %v1667
    %v2030 = vunpack.c.h.b16 %v1667
    %v2031 = vunpack.c.l.b16 %v1668
    %v2032 = vunpack.c.h.b16 %v1668
    %v2033 = vunpack.c.l.b16 %v1669
    %v2034 = vunpack.c.h.b16 %v1669
    %v2035 = vunpack.c.l.b16 %v1670
    %v2036 = vunpack.c.h.b16 %v1670
    %v2037 = vunpack.c.l.b16 %v1671
    %v2038 = vunpack.c.h.b16 %v1671
    %v2039 = vunpack.c.l.b16 %v1672
    %v2040 = vunpack.c.h.b16 %v1672
    %v2041 = vunpack.c.l.b16 %v1673
    %v2042 = vunpack.c.h.b16 %v1673
    %v2043 = vunpack.c.l.b16 %v1674
    %v2044 = vunpack.c.h.b16 %v1674
    %v2045 = vunpack.c.l.b16 %v1675
    %v2046 = vunpack.c.h.b16 %v1675
    %v2047 = vunpack.c.l.b16 %v1676
    %v2048 = vunpack.c.h.b16 %v1676
    %v2049 = vunpack.c.l.b16 %v1677
    %v2050 = vunpack.c.h.b16 %v1677
    %v2051 = vunpack.c.l.b16 %v1678
    %v2052 = vunpack.c.h.b16 %v1678
    %v2053 = vunpack.c.l.b16 %v1679
    %v2054 = vunpack.c.h.b16 %v1679
    %v2055 = vunpack.c.l.b16 %v1680
    %v2056 = vunpack.c.h.b16 %v1680
    %v2057 = vunpack.c.l.b16 %v1681
    %v2058 = vunpack.c.h.b16 %v1681
    %v2059 = vunpack.c.l.b16 %v1682
    %v2060 = vunpack.c.h.b16 %v1682
    %v2061 = vunpack.c.l.b16 %v1683
    %v2062 = vunpack.c.h.b16 %v1683
    %v2063 = vunpack.c.l.b16 %v1684
    %v2064 = vunpack.c.h.b16 %v1684
    %v2065 = vunpack.c.l.b16 %v1685
    %v2066 = vunpack.c.h.b16 %v1685
    %v2067 = vunpack.c.l.b16 %v1686
    %v2068 = vunpack.c.h.b16 %v1686
    %v2069 = vunpack.c.l.b16 %v1687
    %v2070 = vunpack.c.h.b16 %v1687
    %v2071 = vunpack.c.l.b16 %v1688
    %v2072 = vunpack.c.h.b16 %v1688
    %v2073 = vunpack.c.l.b16 %v1689
    %v2074 = vunpack.c.h.b16 %v1689
    %v2075 = vunpack.c.l.b16 %v1690
    %v2076 = vunpack.c.h.b16 %v1690
    %v2077 = vunpack.c.l.b16 %v1691
    %v2078 = vunpack.c.h.b16 %v1691
    %v2079 = vunpack.c.l.b16 %v1692
    %v2080 = vunpack.c.h.b16 %v1692
    %v2081 = vunpack.c.l.b16 %v1693
    %v2082 = vunpack.c.h.b16 %v1693
    %v2083 = vunpack.c.l.b16 %v1694
    %v2084 = vunpack.c.h.b16 %v1694
    %v2085 = vunpack.c.l.b16 %v1695
    %v2086 = vunpack.c.h.b16 %v1695
    %v2087 = vunpack.c.l.b16 %v1696
    %v2088 = vunpack.c.h.b16 %v1696
    %v2089 = vunpack.c.l.b16 %v1697
    %v2090 = vunpack.c.h.b16 %v1697
    %v2091 = vunpack.c.l.b16 %v1698
    %v2092 = vunpack.c.h.b16 %v1698
    %v2093 = vunpack.c.l.b16 %v1699
    %v2094 = vunpack.c.h.b16 %v1699
    %v2095 = vunpack.c.l.b16 %v1700
    %v2096 = vunpack.c.h.b16 %v1700
    %v2097 = vunpack.c.l.b16 %v1701
    %v2098 = vunpack.c.h.b16 %v1701
    %v2099 = vunpack.c.l.b16 %v1702
    %v2100 = vunpack.c.h.b16 %v1702
    %v2101 = vunpack.c.l.b16 %v1703
    %v2102 = vunpack.c.h.b16 %v1703
    %v2103 = vunpack.c.l.b16 %v1704
    %v2104 = vunpack.c.h.b16 %v1704
    %v2105 = vunpack.c.l.b16 %v1705
    %v2106 = vunpack.c.h.b16 %v1705
    %v2107 = vunpack.c.l.b16 %v1706
    %v2108 = vunpack.c.h.b16 %v1706
    %v2109 = vunpack.c.l.b16 %v1707
    %v2110 = vunpack.c.h.b16 %v1707
    %v2111 = vunpack.c.l.b16 %v1708
    %v2112 = vunpack.c.h.b16 %v1708
    %v2113 = vunpack.c.l.b16 %v1709
    %v2114 = vunpack.c.h.b16 %v1709
    %v2115 = vunpack.c.l.b16 %v1710
    %v2116 = vunpack.c.h.b16 %v1710
    %v2117 = vunpack.c.l.b16 %v1711
    %v2118 = vunpack.c.h.b16 %v1711
    %v2119 = vunpack.c.l.b16 %v1712
    %v2120 = vunpack.c.h.b16 %v1712
    %v2121 = vunpack.c.l.b16 %v1713
    %v2122 = vunpack.c.h.b16 %v1713
    %v2123 = vunpack.c.l.b16 %v1714
    %v2124 = vunpack.c.h.b16 %v1714
    %v2125 = vunpack.c.l.b16 %v1715
    %v2126 = vunpack.c.h.b16 %v1715
    %v2127 = vunpack.c.l.b16 %v1716
    %v2128 = vunpack.c.h.b16 %v1716
    %v2129 = vunpack.c.l.b16 %v1717
    %v2130 = vunpack.c.h.b16 %v1717
    %v2131 = vunpack.c.l.b16 %v1718
    %v2132 = vunpack.c.h.b16 %v1718
    %v2133 = vunpack.c.l.b16 %v1719
    %v2134 = vunpack.c.h.b16 %v1719
    %v2135 = vunpack.c.l.b16 %v1720
    %v2136 = vunpack.c.h.b16 %v1720
    %v2137 = vunpack.c.l.b16 %v1721
    %v2138 = vunpack.c.h.b16 %v1721
    %v2139 = vunpack.c.l.b16 %v1722
    %v2140 = vunpack.c.h.b16 %v1722
    %v2141 = vunpack.c.l.b16 %v1723
    %v2142 = vunpack.c.h.b16 %v1723
    %v2143 = vunpack.c.l.b16 %v1724
    %v2144 = vunpack.c.h.b16 %v1724
    %v2145 = vunpack.c.l.b16 %v1725
    %v2146 = vunpack.c.h.b16 %v1725
    %v2147 = vunpack.c.l.b16 %v1726
    %v2148 = vunpack.c.h.b16 %v1726
    %v2149 = vunpack.c.l.b16 %v1727
    %v2150 = vunpack.c.h.b16 %v1727
    %v2151 = vunpack.c.l.b16 %v1728
    %v2152 = vunpack.c.h.b16 %v1728
    %v2153 = vunpack.c.l.b16 %v1729
    %v2154 = vunpack.c.h.b16 %v1729
    %v2155 = vunpack.c.l.b16 %v1730
    %v2156 = vunpack.c.h.b16 %v1730
    %v2157 = vunpack.c.l.b16 %v1731
    %v2158 = vunpack.c.h.b16 %v1731
    %v2159 = vunpack.c.l.b16 %v1732
    %v2160 = vunpack.c.h.b16 %v1732
    %v2161 = vunpack.c.l.b16 %v1733
    %v2162 = vunpack.c.h.b16 %v1733
    %v2163 = vunpack.c.l.b16 %v1734
    %v2164 = vunpack.c.h.b16 %v1734
    %v2165 = vunpack.c.l.b16 %v1735
    %v2166 = vunpack.c.h.b16 %v1735
    %v2167 = vunpack.c.l.b16 %v1736
    %v2168 = vunpack.c.h.b16 %v1736
    %v2169 = vunpack.c.l.b16 %v1737
    %v2170 = vunpack.c.h.b16 %v1737
    %v2171 = vunpack.c.l.b16 %v1738
    %v2172 = vunpack.c.h.b16 %v1738
    %v2173 = vunpack.c.l.b16 %v1739
    %v2174 = vunpack.c.h.b16 %v1739
    %v2175 = vunpack.c.l.b16 %v1740
    %v2176 = vunpack.c.h.b16 %v1740
    %v2177 = vunpack.c.l.b16 %v1741
    %v2178 = vunpack.c.h.b16 %v1741
    %v2179 = vunpack.c.l.b16 %v1742
    %v2180 = vunpack.c.h.b16 %v1742
    %v2181 = vunpack.c.l.b16 %v1743
    %v2182 = vunpack.c.h.b16 %v1743
    %v2183 = vunpack.c.l.b16 %v1744
    %v2184 = vunpack.c.h.b16 %v1744
    %v2185 = vunpack.c.l.b16 %v1745
    %v2186 = vunpack.c.h.b16 %v1745
    %v2187 = vunpack.c.l.b16 %v1746
    %v2188 = vunpack.c.h.b16 %v1746
    %v2189 = vunpack.c.l.b16 %v1747
    %v2190 = vunpack.c.h.b16 %v1747
    %v2191 = vunpack.c.l.b16 %v1748
    %v2192 = vunpack.c.h.b16 %v1748
    %v2193 = vunpack.c.l.b16 %v1749
    %v2194 = vunpack.c.h.b16 %v1749
    %v2195 = vunpack.c.l.b16 %v1750
    %v2196 = vunpack.c.h.b16 %v1750
    %v2197 = vunpack.c.l.b16 %v1751
    %v2198 = vunpack.c.h.b16 %v1751
    %v2199 = vunpack.c.l.b16 %v1752
    %v2200 = vunpack.c.h.b16 %v1752
    %v2201 = vunpack.c.l.b16 %v1753
    %v2202 = vunpack.c.h.b16 %v1753
    %v2203 = vunpack.c.l.b16 %v1754
    %v2204 = vunpack.c.h.b16 %v1754
    %v2205 = vunpack.c.l.b16 %v1755
    %v2206 = vunpack.c.h.b16 %v1755
    %v2207 = vunpack.c.l.b16 %v1756
    %v2208 = vunpack.c.h.b16 %v1756
    %v2209 = vunpack.c.l.b16 %v1757
    %v2210 = vunpack.c.h.b16 %v1757
    %v2211 = vunpack.c.l.b16 %v1758
    %v2212 = vunpack.c.h.b16 %v1758
    %v2213 = vunpack.c.l.b16 %v1759
    %v2214 = vunpack.c.h.b16 %v1759
    %v2215 = vunpack.c.l.b16 %v1760
    %v2216 = vunpack.c.h.b16 %v1760
    %v2217 = vunpack.c.l.b16 %v1761
    %v2218 = vunpack.c.h.b16 %v1761
    %v2219 = vunpack.c.l.b16 %v1762
    %v2220 = vunpack.c.h.b16 %v1762
    %v2221 = vunpack.c.l.b16 %v1763
    %v2222 = vunpack.c.h.b16 %v1763
    %v2223 = vunpack.c.l.b16 %v1764
    %v2224 = vunpack.c.h.b16 %v1764
    %v2225 = vunpack.c.l.b16 %v1765
    %v2226 = vunpack.c.h.b16 %v1765
    %v2227 = vunpack.c.l.b16 %v1766
    %v2228 = vunpack.c.h.b16 %v1766
    %v2229 = vunpack.c.l.b16 %v1767
    %v2230 = vunpack.c.h.b16 %v1767
    %v2231 = vunpack.c.l.b16 %v1768
    %v2232 = vunpack.c.h.b16 %v1768
    %v2233 = vunpack.c.l.b16 %v1769
    %v2234 = vunpack.c.h.b16 %v1769
    %v2235 = vunpack.c.l.b16 %v1770
    %v2236 = vunpack.c.h.b16 %v1770
    %v2237 = vunpack.c.l.b16 %v1771
    %v2238 = vunpack.c.h.b16 %v1771
    %v2239 = vunpack.c.l.b16 %v1772
    %v2240 = vunpack.c.h.b16 %v1772
    %v2241 = vpack.c.b16 %v2001, %v1985
    %v2242 = vpack.c.b16 %v2002, %v1986
    %v2243 = vpack.c.b16 %v2003, %v1987
    %v2244 = vpack.c.b16 %v2004, %v1988
    %v2245 = vpack.c.b16 %v2005, %v1989
    %v2246 = vpack.c.b16 %v2006, %v1990
    %v2247 = vpack.c.b16 %v2007, %v1991
    %v2248 = vpack.c.b16 %v2008, %v1992
    %v2249 = vpack.c.b16 %v2009, %v1993
    %v2250 = vpack.c.b16 %v2010, %v1994
    %v2251 = vpack.c.b16 %v2011, %v1995
    %v2252 = vpack.c.b16 %v2012, %v1996
    %v2253 = vpack.c.b16 %v2013, %v1997
    %v2254 = vpack.c.b16 %v2014, %v1998
    %v2255 = vpack.c.b16 %v2015, %v1999
    %v2256 = vpack.c.b16 %v2016, %v2000
    %v2257 = vpack.c.b16 %v2033, %v2017
    %v2258 = vpack.c.b16 %v2034, %v2018
    %v2259 = vpack.c.b16 %v2035, %v2019
    %v2260 = vpack.c.b16 %v2036, %v2020
    %v2261 = vpack.c.b16 %v2037, %v2021
    %v2262 = vpack.c.b16 %v2038, %v2022
    %v2263 = vpack.c.b16 %v2039, %v2023
    %v2264 = vpack.c.b16 %v2040, %v2024
    %v2265 = vpack.c.b16 %v2041, %v2025
    %v2266 = vpack.c.b16 %v2042, %v2026
    %v2267 = vpack.c.b16 %v2043, %v2027
    %v2268 = vpack.c.b16 %v2044, %v2028
    %v2269 = vpack.c.b16 %v2045, %v2029
    %v2270 = vpack.c.b16 %v2046, %v2030
    %v2271 = vpack.c.b16 %v2047, %v2031
    %v2272 = vpack.c.b16 %v2048, %v2032
    %v2273 = vpack.c.b16 %v2065, %v2049
    %v2274 = vpack.c.b16 %v2066, %v2050
    %v2275 = vpack.c.b16 %v2067, %v2051
    %v2276 = vpack.c.b16 %v2068, %v2052
    %v2277 = vpack.c.b16 %v2069, %v2053
    %v2278 = vpack.c.b16 %v2070, %v2054
    %v2279 = vpack.c.b16 %v2071, %v2055
    %v2280 = vpack.c.b16 %v2072, %v2056
    %v2281 = vpack.c.b16 %v2073, %v2057
    %v2282 = vpack.c.b16 %v2074, %v2058
    %v2283 = vpack.c.b16 %v2075, %v2059
    %v2284 = vpack.c.b16 %v2076, %v2060
    %v2285 = vpack.c.b16 %v2077, %v2061
    %v2286 = vpack.c.b16 %v2078, %v2062
    %v2287 = vpack.c.b16 %v2079, %v2063
    %v2288 = vpack.c.b16 %v2080, %v2064
    %v2289 = vpack.c.b16 %v2097, %v2081
    %v2290 = vpack.c.b16 %v2098, %v2082
    %v2291 = vpack.c.b16 %v2099, %v2083
    %v2292 = vpack.c.b16 %v2100, %v2084
    %v2293 = vpack.c.b16 %v2101, %v2085
    %v2294 = vpack.c.b16 %v2102, %v2086
    %v2295 = vpack.c.b16 %v2103, %v2087
    %v2296 = vpack.c.b16 %v2104, %v2088
    %v2297 = vpack.c.b16 %v2105, %v2089
    %v2298 = vpack.c.b16 %v2106, %v2090
    %v2299 = vpack.c.b16 %v2107, %v2091
    %v2300 = vpack.c.b16 %v2108, %v2092
    %v2301 = vpack.c.b16 %v2109, %v2093
    %v2302 = vpack.c.b16 %v2110, %v2094
    %v2303 = vpack.c.b16 %v2111, %v2095
    %v2304 = vpack.c.b16 %v2112, %v2096
    %v2305 = vpack.c.b16 %v2129, %v2113
    %v2306 = vpack.c.b16 %v2130, %v2114
    %v2307 = vpack.c.b16 %v2131, %v2115
    %v2308 = vpack.c.b16 %v2132, %v2116
    %v2309 = vpack.c.b16 %v2133, %v2117
    %v2310 = vpack.c.b16 %v2134, %v2118
    %v2311 = vpack.c.b16 %v2135, %v2119
    %v2312 = vpack.c.b16 %v2136, %v2120
    %v2313 = vpack.c.b16 %v2137, %v2121
    %v2314 = vpack.c.b16 %v2138, %v2122
    %v2315 = vpack.c.b16 %v2139, %v2123
    %v2316 = vpack.c.b16 %v2140, %v2124
    %v2317 = vpack.c.b16 %v2141, %v2125
    %v2318 = vpack.c.b16 %v2142, %v2126
    %v2319 = vpack.c.b16 %v2143, %v2127
    %v2320 = vpack.c.b16 %v2144, %v2128
    %v2321 = vpack.c.b16 %v2161, %v2145
    %v2322 = vpack.c.b16 %v2162, %v2146
    %v2323 = vpack.c.b16 %v2163, %v2147
    %v2324 = vpack.c.b16 %v2164, %v2148
    %v2325 = vpack.c.b16 %v2165, %v2149
    %v2326 = vpack.c.b16 %v2166, %v2150
    %v2327 = vpack.c.b16 %v2167, %v2151
    %v2328 = vpack.c.b16 %v2168, %v2152
    %v2329 = vpack.c.b16 %v2169, %v2153
    %v2330 = vpack.c.b16 %v2170, %v2154
    %v2331 = vpack.c.b16 %v2171, %v2155
    %v2332 = vpack.c.b16 %v2172, %v2156
    %v2333 = vpack.c.b16 %v2173, %v2157
    %v2334 = vpack.c.b16 %v2174, %v2158
    %v2335 = vpack.c.b16 %v2175, %v2159
    %v2336 = vpack.c.b16 %v2176, %v2160
    %v2337 = vpack.c.b16 %v2193, %v2177
    %v2338 = vpack.c.b16 %v2194, %v2178
    %v2339 = vpack.c.b16 %v2195, %v2179
    %v2340 = vpack.c.b16 %v2196, %v2180
    %v2341 = vpack.c.b16 %v2197, %v2181
    %v2342 = vpack.c.b16 %v2198, %v2182
    %v2343 = vpack.c.b16 %v2199, %v2183
    %v2344 = vpack.c.b16 %v2200, %v2184
    %v2345 = vpack.c.b16 %v2201, %v2185
    %v2346 = vpack.c.b16 %v2202, %v2186
    %v2347 = vpack.c.b16 %v2203, %v2187
    %v2348 = vpack.c.b16 %v2204, %v2188
    %v2349 = vpack.c.b16 %v2205, %v2189
    %v2350 = vpack.c.b16 %v2206, %v2190
    %v2351 = vpack.c.b16 %v2207, %v2191
    %v2352 = vpack.c.b16 %v2208, %v2192
    %v2353 = vpack.c.b16 %v2225, %v2209
    %v2354 = vpack.c.b16 %v2226, %v2210
    %v2355 = vpack.c.b16 %v2227, %v2211
    %v2356 = vpack.c.b16 %v2228, %v2212
    %v2357 = vpack.c.b16 %v2229, %v2213
    %v2358 = vpack.c.b16 %v2230, %v2214
    %v2359 = vpack.c.b16 %v2231, %v2215
    %v2360 = vpack.c.b16 %v2232, %v2216
    %v2361 = vpack.c.b16 %v2233, %v2217
    %v2362 = vpack.c.b16 %v2234, %v2218
    %v2363 = vpack.c.b16 %v2235, %v2219
    %v2364 = vpack.c.b16 %v2236, %v2220
    %v2365 = vpack.c.b16 %v2237, %v2221
    %v2366 = vpack.c.b16 %v2238, %v2222
    %v2367 = vpack.c.b16 %v2239, %v2223
    %v2368 = vpack.c.b16 %v2240, %v2224
    %2497 = vmatprep.subr.bf16.mxu0 %v2354
    %2498 = vmatpush1.bf16.msra.mxu0 %v2353
    %2499 = vmatprep.subr.bf16.mxu0 %v2338
    %2500 = vmatpush1.bf16.msra.mxu0 %v2337
    %2501 = vmatprep.subr.bf16.mxu0 %v2322
    %2502 = vmatpush1.bf16.msra.mxu0 %v2321
    %2503 = vmatprep.subr.bf16.mxu0 %v2306
    %2504 = vmatpush1.bf16.msra.mxu0 %v2305
    %2505 = vmatprep.subr.bf16.mxu0 %v2290
    %2506 = vmatpush1.bf16.msra.mxu0 %v2289
    %2507 = vmatprep.subr.bf16.mxu0 %v2274
    %2508 = vmatpush1.bf16.msra.mxu0 %v2273
    %2509 = vmatprep.subr.bf16.mxu0 %v2258
    %2510 = vmatpush1.bf16.msra.mxu0 %v2257
    %2511 = vmatprep.subr.bf16.mxu0 %v2242
    %2512 = vmatpush1.bf16.msra.mxu0 %v2241
    %2513 = vmatprep.subr.bf16.mxu0 0
    %2514 = vmatpush2.bf16.msra.mxu0 0
    %2515 = vmatprep.subr.bf16.mxu0 0
    %2516 = vmatpush2.bf16.msra.mxu0 0
    %2517 = vmatprep.subr.bf16.mxu0 0
    %2518 = vmatpush2.bf16.msra.mxu0 0
    %2519 = vmatprep.subr.bf16.mxu0 0
    %2520 = vmatpush2.bf16.msra.mxu0 0
    %2521 = vmatprep.subr.bf16.mxu0 0
    %2522 = vmatpush2.bf16.msra.mxu0 0
    %2523 = vmatprep.subr.bf16.mxu0 0
    %2524 = vmatpush2.bf16.msra.mxu0 0
    %2525 = vmatprep.subr.bf16.mxu0 0
    %2526 = vmatpush2.bf16.msra.mxu0 0
    %2527 = vmatprep.subr.bf16.mxu0 0
    %2528 = vmatpush2.bf16.msra.mxu0 0
    %2529 = vmatprep.mubr.bf16.mxu0 0
    %2530 = vmatmul.mubr.bf16.gmra.mxu0 %v1643
    %v2531 = vpop.f32.mrf.mxu0
    %v2532 = vadd.f32 %v1780, %v2531
    %v2533 = vpop.f32.mrf.mxu0
    %v2534 = vadd.f32 %v1784, %v2533
    %v2535 = vpop.f32.mrf.mxu0
    %v2536 = vadd.f32 %v1780, %v2535
    %v2537 = vpop.f32.mrf.mxu0
    %v2538 = vadd.f32 %v1784, %v2537
    %2539 = vmatprep.mubr.bf16.mxu0 0
    %2540 = vmatmul.mubr.bf16.gmra.mxu0 %v1644
    %v2541 = vpop.f32.mrf.mxu0
    %v2542 = vadd.f32 %v1780, %v2541
    %v2543 = vpop.f32.mrf.mxu0
    %v2544 = vadd.f32 %v1784, %v2543
    %v2545 = vpop.f32.mrf.mxu0
    %v2546 = vadd.f32 %v1780, %v2545
    %v2547 = vpop.f32.mrf.mxu0
    %v2548 = vadd.f32 %v1784, %v2547
    %2549 = vdwg.mxu0
    %2550 = vmatprep.subr.bf16.mxu0 %v2356
    %2551 = vmatpush1.bf16.msra.mxu0 %v2355
    %2552 = vmatprep.subr.bf16.mxu0 %v2340
    %2553 = vmatpush1.bf16.msra.mxu0 %v2339
    %2554 = vmatprep.subr.bf16.mxu0 %v2324
    %2555 = vmatpush1.bf16.msra.mxu0 %v2323
    %2556 = vmatprep.subr.bf16.mxu0 %v2308
    %2557 = vmatpush1.bf16.msra.mxu0 %v2307
    %2558 = vmatprep.subr.bf16.mxu0 %v2292
    %2559 = vmatpush1.bf16.msra.mxu0 %v2291
    %2560 = vmatprep.subr.bf16.mxu0 %v2276
    %2561 = vmatpush1.bf16.msra.mxu0 %v2275
    %2562 = vmatprep.subr.bf16.mxu0 %v2260
    %2563 = vmatpush1.bf16.msra.mxu0 %v2259
    %2564 = vmatprep.subr.bf16.mxu0 %v2244
    %2565 = vmatpush1.bf16.msra.mxu0 %v2243
    %2566 = vmatprep.subr.bf16.mxu0 0
    %2567 = vmatpush2.bf16.msra.mxu0 0
    %2568 = vmatprep.subr.bf16.mxu0 0
    %2569 = vmatpush2.bf16.msra.mxu0 0
    %2570 = vmatprep.subr.bf16.mxu0 0
    %2571 = vmatpush2.bf16.msra.mxu0 0
    %2572 = vmatprep.subr.bf16.mxu0 0
    %2573 = vmatpush2.bf16.msra.mxu0 0
    %2574 = vmatprep.subr.bf16.mxu0 0
    %2575 = vmatpush2.bf16.msra.mxu0 0
    %2576 = vmatprep.subr.bf16.mxu0 0
    %2577 = vmatpush2.bf16.msra.mxu0 0
    %2578 = vmatprep.subr.bf16.mxu0 0
    %2579 = vmatpush2.bf16.msra.mxu0 0
    %2580 = vmatprep.subr.bf16.mxu0 0
    %2581 = vmatpush2.bf16.msra.mxu0 0
    %2582 = vmatprep.mubr.bf16.mxu0 0
    %2583 = vmatmul.mubr.bf16.gmra.mxu0 %v1643
    %v2584 = vpop.f32.mrf.mxu0
    %v2585 = vadd.f32 %v1788, %v2584
    %v2586 = vpop.f32.mrf.mxu0
    %v2587 = vadd.f32 %v1792, %v2586
    %v2588 = vpop.f32.mrf.mxu0
    %v2589 = vadd.f32 %v1788, %v2588
    %v2590 = vpop.f32.mrf.mxu0
    %v2591 = vadd.f32 %v1792, %v2590
    %2592 = vmatprep.mubr.bf16.mxu0 0
    %2593 = vmatmul.mubr.bf16.gmra.mxu0 %v1644
    %v2594 = vpop.f32.mrf.mxu0
    %v2595 = vadd.f32 %v1788, %v2594
    %v2596 = vpop.f32.mrf.mxu0
    %v2597 = vadd.f32 %v1792, %v2596
    %v2598 = vpop.f32.mrf.mxu0
    %v2599 = vadd.f32 %v1788, %v2598
    %v2600 = vpop.f32.mrf.mxu0
    %v2601 = vadd.f32 %v1792, %v2600
    %2602 = vdwg.mxu0
    %2603 = vmatprep.subr.bf16.mxu0 %v2358
    %2604 = vmatpush1.bf16.msra.mxu0 %v2357
    %2605 = vmatprep.subr.bf16.mxu0 %v2342
    %2606 = vmatpush1.bf16.msra.mxu0 %v2341
    %2607 = vmatprep.subr.bf16.mxu0 %v2326
    %2608 = vmatpush1.bf16.msra.mxu0 %v2325
    %2609 = vmatprep.subr.bf16.mxu0 %v2310
    %2610 = vmatpush1.bf16.msra.mxu0 %v2309
    %2611 = vmatprep.subr.bf16.mxu0 %v2294
    %2612 = vmatpush1.bf16.msra.mxu0 %v2293
    %2613 = vmatprep.subr.bf16.mxu0 %v2278
    %2614 = vmatpush1.bf16.msra.mxu0 %v2277
    %2615 = vmatprep.subr.bf16.mxu0 %v2262
    %2616 = vmatpush1.bf16.msra.mxu0 %v2261
    %2617 = vmatprep.subr.bf16.mxu0 %v2246
    %2618 = vmatpush1.bf16.msra.mxu0 %v2245
    %2619 = vmatprep.subr.bf16.mxu0 0
    %2620 = vmatpush2.bf16.msra.mxu0 0
    %2621 = vmatprep.subr.bf16.mxu0 0
    %2622 = vmatpush2.bf16.msra.mxu0 0
    %2623 = vmatprep.subr.bf16.mxu0 0
    %2624 = vmatpush2.bf16.msra.mxu0 0
    %2625 = vmatprep.subr.bf16.mxu0 0
    %2626 = vmatpush2.bf16.msra.mxu0 0
    %2627 = vmatprep.subr.bf16.mxu0 0
    %2628 = vmatpush2.bf16.msra.mxu0 0
    %2629 = vmatprep.subr.bf16.mxu0 0
    %2630 = vmatpush2.bf16.msra.mxu0 0
    %2631 = vmatprep.subr.bf16.mxu0 0
    %2632 = vmatpush2.bf16.msra.mxu0 0
    %2633 = vmatprep.subr.bf16.mxu0 0
    %2634 = vmatpush2.bf16.msra.mxu0 0
    %2635 = vmatprep.mubr.bf16.mxu0 0
    %2636 = vmatmul.mubr.bf16.gmra.mxu0 %v1643
    %v2637 = vpop.f32.mrf.mxu0
    %v2638 = vadd.f32 %v1796, %v2637
    %v2639 = vpop.f32.mrf.mxu0
    %v2640 = vadd.f32 %v1800, %v2639
    %v2641 = vpop.f32.mrf.mxu0
    %v2642 = vadd.f32 %v1796, %v2641
    %v2643 = vpop.f32.mrf.mxu0
    %v2644 = vadd.f32 %v1800, %v2643
    %2645 = vmatprep.mubr.bf16.mxu0 0
    %2646 = vmatmul.mubr.bf16.gmra.mxu0 %v1644
    %v2647 = vpop.f32.mrf.mxu0
    %v2648 = vadd.f32 %v1796, %v2647
    %v2649 = vpop.f32.mrf.mxu0
    %v2650 = vadd.f32 %v1800, %v2649
    %v2651 = vpop.f32.mrf.mxu0
    %v2652 = vadd.f32 %v1796, %v2651
    %v2653 = vpop.f32.mrf.mxu0
    %v2654 = vadd.f32 %v1800, %v2653
    %2655 = vdwg.mxu0
    %2656 = vmatprep.subr.bf16.mxu0 %v2360
    %2657 = vmatpush1.bf16.msra.mxu0 %v2359
    %2658 = vmatprep.subr.bf16.mxu0 %v2344
    %2659 = vmatpush1.bf16.msra.mxu0 %v2343
    %2660 = vmatprep.subr.bf16.mxu0 %v2328
    %2661 = vmatpush1.bf16.msra.mxu0 %v2327
    %2662 = vmatprep.subr.bf16.mxu0 %v2312
    %2663 = vmatpush1.bf16.msra.mxu0 %v2311
    %2664 = vmatprep.subr.bf16.mxu0 %v2296
    %2665 = vmatpush1.bf16.msra.mxu0 %v2295
    %2666 = vmatprep.subr.bf16.mxu0 %v2280
    %2667 = vmatpush1.bf16.msra.mxu0 %v2279
    %2668 = vmatprep.subr.bf16.mxu0 %v2264
    %2669 = vmatpush1.bf16.msra.mxu0 %v2263
    %2670 = vmatprep.subr.bf16.mxu0 %v2248
    %2671 = vmatpush1.bf16.msra.mxu0 %v2247
    %2672 = vmatprep.subr.bf16.mxu0 0
    %2673 = vmatpush2.bf16.msra.mxu0 0
    %2674 = vmatprep.subr.bf16.mxu0 0
    %2675 = vmatpush2.bf16.msra.mxu0 0
    %2676 = vmatprep.subr.bf16.mxu0 0
    %2677 = vmatpush2.bf16.msra.mxu0 0
    %2678 = vmatprep.subr.bf16.mxu0 0
    %2679 = vmatpush2.bf16.msra.mxu0 0
    %2680 = vmatprep.subr.bf16.mxu0 0
    %2681 = vmatpush2.bf16.msra.mxu0 0
    %2682 = vmatprep.subr.bf16.mxu0 0
    %2683 = vmatpush2.bf16.msra.mxu0 0
    %2684 = vmatprep.subr.bf16.mxu0 0
    %2685 = vmatpush2.bf16.msra.mxu0 0
    %2686 = vmatprep.subr.bf16.mxu0 0
    %2687 = vmatpush2.bf16.msra.mxu0 0
    %2688 = vmatprep.mubr.bf16.mxu0 0
    %2689 = vmatmul.mubr.bf16.gmra.mxu0 %v1643
    %v2690 = vpop.f32.mrf.mxu0
    %v2691 = vadd.f32 %v1804, %v2690
    %v2692 = vpop.f32.mrf.mxu0
    %v2693 = vadd.f32 %v1808, %v2692
    %v2694 = vpop.f32.mrf.mxu0
    %v2695 = vadd.f32 %v1804, %v2694
    %v2696 = vpop.f32.mrf.mxu0
    %v2697 = vadd.f32 %v1808, %v2696
    %2698 = vmatprep.mubr.bf16.mxu0 0
    %2699 = vmatmul.mubr.bf16.gmra.mxu0 %v1644
    %v2700 = vpop.f32.mrf.mxu0
    %v2701 = vadd.f32 %v1804, %v2700
    %v2702 = vpop.f32.mrf.mxu0
    %v2703 = vadd.f32 %v1808, %v2702
    %v2704 = vpop.f32.mrf.mxu0
    %v2705 = vadd.f32 %v1804, %v2704
    %v2706 = vpop.f32.mrf.mxu0
    %v2707 = vadd.f32 %v1808, %v2706
    %2708 = vdwg.mxu0
    %2709 = vmatprep.subr.bf16.mxu0 %v2362
    %2710 = vmatpush1.bf16.msra.mxu0 %v2361
    %2711 = vmatprep.subr.bf16.mxu0 %v2346
    %2712 = vmatpush1.bf16.msra.mxu0 %v2345
    %2713 = vmatprep.subr.bf16.mxu0 %v2330
    %2714 = vmatpush1.bf16.msra.mxu0 %v2329
    %2715 = vmatprep.subr.bf16.mxu0 %v2314
    %2716 = vmatpush1.bf16.msra.mxu0 %v2313
    %2717 = vmatprep.subr.bf16.mxu0 %v2298
    %2718 = vmatpush1.bf16.msra.mxu0 %v2297
    %2719 = vmatprep.subr.bf16.mxu0 %v2282
    %2720 = vmatpush1.bf16.msra.mxu0 %v2281
    %2721 = vmatprep.subr.bf16.mxu0 %v2266
    %2722 = vmatpush1.bf16.msra.mxu0 %v2265
    %2723 = vmatprep.subr.bf16.mxu0 %v2250
    %2724 = vmatpush1.bf16.msra.mxu0 %v2249
    %2725 = vmatprep.subr.bf16.mxu0 0
    %2726 = vmatpush2.bf16.msra.mxu0 0
    %2727 = vmatprep.subr.bf16.mxu0 0
    %2728 = vmatpush2.bf16.msra.mxu0 0
    %2729 = vmatprep.subr.bf16.mxu0 0
    %2730 = vmatpush2.bf16.msra.mxu0 0
    %2731 = vmatprep.subr.bf16.mxu0 0
    %2732 = vmatpush2.bf16.msra.mxu0 0
    %2733 = vmatprep.subr.bf16.mxu0 0
    %2734 = vmatpush2.bf16.msra.mxu0 0
    %2735 = vmatprep.subr.bf16.mxu0 0
    %2736 = vmatpush2.bf16.msra.mxu0 0
    %2737 = vmatprep.subr.bf16.mxu0 0
    %2738 = vmatpush2.bf16.msra.mxu0 0
    %2739 = vmatprep.subr.bf16.mxu0 0
    %2740 = vmatpush2.bf16.msra.mxu0 0
    %2741 = vmatprep.mubr.bf16.mxu0 0
    %2742 = vmatmul.mubr.bf16.gmra.mxu0 %v1643
    %v2743 = vpop.f32.mrf.mxu0
    %v2744 = vadd.f32 %v1812, %v2743
    %v2745 = vpop.f32.mrf.mxu0
    %v2746 = vadd.f32 %v1816, %v2745
    %v2747 = vpop.f32.mrf.mxu0
    %v2748 = vadd.f32 %v1812, %v2747
    %v2749 = vpop.f32.mrf.mxu0
    %v2750 = vadd.f32 %v1816, %v2749
    %2751 = vmatprep.mubr.bf16.mxu0 0
    %2752 = vmatmul.mubr.bf16.gmra.mxu0 %v1644
    %v2753 = vpop.f32.mrf.mxu0
    %v2754 = vadd.f32 %v1812, %v2753
    %v2755 = vpop.f32.mrf.mxu0
    %v2756 = vadd.f32 %v1816, %v2755
    %v2757 = vpop.f32.mrf.mxu0
    %v2758 = vadd.f32 %v1812, %v2757
    %v2759 = vpop.f32.mrf.mxu0
    %v2760 = vadd.f32 %v1816, %v2759
    %2761 = vdwg.mxu0
    %2762 = vmatprep.subr.bf16.mxu0 %v2364
    %2763 = vmatpush1.bf16.msra.mxu0 %v2363
    %2764 = vmatprep.subr.bf16.mxu0 %v2348
    %2765 = vmatpush1.bf16.msra.mxu0 %v2347
    %2766 = vmatprep.subr.bf16.mxu0 %v2332
    %2767 = vmatpush1.bf16.msra.mxu0 %v2331
    %2768 = vmatprep.subr.bf16.mxu0 %v2316
    %2769 = vmatpush1.bf16.msra.mxu0 %v2315
    %2770 = vmatprep.subr.bf16.mxu0 %v2300
    %2771 = vmatpush1.bf16.msra.mxu0 %v2299
    %2772 = vmatprep.subr.bf16.mxu0 %v2284
    %2773 = vmatpush1.bf16.msra.mxu0 %v2283
    %2774 = vmatprep.subr.bf16.mxu0 %v2268
    %2775 = vmatpush1.bf16.msra.mxu0 %v2267
    %2776 = vmatprep.subr.bf16.mxu0 %v2252
    %2777 = vmatpush1.bf16.msra.mxu0 %v2251
    %2778 = vmatprep.subr.bf16.mxu0 0
    %2779 = vmatpush2.bf16.msra.mxu0 0
    %2780 = vmatprep.subr.bf16.mxu0 0
    %2781 = vmatpush2.bf16.msra.mxu0 0
    %2782 = vmatprep.subr.bf16.mxu0 0
    %2783 = vmatpush2.bf16.msra.mxu0 0
    %2784 = vmatprep.subr.bf16.mxu0 0
    %2785 = vmatpush2.bf16.msra.mxu0 0
    %2786 = vmatprep.subr.bf16.mxu0 0
    %2787 = vmatpush2.bf16.msra.mxu0 0
    %2788 = vmatprep.subr.bf16.mxu0 0
    %2789 = vmatpush2.bf16.msra.mxu0 0
    %2790 = vmatprep.subr.bf16.mxu0 0
    %2791 = vmatpush2.bf16.msra.mxu0 0
    %2792 = vmatprep.subr.bf16.mxu0 0
    %2793 = vmatpush2.bf16.msra.mxu0 0
    %2794 = vmatprep.mubr.bf16.mxu0 0
    %2795 = vmatmul.mubr.bf16.gmra.mxu0 %v1643
    %v2796 = vpop.f32.mrf.mxu0
    %v2797 = vadd.f32 %v1820, %v2796
    %v2798 = vpop.f32.mrf.mxu0
    %v2799 = vadd.f32 %v1824, %v2798
    %v2800 = vpop.f32.mrf.mxu0
    %v2801 = vadd.f32 %v1820, %v2800
    %v2802 = vpop.f32.mrf.mxu0
    %v2803 = vadd.f32 %v1824, %v2802
    %2804 = vmatprep.mubr.bf16.mxu0 0
    %2805 = vmatmul.mubr.bf16.gmra.mxu0 %v1644
    %v2806 = vpop.f32.mrf.mxu0
    %v2807 = vadd.f32 %v1820, %v2806
    %v2808 = vpop.f32.mrf.mxu0
    %v2809 = vadd.f32 %v1824, %v2808
    %v2810 = vpop.f32.mrf.mxu0
    %v2811 = vadd.f32 %v1820, %v2810
    %v2812 = vpop.f32.mrf.mxu0
    %v2813 = vadd.f32 %v1824, %v2812
    %2814 = vdwg.mxu0
    %2815 = vmatprep.subr.bf16.mxu0 %v2366
    %2816 = vmatpush1.bf16.msra.mxu0 %v2365
    %2817 = vmatprep.subr.bf16.mxu0 %v2350
    %2818 = vmatpush1.bf16.msra.mxu0 %v2349
    %2819 = vmatprep.subr.bf16.mxu0 %v2334
    %2820 = vmatpush1.bf16.msra.mxu0 %v2333
    %2821 = vmatprep.subr.bf16.mxu0 %v2318
    %2822 = vmatpush1.bf16.msra.mxu0 %v2317
    %2823 = vmatprep.subr.bf16.mxu0 %v2302
    %2824 = vmatpush1.bf16.msra.mxu0 %v2301
    %2825 = vmatprep.subr.bf16.mxu0 %v2286
    %2826 = vmatpush1.bf16.msra.mxu0 %v2285
    %2827 = vmatprep.subr.bf16.mxu0 %v2270
    %2828 = vmatpush1.bf16.msra.mxu0 %v2269
    %2829 = vmatprep.subr.bf16.mxu0 %v2254
    %2830 = vmatpush1.bf16.msra.mxu0 %v2253
    %2831 = vmatprep.subr.bf16.mxu0 0
    %2832 = vmatpush2.bf16.msra.mxu0 0
    %2833 = vmatprep.subr.bf16.mxu0 0
    %2834 = vmatpush2.bf16.msra.mxu0 0
    %2835 = vmatprep.subr.bf16.mxu0 0
    %2836 = vmatpush2.bf16.msra.mxu0 0
    %2837 = vmatprep.subr.bf16.mxu0 0
    %2838 = vmatpush2.bf16.msra.mxu0 0
    %2839 = vmatprep.subr.bf16.mxu0 0
    %2840 = vmatpush2.bf16.msra.mxu0 0
    %2841 = vmatprep.subr.bf16.mxu0 0
    %2842 = vmatpush2.bf16.msra.mxu0 0
    %2843 = vmatprep.subr.bf16.mxu0 0
    %2844 = vmatpush2.bf16.msra.mxu0 0
    %2845 = vmatprep.subr.bf16.mxu0 0
    %2846 = vmatpush2.bf16.msra.mxu0 0
    %2847 = vmatprep.mubr.bf16.mxu0 0
    %2848 = vmatmul.mubr.bf16.gmra.mxu0 %v1643
    %v2849 = vpop.f32.mrf.mxu0
    %v2850 = vadd.f32 %v1828, %v2849
    %v2851 = vpop.f32.mrf.mxu0
    %v2852 = vadd.f32 %v1832, %v2851
    %v2853 = vpop.f32.mrf.mxu0
    %v2854 = vadd.f32 %v1828, %v2853
    %v2855 = vpop.f32.mrf.mxu0
    %v2856 = vadd.f32 %v1832, %v2855
    %2857 = vmatprep.mubr.bf16.mxu0 0
    %2858 = vmatmul.mubr.bf16.gmra.mxu0 %v1644
    %v2859 = vpop.f32.mrf.mxu0
    %v2860 = vadd.f32 %v1828, %v2859
    %v2861 = vpop.f32.mrf.mxu0
    %v2862 = vadd.f32 %v1832, %v2861
    %v2863 = vpop.f32.mrf.mxu0
    %v2864 = vadd.f32 %v1828, %v2863
    %v2865 = vpop.f32.mrf.mxu0
    %v2866 = vadd.f32 %v1832, %v2865
    %2867 = vdwg.mxu0
    %2868 = vmatprep.subr.bf16.mxu0 %v2368
    %2869 = vmatpush1.bf16.msra.mxu0 %v2367
    %2870 = vmatprep.subr.bf16.mxu0 %v2352
    %2871 = vmatpush1.bf16.msra.mxu0 %v2351
    %2872 = vmatprep.subr.bf16.mxu0 %v2336
    %2873 = vmatpush1.bf16.msra.mxu0 %v2335
    %2874 = vmatprep.subr.bf16.mxu0 %v2320
    %2875 = vmatpush1.bf16.msra.mxu0 %v2319
    %2876 = vmatprep.subr.bf16.mxu0 %v2304
    %2877 = vmatpush1.bf16.msra.mxu0 %v2303
    %2878 = vmatprep.subr.bf16.mxu0 %v2288
    %2879 = vmatpush1.bf16.msra.mxu0 %v2287
    %2880 = vmatprep.subr.bf16.mxu0 %v2272
    %2881 = vmatpush1.bf16.msra.mxu0 %v2271
    %2882 = vmatprep.subr.bf16.mxu0 %v2256
    %2883 = vmatpush1.bf16.msra.mxu0 %v2255
    %2884 = vmatprep.subr.bf16.mxu0 0
    %2885 = vmatpush2.bf16.msra.mxu0 0
    %2886 = vmatprep.subr.bf16.mxu0 0
    %2887 = vmatpush2.bf16.msra.mxu0 0
    %2888 = vmatprep.subr.bf16.mxu0 0
    %2889 = vmatpush2.bf16.msra.mxu0 0
    %2890 = vmatprep.subr.bf16.mxu0 0
    %2891 = vmatpush2.bf16.msra.mxu0 0
    %2892 = vmatprep.subr.bf16.mxu0 0
    %2893 = vmatpush2.bf16.msra.mxu0 0
    %2894 = vmatprep.subr.bf16.mxu0 0
    %2895 = vmatpush2.bf16.msra.mxu0 0
    %2896 = vmatprep.subr.bf16.mxu0 0
    %2897 = vmatpush2.bf16.msra.mxu0 0
    %2898 = vmatprep.subr.bf16.mxu0 0
    %2899 = vmatpush2.bf16.msra.mxu0 0
    %2900 = vmatprep.mubr.bf16.mxu0 0
    %2901 = vmatmul.mubr.bf16.gmra.mxu0 %v1643
    %v2902 = vpop.f32.mrf.mxu0
    %v2903 = vadd.f32 %v1836, %v2902
    %v2904 = vpop.f32.mrf.mxu0
    %v2905 = vadd.f32 %v1840, %v2904
    %v2906 = vpop.f32.mrf.mxu0
    %v2907 = vadd.f32 %v1836, %v2906
    %v2908 = vpop.f32.mrf.mxu0
    %v2909 = vadd.f32 %v1840, %v2908
    %2910 = vmatprep.mubr.bf16.mxu0 0
    %2911 = vmatmul.mubr.bf16.gmra.mxu0 %v1644
    %v2912 = vpop.f32.mrf.mxu0
    %v2913 = vadd.f32 %v1836, %v2912
    %v2914 = vpop.f32.mrf.mxu0
    %v2915 = vadd.f32 %v1840, %v2914
    %v2916 = vpop.f32.mrf.mxu0
    %v2917 = vadd.f32 %v1836, %v2916
    %v2918 = vpop.f32.mrf.mxu0
    %v2919 = vadd.f32 %v1840, %v2918
    %2920 = vdwg.mxu0
    %v2921 = vmax.f32 %v2532, 0.0
    %v2922 = vmax.f32 %v2534, 0.0
    %v2923 = vmax.f32 %v2585, 0.0
    %v2924 = vmax.f32 %v2587, 0.0
    %v2925 = vmax.f32 %v2638, 0.0
    %v2926 = vmax.f32 %v2640, 0.0
    %v2927 = vmax.f32 %v2691, 0.0
    %v2928 = vmax.f32 %v2693, 0.0
    %v2929 = vmax.f32 %v2744, 0.0
    %v2930 = vmax.f32 %v2746, 0.0
    %v2931 = vmax.f32 %v2797, 0.0
    %v2932 = vmax.f32 %v2799, 0.0
    %v2933 = vmax.f32 %v2850, 0.0
    %v2934 = vmax.f32 %v2852, 0.0
    %v2935 = vmax.f32 %v2903, 0.0
    %v2936 = vmax.f32 %v2905, 0.0
    %v2937 = vmax.f32 %v2536, 0.0
    %v2938 = vmax.f32 %v2538, 0.0
    %v2939 = vmax.f32 %v2589, 0.0
    %v2940 = vmax.f32 %v2591, 0.0
    %v2941 = vmax.f32 %v2642, 0.0
    %v2942 = vmax.f32 %v2644, 0.0
    %v2943 = vmax.f32 %v2695, 0.0
    %v2944 = vmax.f32 %v2697, 0.0
    %v2945 = vmax.f32 %v2748, 0.0
    %v2946 = vmax.f32 %v2750, 0.0
    %v2947 = vmax.f32 %v2801, 0.0
    %v2948 = vmax.f32 %v2803, 0.0
    %v2949 = vmax.f32 %v2854, 0.0
    %v2950 = vmax.f32 %v2856, 0.0
    %v2951 = vmax.f32 %v2907, 0.0
    %v2952 = vmax.f32 %v2909, 0.0
    %v2953 = vmax.f32 %v2542, 0.0
    %v2954 = vmax.f32 %v2544, 0.0
    %v2955 = vmax.f32 %v2595, 0.0
    %v2956 = vmax.f32 %v2597, 0.0
    %v2957 = vmax.f32 %v2648, 0.0
    %v2958 = vmax.f32 %v2650, 0.0
    %v2959 = vmax.f32 %v2701, 0.0
    %v2960 = vmax.f32 %v2703, 0.0
    %v2961 = vmax.f32 %v2754, 0.0
    %v2962 = vmax.f32 %v2756, 0.0
    %v2963 = vmax.f32 %v2807, 0.0
    %v2964 = vmax.f32 %v2809, 0.0
    %v2965 = vmax.f32 %v2860, 0.0
    %v2966 = vmax.f32 %v2862, 0.0
    %v2967 = vmax.f32 %v2913, 0.0
    %v2968 = vmax.f32 %v2915, 0.0
    %v2969 = vmax.f32 %v2546, 0.0
    %v2970 = vmax.f32 %v2548, 0.0
    %v2971 = vmax.f32 %v2599, 0.0
    %v2972 = vmax.f32 %v2601, 0.0
    %v2973 = vmax.f32 %v2652, 0.0
    %v2974 = vmax.f32 %v2654, 0.0
    %v2975 = vmax.f32 %v2705, 0.0
    %v2976 = vmax.f32 %v2707, 0.0
    %v2977 = vmax.f32 %v2758, 0.0
    %v2978 = vmax.f32 %v2760, 0.0
    %v2979 = vmax.f32 %v2811, 0.0
    %v2980 = vmax.f32 %v2813, 0.0
    %v2981 = vmax.f32 %v2864, 0.0
    %v2982 = vmax.f32 %v2866, 0.0
    %v2983 = vmax.f32 %v2917, 0.0
    %v2984 = vmax.f32 %v2919, 0.0
    %v2985 = vpack.c.bf16 %v2937, %v2921
    %v2986 = vpack.c.bf16 %v2938, %v2922
    %v2987 = vpack.c.bf16 %v2939, %v2923
    %v2988 = vpack.c.bf16 %v2940, %v2924
    %v2989 = vpack.c.bf16 %v2941, %v2925
    %v2990 = vpack.c.bf16 %v2942, %v2926
    %v2991 = vpack.c.bf16 %v2943, %v2927
    %v2992 = vpack.c.bf16 %v2944, %v2928
    %v2993 = vpack.c.bf16 %v2945, %v2929
    %v2994 = vpack.c.bf16 %v2946, %v2930
    %v2995 = vpack.c.bf16 %v2947, %v2931
    %v2996 = vpack.c.bf16 %v2948, %v2932
    %v2997 = vpack.c.bf16 %v2949, %v2933
    %v2998 = vpack.c.bf16 %v2950, %v2934
    %v2999 = vpack.c.bf16 %v2951, %v2935
    %v3000 = vpack.c.bf16 %v2952, %v2936
    %v3001 = vpack.c.bf16 %v2969, %v2953
    %v3002 = vpack.c.bf16 %v2970, %v2954
    %v3003 = vpack.c.bf16 %v2971, %v2955
    %v3004 = vpack.c.bf16 %v2972, %v2956
    %v3005 = vpack.c.bf16 %v2973, %v2957
    %v3006 = vpack.c.bf16 %v2974, %v2958
    %v3007 = vpack.c.bf16 %v2975, %v2959
    %v3008 = vpack.c.bf16 %v2976, %v2960
    %v3009 = vpack.c.bf16 %v2977, %v2961
    %v3010 = vpack.c.bf16 %v2978, %v2962
    %v3011 = vpack.c.bf16 %v2979, %v2963
    %v3012 = vpack.c.bf16 %v2980, %v2964
    %v3013 = vpack.c.bf16 %v2981, %v2965
    %v3014 = vpack.c.bf16 %v2982, %v2966
    %v3015 = vpack.c.bf16 %v2983, %v2967
    %v3016 = vpack.c.bf16 %v2984, %v2968
    %v3017 = vld [vmem:[#allocation14] sm:$0xf]
    %v3018 = vld [vmem:[#allocation14 + $0x4] sm:$0xf]
    %v3019 = vld [vmem:[#allocation14 + $0x8] sm:$0xf]
    %v3020 = vld [vmem:[#allocation14 + $0xc] sm:$0xf]
    %v3021 = vld [vmem:[#allocation14 + $0x10] sm:$0xf]
    %v3022 = vld [vmem:[#allocation14 + $0x14] sm:$0xf]
    %v3023 = vld [vmem:[#allocation14 + $0x18] sm:$0xf]
    %v3024 = vld [vmem:[#allocation14 + $0x1c] sm:$0xf]
    %v3025 = vld [vmem:[#allocation14 + $0x20] sm:$0xf]
    %v3026 = vld [vmem:[#allocation14 + $0x24] sm:$0xf]
    %v3027 = vld [vmem:[#allocation14 + $0x28] sm:$0xf]
    %v3028 = vld [vmem:[#allocation14 + $0x2c] sm:$0xf]
    %v3029 = vld [vmem:[#allocation14 + $0x30] sm:$0xf]
    %v3030 = vld [vmem:[#allocation14 + $0x34] sm:$0xf]
    %v3031 = vld [vmem:[#allocation14 + $0x38] sm:$0xf]
    %v3032 = vld [vmem:[#allocation14 + $0x3c] sm:$0xf]
    %v3033 = vld [vmem:[#allocation14 + $0x40] sm:$0xf]
    %v3034 = vld [vmem:[#allocation14 + $0x44] sm:$0xf]
    %v3035 = vld [vmem:[#allocation14 + $0x48] sm:$0xf]
    %v3036 = vld [vmem:[#allocation14 + $0x4c] sm:$0xf]
    %v3037 = vld [vmem:[#allocation14 + $0x50] sm:$0xf]
    %v3038 = vld [vmem:[#allocation14 + $0x54] sm:$0xf]
    %v3039 = vld [vmem:[#allocation14 + $0x58] sm:$0xf]
    %v3040 = vld [vmem:[#allocation14 + $0x5c] sm:$0xf]
    %v3041 = vld [vmem:[#allocation14 + $0x60] sm:$0xf]
    %v3042 = vld [vmem:[#allocation14 + $0x64] sm:$0xf]
    %v3043 = vld [vmem:[#allocation14 + $0x68] sm:$0xf]
    %v3044 = vld [vmem:[#allocation14 + $0x6c] sm:$0xf]
    %v3045 = vld [vmem:[#allocation14 + $0x70] sm:$0xf]
    %v3046 = vld [vmem:[#allocation14 + $0x74] sm:$0xf]
    %v3047 = vld [vmem:[#allocation14 + $0x78] sm:$0xf]
    %v3048 = vld [vmem:[#allocation14 + $0x7c] sm:$0xf]
    %v3049 = vld [vmem:[#allocation14 + $0x80] sm:$0xf]
    %v3050 = vld [vmem:[#allocation14 + $0x84] sm:$0xf]
    %v3051 = vld [vmem:[#allocation14 + $0x88] sm:$0xf]
    %v3052 = vld [vmem:[#allocation14 + $0x8c] sm:$0xf]
    %v3053 = vld [vmem:[#allocation14 + $0x90] sm:$0xf]
    %v3054 = vld [vmem:[#allocation14 + $0x94] sm:$0xf]
    %v3055 = vld [vmem:[#allocation14 + $0x98] sm:$0xf]
    %v3056 = vld [vmem:[#allocation14 + $0x9c] sm:$0xf]
    %v3057 = vld [vmem:[#allocation14 + $0xa0] sm:$0xf]
    %v3058 = vld [vmem:[#allocation14 + $0xa4] sm:$0xf]
    %v3059 = vld [vmem:[#allocation14 + $0xa8] sm:$0xf]
    %v3060 = vld [vmem:[#allocation14 + $0xac] sm:$0xf]
    %v3061 = vld [vmem:[#allocation14 + $0xb0] sm:$0xf]
    %v3062 = vld [vmem:[#allocation14 + $0xb4] sm:$0xf]
    %v3063 = vld [vmem:[#allocation14 + $0xb8] sm:$0xf]
    %v3064 = vld [vmem:[#allocation14 + $0xbc] sm:$0xf]
    %v3065 = vld [vmem:[#allocation14 + $0xc0] sm:$0xf]
    %v3066 = vld [vmem:[#allocation14 + $0xc4] sm:$0xf]
    %v3067 = vld [vmem:[#allocation14 + $0xc8] sm:$0xf]
    %v3068 = vld [vmem:[#allocation14 + $0xcc] sm:$0xf]
    %v3069 = vld [vmem:[#allocation14 + $0xd0] sm:$0xf]
    %v3070 = vld [vmem:[#allocation14 + $0xd4] sm:$0xf]
    %v3071 = vld [vmem:[#allocation14 + $0xd8] sm:$0xf]
    %v3072 = vld [vmem:[#allocation14 + $0xdc] sm:$0xf]
    %v3073 = vld [vmem:[#allocation14 + $0xe0] sm:$0xf]
    %v3074 = vld [vmem:[#allocation14 + $0xe4] sm:$0xf]
    %v3075 = vld [vmem:[#allocation14 + $0xe8] sm:$0xf]
    %v3076 = vld [vmem:[#allocation14 + $0xec] sm:$0xf]
    %v3077 = vld [vmem:[#allocation14 + $0xf0] sm:$0xf]
    %v3078 = vld [vmem:[#allocation14 + $0xf4] sm:$0xf]
    %v3079 = vld [vmem:[#allocation14 + $0xf8] sm:$0xf]
    %v3080 = vld [vmem:[#allocation14 + $0xfc] sm:$0xf]
    %v3081 = vld [vmem:[#allocation14 + $0x100] sm:$0xf]
    %v3082 = vld [vmem:[#allocation14 + $0x104] sm:$0xf]
    %v3083 = vld [vmem:[#allocation14 + $0x108] sm:$0xf]
    %v3084 = vld [vmem:[#allocation14 + $0x10c] sm:$0xf]
    %v3085 = vld [vmem:[#allocation14 + $0x110] sm:$0xf]
    %v3086 = vld [vmem:[#allocation14 + $0x114] sm:$0xf]
    %v3087 = vld [vmem:[#allocation14 + $0x118] sm:$0xf]
    %v3088 = vld [vmem:[#allocation14 + $0x11c] sm:$0xf]
    %v3089 = vld [vmem:[#allocation14 + $0x120] sm:$0xf]
    %v3090 = vld [vmem:[#allocation14 + $0x124] sm:$0xf]
    %v3091 = vld [vmem:[#allocation14 + $0x128] sm:$0xf]
    %v3092 = vld [vmem:[#allocation14 + $0x12c] sm:$0xf]
    %v3093 = vld [vmem:[#allocation14 + $0x130] sm:$0xf]
    %v3094 = vld [vmem:[#allocation14 + $0x134] sm:$0xf]
    %v3095 = vld [vmem:[#allocation14 + $0x138] sm:$0xf]
    %v3096 = vld [vmem:[#allocation14 + $0x13c] sm:$0xf]
    %v3097 = vld [vmem:[#allocation14 + $0x140] sm:$0xf]
    %v3098 = vld [vmem:[#allocation14 + $0x144] sm:$0xf]
    %v3099 = vld [vmem:[#allocation14 + $0x148] sm:$0xf]
    %v3100 = vld [vmem:[#allocation14 + $0x14c] sm:$0xf]
    %v3101 = vld [vmem:[#allocation14 + $0x150] sm:$0xf]
    %v3102 = vld [vmem:[#allocation14 + $0x154] sm:$0xf]
    %v3103 = vld [vmem:[#allocation14 + $0x158] sm:$0xf]
    %v3104 = vld [vmem:[#allocation14 + $0x15c] sm:$0xf]
    %v3105 = vld [vmem:[#allocation14 + $0x160] sm:$0xf]
    %v3106 = vld [vmem:[#allocation14 + $0x164] sm:$0xf]
    %v3107 = vld [vmem:[#allocation14 + $0x168] sm:$0xf]
    %v3108 = vld [vmem:[#allocation14 + $0x16c] sm:$0xf]
    %v3109 = vld [vmem:[#allocation14 + $0x170] sm:$0xf]
    %v3110 = vld [vmem:[#allocation14 + $0x174] sm:$0xf]
    %v3111 = vld [vmem:[#allocation14 + $0x178] sm:$0xf]
    %v3112 = vld [vmem:[#allocation14 + $0x17c] sm:$0xf]
    %v3113 = vld [vmem:[#allocation14 + $0x180] sm:$0xf]
    %v3114 = vld [vmem:[#allocation14 + $0x184] sm:$0xf]
    %v3115 = vld [vmem:[#allocation14 + $0x188] sm:$0xf]
    %v3116 = vld [vmem:[#allocation14 + $0x18c] sm:$0xf]
    %v3117 = vld [vmem:[#allocation14 + $0x190] sm:$0xf]
    %v3118 = vld [vmem:[#allocation14 + $0x194] sm:$0xf]
    %v3119 = vld [vmem:[#allocation14 + $0x198] sm:$0xf]
    %v3120 = vld [vmem:[#allocation14 + $0x19c] sm:$0xf]
    %v3121 = vld [vmem:[#allocation14 + $0x1a0] sm:$0xf]
    %v3122 = vld [vmem:[#allocation14 + $0x1a4] sm:$0xf]
    %v3123 = vld [vmem:[#allocation14 + $0x1a8] sm:$0xf]
    %v3124 = vld [vmem:[#allocation14 + $0x1ac] sm:$0xf]
    %v3125 = vld [vmem:[#allocation14 + $0x1b0] sm:$0xf]
    %v3126 = vld [vmem:[#allocation14 + $0x1b4] sm:$0xf]
    %v3127 = vld [vmem:[#allocation14 + $0x1b8] sm:$0xf]
    %v3128 = vld [vmem:[#allocation14 + $0x1bc] sm:$0xf]
    %v3129 = vld [vmem:[#allocation14 + $0x1c0] sm:$0xf]
    %v3130 = vld [vmem:[#allocation14 + $0x1c4] sm:$0xf]
    %v3131 = vld [vmem:[#allocation14 + $0x1c8] sm:$0xf]
    %v3132 = vld [vmem:[#allocation14 + $0x1cc] sm:$0xf]
    %v3133 = vld [vmem:[#allocation14 + $0x1d0] sm:$0xf]
    %v3134 = vld [vmem:[#allocation14 + $0x1d4] sm:$0xf]
    %v3135 = vld [vmem:[#allocation14 + $0x1d8] sm:$0xf]
    %v3136 = vld [vmem:[#allocation14 + $0x1dc] sm:$0xf]
    %v3137 = vld [vmem:[#allocation14 + $0x1e0] sm:$0xf]
    %v3138 = vld [vmem:[#allocation14 + $0x1e4] sm:$0xf]
    %v3139 = vld [vmem:[#allocation14 + $0x1e8] sm:$0xf]
    %v3140 = vld [vmem:[#allocation14 + $0x1ec] sm:$0xf]
    %v3141 = vld [vmem:[#allocation14 + $0x1f0] sm:$0xf]
    %v3142 = vld [vmem:[#allocation14 + $0x1f4] sm:$0xf]
    %v3143 = vld [vmem:[#allocation14 + $0x1f8] sm:$0xf]
    %v3144 = vld [vmem:[#allocation14 + $0x1fc] sm:$0xf]
    %v3145 = vld [vmem:[#allocation14 + $0x200] sm:$0xf]
    %v3146 = vld [vmem:[#allocation14 + $0x204] sm:$0xf]
    %v3147 = vld [vmem:[#allocation14 + $0x208] sm:$0xf]
    %v3148 = vld [vmem:[#allocation14 + $0x20c] sm:$0xf]
    %v3149 = vld [vmem:[#allocation14 + $0x210] sm:$0xf]
    %v3150 = vld [vmem:[#allocation14 + $0x214] sm:$0xf]
    %v3151 = vld [vmem:[#allocation14 + $0x218] sm:$0xf]
    %v3152 = vld [vmem:[#allocation14 + $0x21c] sm:$0xf]
    %v3153 = vld [vmem:[#allocation14 + $0x220] sm:$0xf]
    %v3154 = vld [vmem:[#allocation14 + $0x224] sm:$0xf]
    %v3155 = vld [vmem:[#allocation14 + $0x228] sm:$0xf]
    %v3156 = vld [vmem:[#allocation14 + $0x22c] sm:$0xf]
    %v3157 = vld [vmem:[#allocation14 + $0x230] sm:$0xf]
    %v3158 = vld [vmem:[#allocation14 + $0x234] sm:$0xf]
    %v3159 = vld [vmem:[#allocation14 + $0x238] sm:$0xf]
    %v3160 = vld [vmem:[#allocation14 + $0x23c] sm:$0xf]
    %v3161 = vld [vmem:[#allocation14 + $0x240] sm:$0xf]
    %v3162 = vld [vmem:[#allocation14 + $0x244] sm:$0xf]
    %v3163 = vld [vmem:[#allocation14 + $0x248] sm:$0xf]
    %v3164 = vld [vmem:[#allocation14 + $0x24c] sm:$0xf]
    %v3165 = vld [vmem:[#allocation14 + $0x250] sm:$0xf]
    %v3166 = vld [vmem:[#allocation14 + $0x254] sm:$0xf]
    %v3167 = vld [vmem:[#allocation14 + $0x258] sm:$0xf]
    %v3168 = vld [vmem:[#allocation14 + $0x25c] sm:$0xf]
    %v3169 = vld [vmem:[#allocation14 + $0x260] sm:$0xf]
    %v3170 = vld [vmem:[#allocation14 + $0x264] sm:$0xf]
    %v3171 = vld [vmem:[#allocation14 + $0x268] sm:$0xf]
    %v3172 = vld [vmem:[#allocation14 + $0x26c] sm:$0xf]
    %v3173 = vld [vmem:[#allocation14 + $0x270] sm:$0xf]
    %v3174 = vld [vmem:[#allocation14 + $0x274] sm:$0xf]
    %v3175 = vld [vmem:[#allocation14 + $0x278] sm:$0xf]
    %v3176 = vld [vmem:[#allocation14 + $0x27c] sm:$0xf]
    %v3177 = vld [vmem:[#allocation14 + $0x280] sm:$0xf]
    %v3178 = vld [vmem:[#allocation14 + $0x284] sm:$0xf]
    %v3179 = vld [vmem:[#allocation14 + $0x288] sm:$0xf]
    %v3180 = vld [vmem:[#allocation14 + $0x28c] sm:$0xf]
    %v3181 = vld [vmem:[#allocation14 + $0x290] sm:$0xf]
    %v3182 = vld [vmem:[#allocation14 + $0x294] sm:$0xf]
    %v3183 = vld [vmem:[#allocation14 + $0x298] sm:$0xf]
    %v3184 = vld [vmem:[#allocation14 + $0x29c] sm:$0xf]
    %v3185 = vld [vmem:[#allocation14 + $0x2a0] sm:$0xf]
    %v3186 = vld [vmem:[#allocation14 + $0x2a4] sm:$0xf]
    %v3187 = vld [vmem:[#allocation14 + $0x2a8] sm:$0xf]
    %v3188 = vld [vmem:[#allocation14 + $0x2ac] sm:$0xf]
    %v3189 = vld [vmem:[#allocation14 + $0x2b0] sm:$0xf]
    %v3190 = vld [vmem:[#allocation14 + $0x2b4] sm:$0xf]
    %v3191 = vld [vmem:[#allocation14 + $0x2b8] sm:$0xf]
    %v3192 = vld [vmem:[#allocation14 + $0x2bc] sm:$0xf]
    %v3193 = vld [vmem:[#allocation14 + $0x2c0] sm:$0xf]
    %v3194 = vld [vmem:[#allocation14 + $0x2c4] sm:$0xf]
    %v3195 = vld [vmem:[#allocation14 + $0x2c8] sm:$0xf]
    %v3196 = vld [vmem:[#allocation14 + $0x2cc] sm:$0xf]
    %v3197 = vld [vmem:[#allocation14 + $0x2d0] sm:$0xf]
    %v3198 = vld [vmem:[#allocation14 + $0x2d4] sm:$0xf]
    %v3199 = vld [vmem:[#allocation14 + $0x2d8] sm:$0xf]
    %v3200 = vld [vmem:[#allocation14 + $0x2dc] sm:$0xf]
    %v3201 = vld [vmem:[#allocation14 + $0x2e0] sm:$0xf]
    %v3202 = vld [vmem:[#allocation14 + $0x2e4] sm:$0xf]
    %v3203 = vld [vmem:[#allocation14 + $0x2e8] sm:$0xf]
    %v3204 = vld [vmem:[#allocation14 + $0x2ec] sm:$0xf]
    %v3205 = vld [vmem:[#allocation14 + $0x2f0] sm:$0xf]
    %v3206 = vld [vmem:[#allocation14 + $0x2f4] sm:$0xf]
    %v3207 = vld [vmem:[#allocation14 + $0x2f8] sm:$0xf]
    %v3208 = vld [vmem:[#allocation14 + $0x2fc] sm:$0xf]
    %v3209 = vld [vmem:[#allocation14 + $0x300] sm:$0xf]
    %v3210 = vld [vmem:[#allocation14 + $0x304] sm:$0xf]
    %v3211 = vld [vmem:[#allocation14 + $0x308] sm:$0xf]
    %v3212 = vld [vmem:[#allocation14 + $0x30c] sm:$0xf]
    %v3213 = vld [vmem:[#allocation14 + $0x310] sm:$0xf]
    %v3214 = vld [vmem:[#allocation14 + $0x314] sm:$0xf]
    %v3215 = vld [vmem:[#allocation14 + $0x318] sm:$0xf]
    %v3216 = vld [vmem:[#allocation14 + $0x31c] sm:$0xf]
    %v3217 = vld [vmem:[#allocation14 + $0x320] sm:$0xf]
    %v3218 = vld [vmem:[#allocation14 + $0x324] sm:$0xf]
    %v3219 = vld [vmem:[#allocation14 + $0x328] sm:$0xf]
    %v3220 = vld [vmem:[#allocation14 + $0x32c] sm:$0xf]
    %v3221 = vld [vmem:[#allocation14 + $0x330] sm:$0xf]
    %v3222 = vld [vmem:[#allocation14 + $0x334] sm:$0xf]
    %v3223 = vld [vmem:[#allocation14 + $0x338] sm:$0xf]
    %v3224 = vld [vmem:[#allocation14 + $0x33c] sm:$0xf]
    %v3225 = vld [vmem:[#allocation14 + $0x340] sm:$0xf]
    %v3226 = vld [vmem:[#allocation14 + $0x344] sm:$0xf]
    %v3227 = vld [vmem:[#allocation14 + $0x348] sm:$0xf]
    %v3228 = vld [vmem:[#allocation14 + $0x34c] sm:$0xf]
    %v3229 = vld [vmem:[#allocation14 + $0x350] sm:$0xf]
    %v3230 = vld [vmem:[#allocation14 + $0x354] sm:$0xf]
    %v3231 = vld [vmem:[#allocation14 + $0x358] sm:$0xf]
    %v3232 = vld [vmem:[#allocation14 + $0x35c] sm:$0xf]
    %v3233 = vld [vmem:[#allocation14 + $0x360] sm:$0xf]
    %v3234 = vld [vmem:[#allocation14 + $0x364] sm:$0xf]
    %v3235 = vld [vmem:[#allocation14 + $0x368] sm:$0xf]
    %v3236 = vld [vmem:[#allocation14 + $0x36c] sm:$0xf]
    %v3237 = vld [vmem:[#allocation14 + $0x370] sm:$0xf]
    %v3238 = vld [vmem:[#allocation14 + $0x374] sm:$0xf]
    %v3239 = vld [vmem:[#allocation14 + $0x378] sm:$0xf]
    %v3240 = vld [vmem:[#allocation14 + $0x37c] sm:$0xf]
    %v3241 = vld [vmem:[#allocation14 + $0x380] sm:$0xf]
    %v3242 = vld [vmem:[#allocation14 + $0x384] sm:$0xf]
    %v3243 = vld [vmem:[#allocation14 + $0x388] sm:$0xf]
    %v3244 = vld [vmem:[#allocation14 + $0x38c] sm:$0xf]
    %v3245 = vld [vmem:[#allocation14 + $0x390] sm:$0xf]
    %v3246 = vld [vmem:[#allocation14 + $0x394] sm:$0xf]
    %v3247 = vld [vmem:[#allocation14 + $0x398] sm:$0xf]
    %v3248 = vld [vmem:[#allocation14 + $0x39c] sm:$0xf]
    %v3249 = vld [vmem:[#allocation14 + $0x3a0] sm:$0xf]
    %v3250 = vld [vmem:[#allocation14 + $0x3a4] sm:$0xf]
    %v3251 = vld [vmem:[#allocation14 + $0x3a8] sm:$0xf]
    %v3252 = vld [vmem:[#allocation14 + $0x3ac] sm:$0xf]
    %v3253 = vld [vmem:[#allocation14 + $0x3b0] sm:$0xf]
    %v3254 = vld [vmem:[#allocation14 + $0x3b4] sm:$0xf]
    %v3255 = vld [vmem:[#allocation14 + $0x3b8] sm:$0xf]
    %v3256 = vld [vmem:[#allocation14 + $0x3bc] sm:$0xf]
    %v3257 = vld [vmem:[#allocation14 + $0x3c0] sm:$0xf]
    %v3258 = vld [vmem:[#allocation14 + $0x3c4] sm:$0xf]
    %v3259 = vld [vmem:[#allocation14 + $0x3c8] sm:$0xf]
    %v3260 = vld [vmem:[#allocation14 + $0x3cc] sm:$0xf]
    %v3261 = vld [vmem:[#allocation14 + $0x3d0] sm:$0xf]
    %v3262 = vld [vmem:[#allocation14 + $0x3d4] sm:$0xf]
    %v3263 = vld [vmem:[#allocation14 + $0x3d8] sm:$0xf]
    %v3264 = vld [vmem:[#allocation14 + $0x3dc] sm:$0xf]
    %v3265 = vld [vmem:[#allocation14 + $0x3e0] sm:$0xf]
    %v3266 = vld [vmem:[#allocation14 + $0x3e4] sm:$0xf]
    %v3267 = vld [vmem:[#allocation14 + $0x3e8] sm:$0xf]
    %v3268 = vld [vmem:[#allocation14 + $0x3ec] sm:$0xf]
    %v3269 = vld [vmem:[#allocation14 + $0x3f0] sm:$0xf]
    %v3270 = vld [vmem:[#allocation14 + $0x3f4] sm:$0xf]
    %v3271 = vld [vmem:[#allocation14 + $0x3f8] sm:$0xf]
    %v3272 = vld [vmem:[#allocation14 + $0x3fc] sm:$0xf]
    %v3273 = vld [vmem:[%s15] sm:$0x1]
    %v3275 = vlaneseq
    %v3276 = vshrl.u32 %v3275, 7
    %v3277 = vsub.s32 0, %v3276
    %v3278 = vrot.slane %v3273, %v3277
    %v3536 = vunpack.c.l.b16 %v3017
    %v3537 = vunpack.c.l.b16 %v3018
    %v3538 = vunpack.c.l.b16 %v3019
    %v3539 = vunpack.c.l.b16 %v3020
    %v3540 = vunpack.c.l.b16 %v3021
    %v3541 = vunpack.c.l.b16 %v3022
    %v3542 = vunpack.c.l.b16 %v3023
    %v3543 = vunpack.c.l.b16 %v3024
    %v3544 = vunpack.c.l.b16 %v3025
    %v3545 = vunpack.c.l.b16 %v3026
    %v3546 = vunpack.c.l.b16 %v3027
    %v3547 = vunpack.c.l.b16 %v3028
    %v3548 = vunpack.c.l.b16 %v3029
    %v3549 = vunpack.c.l.b16 %v3030
    %v3550 = vunpack.c.l.b16 %v3031
    %v3551 = vunpack.c.l.b16 %v3032
    %v3552 = vunpack.c.l.b16 %v3033
    %v3553 = vunpack.c.l.b16 %v3034
    %v3554 = vunpack.c.l.b16 %v3035
    %v3555 = vunpack.c.l.b16 %v3036
    %v3556 = vunpack.c.l.b16 %v3037
    %v3557 = vunpack.c.l.b16 %v3038
    %v3558 = vunpack.c.l.b16 %v3039
    %v3559 = vunpack.c.l.b16 %v3040
    %v3560 = vunpack.c.l.b16 %v3041
    %v3561 = vunpack.c.l.b16 %v3042
    %v3562 = vunpack.c.l.b16 %v3043
    %v3563 = vunpack.c.l.b16 %v3044
    %v3564 = vunpack.c.l.b16 %v3045
    %v3565 = vunpack.c.l.b16 %v3046
    %v3566 = vunpack.c.l.b16 %v3047
    %v3567 = vunpack.c.l.b16 %v3048
    %v3568 = vunpack.c.l.b16 %v3049
    %v3569 = vunpack.c.l.b16 %v3050
    %v3570 = vunpack.c.l.b16 %v3051
    %v3571 = vunpack.c.l.b16 %v3052
    %v3572 = vunpack.c.l.b16 %v3053
    %v3573 = vunpack.c.l.b16 %v3054
    %v3574 = vunpack.c.l.b16 %v3055
    %v3575 = vunpack.c.l.b16 %v3056
    %v3576 = vunpack.c.l.b16 %v3057
    %v3577 = vunpack.c.l.b16 %v3058
    %v3578 = vunpack.c.l.b16 %v3059
    %v3579 = vunpack.c.l.b16 %v3060
    %v3580 = vunpack.c.l.b16 %v3061
    %v3581 = vunpack.c.l.b16 %v3062
    %v3582 = vunpack.c.l.b16 %v3063
    %v3583 = vunpack.c.l.b16 %v3064
    %v3584 = vunpack.c.l.b16 %v3065
    %v3585 = vunpack.c.l.b16 %v3066
    %v3586 = vunpack.c.l.b16 %v3067
    %v3587 = vunpack.c.l.b16 %v3068
    %v3588 = vunpack.c.l.b16 %v3069
    %v3589 = vunpack.c.l.b16 %v3070
    %v3590 = vunpack.c.l.b16 %v3071
    %v3591 = vunpack.c.l.b16 %v3072
    %v3592 = vunpack.c.l.b16 %v3073
    %v3593 = vunpack.c.l.b16 %v3074
    %v3594 = vunpack.c.l.b16 %v3075
    %v3595 = vunpack.c.l.b16 %v3076
    %v3596 = vunpack.c.l.b16 %v3077
    %v3597 = vunpack.c.l.b16 %v3078
    %v3598 = vunpack.c.l.b16 %v3079
    %v3599 = vunpack.c.l.b16 %v3080
    %v3600 = vunpack.c.l.b16 %v3081
    %v3601 = vunpack.c.l.b16 %v3082
    %v3602 = vunpack.c.l.b16 %v3083
    %v3603 = vunpack.c.l.b16 %v3084
    %v3604 = vunpack.c.l.b16 %v3085
    %v3605 = vunpack.c.l.b16 %v3086
    %v3606 = vunpack.c.l.b16 %v3087
    %v3607 = vunpack.c.l.b16 %v3088
    %v3608 = vunpack.c.l.b16 %v3089
    %v3609 = vunpack.c.l.b16 %v3090
    %v3610 = vunpack.c.l.b16 %v3091
    %v3611 = vunpack.c.l.b16 %v3092
    %v3612 = vunpack.c.l.b16 %v3093
    %v3613 = vunpack.c.l.b16 %v3094
    %v3614 = vunpack.c.l.b16 %v3095
    %v3615 = vunpack.c.l.b16 %v3096
    %v3616 = vunpack.c.l.b16 %v3097
    %v3617 = vunpack.c.l.b16 %v3098
    %v3618 = vunpack.c.l.b16 %v3099
    %v3619 = vunpack.c.l.b16 %v3100
    %v3620 = vunpack.c.l.b16 %v3101
    %v3621 = vunpack.c.l.b16 %v3102
    %v3622 = vunpack.c.l.b16 %v3103
    %v3623 = vunpack.c.l.b16 %v3104
    %v3624 = vunpack.c.l.b16 %v3105
    %v3625 = vunpack.c.l.b16 %v3106
    %v3626 = vunpack.c.l.b16 %v3107
    %v3627 = vunpack.c.l.b16 %v3108
    %v3628 = vunpack.c.l.b16 %v3109
    %v3629 = vunpack.c.l.b16 %v3110
    %v3630 = vunpack.c.l.b16 %v3111
    %v3631 = vunpack.c.l.b16 %v3112
    %v3632 = vunpack.c.l.b16 %v3113
    %v3633 = vunpack.c.l.b16 %v3114
    %v3634 = vunpack.c.l.b16 %v3115
    %v3635 = vunpack.c.l.b16 %v3116
    %v3636 = vunpack.c.l.b16 %v3117
    %v3637 = vunpack.c.l.b16 %v3118
    %v3638 = vunpack.c.l.b16 %v3119
    %v3639 = vunpack.c.l.b16 %v3120
    %v3640 = vunpack.c.l.b16 %v3121
    %v3641 = vunpack.c.l.b16 %v3122
    %v3642 = vunpack.c.l.b16 %v3123
    %v3643 = vunpack.c.l.b16 %v3124
    %v3644 = vunpack.c.l.b16 %v3125
    %v3645 = vunpack.c.l.b16 %v3126
    %v3646 = vunpack.c.l.b16 %v3127
    %v3647 = vunpack.c.l.b16 %v3128
    %v3648 = vunpack.c.l.b16 %v3129
    %v3649 = vunpack.c.l.b16 %v3130
    %v3650 = vunpack.c.l.b16 %v3131
    %v3651 = vunpack.c.l.b16 %v3132
    %v3652 = vunpack.c.l.b16 %v3133
    %v3653 = vunpack.c.l.b16 %v3134
    %v3654 = vunpack.c.l.b16 %v3135
    %v3655 = vunpack.c.l.b16 %v3136
    %v3656 = vunpack.c.l.b16 %v3137
    %v3657 = vunpack.c.l.b16 %v3138
    %v3658 = vunpack.c.l.b16 %v3139
    %v3659 = vunpack.c.l.b16 %v3140
    %v3660 = vunpack.c.l.b16 %v3141
    %v3661 = vunpack.c.l.b16 %v3142
    %v3662 = vunpack.c.l.b16 %v3143
    %v3663 = vunpack.c.l.b16 %v3144
    %v3664 = vunpack.c.l.b16 %v3145
    %v3665 = vunpack.c.l.b16 %v3146
    %v3666 = vunpack.c.l.b16 %v3147
    %v3667 = vunpack.c.l.b16 %v3148
    %v3668 = vunpack.c.l.b16 %v3149
    %v3669 = vunpack.c.l.b16 %v3150
    %v3670 = vunpack.c.l.b16 %v3151
    %v3671 = vunpack.c.l.b16 %v3152
    %v3672 = vunpack.c.l.b16 %v3153
    %v3673 = vunpack.c.l.b16 %v3154
    %v3674 = vunpack.c.l.b16 %v3155
    %v3675 = vunpack.c.l.b16 %v3156
    %v3676 = vunpack.c.l.b16 %v3157
    %v3677 = vunpack.c.l.b16 %v3158
    %v3678 = vunpack.c.l.b16 %v3159
    %v3679 = vunpack.c.l.b16 %v3160
    %v3680 = vunpack.c.l.b16 %v3161
    %v3681 = vunpack.c.l.b16 %v3162
    %v3682 = vunpack.c.l.b16 %v3163
    %v3683 = vunpack.c.l.b16 %v3164
    %v3684 = vunpack.c.l.b16 %v3165
    %v3685 = vunpack.c.l.b16 %v3166
    %v3686 = vunpack.c.l.b16 %v3167
    %v3687 = vunpack.c.l.b16 %v3168
    %v3688 = vunpack.c.l.b16 %v3169
    %v3689 = vunpack.c.l.b16 %v3170
    %v3690 = vunpack.c.l.b16 %v3171
    %v3691 = vunpack.c.l.b16 %v3172
    %v3692 = vunpack.c.l.b16 %v3173
    %v3693 = vunpack.c.l.b16 %v3174
    %v3694 = vunpack.c.l.b16 %v3175
    %v3695 = vunpack.c.l.b16 %v3176
    %v3696 = vunpack.c.l.b16 %v3177
    %v3697 = vunpack.c.l.b16 %v3178
    %v3698 = vunpack.c.l.b16 %v3179
    %v3699 = vunpack.c.l.b16 %v3180
    %v3700 = vunpack.c.l.b16 %v3181
    %v3701 = vunpack.c.l.b16 %v3182
    %v3702 = vunpack.c.l.b16 %v3183
    %v3703 = vunpack.c.l.b16 %v3184
    %v3704 = vunpack.c.l.b16 %v3185
    %v3705 = vunpack.c.l.b16 %v3186
    %v3706 = vunpack.c.l.b16 %v3187
    %v3707 = vunpack.c.l.b16 %v3188
    %v3708 = vunpack.c.l.b16 %v3189
    %v3709 = vunpack.c.l.b16 %v3190
    %v3710 = vunpack.c.l.b16 %v3191
    %v3711 = vunpack.c.l.b16 %v3192
    %v3712 = vunpack.c.l.b16 %v3193
    %v3713 = vunpack.c.l.b16 %v3194
    %v3714 = vunpack.c.l.b16 %v3195
    %v3715 = vunpack.c.l.b16 %v3196
    %v3716 = vunpack.c.l.b16 %v3197
    %v3717 = vunpack.c.l.b16 %v3198
    %v3718 = vunpack.c.l.b16 %v3199
    %v3719 = vunpack.c.l.b16 %v3200
    %v3720 = vunpack.c.l.b16 %v3201
    %v3721 = vunpack.c.l.b16 %v3202
    %v3722 = vunpack.c.l.b16 %v3203
    %v3723 = vunpack.c.l.b16 %v3204
    %v3724 = vunpack.c.l.b16 %v3205
    %v3725 = vunpack.c.l.b16 %v3206
    %v3726 = vunpack.c.l.b16 %v3207
    %v3727 = vunpack.c.l.b16 %v3208
    %v3728 = vunpack.c.l.b16 %v3209
    %v3729 = vunpack.c.l.b16 %v3210
    %v3730 = vunpack.c.l.b16 %v3211
    %v3731 = vunpack.c.l.b16 %v3212
    %v3732 = vunpack.c.l.b16 %v3213
    %v3733 = vunpack.c.l.b16 %v3214
    %v3734 = vunpack.c.l.b16 %v3215
    %v3735 = vunpack.c.l.b16 %v3216
    %v3736 = vunpack.c.l.b16 %v3217
    %v3737 = vunpack.c.l.b16 %v3218
    %v3738 = vunpack.c.l.b16 %v3219
    %v3739 = vunpack.c.l.b16 %v3220
    %v3740 = vunpack.c.l.b16 %v3221
    %v3741 = vunpack.c.l.b16 %v3222
    %v3742 = vunpack.c.l.b16 %v3223
    %v3743 = vunpack.c.l.b16 %v3224
    %v3744 = vunpack.c.l.b16 %v3225
    %v3745 = vunpack.c.l.b16 %v3226
    %v3746 = vunpack.c.l.b16 %v3227
    %v3747 = vunpack.c.l.b16 %v3228
    %v3748 = vunpack.c.l.b16 %v3229
    %v3749 = vunpack.c.l.b16 %v3230
    %v3750 = vunpack.c.l.b16 %v3231
    %v3751 = vunpack.c.l.b16 %v3232
    %v3752 = vunpack.c.l.b16 %v3233
    %v3753 = vunpack.c.l.b16 %v3234
    %v3754 = vunpack.c.l.b16 %v3235
    %v3755 = vunpack.c.l.b16 %v3236
    %v3756 = vunpack.c.l.b16 %v3237
    %v3757 = vunpack.c.l.b16 %v3238
    %v3758 = vunpack.c.l.b16 %v3239
    %v3759 = vunpack.c.l.b16 %v3240
    %v3760 = vunpack.c.l.b16 %v3241
    %v3761 = vunpack.c.l.b16 %v3242
    %v3762 = vunpack.c.l.b16 %v3243
    %v3763 = vunpack.c.l.b16 %v3244
    %v3764 = vunpack.c.l.b16 %v3245
    %v3765 = vunpack.c.l.b16 %v3246
    %v3766 = vunpack.c.l.b16 %v3247
    %v3767 = vunpack.c.l.b16 %v3248
    %v3768 = vunpack.c.l.b16 %v3249
    %v3769 = vunpack.c.l.b16 %v3250
    %v3770 = vunpack.c.l.b16 %v3251
    %v3771 = vunpack.c.l.b16 %v3252
    %v3772 = vunpack.c.l.b16 %v3253
    %v3773 = vunpack.c.l.b16 %v3254
    %v3774 = vunpack.c.l.b16 %v3255
    %v3775 = vunpack.c.l.b16 %v3256
    %v3776 = vunpack.c.l.b16 %v3257
    %v3777 = vunpack.c.l.b16 %v3258
    %v3778 = vunpack.c.l.b16 %v3259
    %v3779 = vunpack.c.l.b16 %v3260
    %v3780 = vunpack.c.l.b16 %v3261
    %v3781 = vunpack.c.l.b16 %v3262
    %v3782 = vunpack.c.l.b16 %v3263
    %v3783 = vunpack.c.l.b16 %v3264
    %v3784 = vunpack.c.l.b16 %v3265
    %v3785 = vunpack.c.l.b16 %v3266
    %v3786 = vunpack.c.l.b16 %v3267
    %v3787 = vunpack.c.l.b16 %v3268
    %v3788 = vunpack.c.l.b16 %v3269
    %v3789 = vunpack.c.l.b16 %v3270
    %v3790 = vunpack.c.l.b16 %v3271
    %v3791 = vunpack.c.l.b16 %v3272
    %v3792 = vpack.c.b16 %v3537, %v3536
    %v3793 = vpack.c.b16 %v3539, %v3538
    %v3794 = vpack.c.b16 %v3541, %v3540
    %v3795 = vpack.c.b16 %v3543, %v3542
    %v3796 = vpack.c.b16 %v3545, %v3544
    %v3797 = vpack.c.b16 %v3547, %v3546
    %v3798 = vpack.c.b16 %v3549, %v3548
    %v3799 = vpack.c.b16 %v3551, %v3550
    %v3800 = vpack.c.b16 %v3553, %v3552
    %v3801 = vpack.c.b16 %v3555, %v3554
    %v3802 = vpack.c.b16 %v3557, %v3556
    %v3803 = vpack.c.b16 %v3559, %v3558
    %v3804 = vpack.c.b16 %v3561, %v3560
    %v3805 = vpack.c.b16 %v3563, %v3562
    %v3806 = vpack.c.b16 %v3565, %v3564
    %v3807 = vpack.c.b16 %v3567, %v3566
    %v3808 = vpack.c.b16 %v3569, %v3568
    %v3809 = vpack.c.b16 %v3571, %v3570
    %v3810 = vpack.c.b16 %v3573, %v3572
    %v3811 = vpack.c.b16 %v3575, %v3574
    %v3812 = vpack.c.b16 %v3577, %v3576
    %v3813 = vpack.c.b16 %v3579, %v3578
    %v3814 = vpack.c.b16 %v3581, %v3580
    %v3815 = vpack.c.b16 %v3583, %v3582
    %v3816 = vpack.c.b16 %v3585, %v3584
    %v3817 = vpack.c.b16 %v3587, %v3586
    %v3818 = vpack.c.b16 %v3589, %v3588
    %v3819 = vpack.c.b16 %v3591, %v3590
    %v3820 = vpack.c.b16 %v3593, %v3592
    %v3821 = vpack.c.b16 %v3595, %v3594
    %v3822 = vpack.c.b16 %v3597, %v3596
    %v3823 = vpack.c.b16 %v3599, %v3598
    %v3824 = vpack.c.b16 %v3601, %v3600
    %v3825 = vpack.c.b16 %v3603, %v3602
    %v3826 = vpack.c.b16 %v3605, %v3604
    %v3827 = vpack.c.b16 %v3607, %v3606
    %v3828 = vpack.c.b16 %v3609, %v3608
    %v3829 = vpack.c.b16 %v3611, %v3610
    %v3830 = vpack.c.b16 %v3613, %v3612
    %v3831 = vpack.c.b16 %v3615, %v3614
    %v3832 = vpack.c.b16 %v3617, %v3616
    %v3833 = vpack.c.b16 %v3619, %v3618
    %v3834 = vpack.c.b16 %v3621, %v3620
    %v3835 = vpack.c.b16 %v3623, %v3622
    %v3836 = vpack.c.b16 %v3625, %v3624
    %v3837 = vpack.c.b16 %v3627, %v3626
    %v3838 = vpack.c.b16 %v3629, %v3628
    %v3839 = vpack.c.b16 %v3631, %v3630
    %v3840 = vpack.c.b16 %v3633, %v3632
    %v3841 = vpack.c.b16 %v3635, %v3634
    %v3842 = vpack.c.b16 %v3637, %v3636
    %v3843 = vpack.c.b16 %v3639, %v3638
    %v3844 = vpack.c.b16 %v3641, %v3640
    %v3845 = vpack.c.b16 %v3643, %v3642
    %v3846 = vpack.c.b16 %v3645, %v3644
    %v3847 = vpack.c.b16 %v3647, %v3646
    %v3848 = vpack.c.b16 %v3649, %v3648
    %v3849 = vpack.c.b16 %v3651, %v3650
    %v3850 = vpack.c.b16 %v3653, %v3652
    %v3851 = vpack.c.b16 %v3655, %v3654
    %v3852 = vpack.c.b16 %v3657, %v3656
    %v3853 = vpack.c.b16 %v3659, %v3658
    %v3854 = vpack.c.b16 %v3661, %v3660
    %v3855 = vpack.c.b16 %v3663, %v3662
    %v3856 = vpack.c.b16 %v3665, %v3664
    %v3857 = vpack.c.b16 %v3667, %v3666
    %v3858 = vpack.c.b16 %v3669, %v3668
    %v3859 = vpack.c.b16 %v3671, %v3670
    %v3860 = vpack.c.b16 %v3673, %v3672
    %v3861 = vpack.c.b16 %v3675, %v3674
    %v3862 = vpack.c.b16 %v3677, %v3676
    %v3863 = vpack.c.b16 %v3679, %v3678
    %v3864 = vpack.c.b16 %v3681, %v3680
    %v3865 = vpack.c.b16 %v3683, %v3682
    %v3866 = vpack.c.b16 %v3685, %v3684
    %v3867 = vpack.c.b16 %v3687, %v3686
    %v3868 = vpack.c.b16 %v3689, %v3688
    %v3869 = vpack.c.b16 %v3691, %v3690
    %v3870 = vpack.c.b16 %v3693, %v3692
    %v3871 = vpack.c.b16 %v3695, %v3694
    %v3872 = vpack.c.b16 %v3697, %v3696
    %v3873 = vpack.c.b16 %v3699, %v3698
    %v3874 = vpack.c.b16 %v3701, %v3700
    %v3875 = vpack.c.b16 %v3703, %v3702
    %v3876 = vpack.c.b16 %v3705, %v3704
    %v3877 = vpack.c.b16 %v3707, %v3706
    %v3878 = vpack.c.b16 %v3709, %v3708
    %v3879 = vpack.c.b16 %v3711, %v3710
    %v3880 = vpack.c.b16 %v3713, %v3712
    %v3881 = vpack.c.b16 %v3715, %v3714
    %v3882 = vpack.c.b16 %v3717, %v3716
    %v3883 = vpack.c.b16 %v3719, %v3718
    %v3884 = vpack.c.b16 %v3721, %v3720
    %v3885 = vpack.c.b16 %v3723, %v3722
    %v3886 = vpack.c.b16 %v3725, %v3724
    %v3887 = vpack.c.b16 %v3727, %v3726
    %v3888 = vpack.c.b16 %v3729, %v3728
    %v3889 = vpack.c.b16 %v3731, %v3730
    %v3890 = vpack.c.b16 %v3733, %v3732
    %v3891 = vpack.c.b16 %v3735, %v3734
    %v3892 = vpack.c.b16 %v3737, %v3736
    %v3893 = vpack.c.b16 %v3739, %v3738
    %v3894 = vpack.c.b16 %v3741, %v3740
    %v3895 = vpack.c.b16 %v3743, %v3742
    %v3896 = vpack.c.b16 %v3745, %v3744
    %v3897 = vpack.c.b16 %v3747, %v3746
    %v3898 = vpack.c.b16 %v3749, %v3748
    %v3899 = vpack.c.b16 %v3751, %v3750
    %v3900 = vpack.c.b16 %v3753, %v3752
    %v3901 = vpack.c.b16 %v3755, %v3754
    %v3902 = vpack.c.b16 %v3757, %v3756
    %v3903 = vpack.c.b16 %v3759, %v3758
    %v3904 = vpack.c.b16 %v3761, %v3760
    %v3905 = vpack.c.b16 %v3763, %v3762
    %v3906 = vpack.c.b16 %v3765, %v3764
    %v3907 = vpack.c.b16 %v3767, %v3766
    %v3908 = vpack.c.b16 %v3769, %v3768
    %v3909 = vpack.c.b16 %v3771, %v3770
    %v3910 = vpack.c.b16 %v3773, %v3772
    %v3911 = vpack.c.b16 %v3775, %v3774
    %v3912 = vpack.c.b16 %v3777, %v3776
    %v3913 = vpack.c.b16 %v3779, %v3778
    %v3914 = vpack.c.b16 %v3781, %v3780
    %v3915 = vpack.c.b16 %v3783, %v3782
    %v3916 = vpack.c.b16 %v3785, %v3784
    %v3917 = vpack.c.b16 %v3787, %v3786
    %v3918 = vpack.c.b16 %v3789, %v3788
    %v3919 = vpack.c.b16 %v3791, %v3790
    %4048 = vmatprep.subr.bf16.mxu0 0
    %4049 = vmatpush1.bf16.msra.mxu0 %v3799
    %4050 = vmatprep.subr.bf16.mxu0 0
    %4051 = vmatpush1.bf16.msra.mxu0 %v3798
    %4052 = vmatprep.subr.bf16.mxu0 0
    %4053 = vmatpush1.bf16.msra.mxu0 %v3797
    %4054 = vmatprep.subr.bf16.mxu0 0
    %4055 = vmatpush1.bf16.msra.mxu0 %v3796
    %4056 = vmatprep.subr.bf16.mxu0 0
    %4057 = vmatpush1.bf16.msra.mxu0 %v3795
    %4058 = vmatprep.subr.bf16.mxu0 0
    %4059 = vmatpush1.bf16.msra.mxu0 %v3794
    %4060 = vmatprep.subr.bf16.mxu0 0
    %4061 = vmatpush1.bf16.msra.mxu0 %v3793
    %4062 = vmatprep.subr.bf16.mxu0 0
    %4063 = vmatpush1.bf16.msra.mxu0 %v3792
    %4064 = vmatprep.subr.bf16.mxu0 0
    %4065 = vmatpush2.bf16.msra.mxu0 %v3807
    %4066 = vmatprep.subr.bf16.mxu0 0
    %4067 = vmatpush2.bf16.msra.mxu0 %v3806
    %4068 = vmatprep.subr.bf16.mxu0 0
    %4069 = vmatpush2.bf16.msra.mxu0 %v3805
    %4070 = vmatprep.subr.bf16.mxu0 0
    %4071 = vmatpush2.bf16.msra.mxu0 %v3804
    %4072 = vmatprep.subr.bf16.mxu0 0
    %4073 = vmatpush2.bf16.msra.mxu0 %v3803
    %4074 = vmatprep.subr.bf16.mxu0 0
    %4075 = vmatpush2.bf16.msra.mxu0 %v3802
    %4076 = vmatprep.subr.bf16.mxu0 0
    %4077 = vmatpush2.bf16.msra.mxu0 %v3801
    %4078 = vmatprep.subr.bf16.mxu0 0
    %4079 = vmatpush2.bf16.msra.mxu0 %v3800
    %4080 = vmatprep.mubr.bf16.mxu0 %v2986
    %4081 = vmatmul.mubr.bf16.gmra.mxu0 %v2985
    %v4082 = vpop.f32.mrf.mxu0
    %v4083 = vadd.f32 %v3278, %v4082
    %v4084 = vpop.f32.mrf.mxu0
    %v4085 = vpop.f32.mrf.mxu0
    %v4086 = vadd.f32 %v3278, %v4085
    %v4087 = vpop.f32.mrf.mxu0
    %4088 = vmatprep.mubr.bf16.mxu0 %v3002
    %4089 = vmatmul.mubr.bf16.gmra.mxu0 %v3001
    %v4090 = vpop.f32.mrf.mxu0
    %v4091 = vadd.f32 %v3278, %v4090
    %v4092 = vpop.f32.mrf.mxu0
    %v4093 = vpop.f32.mrf.mxu0
    %v4094 = vadd.f32 %v3278, %v4093
    %v4095 = vpop.f32.mrf.mxu0
    %4096 = vdwg.mxu0
    %4097 = vmatprep.subr.bf16.mxu0 0
    %4098 = vmatpush1.bf16.msra.mxu0 %v3815
    %4099 = vmatprep.subr.bf16.mxu0 0
    %4100 = vmatpush1.bf16.msra.mxu0 %v3814
    %4101 = vmatprep.subr.bf16.mxu0 0
    %4102 = vmatpush1.bf16.msra.mxu0 %v3813
    %4103 = vmatprep.subr.bf16.mxu0 0
    %4104 = vmatpush1.bf16.msra.mxu0 %v3812
    %4105 = vmatprep.subr.bf16.mxu0 0
    %4106 = vmatpush1.bf16.msra.mxu0 %v3811
    %4107 = vmatprep.subr.bf16.mxu0 0
    %4108 = vmatpush1.bf16.msra.mxu0 %v3810
    %4109 = vmatprep.subr.bf16.mxu0 0
    %4110 = vmatpush1.bf16.msra.mxu0 %v3809
    %4111 = vmatprep.subr.bf16.mxu0 0
    %4112 = vmatpush1.bf16.msra.mxu0 %v3808
    %4113 = vmatprep.subr.bf16.mxu0 0
    %4114 = vmatpush2.bf16.msra.mxu0 %v3823
    %4115 = vmatprep.subr.bf16.mxu0 0
    %4116 = vmatpush2.bf16.msra.mxu0 %v3822
    %4117 = vmatprep.subr.bf16.mxu0 0
    %4118 = vmatpush2.bf16.msra.mxu0 %v3821
    %4119 = vmatprep.subr.bf16.mxu0 0
    %4120 = vmatpush2.bf16.msra.mxu0 %v3820
    %4121 = vmatprep.subr.bf16.mxu0 0
    %4122 = vmatpush2.bf16.msra.mxu0 %v3819
    %4123 = vmatprep.subr.bf16.mxu0 0
    %4124 = vmatpush2.bf16.msra.mxu0 %v3818
    %4125 = vmatprep.subr.bf16.mxu0 0
    %4126 = vmatpush2.bf16.msra.mxu0 %v3817
    %4127 = vmatprep.subr.bf16.mxu0 0
    %4128 = vmatpush2.bf16.msra.mxu0 %v3816
    %4129 = vmatprep.mubr.bf16.mxu0 %v2988
    %4130 = vmatmul.mubr.bf16.gmra.mxu0 %v2987
    %v4131 = vpop.f32.mrf.mxu0
    %v4132 = vadd.f32 %v4083, %v4131
    %v4133 = vpop.f32.mrf.mxu0
    %v4134 = vpop.f32.mrf.mxu0
    %v4135 = vadd.f32 %v4086, %v4134
    %v4136 = vpop.f32.mrf.mxu0
    %4137 = vmatprep.mubr.bf16.mxu0 %v3004
    %4138 = vmatmul.mubr.bf16.gmra.mxu0 %v3003
    %v4139 = vpop.f32.mrf.mxu0
    %v4140 = vadd.f32 %v4091, %v4139
    %v4141 = vpop.f32.mrf.mxu0
    %v4142 = vpop.f32.mrf.mxu0
    %v4143 = vadd.f32 %v4094, %v4142
    %v4144 = vpop.f32.mrf.mxu0
    %4145 = vdwg.mxu0
    %4146 = vmatprep.subr.bf16.mxu0 0
    %4147 = vmatpush1.bf16.msra.mxu0 %v3831
    %4148 = vmatprep.subr.bf16.mxu0 0
    %4149 = vmatpush1.bf16.msra.mxu0 %v3830
    %4150 = vmatprep.subr.bf16.mxu0 0
    %4151 = vmatpush1.bf16.msra.mxu0 %v3829
    %4152 = vmatprep.subr.bf16.mxu0 0
    %4153 = vmatpush1.bf16.msra.mxu0 %v3828
    %4154 = vmatprep.subr.bf16.mxu0 0
    %4155 = vmatpush1.bf16.msra.mxu0 %v3827
    %4156 = vmatprep.subr.bf16.mxu0 0
    %4157 = vmatpush1.bf16.msra.mxu0 %v3826
    %4158 = vmatprep.subr.bf16.mxu0 0
    %4159 = vmatpush1.bf16.msra.mxu0 %v3825
    %4160 = vmatprep.subr.bf16.mxu0 0
    %4161 = vmatpush1.bf16.msra.mxu0 %v3824
    %4162 = vmatprep.subr.bf16.mxu0 0
    %4163 = vmatpush2.bf16.msra.mxu0 %v3839
    %4164 = vmatprep.subr.bf16.mxu0 0
    %4165 = vmatpush2.bf16.msra.mxu0 %v3838
    %4166 = vmatprep.subr.bf16.mxu0 0
    %4167 = vmatpush2.bf16.msra.mxu0 %v3837
    %4168 = vmatprep.subr.bf16.mxu0 0
    %4169 = vmatpush2.bf16.msra.mxu0 %v3836
    %4170 = vmatprep.subr.bf16.mxu0 0
    %4171 = vmatpush2.bf16.msra.mxu0 %v3835
    %4172 = vmatprep.subr.bf16.mxu0 0
    %4173 = vmatpush2.bf16.msra.mxu0 %v3834
    %4174 = vmatprep.subr.bf16.mxu0 0
    %4175 = vmatpush2.bf16.msra.mxu0 %v3833
    %4176 = vmatprep.subr.bf16.mxu0 0
    %4177 = vmatpush2.bf16.msra.mxu0 %v3832
    %4178 = vmatprep.mubr.bf16.mxu0 %v2990
    %4179 = vmatmul.mubr.bf16.gmra.mxu0 %v2989
    %v4180 = vpop.f32.mrf.mxu0
    %v4181 = vadd.f32 %v4132, %v4180
    %v4182 = vpop.f32.mrf.mxu0
    %v4183 = vpop.f32.mrf.mxu0
    %v4184 = vadd.f32 %v4135, %v4183
    %v4185 = vpop.f32.mrf.mxu0
    %4186 = vmatprep.mubr.bf16.mxu0 %v3006
    %4187 = vmatmul.mubr.bf16.gmra.mxu0 %v3005
    %v4188 = vpop.f32.mrf.mxu0
    %v4189 = vadd.f32 %v4140, %v4188
    %v4190 = vpop.f32.mrf.mxu0
    %v4191 = vpop.f32.mrf.mxu0
    %v4192 = vadd.f32 %v4143, %v4191
    %v4193 = vpop.f32.mrf.mxu0
    %4194 = vdwg.mxu0
    %4195 = vmatprep.subr.bf16.mxu0 0
    %4196 = vmatpush1.bf16.msra.mxu0 %v3847
    %4197 = vmatprep.subr.bf16.mxu0 0
    %4198 = vmatpush1.bf16.msra.mxu0 %v3846
    %4199 = vmatprep.subr.bf16.mxu0 0
    %4200 = vmatpush1.bf16.msra.mxu0 %v3845
    %4201 = vmatprep.subr.bf16.mxu0 0
    %4202 = vmatpush1.bf16.msra.mxu0 %v3844
    %4203 = vmatprep.subr.bf16.mxu0 0
    %4204 = vmatpush1.bf16.msra.mxu0 %v3843
    %4205 = vmatprep.subr.bf16.mxu0 0
    %4206 = vmatpush1.bf16.msra.mxu0 %v3842
    %4207 = vmatprep.subr.bf16.mxu0 0
    %4208 = vmatpush1.bf16.msra.mxu0 %v3841
    %4209 = vmatprep.subr.bf16.mxu0 0
    %4210 = vmatpush1.bf16.msra.mxu0 %v3840
    %4211 = vmatprep.subr.bf16.mxu0 0
    %4212 = vmatpush2.bf16.msra.mxu0 %v3855
    %4213 = vmatprep.subr.bf16.mxu0 0
    %4214 = vmatpush2.bf16.msra.mxu0 %v3854
    %4215 = vmatprep.subr.bf16.mxu0 0
    %4216 = vmatpush2.bf16.msra.mxu0 %v3853
    %4217 = vmatprep.subr.bf16.mxu0 0
    %4218 = vmatpush2.bf16.msra.mxu0 %v3852
    %4219 = vmatprep.subr.bf16.mxu0 0
    %4220 = vmatpush2.bf16.msra.mxu0 %v3851
    %4221 = vmatprep.subr.bf16.mxu0 0
    %4222 = vmatpush2.bf16.msra.mxu0 %v3850
    %4223 = vmatprep.subr.bf16.mxu0 0
    %4224 = vmatpush2.bf16.msra.mxu0 %v3849
    %4225 = vmatprep.subr.bf16.mxu0 0
    %4226 = vmatpush2.bf16.msra.mxu0 %v3848
    %4227 = vmatprep.mubr.bf16.mxu0 %v2992
    %4228 = vmatmul.mubr.bf16.gmra.mxu0 %v2991
    %v4229 = vpop.f32.mrf.mxu0
    %v4230 = vadd.f32 %v4181, %v4229
    %v4231 = vpop.f32.mrf.mxu0
    %v4232 = vpop.f32.mrf.mxu0
    %v4233 = vadd.f32 %v4184, %v4232
    %v4234 = vpop.f32.mrf.mxu0
    %4235 = vmatprep.mubr.bf16.mxu0 %v3008
    %4236 = vmatmul.mubr.bf16.gmra.mxu0 %v3007
    %v4237 = vpop.f32.mrf.mxu0
    %v4238 = vadd.f32 %v4189, %v4237
    %v4239 = vpop.f32.mrf.mxu0
    %v4240 = vpop.f32.mrf.mxu0
    %v4241 = vadd.f32 %v4192, %v4240
    %v4242 = vpop.f32.mrf.mxu0
    %4243 = vdwg.mxu0
    %4244 = vmatprep.subr.bf16.mxu0 0
    %4245 = vmatpush1.bf16.msra.mxu0 %v3863
    %4246 = vmatprep.subr.bf16.mxu0 0
    %4247 = vmatpush1.bf16.msra.mxu0 %v3862
    %4248 = vmatprep.subr.bf16.mxu0 0
    %4249 = vmatpush1.bf16.msra.mxu0 %v3861
    %4250 = vmatprep.subr.bf16.mxu0 0
    %4251 = vmatpush1.bf16.msra.mxu0 %v3860
    %4252 = vmatprep.subr.bf16.mxu0 0
    %4253 = vmatpush1.bf16.msra.mxu0 %v3859
    %4254 = vmatprep.subr.bf16.mxu0 0
    %4255 = vmatpush1.bf16.msra.mxu0 %v3858
    %4256 = vmatprep.subr.bf16.mxu0 0
    %4257 = vmatpush1.bf16.msra.mxu0 %v3857
    %4258 = vmatprep.subr.bf16.mxu0 0
    %4259 = vmatpush1.bf16.msra.mxu0 %v3856
    %4260 = vmatprep.subr.bf16.mxu0 0
    %4261 = vmatpush2.bf16.msra.mxu0 %v3871
    %4262 = vmatprep.subr.bf16.mxu0 0
    %4263 = vmatpush2.bf16.msra.mxu0 %v3870
    %4264 = vmatprep.subr.bf16.mxu0 0
    %4265 = vmatpush2.bf16.msra.mxu0 %v3869
    %4266 = vmatprep.subr.bf16.mxu0 0
    %4267 = vmatpush2.bf16.msra.mxu0 %v3868
    %4268 = vmatprep.subr.bf16.mxu0 0
    %4269 = vmatpush2.bf16.msra.mxu0 %v3867
    %4270 = vmatprep.subr.bf16.mxu0 0
    %4271 = vmatpush2.bf16.msra.mxu0 %v3866
    %4272 = vmatprep.subr.bf16.mxu0 0
    %4273 = vmatpush2.bf16.msra.mxu0 %v3865
    %4274 = vmatprep.subr.bf16.mxu0 0
    %4275 = vmatpush2.bf16.msra.mxu0 %v3864
    %4276 = vmatprep.mubr.bf16.mxu0 %v2994
    %4277 = vmatmul.mubr.bf16.gmra.mxu0 %v2993
    %v4278 = vpop.f32.mrf.mxu0
    %v4279 = vadd.f32 %v4230, %v4278
    %v4280 = vpop.f32.mrf.mxu0
    %v4281 = vpop.f32.mrf.mxu0
    %v4282 = vadd.f32 %v4233, %v4281
    %v4283 = vpop.f32.mrf.mxu0
    %4284 = vmatprep.mubr.bf16.mxu0 %v3010
    %4285 = vmatmul.mubr.bf16.gmra.mxu0 %v3009
    %v4286 = vpop.f32.mrf.mxu0
    %v4287 = vadd.f32 %v4238, %v4286
    %v4288 = vpop.f32.mrf.mxu0
    %v4289 = vpop.f32.mrf.mxu0
    %v4290 = vadd.f32 %v4241, %v4289
    %v4291 = vpop.f32.mrf.mxu0
    %4292 = vdwg.mxu0
    %4293 = vmatprep.subr.bf16.mxu0 0
    %4294 = vmatpush1.bf16.msra.mxu0 %v3879
    %4295 = vmatprep.subr.bf16.mxu0 0
    %4296 = vmatpush1.bf16.msra.mxu0 %v3878
    %4297 = vmatprep.subr.bf16.mxu0 0
    %4298 = vmatpush1.bf16.msra.mxu0 %v3877
    %4299 = vmatprep.subr.bf16.mxu0 0
    %4300 = vmatpush1.bf16.msra.mxu0 %v3876
    %4301 = vmatprep.subr.bf16.mxu0 0
    %4302 = vmatpush1.bf16.msra.mxu0 %v3875
    %4303 = vmatprep.subr.bf16.mxu0 0
    %4304 = vmatpush1.bf16.msra.mxu0 %v3874
    %4305 = vmatprep.subr.bf16.mxu0 0
    %4306 = vmatpush1.bf16.msra.mxu0 %v3873
    %4307 = vmatprep.subr.bf16.mxu0 0
    %4308 = vmatpush1.bf16.msra.mxu0 %v3872
    %4309 = vmatprep.subr.bf16.mxu0 0
    %4310 = vmatpush2.bf16.msra.mxu0 %v3887
    %4311 = vmatprep.subr.bf16.mxu0 0
    %4312 = vmatpush2.bf16.msra.mxu0 %v3886
    %4313 = vmatprep.subr.bf16.mxu0 0
    %4314 = vmatpush2.bf16.msra.mxu0 %v3885
    %4315 = vmatprep.subr.bf16.mxu0 0
    %4316 = vmatpush2.bf16.msra.mxu0 %v3884
    %4317 = vmatprep.subr.bf16.mxu0 0
    %4318 = vmatpush2.bf16.msra.mxu0 %v3883
    %4319 = vmatprep.subr.bf16.mxu0 0
    %4320 = vmatpush2.bf16.msra.mxu0 %v3882
    %4321 = vmatprep.subr.bf16.mxu0 0
    %4322 = vmatpush2.bf16.msra.mxu0 %v3881
    %4323 = vmatprep.subr.bf16.mxu0 0
    %4324 = vmatpush2.bf16.msra.mxu0 %v3880
    %4325 = vmatprep.mubr.bf16.mxu0 %v2996
    %4326 = vmatmul.mubr.bf16.gmra.mxu0 %v2995
    %v4327 = vpop.f32.mrf.mxu0
    %v4328 = vadd.f32 %v4279, %v4327
    %v4329 = vpop.f32.mrf.mxu0
    %v4330 = vpop.f32.mrf.mxu0
    %v4331 = vadd.f32 %v4282, %v4330
    %v4332 = vpop.f32.mrf.mxu0
    %4333 = vmatprep.mubr.bf16.mxu0 %v3012
    %4334 = vmatmul.mubr.bf16.gmra.mxu0 %v3011
    %v4335 = vpop.f32.mrf.mxu0
    %v4336 = vadd.f32 %v4287, %v4335
    %v4337 = vpop.f32.mrf.mxu0
    %v4338 = vpop.f32.mrf.mxu0
    %v4339 = vadd.f32 %v4290, %v4338
    %v4340 = vpop.f32.mrf.mxu0
    %4341 = vdwg.mxu0
    %4342 = vmatprep.subr.bf16.mxu0 0
    %4343 = vmatpush1.bf16.msra.mxu0 %v3895
    %4344 = vmatprep.subr.bf16.mxu0 0
    %4345 = vmatpush1.bf16.msra.mxu0 %v3894
    %4346 = vmatprep.subr.bf16.mxu0 0
    %4347 = vmatpush1.bf16.msra.mxu0 %v3893
    %4348 = vmatprep.subr.bf16.mxu0 0
    %4349 = vmatpush1.bf16.msra.mxu0 %v3892
    %4350 = vmatprep.subr.bf16.mxu0 0
    %4351 = vmatpush1.bf16.msra.mxu0 %v3891
    %4352 = vmatprep.subr.bf16.mxu0 0
    %4353 = vmatpush1.bf16.msra.mxu0 %v3890
    %4354 = vmatprep.subr.bf16.mxu0 0
    %4355 = vmatpush1.bf16.msra.mxu0 %v3889
    %4356 = vmatprep.subr.bf16.mxu0 0
    %4357 = vmatpush1.bf16.msra.mxu0 %v3888
    %4358 = vmatprep.subr.bf16.mxu0 0
    %4359 = vmatpush2.bf16.msra.mxu0 %v3903
    %4360 = vmatprep.subr.bf16.mxu0 0
    %4361 = vmatpush2.bf16.msra.mxu0 %v3902
    %4362 = vmatprep.subr.bf16.mxu0 0
    %4363 = vmatpush2.bf16.msra.mxu0 %v3901
    %4364 = vmatprep.subr.bf16.mxu0 0
    %4365 = vmatpush2.bf16.msra.mxu0 %v3900
    %4366 = vmatprep.subr.bf16.mxu0 0
    %4367 = vmatpush2.bf16.msra.mxu0 %v3899
    %4368 = vmatprep.subr.bf16.mxu0 0
    %4369 = vmatpush2.bf16.msra.mxu0 %v3898
    %4370 = vmatprep.subr.bf16.mxu0 0
    %4371 = vmatpush2.bf16.msra.mxu0 %v3897
    %4372 = vmatprep.subr.bf16.mxu0 0
    %4373 = vmatpush2.bf16.msra.mxu0 %v3896
    %4374 = vmatprep.mubr.bf16.mxu0 %v2998
    %4375 = vmatmul.mubr.bf16.gmra.mxu0 %v2997
    %v4376 = vpop.f32.mrf.mxu0
    %v4377 = vadd.f32 %v4328, %v4376
    %v4378 = vpop.f32.mrf.mxu0
    %v4379 = vpop.f32.mrf.mxu0
    %v4380 = vadd.f32 %v4331, %v4379
    %v4381 = vpop.f32.mrf.mxu0
    %4382 = vmatprep.mubr.bf16.mxu0 %v3014
    %4383 = vmatmul.mubr.bf16.gmra.mxu0 %v3013
    %v4384 = vpop.f32.mrf.mxu0
    %v4385 = vadd.f32 %v4336, %v4384
    %v4386 = vpop.f32.mrf.mxu0
    %v4387 = vpop.f32.mrf.mxu0
    %v4388 = vadd.f32 %v4339, %v4387
    %v4389 = vpop.f32.mrf.mxu0
    %4390 = vdwg.mxu0
    %4391 = vmatprep.subr.bf16.mxu0 0
    %4392 = vmatpush1.bf16.msra.mxu0 %v3911
    %4393 = vmatprep.subr.bf16.mxu0 0
    %4394 = vmatpush1.bf16.msra.mxu0 %v3910
    %4395 = vmatprep.subr.bf16.mxu0 0
    %4396 = vmatpush1.bf16.msra.mxu0 %v3909
    %4397 = vmatprep.subr.bf16.mxu0 0
    %4398 = vmatpush1.bf16.msra.mxu0 %v3908
    %4399 = vmatprep.subr.bf16.mxu0 0
    %4400 = vmatpush1.bf16.msra.mxu0 %v3907
    %4401 = vmatprep.subr.bf16.mxu0 0
    %4402 = vmatpush1.bf16.msra.mxu0 %v3906
    %4403 = vmatprep.subr.bf16.mxu0 0
    %4404 = vmatpush1.bf16.msra.mxu0 %v3905
    %4405 = vmatprep.subr.bf16.mxu0 0
    %4406 = vmatpush1.bf16.msra.mxu0 %v3904
    %4407 = vmatprep.subr.bf16.mxu0 0
    %4408 = vmatpush2.bf16.msra.mxu0 %v3919
    %4409 = vmatprep.subr.bf16.mxu0 0
    %4410 = vmatpush2.bf16.msra.mxu0 %v3918
    %4411 = vmatprep.subr.bf16.mxu0 0
    %4412 = vmatpush2.bf16.msra.mxu0 %v3917
    %4413 = vmatprep.subr.bf16.mxu0 0
    %4414 = vmatpush2.bf16.msra.mxu0 %v3916
    %4415 = vmatprep.subr.bf16.mxu0 0
    %4416 = vmatpush2.bf16.msra.mxu0 %v3915
    %4417 = vmatprep.subr.bf16.mxu0 0
    %4418 = vmatpush2.bf16.msra.mxu0 %v3914
    %4419 = vmatprep.subr.bf16.mxu0 0
    %4420 = vmatpush2.bf16.msra.mxu0 %v3913
    %4421 = vmatprep.subr.bf16.mxu0 0
    %4422 = vmatpush2.bf16.msra.mxu0 %v3912
    %4423 = vmatprep.mubr.bf16.mxu0 %v3000
    %4424 = vmatmul.mubr.bf16.gmra.mxu0 %v2999
    %v4425 = vpop.f32.mrf.mxu0
    %v4426 = vadd.f32 %v4377, %v4425
    %v4427 = vpop.f32.mrf.mxu0
    %v4428 = vpop.f32.mrf.mxu0
    %v4429 = vadd.f32 %v4380, %v4428
    %v4430 = vpop.f32.mrf.mxu0
    %4431 = vmatprep.mubr.bf16.mxu0 %v3016
    %4432 = vmatmul.mubr.bf16.gmra.mxu0 %v3015
    %v4433 = vpop.f32.mrf.mxu0
    %v4434 = vadd.f32 %v4385, %v4433
    %v4435 = vpop.f32.mrf.mxu0
    %v4436 = vpop.f32.mrf.mxu0
    %v4437 = vadd.f32 %v4388, %v4436
    %v4438 = vpop.f32.mrf.mxu0
    %4439 = vdwg.mxu0
    %v4440 = vadd.f32 %v1639, %v4426
    %v4441 = vadd.f32 %v1640, %v4429
    %v4442 = vadd.f32 %v1641, %v4434
    %v4443 = vadd.f32 %v1642, %v4437
    %v4444 = vld [vmem:[%s16] sm:$0x1]
    %v4445 = vld [vmem:[%s17] sm:$0x1]
    %4446 = vadd.xlane.f32.xlu0 %v4440
    %v4447 = vpop.xlane.xlu0 %4446
    %4448 = vadd.xlane.f32.xlu0 %v4441
    %v4449 = vpop.xlane.xlu0 %4448
    %4450 = vadd.xlane.f32.xlu0 %v4442
    %v4451 = vpop.xlane.xlu0 %4450
    %4452 = vadd.xlane.f32.xlu0 %v4443
    %v4453 = vpop.xlane.xlu0 %4452
    %v4454 = vmul.f32 %v4447, %v1586
    %v4455 = vmul.f32 %v4449, %v1586
    %v4456 = vmul.f32 %v4451, %v1586
    %v4457 = vmul.f32 %v4453, %v1586
    %v4458 = vsub.f32 %v4440, %v4454
    %v4459 = vsub.f32 %v4441, %v4455
    %v4460 = vsub.f32 %v4442, %v4456
    %v4461 = vsub.f32 %v4443, %v4457
    %v4462 = vmul.f32 %v4458, %v4458
    %v4463 = vmul.f32 %v4459, %v4459
    %v4464 = vmul.f32 %v4460, %v4460
    %v4465 = vmul.f32 %v4461, %v4461
    %4466 = vadd.xlane.f32.xlu0 %v4462
    %v4467 = vpop.xlane.xlu0 %4466
    %4468 = vadd.xlane.f32.xlu0 %v4463
    %v4469 = vpop.xlane.xlu0 %4468
    %4470 = vadd.xlane.f32.xlu0 %v4464
    %v4471 = vpop.xlane.xlu0 %4470
    %4472 = vadd.xlane.f32.xlu0 %v4465
    %v4473 = vpop.xlane.xlu0 %4472
    %v4474 = vmul.f32 %v4467, %v1586
    %v4475 = vmul.f32 %v4469, %v1586
    %v4476 = vmul.f32 %v4471, %v1586
    %v4477 = vmul.f32 %v4473, %v1586
    %v4478 = vadd.f32 %v4474, 1e-05
    %v4479 = vadd.f32 %v4475, 1e-05
    %v4480 = vadd.f32 %v4476, 1e-05
    %v4481 = vadd.f32 %v4477, 1e-05
    %v4482 = vrsqrt.pop %v4478
    %v4483 = vrsqrt.pop %v4479
    %v4484 = vrsqrt.pop %v4480
    %v4485 = vrsqrt.pop %v4481
    %v4486 = vmul.f32 %v4458, %v4482
    %v4487 = vmul.f32 %v4459, %v4483
    %v4488 = vmul.f32 %v4460, %v4484
    %v4489 = vmul.f32 %v4461, %v4485
    %v4491 = vlaneseq
    %v4492 = vshrl.u32 %v4491, 7
    %v4493 = vsub.s32 0, %v4492
    %v4494 = vrot.slane %v4444, %v4493
    %v4496 = vmul.f32 %v4486, %v4494
    %v4497 = vmul.f32 %v4487, %v4494
    %v4498 = vmul.f32 %v4488, %v4494
    %v4499 = vmul.f32 %v4489, %v4494
    %v4501 = vlaneseq
    %v4502 = vshrl.u32 %v4501, 7
    %v4503 = vsub.s32 0, %v4502
    %v4504 = vrot.slane %v4445, %v4503
    %v4506 = vadd.f32 %v4496, %v4504
    %v4507 = vadd.f32 %v4497, %v4504
    %v4508 = vadd.f32 %v4498, %v4504
    %v4509 = vadd.f32 %v4499, %v4504
    %s4510 = scalar_lea.vmem [#allocation8], 192
    %v4511 = vld [vmem:[%s4510] sm:$0xff]
    %v4512 = vld [vmem:[%s4510 + $0x8] sm:$0xf]
    %v4513 = vld [vmem:[%s4510 + $0xc] sm:$0xff]
    %v4514 = vld [vmem:[%s4510 + $0x14] sm:$0xf]
    %v4515 = vld [vmem:[%s4510 + $0x18] sm:$0xff]
    %v4516 = vld [vmem:[%s4510 + $0x20] sm:$0xf]
    %v4517 = vld [vmem:[%s4510 + $0x24] sm:$0xff]
    %v4518 = vld [vmem:[%s4510 + $0x2c] sm:$0xf]
    %v4519 = vld [vmem:[%s4510 + $0x30] sm:$0xff]
    %v4520 = vld [vmem:[%s4510 + $0x38] sm:$0xf]
    %v4521 = vld [vmem:[%s4510 + $0x3c] sm:$0xff]
    %v4522 = vld [vmem:[%s4510 + $0x44] sm:$0xf]
    %v4523 = vld [vmem:[%s4510 + $0x48] sm:$0xff]
    %v4524 = vld [vmem:[%s4510 + $0x50] sm:$0xf]
    %v4525 = vld [vmem:[%s4510 + $0x54] sm:$0xff]
    %v4526 = vld [vmem:[%s4510 + $0x5c] sm:$0xf]
    %v4527 = vld [vmem:[%s4510 + $0x60] sm:$0xff]
    %v4528 = vld [vmem:[%s4510 + $0x68] sm:$0xf]
    %v4529 = vld [vmem:[%s4510 + $0x6c] sm:$0xff]
    %v4530 = vld [vmem:[%s4510 + $0x74] sm:$0xf]
    %v4531 = vld [vmem:[%s4510 + $0x78] sm:$0xff]
    %v4532 = vld [vmem:[%s4510 + $0x80] sm:$0xf]
    %v4533 = vld [vmem:[%s4510 + $0x84] sm:$0xff]
    %v4534 = vld [vmem:[%s4510 + $0x8c] sm:$0xf]
    %v4535 = vld [vmem:[%s4510 + $0x90] sm:$0xff]
    %v4536 = vld [vmem:[%s4510 + $0x98] sm:$0xf]
    %v4537 = vld [vmem:[%s4510 + $0x9c] sm:$0xff]
    %v4538 = vld [vmem:[%s4510 + $0xa4] sm:$0xf]
    %v4539 = vld [vmem:[%s4510 + $0xa8] sm:$0xff]
    %v4540 = vld [vmem:[%s4510 + $0xb0] sm:$0xf]
    %v4541 = vld [vmem:[%s4510 + $0xb4] sm:$0xff]
    %v4542 = vld [vmem:[%s4510 + $0xbc] sm:$0xf]
    %s4543 = scalar_lea.vmem [#allocation10], 64
    %v4544 = vld [vmem:[%s4543] sm:$0xf]
    %v4545 = vld [vmem:[%s4543 + $0x4] sm:$0xf]
    %v4546 = vld [vmem:[%s4543 + $0x8] sm:$0xf]
    %v4547 = vld [vmem:[%s4543 + $0xc] sm:$0xf]
    %v4548 = vld [vmem:[%s4543 + $0x10] sm:$0xf]
    %v4549 = vld [vmem:[%s4543 + $0x14] sm:$0xf]
    %v4550 = vld [vmem:[%s4543 + $0x18] sm:$0xf]
    %v4551 = vld [vmem:[%s4543 + $0x1c] sm:$0xf]
    %v4552 = vld [vmem:[%s4543 + $0x20] sm:$0xf]
    %v4553 = vld [vmem:[%s4543 + $0x24] sm:$0xf]
    %v4554 = vld [vmem:[%s4543 + $0x28] sm:$0xf]
    %v4555 = vld [vmem:[%s4543 + $0x2c] sm:$0xf]
    %v4556 = vld [vmem:[%s4543 + $0x30] sm:$0xf]
    %v4557 = vld [vmem:[%s4543 + $0x34] sm:$0xf]
    %v4558 = vld [vmem:[%s4543 + $0x38] sm:$0xf]
    %v4559 = vld [vmem:[%s4543 + $0x3c] sm:$0xf]
    %v4560 = vpack.c.bf16 %v4507, %v4506
    %v4561 = vpack.c.bf16 %v4509, %v4508
    %s4562 = scalar_lea.vmem %s7, 3
    %v4563 = vld [vmem:[%s4562] sm:$0x7]
    %v4565 = vlaneseq
    %v4566 = vshrl.u32 %v4565, 7
    %v4567 = vsub.s32 0, %v4566
    %v4568 = vrot.slane %v4563, %v4567
    %v4569 = vlaneseq
    %v4570 = vshrl.u32 %v4569, 7
    %v4571 = vsub.s32 1, %v4570
    %v4572 = vrot.slane %v4563, %v4571
    %v4573 = vlaneseq
    %v4574 = vshrl.u32 %v4573, 7
    %v4575 = vsub.s32 2, %v4574
    %v4576 = vrot.slane %v4563, %v4575
    %v4612 = vunpack.c.l.b16 %v4511
    %v4613 = vunpack.c.h.b16 %v4511
    %v4614 = vunpack.c.l.b16 %v4512
    %v4615 = vunpack.c.l.b16 %v4513
    %v4616 = vunpack.c.h.b16 %v4513
    %v4617 = vunpack.c.l.b16 %v4514
    %v4618 = vunpack.c.l.b16 %v4515
    %v4619 = vunpack.c.h.b16 %v4515
    %v4620 = vunpack.c.l.b16 %v4516
    %v4621 = vunpack.c.l.b16 %v4517
    %v4622 = vunpack.c.h.b16 %v4517
    %v4623 = vunpack.c.l.b16 %v4518
    %v4624 = vunpack.c.l.b16 %v4519
    %v4625 = vunpack.c.h.b16 %v4519
    %v4626 = vunpack.c.l.b16 %v4520
    %v4627 = vunpack.c.l.b16 %v4521
    %v4628 = vunpack.c.h.b16 %v4521
    %v4629 = vunpack.c.l.b16 %v4522
    %v4630 = vunpack.c.l.b16 %v4523
    %v4631 = vunpack.c.h.b16 %v4523
    %v4632 = vunpack.c.l.b16 %v4524
    %v4633 = vunpack.c.l.b16 %v4525
    %v4634 = vunpack.c.h.b16 %v4525
    %v4635 = vunpack.c.l.b16 %v4526
    %v4636 = vunpack.c.l.b16 %v4527
    %v4637 = vunpack.c.h.b16 %v4527
    %v4638 = vunpack.c.l.b16 %v4528
    %v4639 = vunpack.c.l.b16 %v4529
    %v4640 = vunpack.c.h.b16 %v4529
    %v4641 = vunpack.c.l.b16 %v4530
    %v4642 = vunpack.c.l.b16 %v4531
    %v4643 = vunpack.c.h.b16 %v4531
    %v4644 = vunpack.c.l.b16 %v4532
    %v4645 = vunpack.c.l.b16 %v4533
    %v4646 = vunpack.c.h.b16 %v4533
    %v4647 = vunpack.c.l.b16 %v4534
    %v4648 = vunpack.c.l.b16 %v4535
    %v4649 = vunpack.c.h.b16 %v4535
    %v4650 = vunpack.c.l.b16 %v4536
    %v4651 = vunpack.c.l.b16 %v4537
    %v4652 = vunpack.c.h.b16 %v4537
    %v4653 = vunpack.c.l.b16 %v4538
    %v4654 = vunpack.c.l.b16 %v4539
    %v4655 = vunpack.c.h.b16 %v4539
    %v4656 = vunpack.c.l.b16 %v4540
    %v4657 = vunpack.c.l.b16 %v4541
    %v4658 = vunpack.c.h.b16 %v4541
    %v4659 = vunpack.c.l.b16 %v4542
    %v4660 = vpack.c.b16 %v4615, %v4612
    %v4661 = vpack.c.b16 %v4616, %v4613
    %v4662 = vpack.c.b16 %v4617, %v4614
    %v4663 = vpack.c.b16 %v4621, %v4618
    %v4664 = vpack.c.b16 %v4622, %v4619
    %v4665 = vpack.c.b16 %v4623, %v4620
    %v4666 = vpack.c.b16 %v4627, %v4624
    %v4667 = vpack.c.b16 %v4628, %v4625
    %v4668 = vpack.c.b16 %v4629, %v4626
    %v4669 = vpack.c.b16 %v4633, %v4630
    %v4670 = vpack.c.b16 %v4634, %v4631
    %v4671 = vpack.c.b16 %v4635, %v4632
    %v4672 = vpack.c.b16 %v4639, %v4636
    %v4673 = vpack.c.b16 %v4640, %v4637
    %v4674 = vpack.c.b16 %v4641, %v4638
    %v4675 = vpack.c.b16 %v4645, %v4642
    %v4676 = vpack.c.b16 %v4646, %v4643
    %v4677 = vpack.c.b16 %v4647, %v4644
    %v4678 = vpack.c.b16 %v4651, %v4648
    %v4679 = vpack.c.b16 %v4652, %v4649
    %v4680 = vpack.c.b16 %v4653, %v4650
    %v4681 = vpack.c.b16 %v4657, %v4654
    %v4682 = vpack.c.b16 %v4658, %v4655
    %v4683 = vpack.c.b16 %v4659, %v4656
    %4708 = vmatprep.subr.bf16.mxu0 %v4682
    %4709 = vmatpush1.bf16.msra.mxu0 %v4681
    %4710 = vmatprep.subr.bf16.mxu0 %v4679
    %4711 = vmatpush1.bf16.msra.mxu0 %v4678
    %4712 = vmatprep.subr.bf16.mxu0 %v4676
    %4713 = vmatpush1.bf16.msra.mxu0 %v4675
    %4714 = vmatprep.subr.bf16.mxu0 %v4673
    %4715 = vmatpush1.bf16.msra.mxu0 %v4672
    %4716 = vmatprep.subr.bf16.mxu0 %v4670
    %4717 = vmatpush1.bf16.msra.mxu0 %v4669
    %4718 = vmatprep.subr.bf16.mxu0 %v4667
    %4719 = vmatpush1.bf16.msra.mxu0 %v4666
    %4720 = vmatprep.subr.bf16.mxu0 %v4664
    %4721 = vmatpush1.bf16.msra.mxu0 %v4663
    %4722 = vmatprep.subr.bf16.mxu0 %v4661
    %4723 = vmatpush1.bf16.msra.mxu0 %v4660
    %4724 = vmatprep.subr.bf16.mxu0 0
    %4725 = vmatpush2.bf16.msra.mxu0 0
    %4726 = vmatprep.subr.bf16.mxu0 0
    %4727 = vmatpush2.bf16.msra.mxu0 0
    %4728 = vmatprep.subr.bf16.mxu0 0
    %4729 = vmatpush2.bf16.msra.mxu0 0
    %4730 = vmatprep.subr.bf16.mxu0 0
    %4731 = vmatpush2.bf16.msra.mxu0 0
    %4732 = vmatprep.subr.bf16.mxu0 0
    %4733 = vmatpush2.bf16.msra.mxu0 0
    %4734 = vmatprep.subr.bf16.mxu0 0
    %4735 = vmatpush2.bf16.msra.mxu0 0
    %4736 = vmatprep.subr.bf16.mxu0 0
    %4737 = vmatpush2.bf16.msra.mxu0 0
    %4738 = vmatprep.subr.bf16.mxu0 0
    %4739 = vmatpush2.bf16.msra.mxu0 0
    %4740 = vmatprep.mubr.bf16.mxu0 0
    %4741 = vmatmul.mubr.bf16.gmra.mxu0 %v4560
    %v4742 = vpop.f32.mrf.mxu0
    %v4743 = vadd.f32 %v4568, %v4742
    %v4744 = vpop.f32.mrf.mxu0
    %v4745 = vadd.f32 %v4572, %v4744
    %v4746 = vpop.f32.mrf.mxu0
    %v4747 = vadd.f32 %v4568, %v4746
    %v4748 = vpop.f32.mrf.mxu0
    %v4749 = vadd.f32 %v4572, %v4748
    %4750 = vmatprep.mubr.bf16.mxu0 0
    %4751 = vmatmul.mubr.bf16.gmra.mxu0 %v4561
    %v4752 = vpop.f32.mrf.mxu0
    %v4753 = vadd.f32 %v4568, %v4752
    %v4754 = vpop.f32.mrf.mxu0
    %v4755 = vadd.f32 %v4572, %v4754
    %v4756 = vpop.f32.mrf.mxu0
    %v4757 = vadd.f32 %v4568, %v4756
    %v4758 = vpop.f32.mrf.mxu0
    %v4759 = vadd.f32 %v4572, %v4758
    %4760 = vdwg.mxu0
    %4761 = vmatprep.subr.bf16.mxu0 0
    %4762 = vmatpush1.bf16.msra.mxu0 %v4683
    %4763 = vmatprep.subr.bf16.mxu0 0
    %4764 = vmatpush1.bf16.msra.mxu0 %v4680
    %4765 = vmatprep.subr.bf16.mxu0 0
    %4766 = vmatpush1.bf16.msra.mxu0 %v4677
    %4767 = vmatprep.subr.bf16.mxu0 0
    %4768 = vmatpush1.bf16.msra.mxu0 %v4674
    %4769 = vmatprep.subr.bf16.mxu0 0
    %4770 = vmatpush1.bf16.msra.mxu0 %v4671
    %4771 = vmatprep.subr.bf16.mxu0 0
    %4772 = vmatpush1.bf16.msra.mxu0 %v4668
    %4773 = vmatprep.subr.bf16.mxu0 0
    %4774 = vmatpush1.bf16.msra.mxu0 %v4665
    %4775 = vmatprep.subr.bf16.mxu0 0
    %4776 = vmatpush1.bf16.msra.mxu0 %v4662
    %4777 = vmatprep.subr.bf16.mxu0 0
    %4778 = vmatpush2.bf16.msra.mxu0 0
    %4779 = vmatprep.subr.bf16.mxu0 0
    %4780 = vmatpush2.bf16.msra.mxu0 0
    %4781 = vmatprep.subr.bf16.mxu0 0
    %4782 = vmatpush2.bf16.msra.mxu0 0
    %4783 = vmatprep.subr.bf16.mxu0 0
    %4784 = vmatpush2.bf16.msra.mxu0 0
    %4785 = vmatprep.subr.bf16.mxu0 0
    %4786 = vmatpush2.bf16.msra.mxu0 0
    %4787 = vmatprep.subr.bf16.mxu0 0
    %4788 = vmatpush2.bf16.msra.mxu0 0
    %4789 = vmatprep.subr.bf16.mxu0 0
    %4790 = vmatpush2.bf16.msra.mxu0 0
    %4791 = vmatprep.subr.bf16.mxu0 0
    %4792 = vmatpush2.bf16.msra.mxu0 0
    %4793 = vmatprep.mubr.bf16.mxu0 0
    %4794 = vmatmul.mubr.bf16.gmra.mxu0 %v4560
    %v4795 = vpop.f32.mrf.mxu0
    %v4796 = vadd.f32 %v4576, %v4795
    %v4797 = vpop.f32.mrf.mxu0
    %v4798 = vpop.f32.mrf.mxu0
    %v4799 = vadd.f32 %v4576, %v4798
    %v4800 = vpop.f32.mrf.mxu0
    %4801 = vmatprep.mubr.bf16.mxu0 0
    %4802 = vmatmul.mubr.bf16.gmra.mxu0 %v4561
    %v4803 = vpop.f32.mrf.mxu0
    %v4804 = vadd.f32 %v4576, %v4803
    %v4805 = vpop.f32.mrf.mxu0
    %v4806 = vpop.f32.mrf.mxu0
    %v4807 = vadd.f32 %v4576, %v4806
    %v4808 = vpop.f32.mrf.mxu0
    %4809 = vdwg.mxu0
    %v4810 = vpack.c.bf16 %v4747, %v4743
    %v4811 = vpack.c.bf16 %v4757, %v4753
    %v4812 = vpack.c.bf16 %v4749, %v4745
    %v4813 = vpack.c.bf16 %v4759, %v4755
    %v4814 = vpack.c.bf16 %v4799, %v4796
    %v4815 = vpack.c.bf16 %v4807, %v4804
    %v4817 = vsel %vm675, %v4810, 0
    %v4820 = vsel %vm675, %v4811, 0
    %v4823 = vsel %vm675, %v4812, 0
    %v4826 = vsel %vm675, %v4813, 0
    %4828 = vmatprep.subr.bf16.mxu0 0
    %4829 = vmatpush1.bf16.xpose.msra.mxu0 0
    %4830 = vmatprep.subr.bf16.mxu0 0
    %4831 = vmatpush1.bf16.xpose.msra.mxu0 0
    %4832 = vmatprep.subr.bf16.mxu0 0
    %4833 = vmatpush1.bf16.xpose.msra.mxu0 0
    %4834 = vmatprep.subr.bf16.mxu0 0
    %4835 = vmatpush1.bf16.xpose.msra.mxu0 0
    %4836 = vmatprep.subr.bf16.mxu0 0
    %4837 = vmatpush1.bf16.xpose.msra.mxu0 0
    %4838 = vmatprep.subr.bf16.mxu0 0
    %4839 = vmatpush1.bf16.xpose.msra.mxu0 0
    %4840 = vmatprep.subr.bf16.mxu0 0
    %4841 = vmatpush1.bf16.xpose.msra.mxu0 %v4826
    %4842 = vmatprep.subr.bf16.mxu0 0
    %4843 = vmatpush1.bf16.xpose.msra.mxu0 %v4823
    %4844 = vmatprep.subr.bf16.mxu0 0
    %4845 = vmatpush2.bf16.xpose.msra.mxu0 0
    %4846 = vmatprep.subr.bf16.mxu0 0
    %4847 = vmatpush2.bf16.xpose.msra.mxu0 0
    %4848 = vmatprep.subr.bf16.mxu0 0
    %4849 = vmatpush2.bf16.xpose.msra.mxu0 0
    %4850 = vmatprep.subr.bf16.mxu0 0
    %4851 = vmatpush2.bf16.xpose.msra.mxu0 0
    %4852 = vmatprep.subr.bf16.mxu0 0
    %4853 = vmatpush2.bf16.xpose.msra.mxu0 0
    %4854 = vmatprep.subr.bf16.mxu0 0
    %4855 = vmatpush2.bf16.xpose.msra.mxu0 0
    %4856 = vmatprep.subr.bf16.mxu0 0
    %4857 = vmatpush2.bf16.xpose.msra.mxu0 0
    %4858 = vmatprep.subr.bf16.mxu0 0
    %4859 = vmatpush2.bf16.xpose.msra.mxu0 0
    %4860 = vmatprep.mubr.bf16.mxu0 0
    %4861 = vmatmul.mubr.bf16.gmra.mxu0 %v4817
    %v4862 = vpop.f32.mrf.mxu0
    %v4863 = vadd.f32 0.0, %v4862
    %v4864 = vpop.f32.mrf.mxu0
    %v4865 = vpop.f32.mrf.mxu0
    %v4866 = vadd.f32 0.0, %v4865
    %v4867 = vpop.f32.mrf.mxu0
    %4868 = vmatprep.mubr.bf16.mxu0 0
    %4869 = vmatmul.mubr.bf16.gmra.mxu0 %v4820
    %v4870 = vpop.f32.mrf.mxu0
    %v4871 = vadd.f32 0.0, %v4870
    %v4872 = vpop.f32.mrf.mxu0
    %v4873 = vpop.f32.mrf.mxu0
    %v4874 = vadd.f32 0.0, %v4873
    %v4875 = vpop.f32.mrf.mxu0
    %4876 = vdwg.mxu0
    %v4877 = vmul.f32 %v4863, 0.17677669
    %v4878 = vmul.f32 %v4866, 0.17677669
    %v4879 = vmul.f32 %v4871, 0.17677669
    %v4880 = vmul.f32 %v4874, 0.17677669
    %v4881 = vadd.f32 %v4877, %v368
    %v4882 = vadd.f32 %v4878, %v369
    %v4883 = vadd.f32 %v4879, %v370
    %v4884 = vadd.f32 %v4880, %v371
    %v4885 = vsel %vm675, %v4881, -inf
    %4886 = vmax.xlane.f32.xlu0 %v4885
    %v4887 = vpop.xlane.xlu0 %4886
    %v4888 = vsel %vm675, %v4882, -inf
    %4889 = vmax.xlane.f32.xlu0 %v4888
    %v4890 = vpop.xlane.xlu0 %4889
    %v4891 = vsel %vm675, %v4883, -inf
    %4892 = vmax.xlane.f32.xlu0 %v4891
    %v4893 = vpop.xlane.xlu0 %4892
    %v4894 = vsel %vm675, %v4884, -inf
    %4895 = vmax.xlane.f32.xlu0 %v4894
    %v4896 = vpop.xlane.xlu0 %4895
    %v4897 = vsub.f32 %v4881, %v4887
    %v4898 = vsub.f32 %v4882, %v4890
    %v4899 = vsub.f32 %v4883, %v4893
    %v4900 = vsub.f32 %v4884, %v4896
    %v4901 = vmul.f32 %v4897, 1.442695
    %v4902 = vpow.pop %v4901
    %v4903 = vmul.f32 %v4898, 1.442695
    %v4904 = vpow.pop %v4903
    %v4905 = vmul.f32 %v4899, 1.442695
    %v4906 = vpow.pop %v4905
    %v4907 = vmul.f32 %v4900, 1.442695
    %v4908 = vpow.pop %v4907
    %v4909 = vsel %vm675, %v4902, 0.0
    %4910 = vadd.xlane.f32.xlu0 %v4909
    %v4911 = vpop.xlane.xlu0 %4910
    %v4912 = vsel %vm675, %v4904, 0.0
    %4913 = vadd.xlane.f32.xlu0 %v4912
    %v4914 = vpop.xlane.xlu0 %4913
    %v4915 = vsel %vm675, %v4906, 0.0
    %4916 = vadd.xlane.f32.xlu0 %v4915
    %v4917 = vpop.xlane.xlu0 %4916
    %v4918 = vsel %vm675, %v4908, 0.0
    %4919 = vadd.xlane.f32.xlu0 %v4918
    %v4920 = vpop.xlane.xlu0 %4919
    %v4921 = vrcp.pop %v4911
    %v4922 = vrcp.pop %v4914
    %v4923 = vrcp.pop %v4917
    %v4924 = vrcp.pop %v4920
    %v4925 = vmul.f32 %v4902, %v4921
    %v4926 = vmul.f32 %v4904, %v4922
    %v4927 = vmul.f32 %v4906, %v4923
    %v4928 = vmul.f32 %v4908, %v4924
    %v4929 = vpack.c.bf16 %v4926, %v4925
    %v4930 = vpack.c.bf16 %v4928, %v4927
    %v4932 = vsel %vm675, %v4929, 0
    %v4935 = vsel %vm675, %v4930, 0
    %4937 = vmatprep.subr.bf16.mxu0 0
    %4938 = vmatpush1.bf16.msra.mxu0 0
    %4939 = vmatprep.subr.bf16.mxu0 0
    %4940 = vmatpush1.bf16.msra.mxu0 0
    %4941 = vmatprep.subr.bf16.mxu0 0
    %4942 = vmatpush1.bf16.msra.mxu0 0
    %4943 = vmatprep.subr.bf16.mxu0 0
    %4944 = vmatpush1.bf16.msra.mxu0 0
    %4945 = vmatprep.subr.bf16.mxu0 0
    %4946 = vmatpush1.bf16.msra.mxu0 0
    %4947 = vmatprep.subr.bf16.mxu0 0
    %4948 = vmatpush1.bf16.msra.mxu0 0
    %4949 = vmatprep.subr.bf16.mxu0 0
    %4950 = vmatpush1.bf16.msra.mxu0 %v4815
    %4951 = vmatprep.subr.bf16.mxu0 0
    %4952 = vmatpush1.bf16.msra.mxu0 %v4814
    %4953 = vmatprep.subr.bf16.mxu0 0
    %4954 = vmatpush2.bf16.msra.mxu0 0
    %4955 = vmatprep.subr.bf16.mxu0 0
    %4956 = vmatpush2.bf16.msra.mxu0 0
    %4957 = vmatprep.subr.bf16.mxu0 0
    %4958 = vmatpush2.bf16.msra.mxu0 0
    %4959 = vmatprep.subr.bf16.mxu0 0
    %4960 = vmatpush2.bf16.msra.mxu0 0
    %4961 = vmatprep.subr.bf16.mxu0 0
    %4962 = vmatpush2.bf16.msra.mxu0 0
    %4963 = vmatprep.subr.bf16.mxu0 0
    %4964 = vmatpush2.bf16.msra.mxu0 0
    %4965 = vmatprep.subr.bf16.mxu0 0
    %4966 = vmatpush2.bf16.msra.mxu0 0
    %4967 = vmatprep.subr.bf16.mxu0 0
    %4968 = vmatpush2.bf16.msra.mxu0 0
    %4969 = vmatprep.mubr.bf16.mxu0 0
    %4970 = vmatmul.mubr.bf16.gmra.mxu0 %v4932
    %v4971 = vpop.f32.mrf.mxu0
    %v4972 = vadd.f32 0.0, %v4971
    %v4973 = vpop.f32.mrf.mxu0
    %v4974 = vpop.f32.mrf.mxu0
    %v4975 = vadd.f32 0.0, %v4974
    %v4976 = vpop.f32.mrf.mxu0
    %4977 = vmatprep.mubr.bf16.mxu0 0
    %4978 = vmatmul.mubr.bf16.gmra.mxu0 %v4935
    %v4979 = vpop.f32.mrf.mxu0
    %v4980 = vadd.f32 0.0, %v4979
    %v4981 = vpop.f32.mrf.mxu0
    %v4982 = vpop.f32.mrf.mxu0
    %v4983 = vadd.f32 0.0, %v4982
    %v4984 = vpop.f32.mrf.mxu0
    %4985 = vdwg.mxu0
    %4988 = vrot.lane.b32.xlu0 %v4810, 96
    %v4989 = vpop.permute.xlu0 %4988
    %4990 = vrot.lane.b32.xlu0 %v4811, 96
    %v4991 = vpop.permute.xlu0 %4990
    %4994 = vrot.lane.b32.xlu0 %v4812, 96
    %v4995 = vpop.permute.xlu0 %4994
    %4996 = vrot.lane.b32.xlu0 %v4813, 96
    %v4997 = vpop.permute.xlu0 %4996
    %v4999 = vsel %vm675, %v4989, 0
    %v5002 = vsel %vm675, %v4991, 0
    %v5005 = vsel %vm675, %v4995, 0
    %v5008 = vsel %vm675, %v4997, 0
    %5010 = vmatprep.subr.bf16.mxu0 0
    %5011 = vmatpush1.bf16.xpose.msra.mxu0 0
    %5012 = vmatprep.subr.bf16.mxu0 0
    %5013 = vmatpush1.bf16.xpose.msra.mxu0 0
    %5014 = vmatprep.subr.bf16.mxu0 0
    %5015 = vmatpush1.bf16.xpose.msra.mxu0 0
    %5016 = vmatprep.subr.bf16.mxu0 0
    %5017 = vmatpush1.bf16.xpose.msra.mxu0 0
    %5018 = vmatprep.subr.bf16.mxu0 0
    %5019 = vmatpush1.bf16.xpose.msra.mxu0 0
    %5020 = vmatprep.subr.bf16.mxu0 0
    %5021 = vmatpush1.bf16.xpose.msra.mxu0 0
    %5022 = vmatprep.subr.bf16.mxu0 0
    %5023 = vmatpush1.bf16.xpose.msra.mxu0 %v5008
    %5024 = vmatprep.subr.bf16.mxu0 0
    %5025 = vmatpush1.bf16.xpose.msra.mxu0 %v5005
    %5026 = vmatprep.subr.bf16.mxu0 0
    %5027 = vmatpush2.bf16.xpose.msra.mxu0 0
    %5028 = vmatprep.subr.bf16.mxu0 0
    %5029 = vmatpush2.bf16.xpose.msra.mxu0 0
    %5030 = vmatprep.subr.bf16.mxu0 0
    %5031 = vmatpush2.bf16.xpose.msra.mxu0 0
    %5032 = vmatprep.subr.bf16.mxu0 0
    %5033 = vmatpush2.bf16.xpose.msra.mxu0 0
    %5034 = vmatprep.subr.bf16.mxu0 0
    %5035 = vmatpush2.bf16.xpose.msra.mxu0 0
    %5036 = vmatprep.subr.bf16.mxu0 0
    %5037 = vmatpush2.bf16.xpose.msra.mxu0 0
    %5038 = vmatprep.subr.bf16.mxu0 0
    %5039 = vmatpush2.bf16.xpose.msra.mxu0 0
    %5040 = vmatprep.subr.bf16.mxu0 0
    %5041 = vmatpush2.bf16.xpose.msra.mxu0 0
    %5042 = vmatprep.mubr.bf16.mxu0 0
    %5043 = vmatmul.mubr.bf16.gmra.mxu0 %v4999
    %v5044 = vpop.f32.mrf.mxu0
    %v5045 = vadd.f32 0.0, %v5044
    %v5046 = vpop.f32.mrf.mxu0
    %v5047 = vpop.f32.mrf.mxu0
    %v5048 = vadd.f32 0.0, %v5047
    %v5049 = vpop.f32.mrf.mxu0
    %5050 = vmatprep.mubr.bf16.mxu0 0
    %5051 = vmatmul.mubr.bf16.gmra.mxu0 %v5002
    %v5052 = vpop.f32.mrf.mxu0
    %v5053 = vadd.f32 0.0, %v5052
    %v5054 = vpop.f32.mrf.mxu0
    %v5055 = vpop.f32.mrf.mxu0
    %v5056 = vadd.f32 0.0, %v5055
    %v5057 = vpop.f32.mrf.mxu0
    %5058 = vdwg.mxu0
    %v5059 = vmul.f32 %v5045, 0.17677669
    %v5060 = vmul.f32 %v5048, 0.17677669
    %v5061 = vmul.f32 %v5053, 0.17677669
    %v5062 = vmul.f32 %v5056, 0.17677669
    %v5063 = vadd.f32 %v5059, %v368
    %v5064 = vadd.f32 %v5060, %v369
    %v5065 = vadd.f32 %v5061, %v370
    %v5066 = vadd.f32 %v5062, %v371
    %v5067 = vsel %vm675, %v5063, -inf
    %5068 = vmax.xlane.f32.xlu0 %v5067
    %v5069 = vpop.xlane.xlu0 %5068
    %v5070 = vsel %vm675, %v5064, -inf
    %5071 = vmax.xlane.f32.xlu0 %v5070
    %v5072 = vpop.xlane.xlu0 %5071
    %v5073 = vsel %vm675, %v5065, -inf
    %5074 = vmax.xlane.f32.xlu0 %v5073
    %v5075 = vpop.xlane.xlu0 %5074
    %v5076 = vsel %vm675, %v5066, -inf
    %5077 = vmax.xlane.f32.xlu0 %v5076
    %v5078 = vpop.xlane.xlu0 %5077
    %v5079 = vsub.f32 %v5063, %v5069
    %v5080 = vsub.f32 %v5064, %v5072
    %v5081 = vsub.f32 %v5065, %v5075
    %v5082 = vsub.f32 %v5066, %v5078
    %v5083 = vmul.f32 %v5079, 1.442695
    %v5084 = vpow.pop %v5083
    %v5085 = vmul.f32 %v5080, 1.442695
    %v5086 = vpow.pop %v5085
    %v5087 = vmul.f32 %v5081, 1.442695
    %v5088 = vpow.pop %v5087
    %v5089 = vmul.f32 %v5082, 1.442695
    %v5090 = vpow.pop %v5089
    %v5091 = vsel %vm675, %v5084, 0.0
    %5092 = vadd.xlane.f32.xlu0 %v5091
    %v5093 = vpop.xlane.xlu0 %5092
    %v5094 = vsel %vm675, %v5086, 0.0
    %5095 = vadd.xlane.f32.xlu0 %v5094
    %v5096 = vpop.xlane.xlu0 %5095
    %v5097 = vsel %vm675, %v5088, 0.0
    %5098 = vadd.xlane.f32.xlu0 %v5097
    %v5099 = vpop.xlane.xlu0 %5098
    %v5100 = vsel %vm675, %v5090, 0.0
    %5101 = vadd.xlane.f32.xlu0 %v5100
    %v5102 = vpop.xlane.xlu0 %5101
    %v5103 = vrcp.pop %v5093
    %v5104 = vrcp.pop %v5096
    %v5105 = vrcp.pop %v5099
    %v5106 = vrcp.pop %v5102
    %v5107 = vmul.f32 %v5084, %v5103
    %v5108 = vmul.f32 %v5086, %v5104
    %v5109 = vmul.f32 %v5088, %v5105
    %v5110 = vmul.f32 %v5090, %v5106
    %v5111 = vpack.c.bf16 %v5108, %v5107
    %v5112 = vpack.c.bf16 %v5110, %v5109
    %5115 = vrot.lane.b32.xlu0 %v4814, 96
    %v5116 = vpop.permute.xlu0 %5115
    %5117 = vrot.lane.b32.xlu0 %v4815, 96
    %v5118 = vpop.permute.xlu0 %5117
    %v5122 = vsel %vm675, %v5111, 0
    %v5125 = vsel %vm675, %v5112, 0
    %5127 = vmatprep.subr.bf16.mxu0 0
    %5128 = vmatpush1.bf16.msra.mxu0 0
    %5129 = vmatprep.subr.bf16.mxu0 0
    %5130 = vmatpush1.bf16.msra.mxu0 0
    %5131 = vmatprep.subr.bf16.mxu0 0
    %5132 = vmatpush1.bf16.msra.mxu0 0
    %5133 = vmatprep.subr.bf16.mxu0 0
    %5134 = vmatpush1.bf16.msra.mxu0 0
    %5135 = vmatprep.subr.bf16.mxu0 0
    %5136 = vmatpush1.bf16.msra.mxu0 0
    %5137 = vmatprep.subr.bf16.mxu0 0
    %5138 = vmatpush1.bf16.msra.mxu0 0
    %5139 = vmatprep.subr.bf16.mxu0 0
    %5140 = vmatpush1.bf16.msra.mxu0 %v5118
    %5141 = vmatprep.subr.bf16.mxu0 0
    %5142 = vmatpush1.bf16.msra.mxu0 %v5116
    %5143 = vmatprep.subr.bf16.mxu0 0
    %5144 = vmatpush2.bf16.msra.mxu0 0
    %5145 = vmatprep.subr.bf16.mxu0 0
    %5146 = vmatpush2.bf16.msra.mxu0 0
    %5147 = vmatprep.subr.bf16.mxu0 0
    %5148 = vmatpush2.bf16.msra.mxu0 0
    %5149 = vmatprep.subr.bf16.mxu0 0
    %5150 = vmatpush2.bf16.msra.mxu0 0
    %5151 = vmatprep.subr.bf16.mxu0 0
    %5152 = vmatpush2.bf16.msra.mxu0 0
    %5153 = vmatprep.subr.bf16.mxu0 0
    %5154 = vmatpush2.bf16.msra.mxu0 0
    %5155 = vmatprep.subr.bf16.mxu0 0
    %5156 = vmatpush2.bf16.msra.mxu0 0
    %5157 = vmatprep.subr.bf16.mxu0 0
    %5158 = vmatpush2.bf16.msra.mxu0 0
    %5159 = vmatprep.mubr.bf16.mxu0 0
    %5160 = vmatmul.mubr.bf16.gmra.mxu0 %v5122
    %v5161 = vpop.f32.mrf.mxu0
    %v5162 = vadd.f32 0.0, %v5161
    %v5163 = vpop.f32.mrf.mxu0
    %v5164 = vpop.f32.mrf.mxu0
    %v5165 = vadd.f32 0.0, %v5164
    %v5166 = vpop.f32.mrf.mxu0
    %5167 = vmatprep.mubr.bf16.mxu0 0
    %5168 = vmatmul.mubr.bf16.gmra.mxu0 %v5125
    %v5169 = vpop.f32.mrf.mxu0
    %v5170 = vadd.f32 0.0, %v5169
    %v5171 = vpop.f32.mrf.mxu0
    %v5172 = vpop.f32.mrf.mxu0
    %v5173 = vadd.f32 0.0, %v5172
    %v5174 = vpop.f32.mrf.mxu0
    %5175 = vdwg.mxu0
    %5176 = vrot.lane.b32.xlu0 %v4810, 64
    %v5177 = vpop.permute.xlu0 %5176
    %5178 = vrot.lane.b32.xlu0 %v4811, 64
    %v5179 = vpop.permute.xlu0 %5178
    %5180 = vrot.lane.b32.xlu0 %v4812, 64
    %v5181 = vpop.permute.xlu0 %5180
    %5182 = vrot.lane.b32.xlu0 %v4813, 64
    %v5183 = vpop.permute.xlu0 %5182
    %v5185 = vsel %vm675, %v5177, 0
    %v5188 = vsel %vm675, %v5179, 0
    %v5191 = vsel %vm675, %v5181, 0
    %v5194 = vsel %vm675, %v5183, 0
    %5196 = vmatprep.subr.bf16.mxu0 0
    %5197 = vmatpush1.bf16.xpose.msra.mxu0 0
    %5198 = vmatprep.subr.bf16.mxu0 0
    %5199 = vmatpush1.bf16.xpose.msra.mxu0 0
    %5200 = vmatprep.subr.bf16.mxu0 0
    %5201 = vmatpush1.bf16.xpose.msra.mxu0 0
    %5202 = vmatprep.subr.bf16.mxu0 0
    %5203 = vmatpush1.bf16.xpose.msra.mxu0 0
    %5204 = vmatprep.subr.bf16.mxu0 0
    %5205 = vmatpush1.bf16.xpose.msra.mxu0 0
    %5206 = vmatprep.subr.bf16.mxu0 0
    %5207 = vmatpush1.bf16.xpose.msra.mxu0 0
    %5208 = vmatprep.subr.bf16.mxu0 0
    %5209 = vmatpush1.bf16.xpose.msra.mxu0 %v5194
    %5210 = vmatprep.subr.bf16.mxu0 0
    %5211 = vmatpush1.bf16.xpose.msra.mxu0 %v5191
    %5212 = vmatprep.subr.bf16.mxu0 0
    %5213 = vmatpush2.bf16.xpose.msra.mxu0 0
    %5214 = vmatprep.subr.bf16.mxu0 0
    %5215 = vmatpush2.bf16.xpose.msra.mxu0 0
    %5216 = vmatprep.subr.bf16.mxu0 0
    %5217 = vmatpush2.bf16.xpose.msra.mxu0 0
    %5218 = vmatprep.subr.bf16.mxu0 0
    %5219 = vmatpush2.bf16.xpose.msra.mxu0 0
    %5220 = vmatprep.subr.bf16.mxu0 0
    %5221 = vmatpush2.bf16.xpose.msra.mxu0 0
    %5222 = vmatprep.subr.bf16.mxu0 0
    %5223 = vmatpush2.bf16.xpose.msra.mxu0 0
    %5224 = vmatprep.subr.bf16.mxu0 0
    %5225 = vmatpush2.bf16.xpose.msra.mxu0 0
    %5226 = vmatprep.subr.bf16.mxu0 0
    %5227 = vmatpush2.bf16.xpose.msra.mxu0 0
    %5228 = vmatprep.mubr.bf16.mxu0 0
    %5229 = vmatmul.mubr.bf16.gmra.mxu0 %v5185
    %v5230 = vpop.f32.mrf.mxu0
    %v5231 = vadd.f32 0.0, %v5230
    %v5232 = vpop.f32.mrf.mxu0
    %v5233 = vpop.f32.mrf.mxu0
    %v5234 = vadd.f32 0.0, %v5233
    %v5235 = vpop.f32.mrf.mxu0
    %5236 = vmatprep.mubr.bf16.mxu0 0
    %5237 = vmatmul.mubr.bf16.gmra.mxu0 %v5188
    %v5238 = vpop.f32.mrf.mxu0
    %v5239 = vadd.f32 0.0, %v5238
    %v5240 = vpop.f32.mrf.mxu0
    %v5241 = vpop.f32.mrf.mxu0
    %v5242 = vadd.f32 0.0, %v5241
    %v5243 = vpop.f32.mrf.mxu0
    %5244 = vdwg.mxu0
    %v5245 = vmul.f32 %v5231, 0.17677669
    %v5246 = vmul.f32 %v5234, 0.17677669
    %v5247 = vmul.f32 %v5239, 0.17677669
    %v5248 = vmul.f32 %v5242, 0.17677669
    %v5249 = vadd.f32 %v5245, %v368
    %v5250 = vadd.f32 %v5246, %v369
    %v5251 = vadd.f32 %v5247, %v370
    %v5252 = vadd.f32 %v5248, %v371
    %v5253 = vsel %vm675, %v5249, -inf
    %5254 = vmax.xlane.f32.xlu0 %v5253
    %v5255 = vpop.xlane.xlu0 %5254
    %v5256 = vsel %vm675, %v5250, -inf
    %5257 = vmax.xlane.f32.xlu0 %v5256
    %v5258 = vpop.xlane.xlu0 %5257
    %v5259 = vsel %vm675, %v5251, -inf
    %5260 = vmax.xlane.f32.xlu0 %v5259
    %v5261 = vpop.xlane.xlu0 %5260
    %v5262 = vsel %vm675, %v5252, -inf
    %5263 = vmax.xlane.f32.xlu0 %v5262
    %v5264 = vpop.xlane.xlu0 %5263
    %v5265 = vsub.f32 %v5249, %v5255
    %v5266 = vsub.f32 %v5250, %v5258
    %v5267 = vsub.f32 %v5251, %v5261
    %v5268 = vsub.f32 %v5252, %v5264
    %v5269 = vmul.f32 %v5265, 1.442695
    %v5270 = vpow.pop %v5269
    %v5271 = vmul.f32 %v5266, 1.442695
    %v5272 = vpow.pop %v5271
    %v5273 = vmul.f32 %v5267, 1.442695
    %v5274 = vpow.pop %v5273
    %v5275 = vmul.f32 %v5268, 1.442695
    %v5276 = vpow.pop %v5275
    %v5277 = vsel %vm675, %v5270, 0.0
    %5278 = vadd.xlane.f32.xlu0 %v5277
    %v5279 = vpop.xlane.xlu0 %5278
    %v5280 = vsel %vm675, %v5272, 0.0
    %5281 = vadd.xlane.f32.xlu0 %v5280
    %v5282 = vpop.xlane.xlu0 %5281
    %v5283 = vsel %vm675, %v5274, 0.0
    %5284 = vadd.xlane.f32.xlu0 %v5283
    %v5285 = vpop.xlane.xlu0 %5284
    %v5286 = vsel %vm675, %v5276, 0.0
    %5287 = vadd.xlane.f32.xlu0 %v5286
    %v5288 = vpop.xlane.xlu0 %5287
    %v5289 = vrcp.pop %v5279
    %v5290 = vrcp.pop %v5282
    %v5291 = vrcp.pop %v5285
    %v5292 = vrcp.pop %v5288
    %v5293 = vmul.f32 %v5270, %v5289
    %v5294 = vmul.f32 %v5272, %v5290
    %v5295 = vmul.f32 %v5274, %v5291
    %v5296 = vmul.f32 %v5276, %v5292
    %v5297 = vpack.c.bf16 %v5294, %v5293
    %v5298 = vpack.c.bf16 %v5296, %v5295
    %5299 = vrot.lane.b32.xlu0 %v4814, 64
    %v5300 = vpop.permute.xlu0 %5299
    %5301 = vrot.lane.b32.xlu0 %v4815, 64
    %v5302 = vpop.permute.xlu0 %5301
    %v5306 = vsel %vm675, %v5297, 0
    %v5309 = vsel %vm675, %v5298, 0
    %5311 = vmatprep.subr.bf16.mxu0 0
    %5312 = vmatpush1.bf16.msra.mxu0 0
    %5313 = vmatprep.subr.bf16.mxu0 0
    %5314 = vmatpush1.bf16.msra.mxu0 0
    %5315 = vmatprep.subr.bf16.mxu0 0
    %5316 = vmatpush1.bf16.msra.mxu0 0
    %5317 = vmatprep.subr.bf16.mxu0 0
    %5318 = vmatpush1.bf16.msra.mxu0 0
    %5319 = vmatprep.subr.bf16.mxu0 0
    %5320 = vmatpush1.bf16.msra.mxu0 0
    %5321 = vmatprep.subr.bf16.mxu0 0
    %5322 = vmatpush1.bf16.msra.mxu0 0
    %5323 = vmatprep.subr.bf16.mxu0 0
    %5324 = vmatpush1.bf16.msra.mxu0 %v5302
    %5325 = vmatprep.subr.bf16.mxu0 0
    %5326 = vmatpush1.bf16.msra.mxu0 %v5300
    %5327 = vmatprep.subr.bf16.mxu0 0
    %5328 = vmatpush2.bf16.msra.mxu0 0
    %5329 = vmatprep.subr.bf16.mxu0 0
    %5330 = vmatpush2.bf16.msra.mxu0 0
    %5331 = vmatprep.subr.bf16.mxu0 0
    %5332 = vmatpush2.bf16.msra.mxu0 0
    %5333 = vmatprep.subr.bf16.mxu0 0
    %5334 = vmatpush2.bf16.msra.mxu0 0
    %5335 = vmatprep.subr.bf16.mxu0 0
    %5336 = vmatpush2.bf16.msra.mxu0 0
    %5337 = vmatprep.subr.bf16.mxu0 0
    %5338 = vmatpush2.bf16.msra.mxu0 0
    %5339 = vmatprep.subr.bf16.mxu0 0
    %5340 = vmatpush2.bf16.msra.mxu0 0
    %5341 = vmatprep.subr.bf16.mxu0 0
    %5342 = vmatpush2.bf16.msra.mxu0 0
    %5343 = vmatprep.mubr.bf16.mxu0 0
    %5344 = vmatmul.mubr.bf16.gmra.mxu0 %v5306
    %v5345 = vpop.f32.mrf.mxu0
    %v5346 = vadd.f32 0.0, %v5345
    %v5347 = vpop.f32.mrf.mxu0
    %v5348 = vpop.f32.mrf.mxu0
    %v5349 = vadd.f32 0.0, %v5348
    %v5350 = vpop.f32.mrf.mxu0
    %5351 = vmatprep.mubr.bf16.mxu0 0
    %5352 = vmatmul.mubr.bf16.gmra.mxu0 %v5309
    %v5353 = vpop.f32.mrf.mxu0
    %v5354 = vadd.f32 0.0, %v5353
    %v5355 = vpop.f32.mrf.mxu0
    %v5356 = vpop.f32.mrf.mxu0
    %v5357 = vadd.f32 0.0, %v5356
    %v5358 = vpop.f32.mrf.mxu0
    %5359 = vdwg.mxu0
    %5360 = vrot.lane.b32.xlu0 %v4810, 32
    %v5361 = vpop.permute.xlu0 %5360
    %5362 = vrot.lane.b32.xlu0 %v4811, 32
    %v5363 = vpop.permute.xlu0 %5362
    %5364 = vrot.lane.b32.xlu0 %v4812, 32
    %v5365 = vpop.permute.xlu0 %5364
    %5366 = vrot.lane.b32.xlu0 %v4813, 32
    %v5367 = vpop.permute.xlu0 %5366
    %v5369 = vsel %vm675, %v5361, 0
    %v5372 = vsel %vm675, %v5363, 0
    %v5375 = vsel %vm675, %v5365, 0
    %v5378 = vsel %vm675, %v5367, 0
    %5380 = vmatprep.subr.bf16.mxu0 0
    %5381 = vmatpush1.bf16.xpose.msra.mxu0 0
    %5382 = vmatprep.subr.bf16.mxu0 0
    %5383 = vmatpush1.bf16.xpose.msra.mxu0 0
    %5384 = vmatprep.subr.bf16.mxu0 0
    %5385 = vmatpush1.bf16.xpose.msra.mxu0 0
    %5386 = vmatprep.subr.bf16.mxu0 0
    %5387 = vmatpush1.bf16.xpose.msra.mxu0 0
    %5388 = vmatprep.subr.bf16.mxu0 0
    %5389 = vmatpush1.bf16.xpose.msra.mxu0 0
    %5390 = vmatprep.subr.bf16.mxu0 0
    %5391 = vmatpush1.bf16.xpose.msra.mxu0 0
    %5392 = vmatprep.subr.bf16.mxu0 0
    %5393 = vmatpush1.bf16.xpose.msra.mxu0 %v5378
    %5394 = vmatprep.subr.bf16.mxu0 0
    %5395 = vmatpush1.bf16.xpose.msra.mxu0 %v5375
    %5396 = vmatprep.subr.bf16.mxu0 0
    %5397 = vmatpush2.bf16.xpose.msra.mxu0 0
    %5398 = vmatprep.subr.bf16.mxu0 0
    %5399 = vmatpush2.bf16.xpose.msra.mxu0 0
    %5400 = vmatprep.subr.bf16.mxu0 0
    %5401 = vmatpush2.bf16.xpose.msra.mxu0 0
    %5402 = vmatprep.subr.bf16.mxu0 0
    %5403 = vmatpush2.bf16.xpose.msra.mxu0 0
    %5404 = vmatprep.subr.bf16.mxu0 0
    %5405 = vmatpush2.bf16.xpose.msra.mxu0 0
    %5406 = vmatprep.subr.bf16.mxu0 0
    %5407 = vmatpush2.bf16.xpose.msra.mxu0 0
    %5408 = vmatprep.subr.bf16.mxu0 0
    %5409 = vmatpush2.bf16.xpose.msra.mxu0 0
    %5410 = vmatprep.subr.bf16.mxu0 0
    %5411 = vmatpush2.bf16.xpose.msra.mxu0 0
    %5412 = vmatprep.mubr.bf16.mxu0 0
    %5413 = vmatmul.mubr.bf16.gmra.mxu0 %v5369
    %v5414 = vpop.f32.mrf.mxu0
    %v5415 = vadd.f32 0.0, %v5414
    %v5416 = vpop.f32.mrf.mxu0
    %v5417 = vpop.f32.mrf.mxu0
    %v5418 = vadd.f32 0.0, %v5417
    %v5419 = vpop.f32.mrf.mxu0
    %5420 = vmatprep.mubr.bf16.mxu0 0
    %5421 = vmatmul.mubr.bf16.gmra.mxu0 %v5372
    %v5422 = vpop.f32.mrf.mxu0
    %v5423 = vadd.f32 0.0, %v5422
    %v5424 = vpop.f32.mrf.mxu0
    %v5425 = vpop.f32.mrf.mxu0
    %v5426 = vadd.f32 0.0, %v5425
    %v5427 = vpop.f32.mrf.mxu0
    %5428 = vdwg.mxu0
    %v5429 = vmul.f32 %v5415, 0.17677669
    %v5430 = vmul.f32 %v5418, 0.17677669
    %v5431 = vmul.f32 %v5423, 0.17677669
    %v5432 = vmul.f32 %v5426, 0.17677669
    %v5433 = vadd.f32 %v5429, %v368
    %v5434 = vadd.f32 %v5430, %v369
    %v5435 = vadd.f32 %v5431, %v370
    %v5436 = vadd.f32 %v5432, %v371
    %v5437 = vsel %vm675, %v5433, -inf
    %5438 = vmax.xlane.f32.xlu0 %v5437
    %v5439 = vpop.xlane.xlu0 %5438
    %v5440 = vsel %vm675, %v5434, -inf
    %5441 = vmax.xlane.f32.xlu0 %v5440
    %v5442 = vpop.xlane.xlu0 %5441
    %v5443 = vsel %vm675, %v5435, -inf
    %5444 = vmax.xlane.f32.xlu0 %v5443
    %v5445 = vpop.xlane.xlu0 %5444
    %v5446 = vsel %vm675, %v5436, -inf
    %5447 = vmax.xlane.f32.xlu0 %v5446
    %v5448 = vpop.xlane.xlu0 %5447
    %v5449 = vsub.f32 %v5433, %v5439
    %v5450 = vsub.f32 %v5434, %v5442
    %v5451 = vsub.f32 %v5435, %v5445
    %v5452 = vsub.f32 %v5436, %v5448
    %v5453 = vmul.f32 %v5449, 1.442695
    %v5454 = vpow.pop %v5453
    %v5455 = vmul.f32 %v5450, 1.442695
    %v5456 = vpow.pop %v5455
    %v5457 = vmul.f32 %v5451, 1.442695
    %v5458 = vpow.pop %v5457
    %v5459 = vmul.f32 %v5452, 1.442695
    %v5460 = vpow.pop %v5459
    %v5461 = vsel %vm675, %v5454, 0.0
    %5462 = vadd.xlane.f32.xlu0 %v5461
    %v5463 = vpop.xlane.xlu0 %5462
    %v5464 = vsel %vm675, %v5456, 0.0
    %5465 = vadd.xlane.f32.xlu0 %v5464
    %v5466 = vpop.xlane.xlu0 %5465
    %v5467 = vsel %vm675, %v5458, 0.0
    %5468 = vadd.xlane.f32.xlu0 %v5467
    %v5469 = vpop.xlane.xlu0 %5468
    %v5470 = vsel %vm675, %v5460, 0.0
    %5471 = vadd.xlane.f32.xlu0 %v5470
    %v5472 = vpop.xlane.xlu0 %5471
    %v5473 = vrcp.pop %v5463
    %v5474 = vrcp.pop %v5466
    %v5475 = vrcp.pop %v5469
    %v5476 = vrcp.pop %v5472
    %v5477 = vmul.f32 %v5454, %v5473
    %v5478 = vmul.f32 %v5456, %v5474
    %v5479 = vmul.f32 %v5458, %v5475
    %v5480 = vmul.f32 %v5460, %v5476
    %v5481 = vpack.c.bf16 %v5478, %v5477
    %v5482 = vpack.c.bf16 %v5480, %v5479
    %5483 = vrot.lane.b32.xlu0 %v4814, 32
    %v5484 = vpop.permute.xlu0 %5483
    %5485 = vrot.lane.b32.xlu0 %v4815, 32
    %v5486 = vpop.permute.xlu0 %5485
    %v5490 = vsel %vm675, %v5481, 0
    %v5493 = vsel %vm675, %v5482, 0
    %5495 = vmatprep.subr.bf16.mxu0 0
    %5496 = vmatpush1.bf16.msra.mxu0 0
    %5497 = vmatprep.subr.bf16.mxu0 0
    %5498 = vmatpush1.bf16.msra.mxu0 0
    %5499 = vmatprep.subr.bf16.mxu0 0
    %5500 = vmatpush1.bf16.msra.mxu0 0
    %5501 = vmatprep.subr.bf16.mxu0 0
    %5502 = vmatpush1.bf16.msra.mxu0 0
    %5503 = vmatprep.subr.bf16.mxu0 0
    %5504 = vmatpush1.bf16.msra.mxu0 0
    %5505 = vmatprep.subr.bf16.mxu0 0
    %5506 = vmatpush1.bf16.msra.mxu0 0
    %5507 = vmatprep.subr.bf16.mxu0 0
    %5508 = vmatpush1.bf16.msra.mxu0 %v5486
    %5509 = vmatprep.subr.bf16.mxu0 0
    %5510 = vmatpush1.bf16.msra.mxu0 %v5484
    %5511 = vmatprep.subr.bf16.mxu0 0
    %5512 = vmatpush2.bf16.msra.mxu0 0
    %5513 = vmatprep.subr.bf16.mxu0 0
    %5514 = vmatpush2.bf16.msra.mxu0 0
    %5515 = vmatprep.subr.bf16.mxu0 0
    %5516 = vmatpush2.bf16.msra.mxu0 0
    %5517 = vmatprep.subr.bf16.mxu0 0
    %5518 = vmatpush2.bf16.msra.mxu0 0
    %5519 = vmatprep.subr.bf16.mxu0 0
    %5520 = vmatpush2.bf16.msra.mxu0 0
    %5521 = vmatprep.subr.bf16.mxu0 0
    %5522 = vmatpush2.bf16.msra.mxu0 0
    %5523 = vmatprep.subr.bf16.mxu0 0
    %5524 = vmatpush2.bf16.msra.mxu0 0
    %5525 = vmatprep.subr.bf16.mxu0 0
    %5526 = vmatpush2.bf16.msra.mxu0 0
    %5527 = vmatprep.mubr.bf16.mxu0 0
    %5528 = vmatmul.mubr.bf16.gmra.mxu0 %v5490
    %v5529 = vpop.f32.mrf.mxu0
    %v5530 = vadd.f32 0.0, %v5529
    %v5531 = vpop.f32.mrf.mxu0
    %v5532 = vpop.f32.mrf.mxu0
    %v5533 = vadd.f32 0.0, %v5532
    %v5534 = vpop.f32.mrf.mxu0
    %5535 = vmatprep.mubr.bf16.mxu0 0
    %5536 = vmatmul.mubr.bf16.gmra.mxu0 %v5493
    %v5537 = vpop.f32.mrf.mxu0
    %v5538 = vadd.f32 0.0, %v5537
    %v5539 = vpop.f32.mrf.mxu0
    %v5540 = vpop.f32.mrf.mxu0
    %v5541 = vadd.f32 0.0, %v5540
    %v5542 = vpop.f32.mrf.mxu0
    %5543 = vdwg.mxu0
    %5548 = vrot.lane.b32.xlu0 %v5162, 32
    %v5549 = vpop.permute.xlu0 %5548
    %5550 = vrot.lane.b32.xlu0 %v5165, 32
    %v5551 = vpop.permute.xlu0 %5550
    %5552 = vrot.lane.b32.xlu0 %v5170, 32
    %v5553 = vpop.permute.xlu0 %5552
    %5554 = vrot.lane.b32.xlu0 %v5173, 32
    %v5555 = vpop.permute.xlu0 %5554
    %5564 = vrot.lane.b32.xlu0 %v5346, 64
    %v5565 = vpop.permute.xlu0 %5564
    %5566 = vrot.lane.b32.xlu0 %v5349, 64
    %v5567 = vpop.permute.xlu0 %5566
    %5568 = vrot.lane.b32.xlu0 %v5354, 64
    %v5569 = vpop.permute.xlu0 %5568
    %5570 = vrot.lane.b32.xlu0 %v5357, 64
    %v5571 = vpop.permute.xlu0 %5570
    %5580 = vrot.lane.b32.xlu0 %v5530, 96
    %v5581 = vpop.permute.xlu0 %5580
    %5582 = vrot.lane.b32.xlu0 %v5533, 96
    %v5583 = vpop.permute.xlu0 %5582
    %5584 = vrot.lane.b32.xlu0 %v5538, 96
    %v5585 = vpop.permute.xlu0 %5584
    %5586 = vrot.lane.b32.xlu0 %v5541, 96
    %v5587 = vpop.permute.xlu0 %5586
    %v5592 = vsel %vm675, %v4972, %v5549
    %v5593 = vsel %vm675, %v4975, %v5551
    %v5594 = vsel %vm675, %v4980, %v5553
    %v5595 = vsel %vm675, %v4983, %v5555
    %v5596 = vsel %vm1456, %v5592, %v5565
    %v5597 = vsel %vm1456, %v5593, %v5567
    %v5598 = vsel %vm1456, %v5594, %v5569
    %v5599 = vsel %vm1456, %v5595, %v5571
    %v5600 = vsel %vm1461, %v5596, %v5581
    %v5601 = vsel %vm1461, %v5597, %v5583
    %v5602 = vsel %vm1461, %v5598, %v5585
    %v5603 = vsel %vm1461, %v5599, %v5587
    %v5604 = vpack.c.bf16 %v5601, %v5600
    %v5605 = vpack.c.bf16 %v5603, %v5602
    %s5606 = scalar_lea.vmem %s9, 1
    %v5607 = vld [vmem:[%s5606] sm:$0x1]
    %v5609 = vlaneseq
    %v5610 = vshrl.u32 %v5609, 7
    %v5611 = vsub.s32 0, %v5610
    %v5612 = vrot.slane %v5607, %v5611
    %v5630 = vunpack.c.l.b16 %v4544
    %v5631 = vunpack.c.l.b16 %v4545
    %v5632 = vunpack.c.l.b16 %v4546
    %v5633 = vunpack.c.l.b16 %v4547
    %v5634 = vunpack.c.l.b16 %v4548
    %v5635 = vunpack.c.l.b16 %v4549
    %v5636 = vunpack.c.l.b16 %v4550
    %v5637 = vunpack.c.l.b16 %v4551
    %v5638 = vunpack.c.l.b16 %v4552
    %v5639 = vunpack.c.l.b16 %v4553
    %v5640 = vunpack.c.l.b16 %v4554
    %v5641 = vunpack.c.l.b16 %v4555
    %v5642 = vunpack.c.l.b16 %v4556
    %v5643 = vunpack.c.l.b16 %v4557
    %v5644 = vunpack.c.l.b16 %v4558
    %v5645 = vunpack.c.l.b16 %v4559
    %v5646 = vpack.c.b16 %v5631, %v5630
    %v5647 = vpack.c.b16 %v5633, %v5632
    %v5648 = vpack.c.b16 %v5635, %v5634
    %v5649 = vpack.c.b16 %v5637, %v5636
    %v5650 = vpack.c.b16 %v5639, %v5638
    %v5651 = vpack.c.b16 %v5641, %v5640
    %v5652 = vpack.c.b16 %v5643, %v5642
    %v5653 = vpack.c.b16 %v5645, %v5644
    %5662 = vmatprep.subr.bf16.mxu0 0
    %5663 = vmatpush1.bf16.msra.mxu0 %v5653
    %5664 = vmatprep.subr.bf16.mxu0 0
    %5665 = vmatpush1.bf16.msra.mxu0 %v5652
    %5666 = vmatprep.subr.bf16.mxu0 0
    %5667 = vmatpush1.bf16.msra.mxu0 %v5651
    %5668 = vmatprep.subr.bf16.mxu0 0
    %5669 = vmatpush1.bf16.msra.mxu0 %v5650
    %5670 = vmatprep.subr.bf16.mxu0 0
    %5671 = vmatpush1.bf16.msra.mxu0 %v5649
    %5672 = vmatprep.subr.bf16.mxu0 0
    %5673 = vmatpush1.bf16.msra.mxu0 %v5648
    %5674 = vmatprep.subr.bf16.mxu0 0
    %5675 = vmatpush1.bf16.msra.mxu0 %v5647
    %5676 = vmatprep.subr.bf16.mxu0 0
    %5677 = vmatpush1.bf16.msra.mxu0 %v5646
    %5678 = vmatprep.subr.bf16.mxu0 0
    %5679 = vmatpush2.bf16.msra.mxu0 0
    %5680 = vmatprep.subr.bf16.mxu0 0
    %5681 = vmatpush2.bf16.msra.mxu0 0
    %5682 = vmatprep.subr.bf16.mxu0 0
    %5683 = vmatpush2.bf16.msra.mxu0 0
    %5684 = vmatprep.subr.bf16.mxu0 0
    %5685 = vmatpush2.bf16.msra.mxu0 0
    %5686 = vmatprep.subr.bf16.mxu0 0
    %5687 = vmatpush2.bf16.msra.mxu0 0
    %5688 = vmatprep.subr.bf16.mxu0 0
    %5689 = vmatpush2.bf16.msra.mxu0 0
    %5690 = vmatprep.subr.bf16.mxu0 0
    %5691 = vmatpush2.bf16.msra.mxu0 0
    %5692 = vmatprep.subr.bf16.mxu0 0
    %5693 = vmatpush2.bf16.msra.mxu0 0
    %5694 = vmatprep.mubr.bf16.mxu0 0
    %5695 = vmatmul.mubr.bf16.gmra.mxu0 %v5604
    %v5696 = vpop.f32.mrf.mxu0
    %v5697 = vadd.f32 %v5612, %v5696
    %v5698 = vpop.f32.mrf.mxu0
    %v5699 = vpop.f32.mrf.mxu0
    %v5700 = vadd.f32 %v5612, %v5699
    %v5701 = vpop.f32.mrf.mxu0
    %5702 = vmatprep.mubr.bf16.mxu0 0
    %5703 = vmatmul.mubr.bf16.gmra.mxu0 %v5605
    %v5704 = vpop.f32.mrf.mxu0
    %v5705 = vadd.f32 %v5612, %v5704
    %v5706 = vpop.f32.mrf.mxu0
    %v5707 = vpop.f32.mrf.mxu0
    %v5708 = vadd.f32 %v5612, %v5707
    %v5709 = vpop.f32.mrf.mxu0
    %5710 = vdwg.mxu0
    %v5711 = vadd.f32 %v4506, %v5697
    %v5712 = vadd.f32 %v4507, %v5700
    %v5713 = vadd.f32 %v4508, %v5705
    %v5714 = vadd.f32 %v4509, %v5708
    %s5715 = scalar_lea.vmem %s10, 1
    %v5716 = vld [vmem:[%s5715] sm:$0x1]
    %s5717 = scalar_lea.vmem %s11, 1
    %v5718 = vld [vmem:[%s5717] sm:$0x1]
    %5719 = vadd.xlane.f32.xlu0 %v5711
    %v5720 = vpop.xlane.xlu0 %5719
    %5721 = vadd.xlane.f32.xlu0 %v5712
    %v5722 = vpop.xlane.xlu0 %5721
    %5723 = vadd.xlane.f32.xlu0 %v5713
    %v5724 = vpop.xlane.xlu0 %5723
    %5725 = vadd.xlane.f32.xlu0 %v5714
    %v5726 = vpop.xlane.xlu0 %5725
    %v5727 = vmul.f32 %v5720, %v1586
    %v5728 = vmul.f32 %v5722, %v1586
    %v5729 = vmul.f32 %v5724, %v1586
    %v5730 = vmul.f32 %v5726, %v1586
    %v5731 = vsub.f32 %v5711, %v5727
    %v5732 = vsub.f32 %v5712, %v5728
    %v5733 = vsub.f32 %v5713, %v5729
    %v5734 = vsub.f32 %v5714, %v5730
    %v5735 = vmul.f32 %v5731, %v5731
    %v5736 = vmul.f32 %v5732, %v5732
    %v5737 = vmul.f32 %v5733, %v5733
    %v5738 = vmul.f32 %v5734, %v5734
    %5739 = vadd.xlane.f32.xlu0 %v5735
    %v5740 = vpop.xlane.xlu0 %5739
    %5741 = vadd.xlane.f32.xlu0 %v5736
    %v5742 = vpop.xlane.xlu0 %5741
    %5743 = vadd.xlane.f32.xlu0 %v5737
    %v5744 = vpop.xlane.xlu0 %5743
    %5745 = vadd.xlane.f32.xlu0 %v5738
    %v5746 = vpop.xlane.xlu0 %5745
    %v5747 = vmul.f32 %v5740, %v1586
    %v5748 = vmul.f32 %v5742, %v1586
    %v5749 = vmul.f32 %v5744, %v1586
    %v5750 = vmul.f32 %v5746, %v1586
    %v5751 = vadd.f32 %v5747, 1e-05
    %v5752 = vadd.f32 %v5748, 1e-05
    %v5753 = vadd.f32 %v5749, 1e-05
    %v5754 = vadd.f32 %v5750, 1e-05
    %v5755 = vrsqrt.pop %v5751
    %v5756 = vrsqrt.pop %v5752
    %v5757 = vrsqrt.pop %v5753
    %v5758 = vrsqrt.pop %v5754
    %v5759 = vmul.f32 %v5731, %v5755
    %v5760 = vmul.f32 %v5732, %v5756
    %v5761 = vmul.f32 %v5733, %v5757
    %v5762 = vmul.f32 %v5734, %v5758
    %v5764 = vlaneseq
    %v5765 = vshrl.u32 %v5764, 7
    %v5766 = vsub.s32 0, %v5765
    %v5767 = vrot.slane %v5716, %v5766
    %v5769 = vmul.f32 %v5759, %v5767
    %v5770 = vmul.f32 %v5760, %v5767
    %v5771 = vmul.f32 %v5761, %v5767
    %v5772 = vmul.f32 %v5762, %v5767
    %v5774 = vlaneseq
    %v5775 = vshrl.u32 %v5774, 7
    %v5776 = vsub.s32 0, %v5775
    %v5777 = vrot.slane %v5718, %v5776
    %v5779 = vadd.f32 %v5769, %v5777
    %v5780 = vadd.f32 %v5770, %v5777
    %v5781 = vadd.f32 %v5771, %v5777
    %v5782 = vadd.f32 %v5772, %v5777
    %v5783 = vpack.c.bf16 %v5780, %v5779
    %v5784 = vpack.c.bf16 %v5782, %v5781
    %s5785 = scalar_lea.vmem [#allocation11], 1024
    %v5786 = vld [vmem:[%s5785] sm:$0xff]
    %v5787 = vld [vmem:[%s5785 + $0x8] sm:$0xff]
    %v5788 = vld [vmem:[%s5785 + $0x10] sm:$0xff]
    %v5789 = vld [vmem:[%s5785 + $0x18] sm:$0xff]
    %v5790 = vld [vmem:[%s5785 + $0x20] sm:$0xff]
    %v5791 = vld [vmem:[%s5785 + $0x28] sm:$0xff]
    %v5792 = vld [vmem:[%s5785 + $0x30] sm:$0xff]
    %v5793 = vld [vmem:[%s5785 + $0x38] sm:$0xff]
    %v5794 = vld [vmem:[%s5785 + $0x40] sm:$0xff]
    %v5795 = vld [vmem:[%s5785 + $0x48] sm:$0xff]
    %v5796 = vld [vmem:[%s5785 + $0x50] sm:$0xff]
    %v5797 = vld [vmem:[%s5785 + $0x58] sm:$0xff]
    %v5798 = vld [vmem:[%s5785 + $0x60] sm:$0xff]
    %v5799 = vld [vmem:[%s5785 + $0x68] sm:$0xff]
    %v5800 = vld [vmem:[%s5785 + $0x70] sm:$0xff]
    %v5801 = vld [vmem:[%s5785 + $0x78] sm:$0xff]
    %v5802 = vld [vmem:[%s5785 + $0x80] sm:$0xff]
    %v5803 = vld [vmem:[%s5785 + $0x88] sm:$0xff]
    %v5804 = vld [vmem:[%s5785 + $0x90] sm:$0xff]
    %v5805 = vld [vmem:[%s5785 + $0x98] sm:$0xff]
    %v5806 = vld [vmem:[%s5785 + $0xa0] sm:$0xff]
    %v5807 = vld [vmem:[%s5785 + $0xa8] sm:$0xff]
    %v5808 = vld [vmem:[%s5785 + $0xb0] sm:$0xff]
    %v5809 = vld [vmem:[%s5785 + $0xb8] sm:$0xff]
    %v5810 = vld [vmem:[%s5785 + $0xc0] sm:$0xff]
    %v5811 = vld [vmem:[%s5785 + $0xc8] sm:$0xff]
    %v5812 = vld [vmem:[%s5785 + $0xd0] sm:$0xff]
    %v5813 = vld [vmem:[%s5785 + $0xd8] sm:$0xff]
    %v5814 = vld [vmem:[%s5785 + $0xe0] sm:$0xff]
    %v5815 = vld [vmem:[%s5785 + $0xe8] sm:$0xff]
    %v5816 = vld [vmem:[%s5785 + $0xf0] sm:$0xff]
    %v5817 = vld [vmem:[%s5785 + $0xf8] sm:$0xff]
    %v5818 = vld [vmem:[%s5785 + $0x100] sm:$0xff]
    %v5819 = vld [vmem:[%s5785 + $0x108] sm:$0xff]
    %v5820 = vld [vmem:[%s5785 + $0x110] sm:$0xff]
    %v5821 = vld [vmem:[%s5785 + $0x118] sm:$0xff]
    %v5822 = vld [vmem:[%s5785 + $0x120] sm:$0xff]
    %v5823 = vld [vmem:[%s5785 + $0x128] sm:$0xff]
    %v5824 = vld [vmem:[%s5785 + $0x130] sm:$0xff]
    %v5825 = vld [vmem:[%s5785 + $0x138] sm:$0xff]
    %v5826 = vld [vmem:[%s5785 + $0x140] sm:$0xff]
    %v5827 = vld [vmem:[%s5785 + $0x148] sm:$0xff]
    %v5828 = vld [vmem:[%s5785 + $0x150] sm:$0xff]
    %v5829 = vld [vmem:[%s5785 + $0x158] sm:$0xff]
    %v5830 = vld [vmem:[%s5785 + $0x160] sm:$0xff]
    %v5831 = vld [vmem:[%s5785 + $0x168] sm:$0xff]
    %v5832 = vld [vmem:[%s5785 + $0x170] sm:$0xff]
    %v5833 = vld [vmem:[%s5785 + $0x178] sm:$0xff]
    %v5834 = vld [vmem:[%s5785 + $0x180] sm:$0xff]
    %v5835 = vld [vmem:[%s5785 + $0x188] sm:$0xff]
    %v5836 = vld [vmem:[%s5785 + $0x190] sm:$0xff]
    %v5837 = vld [vmem:[%s5785 + $0x198] sm:$0xff]
    %v5838 = vld [vmem:[%s5785 + $0x1a0] sm:$0xff]
    %v5839 = vld [vmem:[%s5785 + $0x1a8] sm:$0xff]
    %v5840 = vld [vmem:[%s5785 + $0x1b0] sm:$0xff]
    %v5841 = vld [vmem:[%s5785 + $0x1b8] sm:$0xff]
    %v5842 = vld [vmem:[%s5785 + $0x1c0] sm:$0xff]
    %v5843 = vld [vmem:[%s5785 + $0x1c8] sm:$0xff]
    %v5844 = vld [vmem:[%s5785 + $0x1d0] sm:$0xff]
    %v5845 = vld [vmem:[%s5785 + $0x1d8] sm:$0xff]
    %v5846 = vld [vmem:[%s5785 + $0x1e0] sm:$0xff]
    %v5847 = vld [vmem:[%s5785 + $0x1e8] sm:$0xff]
    %v5848 = vld [vmem:[%s5785 + $0x1f0] sm:$0xff]
    %v5849 = vld [vmem:[%s5785 + $0x1f8] sm:$0xff]
    %v5850 = vld [vmem:[%s5785 + $0x200] sm:$0xff]
    %v5851 = vld [vmem:[%s5785 + $0x208] sm:$0xff]
    %v5852 = vld [vmem:[%s5785 + $0x210] sm:$0xff]
    %v5853 = vld [vmem:[%s5785 + $0x218] sm:$0xff]
    %v5854 = vld [vmem:[%s5785 + $0x220] sm:$0xff]
    %v5855 = vld [vmem:[%s5785 + $0x228] sm:$0xff]
    %v5856 = vld [vmem:[%s5785 + $0x230] sm:$0xff]
    %v5857 = vld [vmem:[%s5785 + $0x238] sm:$0xff]
    %v5858 = vld [vmem:[%s5785 + $0x240] sm:$0xff]
    %v5859 = vld [vmem:[%s5785 + $0x248] sm:$0xff]
    %v5860 = vld [vmem:[%s5785 + $0x250] sm:$0xff]
    %v5861 = vld [vmem:[%s5785 + $0x258] sm:$0xff]
    %v5862 = vld [vmem:[%s5785 + $0x260] sm:$0xff]
    %v5863 = vld [vmem:[%s5785 + $0x268] sm:$0xff]
    %v5864 = vld [vmem:[%s5785 + $0x270] sm:$0xff]
    %v5865 = vld [vmem:[%s5785 + $0x278] sm:$0xff]
    %v5866 = vld [vmem:[%s5785 + $0x280] sm:$0xff]
    %v5867 = vld [vmem:[%s5785 + $0x288] sm:$0xff]
    %v5868 = vld [vmem:[%s5785 + $0x290] sm:$0xff]
    %v5869 = vld [vmem:[%s5785 + $0x298] sm:$0xff]
    %v5870 = vld [vmem:[%s5785 + $0x2a0] sm:$0xff]
    %v5871 = vld [vmem:[%s5785 + $0x2a8] sm:$0xff]
    %v5872 = vld [vmem:[%s5785 + $0x2b0] sm:$0xff]
    %v5873 = vld [vmem:[%s5785 + $0x2b8] sm:$0xff]
    %v5874 = vld [vmem:[%s5785 + $0x2c0] sm:$0xff]
    %v5875 = vld [vmem:[%s5785 + $0x2c8] sm:$0xff]
    %v5876 = vld [vmem:[%s5785 + $0x2d0] sm:$0xff]
    %v5877 = vld [vmem:[%s5785 + $0x2d8] sm:$0xff]
    %v5878 = vld [vmem:[%s5785 + $0x2e0] sm:$0xff]
    %v5879 = vld [vmem:[%s5785 + $0x2e8] sm:$0xff]
    %v5880 = vld [vmem:[%s5785 + $0x2f0] sm:$0xff]
    %v5881 = vld [vmem:[%s5785 + $0x2f8] sm:$0xff]
    %v5882 = vld [vmem:[%s5785 + $0x300] sm:$0xff]
    %v5883 = vld [vmem:[%s5785 + $0x308] sm:$0xff]
    %v5884 = vld [vmem:[%s5785 + $0x310] sm:$0xff]
    %v5885 = vld [vmem:[%s5785 + $0x318] sm:$0xff]
    %v5886 = vld [vmem:[%s5785 + $0x320] sm:$0xff]
    %v5887 = vld [vmem:[%s5785 + $0x328] sm:$0xff]
    %v5888 = vld [vmem:[%s5785 + $0x330] sm:$0xff]
    %v5889 = vld [vmem:[%s5785 + $0x338] sm:$0xff]
    %v5890 = vld [vmem:[%s5785 + $0x340] sm:$0xff]
    %v5891 = vld [vmem:[%s5785 + $0x348] sm:$0xff]
    %v5892 = vld [vmem:[%s5785 + $0x350] sm:$0xff]
    %v5893 = vld [vmem:[%s5785 + $0x358] sm:$0xff]
    %v5894 = vld [vmem:[%s5785 + $0x360] sm:$0xff]
    %v5895 = vld [vmem:[%s5785 + $0x368] sm:$0xff]
    %v5896 = vld [vmem:[%s5785 + $0x370] sm:$0xff]
    %v5897 = vld [vmem:[%s5785 + $0x378] sm:$0xff]
    %v5898 = vld [vmem:[%s5785 + $0x380] sm:$0xff]
    %v5899 = vld [vmem:[%s5785 + $0x388] sm:$0xff]
    %v5900 = vld [vmem:[%s5785 + $0x390] sm:$0xff]
    %v5901 = vld [vmem:[%s5785 + $0x398] sm:$0xff]
    %v5902 = vld [vmem:[%s5785 + $0x3a0] sm:$0xff]
    %v5903 = vld [vmem:[%s5785 + $0x3a8] sm:$0xff]
    %v5904 = vld [vmem:[%s5785 + $0x3b0] sm:$0xff]
    %v5905 = vld [vmem:[%s5785 + $0x3b8] sm:$0xff]
    %v5906 = vld [vmem:[%s5785 + $0x3c0] sm:$0xff]
    %v5907 = vld [vmem:[%s5785 + $0x3c8] sm:$0xff]
    %v5908 = vld [vmem:[%s5785 + $0x3d0] sm:$0xff]
    %v5909 = vld [vmem:[%s5785 + $0x3d8] sm:$0xff]
    %v5910 = vld [vmem:[%s5785 + $0x3e0] sm:$0xff]
    %v5911 = vld [vmem:[%s5785 + $0x3e8] sm:$0xff]
    %v5912 = vld [vmem:[%s5785 + $0x3f0] sm:$0xff]
    %v5913 = vld [vmem:[%s5785 + $0x3f8] sm:$0xff]
    %s5914 = scalar_lea.vmem [#allocation13], 16
    %v5915 = vld [vmem:[%s5914] sm:$0xff]
    %v5916 = vld [vmem:[%s5914 + $0x8] sm:$0xff]
    %v5919 = vlaneseq
    %v5920 = vshrl.u32 %v5919, 7
    %v5921 = vsub.s32 0, %v5920
    %v5922 = vrot.slane %v5915, %v5921
    %v5923 = vlaneseq
    %v5924 = vshrl.u32 %v5923, 7
    %v5925 = vsub.s32 1, %v5924
    %v5926 = vrot.slane %v5915, %v5925
    %v5927 = vlaneseq
    %v5928 = vshrl.u32 %v5927, 7
    %v5929 = vsub.s32 2, %v5928
    %v5930 = vrot.slane %v5915, %v5929
    %v5931 = vlaneseq
    %v5932 = vshrl.u32 %v5931, 7
    %v5933 = vsub.s32 3, %v5932
    %v5934 = vrot.slane %v5915, %v5933
    %v5935 = vlaneseq
    %v5936 = vshrl.u32 %v5935, 7
    %v5937 = vsub.s32 4, %v5936
    %v5938 = vrot.slane %v5915, %v5937
    %v5939 = vlaneseq
    %v5940 = vshrl.u32 %v5939, 7
    %v5941 = vsub.s32 5, %v5940
    %v5942 = vrot.slane %v5915, %v5941
    %v5943 = vlaneseq
    %v5944 = vshrl.u32 %v5943, 7
    %v5945 = vsub.s32 6, %v5944
    %v5946 = vrot.slane %v5915, %v5945
    %v5947 = vlaneseq
    %v5948 = vshrl.u32 %v5947, 7
    %v5949 = vsub.s32 7, %v5948
    %v5950 = vrot.slane %v5915, %v5949
    %v5951 = vlaneseq
    %v5952 = vshrl.u32 %v5951, 7
    %v5953 = vsub.s32 0, %v5952
    %v5954 = vrot.slane %v5916, %v5953
    %v5955 = vlaneseq
    %v5956 = vshrl.u32 %v5955, 7
    %v5957 = vsub.s32 1, %v5956
    %v5958 = vrot.slane %v5916, %v5957
    %v5959 = vlaneseq
    %v5960 = vshrl.u32 %v5959, 7
    %v5961 = vsub.s32 2, %v5960
    %v5962 = vrot.slane %v5916, %v5961
    %v5963 = vlaneseq
    %v5964 = vshrl.u32 %v5963, 7
    %v5965 = vsub.s32 3, %v5964
    %v5966 = vrot.slane %v5916, %v5965
    %v5967 = vlaneseq
    %v5968 = vshrl.u32 %v5967, 7
    %v5969 = vsub.s32 4, %v5968
    %v5970 = vrot.slane %v5916, %v5969
    %v5971 = vlaneseq
    %v5972 = vshrl.u32 %v5971, 7
    %v5973 = vsub.s32 5, %v5972
    %v5974 = vrot.slane %v5916, %v5973
    %v5975 = vlaneseq
    %v5976 = vshrl.u32 %v5975, 7
    %v5977 = vsub.s32 6, %v5976
    %v5978 = vrot.slane %v5916, %v5977
    %v5979 = vlaneseq
    %v5980 = vshrl.u32 %v5979, 7
    %v5981 = vsub.s32 7, %v5980
    %v5982 = vrot.slane %v5916, %v5981
    %v6127 = vunpack.c.l.b16 %v5786
    %v6128 = vunpack.c.h.b16 %v5786
    %v6129 = vunpack.c.l.b16 %v5787
    %v6130 = vunpack.c.h.b16 %v5787
    %v6131 = vunpack.c.l.b16 %v5788
    %v6132 = vunpack.c.h.b16 %v5788
    %v6133 = vunpack.c.l.b16 %v5789
    %v6134 = vunpack.c.h.b16 %v5789
    %v6135 = vunpack.c.l.b16 %v5790
    %v6136 = vunpack.c.h.b16 %v5790
    %v6137 = vunpack.c.l.b16 %v5791
    %v6138 = vunpack.c.h.b16 %v5791
    %v6139 = vunpack.c.l.b16 %v5792
    %v6140 = vunpack.c.h.b16 %v5792
    %v6141 = vunpack.c.l.b16 %v5793
    %v6142 = vunpack.c.h.b16 %v5793
    %v6143 = vunpack.c.l.b16 %v5794
    %v6144 = vunpack.c.h.b16 %v5794
    %v6145 = vunpack.c.l.b16 %v5795
    %v6146 = vunpack.c.h.b16 %v5795
    %v6147 = vunpack.c.l.b16 %v5796
    %v6148 = vunpack.c.h.b16 %v5796
    %v6149 = vunpack.c.l.b16 %v5797
    %v6150 = vunpack.c.h.b16 %v5797
    %v6151 = vunpack.c.l.b16 %v5798
    %v6152 = vunpack.c.h.b16 %v5798
    %v6153 = vunpack.c.l.b16 %v5799
    %v6154 = vunpack.c.h.b16 %v5799
    %v6155 = vunpack.c.l.b16 %v5800
    %v6156 = vunpack.c.h.b16 %v5800
    %v6157 = vunpack.c.l.b16 %v5801
    %v6158 = vunpack.c.h.b16 %v5801
    %v6159 = vunpack.c.l.b16 %v5802
    %v6160 = vunpack.c.h.b16 %v5802
    %v6161 = vunpack.c.l.b16 %v5803
    %v6162 = vunpack.c.h.b16 %v5803
    %v6163 = vunpack.c.l.b16 %v5804
    %v6164 = vunpack.c.h.b16 %v5804
    %v6165 = vunpack.c.l.b16 %v5805
    %v6166 = vunpack.c.h.b16 %v5805
    %v6167 = vunpack.c.l.b16 %v5806
    %v6168 = vunpack.c.h.b16 %v5806
    %v6169 = vunpack.c.l.b16 %v5807
    %v6170 = vunpack.c.h.b16 %v5807
    %v6171 = vunpack.c.l.b16 %v5808
    %v6172 = vunpack.c.h.b16 %v5808
    %v6173 = vunpack.c.l.b16 %v5809
    %v6174 = vunpack.c.h.b16 %v5809
    %v6175 = vunpack.c.l.b16 %v5810
    %v6176 = vunpack.c.h.b16 %v5810
    %v6177 = vunpack.c.l.b16 %v5811
    %v6178 = vunpack.c.h.b16 %v5811
    %v6179 = vunpack.c.l.b16 %v5812
    %v6180 = vunpack.c.h.b16 %v5812
    %v6181 = vunpack.c.l.b16 %v5813
    %v6182 = vunpack.c.h.b16 %v5813
    %v6183 = vunpack.c.l.b16 %v5814
    %v6184 = vunpack.c.h.b16 %v5814
    %v6185 = vunpack.c.l.b16 %v5815
    %v6186 = vunpack.c.h.b16 %v5815
    %v6187 = vunpack.c.l.b16 %v5816
    %v6188 = vunpack.c.h.b16 %v5816
    %v6189 = vunpack.c.l.b16 %v5817
    %v6190 = vunpack.c.h.b16 %v5817
    %v6191 = vunpack.c.l.b16 %v5818
    %v6192 = vunpack.c.h.b16 %v5818
    %v6193 = vunpack.c.l.b16 %v5819
    %v6194 = vunpack.c.h.b16 %v5819
    %v6195 = vunpack.c.l.b16 %v5820
    %v6196 = vunpack.c.h.b16 %v5820
    %v6197 = vunpack.c.l.b16 %v5821
    %v6198 = vunpack.c.h.b16 %v5821
    %v6199 = vunpack.c.l.b16 %v5822
    %v6200 = vunpack.c.h.b16 %v5822
    %v6201 = vunpack.c.l.b16 %v5823
    %v6202 = vunpack.c.h.b16 %v5823
    %v6203 = vunpack.c.l.b16 %v5824
    %v6204 = vunpack.c.h.b16 %v5824
    %v6205 = vunpack.c.l.b16 %v5825
    %v6206 = vunpack.c.h.b16 %v5825
    %v6207 = vunpack.c.l.b16 %v5826
    %v6208 = vunpack.c.h.b16 %v5826
    %v6209 = vunpack.c.l.b16 %v5827
    %v6210 = vunpack.c.h.b16 %v5827
    %v6211 = vunpack.c.l.b16 %v5828
    %v6212 = vunpack.c.h.b16 %v5828
    %v6213 = vunpack.c.l.b16 %v5829
    %v6214 = vunpack.c.h.b16 %v5829
    %v6215 = vunpack.c.l.b16 %v5830
    %v6216 = vunpack.c.h.b16 %v5830
    %v6217 = vunpack.c.l.b16 %v5831
    %v6218 = vunpack.c.h.b16 %v5831
    %v6219 = vunpack.c.l.b16 %v5832
    %v6220 = vunpack.c.h.b16 %v5832
    %v6221 = vunpack.c.l.b16 %v5833
    %v6222 = vunpack.c.h.b16 %v5833
    %v6223 = vunpack.c.l.b16 %v5834
    %v6224 = vunpack.c.h.b16 %v5834
    %v6225 = vunpack.c.l.b16 %v5835
    %v6226 = vunpack.c.h.b16 %v5835
    %v6227 = vunpack.c.l.b16 %v5836
    %v6228 = vunpack.c.h.b16 %v5836
    %v6229 = vunpack.c.l.b16 %v5837
    %v6230 = vunpack.c.h.b16 %v5837
    %v6231 = vunpack.c.l.b16 %v5838
    %v6232 = vunpack.c.h.b16 %v5838
    %v6233 = vunpack.c.l.b16 %v5839
    %v6234 = vunpack.c.h.b16 %v5839
    %v6235 = vunpack.c.l.b16 %v5840
    %v6236 = vunpack.c.h.b16 %v5840
    %v6237 = vunpack.c.l.b16 %v5841
    %v6238 = vunpack.c.h.b16 %v5841
    %v6239 = vunpack.c.l.b16 %v5842
    %v6240 = vunpack.c.h.b16 %v5842
    %v6241 = vunpack.c.l.b16 %v5843
    %v6242 = vunpack.c.h.b16 %v5843
    %v6243 = vunpack.c.l.b16 %v5844
    %v6244 = vunpack.c.h.b16 %v5844
    %v6245 = vunpack.c.l.b16 %v5845
    %v6246 = vunpack.c.h.b16 %v5845
    %v6247 = vunpack.c.l.b16 %v5846
    %v6248 = vunpack.c.h.b16 %v5846
    %v6249 = vunpack.c.l.b16 %v5847
    %v6250 = vunpack.c.h.b16 %v5847
    %v6251 = vunpack.c.l.b16 %v5848
    %v6252 = vunpack.c.h.b16 %v5848
    %v6253 = vunpack.c.l.b16 %v5849
    %v6254 = vunpack.c.h.b16 %v5849
    %v6255 = vunpack.c.l.b16 %v5850
    %v6256 = vunpack.c.h.b16 %v5850
    %v6257 = vunpack.c.l.b16 %v5851
    %v6258 = vunpack.c.h.b16 %v5851
    %v6259 = vunpack.c.l.b16 %v5852
    %v6260 = vunpack.c.h.b16 %v5852
    %v6261 = vunpack.c.l.b16 %v5853
    %v6262 = vunpack.c.h.b16 %v5853
    %v6263 = vunpack.c.l.b16 %v5854
    %v6264 = vunpack.c.h.b16 %v5854
    %v6265 = vunpack.c.l.b16 %v5855
    %v6266 = vunpack.c.h.b16 %v5855
    %v6267 = vunpack.c.l.b16 %v5856
    %v6268 = vunpack.c.h.b16 %v5856
    %v6269 = vunpack.c.l.b16 %v5857
    %v6270 = vunpack.c.h.b16 %v5857
    %v6271 = vunpack.c.l.b16 %v5858
    %v6272 = vunpack.c.h.b16 %v5858
    %v6273 = vunpack.c.l.b16 %v5859
    %v6274 = vunpack.c.h.b16 %v5859
    %v6275 = vunpack.c.l.b16 %v5860
    %v6276 = vunpack.c.h.b16 %v5860
    %v6277 = vunpack.c.l.b16 %v5861
    %v6278 = vunpack.c.h.b16 %v5861
    %v6279 = vunpack.c.l.b16 %v5862
    %v6280 = vunpack.c.h.b16 %v5862
    %v6281 = vunpack.c.l.b16 %v5863
    %v6282 = vunpack.c.h.b16 %v5863
    %v6283 = vunpack.c.l.b16 %v5864
    %v6284 = vunpack.c.h.b16 %v5864
    %v6285 = vunpack.c.l.b16 %v5865
    %v6286 = vunpack.c.h.b16 %v5865
    %v6287 = vunpack.c.l.b16 %v5866
    %v6288 = vunpack.c.h.b16 %v5866
    %v6289 = vunpack.c.l.b16 %v5867
    %v6290 = vunpack.c.h.b16 %v5867
    %v6291 = vunpack.c.l.b16 %v5868
    %v6292 = vunpack.c.h.b16 %v5868
    %v6293 = vunpack.c.l.b16 %v5869
    %v6294 = vunpack.c.h.b16 %v5869
    %v6295 = vunpack.c.l.b16 %v5870
    %v6296 = vunpack.c.h.b16 %v5870
    %v6297 = vunpack.c.l.b16 %v5871
    %v6298 = vunpack.c.h.b16 %v5871
    %v6299 = vunpack.c.l.b16 %v5872
    %v6300 = vunpack.c.h.b16 %v5872
    %v6301 = vunpack.c.l.b16 %v5873
    %v6302 = vunpack.c.h.b16 %v5873
    %v6303 = vunpack.c.l.b16 %v5874
    %v6304 = vunpack.c.h.b16 %v5874
    %v6305 = vunpack.c.l.b16 %v5875
    %v6306 = vunpack.c.h.b16 %v5875
    %v6307 = vunpack.c.l.b16 %v5876
    %v6308 = vunpack.c.h.b16 %v5876
    %v6309 = vunpack.c.l.b16 %v5877
    %v6310 = vunpack.c.h.b16 %v5877
    %v6311 = vunpack.c.l.b16 %v5878
    %v6312 = vunpack.c.h.b16 %v5878
    %v6313 = vunpack.c.l.b16 %v5879
    %v6314 = vunpack.c.h.b16 %v5879
    %v6315 = vunpack.c.l.b16 %v5880
    %v6316 = vunpack.c.h.b16 %v5880
    %v6317 = vunpack.c.l.b16 %v5881
    %v6318 = vunpack.c.h.b16 %v5881
    %v6319 = vunpack.c.l.b16 %v5882
    %v6320 = vunpack.c.h.b16 %v5882
    %v6321 = vunpack.c.l.b16 %v5883
    %v6322 = vunpack.c.h.b16 %v5883
    %v6323 = vunpack.c.l.b16 %v5884
    %v6324 = vunpack.c.h.b16 %v5884
    %v6325 = vunpack.c.l.b16 %v5885
    %v6326 = vunpack.c.h.b16 %v5885
    %v6327 = vunpack.c.l.b16 %v5886
    %v6328 = vunpack.c.h.b16 %v5886
    %v6329 = vunpack.c.l.b16 %v5887
    %v6330 = vunpack.c.h.b16 %v5887
    %v6331 = vunpack.c.l.b16 %v5888
    %v6332 = vunpack.c.h.b16 %v5888
    %v6333 = vunpack.c.l.b16 %v5889
    %v6334 = vunpack.c.h.b16 %v5889
    %v6335 = vunpack.c.l.b16 %v5890
    %v6336 = vunpack.c.h.b16 %v5890
    %v6337 = vunpack.c.l.b16 %v5891
    %v6338 = vunpack.c.h.b16 %v5891
    %v6339 = vunpack.c.l.b16 %v5892
    %v6340 = vunpack.c.h.b16 %v5892
    %v6341 = vunpack.c.l.b16 %v5893
    %v6342 = vunpack.c.h.b16 %v5893
    %v6343 = vunpack.c.l.b16 %v5894
    %v6344 = vunpack.c.h.b16 %v5894
    %v6345 = vunpack.c.l.b16 %v5895
    %v6346 = vunpack.c.h.b16 %v5895
    %v6347 = vunpack.c.l.b16 %v5896
    %v6348 = vunpack.c.h.b16 %v5896
    %v6349 = vunpack.c.l.b16 %v5897
    %v6350 = vunpack.c.h.b16 %v5897
    %v6351 = vunpack.c.l.b16 %v5898
    %v6352 = vunpack.c.h.b16 %v5898
    %v6353 = vunpack.c.l.b16 %v5899
    %v6354 = vunpack.c.h.b16 %v5899
    %v6355 = vunpack.c.l.b16 %v5900
    %v6356 = vunpack.c.h.b16 %v5900
    %v6357 = vunpack.c.l.b16 %v5901
    %v6358 = vunpack.c.h.b16 %v5901
    %v6359 = vunpack.c.l.b16 %v5902
    %v6360 = vunpack.c.h.b16 %v5902
    %v6361 = vunpack.c.l.b16 %v5903
    %v6362 = vunpack.c.h.b16 %v5903
    %v6363 = vunpack.c.l.b16 %v5904
    %v6364 = vunpack.c.h.b16 %v5904
    %v6365 = vunpack.c.l.b16 %v5905
    %v6366 = vunpack.c.h.b16 %v5905
    %v6367 = vunpack.c.l.b16 %v5906
    %v6368 = vunpack.c.h.b16 %v5906
    %v6369 = vunpack.c.l.b16 %v5907
    %v6370 = vunpack.c.h.b16 %v5907
    %v6371 = vunpack.c.l.b16 %v5908
    %v6372 = vunpack.c.h.b16 %v5908
    %v6373 = vunpack.c.l.b16 %v5909
    %v6374 = vunpack.c.h.b16 %v5909
    %v6375 = vunpack.c.l.b16 %v5910
    %v6376 = vunpack.c.h.b16 %v5910
    %v6377 = vunpack.c.l.b16 %v5911
    %v6378 = vunpack.c.h.b16 %v5911
    %v6379 = vunpack.c.l.b16 %v5912
    %v6380 = vunpack.c.h.b16 %v5912
    %v6381 = vunpack.c.l.b16 %v5913
    %v6382 = vunpack.c.h.b16 %v5913
    %v6383 = vpack.c.b16 %v6143, %v6127
    %v6384 = vpack.c.b16 %v6144, %v6128
    %v6385 = vpack.c.b16 %v6145, %v6129
    %v6386 = vpack.c.b16 %v6146, %v6130
    %v6387 = vpack.c.b16 %v6147, %v6131
    %v6388 = vpack.c.b16 %v6148, %v6132
    %v6389 = vpack.c.b16 %v6149, %v6133
    %v6390 = vpack.c.b16 %v6150, %v6134
    %v6391 = vpack.c.b16 %v6151, %v6135
    %v6392 = vpack.c.b16 %v6152, %v6136
    %v6393 = vpack.c.b16 %v6153, %v6137
    %v6394 = vpack.c.b16 %v6154, %v6138
    %v6395 = vpack.c.b16 %v6155, %v6139
    %v6396 = vpack.c.b16 %v6156, %v6140
    %v6397 = vpack.c.b16 %v6157, %v6141
    %v6398 = vpack.c.b16 %v6158, %v6142
    %v6399 = vpack.c.b16 %v6175, %v6159
    %v6400 = vpack.c.b16 %v6176, %v6160
    %v6401 = vpack.c.b16 %v6177, %v6161
    %v6402 = vpack.c.b16 %v6178, %v6162
    %v6403 = vpack.c.b16 %v6179, %v6163
    %v6404 = vpack.c.b16 %v6180, %v6164
    %v6405 = vpack.c.b16 %v6181, %v6165
    %v6406 = vpack.c.b16 %v6182, %v6166
    %v6407 = vpack.c.b16 %v6183, %v6167
    %v6408 = vpack.c.b16 %v6184, %v6168
    %v6409 = vpack.c.b16 %v6185, %v6169
    %v6410 = vpack.c.b16 %v6186, %v6170
    %v6411 = vpack.c.b16 %v6187, %v6171
    %v6412 = vpack.c.b16 %v6188, %v6172
    %v6413 = vpack.c.b16 %v6189, %v6173
    %v6414 = vpack.c.b16 %v6190, %v6174
    %v6415 = vpack.c.b16 %v6207, %v6191
    %v6416 = vpack.c.b16 %v6208, %v6192
    %v6417 = vpack.c.b16 %v6209, %v6193
    %v6418 = vpack.c.b16 %v6210, %v6194
    %v6419 = vpack.c.b16 %v6211, %v6195
    %v6420 = vpack.c.b16 %v6212, %v6196
    %v6421 = vpack.c.b16 %v6213, %v6197
    %v6422 = vpack.c.b16 %v6214, %v6198
    %v6423 = vpack.c.b16 %v6215, %v6199
    %v6424 = vpack.c.b16 %v6216, %v6200
    %v6425 = vpack.c.b16 %v6217, %v6201
    %v6426 = vpack.c.b16 %v6218, %v6202
    %v6427 = vpack.c.b16 %v6219, %v6203
    %v6428 = vpack.c.b16 %v6220, %v6204
    %v6429 = vpack.c.b16 %v6221, %v6205
    %v6430 = vpack.c.b16 %v6222, %v6206
    %v6431 = vpack.c.b16 %v6239, %v6223
    %v6432 = vpack.c.b16 %v6240, %v6224
    %v6433 = vpack.c.b16 %v6241, %v6225
    %v6434 = vpack.c.b16 %v6242, %v6226
    %v6435 = vpack.c.b16 %v6243, %v6227
    %v6436 = vpack.c.b16 %v6244, %v6228
    %v6437 = vpack.c.b16 %v6245, %v6229
    %v6438 = vpack.c.b16 %v6246, %v6230
    %v6439 = vpack.c.b16 %v6247, %v6231
    %v6440 = vpack.c.b16 %v6248, %v6232
    %v6441 = vpack.c.b16 %v6249, %v6233
    %v6442 = vpack.c.b16 %v6250, %v6234
    %v6443 = vpack.c.b16 %v6251, %v6235
    %v6444 = vpack.c.b16 %v6252, %v6236
    %v6445 = vpack.c.b16 %v6253, %v6237
    %v6446 = vpack.c.b16 %v6254, %v6238
    %v6447 = vpack.c.b16 %v6271, %v6255
    %v6448 = vpack.c.b16 %v6272, %v6256
    %v6449 = vpack.c.b16 %v6273, %v6257
    %v6450 = vpack.c.b16 %v6274, %v6258
    %v6451 = vpack.c.b16 %v6275, %v6259
    %v6452 = vpack.c.b16 %v6276, %v6260
    %v6453 = vpack.c.b16 %v6277, %v6261
    %v6454 = vpack.c.b16 %v6278, %v6262
    %v6455 = vpack.c.b16 %v6279, %v6263
    %v6456 = vpack.c.b16 %v6280, %v6264
    %v6457 = vpack.c.b16 %v6281, %v6265
    %v6458 = vpack.c.b16 %v6282, %v6266
    %v6459 = vpack.c.b16 %v6283, %v6267
    %v6460 = vpack.c.b16 %v6284, %v6268
    %v6461 = vpack.c.b16 %v6285, %v6269
    %v6462 = vpack.c.b16 %v6286, %v6270
    %v6463 = vpack.c.b16 %v6303, %v6287
    %v6464 = vpack.c.b16 %v6304, %v6288
    %v6465 = vpack.c.b16 %v6305, %v6289
    %v6466 = vpack.c.b16 %v6306, %v6290
    %v6467 = vpack.c.b16 %v6307, %v6291
    %v6468 = vpack.c.b16 %v6308, %v6292
    %v6469 = vpack.c.b16 %v6309, %v6293
    %v6470 = vpack.c.b16 %v6310, %v6294
    %v6471 = vpack.c.b16 %v6311, %v6295
    %v6472 = vpack.c.b16 %v6312, %v6296
    %v6473 = vpack.c.b16 %v6313, %v6297
    %v6474 = vpack.c.b16 %v6314, %v6298
    %v6475 = vpack.c.b16 %v6315, %v6299
    %v6476 = vpack.c.b16 %v6316, %v6300
    %v6477 = vpack.c.b16 %v6317, %v6301
    %v6478 = vpack.c.b16 %v6318, %v6302
    %v6479 = vpack.c.b16 %v6335, %v6319
    %v6480 = vpack.c.b16 %v6336, %v6320
    %v6481 = vpack.c.b16 %v6337, %v6321
    %v6482 = vpack.c.b16 %v6338, %v6322
    %v6483 = vpack.c.b16 %v6339, %v6323
    %v6484 = vpack.c.b16 %v6340, %v6324
    %v6485 = vpack.c.b16 %v6341, %v6325
    %v6486 = vpack.c.b16 %v6342, %v6326
    %v6487 = vpack.c.b16 %v6343, %v6327
    %v6488 = vpack.c.b16 %v6344, %v6328
    %v6489 = vpack.c.b16 %v6345, %v6329
    %v6490 = vpack.c.b16 %v6346, %v6330
    %v6491 = vpack.c.b16 %v6347, %v6331
    %v6492 = vpack.c.b16 %v6348, %v6332
    %v6493 = vpack.c.b16 %v6349, %v6333
    %v6494 = vpack.c.b16 %v6350, %v6334
    %v6495 = vpack.c.b16 %v6367, %v6351
    %v6496 = vpack.c.b16 %v6368, %v6352
    %v6497 = vpack.c.b16 %v6369, %v6353
    %v6498 = vpack.c.b16 %v6370, %v6354
    %v6499 = vpack.c.b16 %v6371, %v6355
    %v6500 = vpack.c.b16 %v6372, %v6356
    %v6501 = vpack.c.b16 %v6373, %v6357
    %v6502 = vpack.c.b16 %v6374, %v6358
    %v6503 = vpack.c.b16 %v6375, %v6359
    %v6504 = vpack.c.b16 %v6376, %v6360
    %v6505 = vpack.c.b16 %v6377, %v6361
    %v6506 = vpack.c.b16 %v6378, %v6362
    %v6507 = vpack.c.b16 %v6379, %v6363
    %v6508 = vpack.c.b16 %v6380, %v6364
    %v6509 = vpack.c.b16 %v6381, %v6365
    %v6510 = vpack.c.b16 %v6382, %v6366
    %6639 = vmatprep.subr.bf16.mxu0 %v6496
    %6640 = vmatpush1.bf16.msra.mxu0 %v6495
    %6641 = vmatprep.subr.bf16.mxu0 %v6480
    %6642 = vmatpush1.bf16.msra.mxu0 %v6479
    %6643 = vmatprep.subr.bf16.mxu0 %v6464
    %6644 = vmatpush1.bf16.msra.mxu0 %v6463
    %6645 = vmatprep.subr.bf16.mxu0 %v6448
    %6646 = vmatpush1.bf16.msra.mxu0 %v6447
    %6647 = vmatprep.subr.bf16.mxu0 %v6432
    %6648 = vmatpush1.bf16.msra.mxu0 %v6431
    %6649 = vmatprep.subr.bf16.mxu0 %v6416
    %6650 = vmatpush1.bf16.msra.mxu0 %v6415
    %6651 = vmatprep.subr.bf16.mxu0 %v6400
    %6652 = vmatpush1.bf16.msra.mxu0 %v6399
    %6653 = vmatprep.subr.bf16.mxu0 %v6384
    %6654 = vmatpush1.bf16.msra.mxu0 %v6383
    %6655 = vmatprep.subr.bf16.mxu0 0
    %6656 = vmatpush2.bf16.msra.mxu0 0
    %6657 = vmatprep.subr.bf16.mxu0 0
    %6658 = vmatpush2.bf16.msra.mxu0 0
    %6659 = vmatprep.subr.bf16.mxu0 0
    %6660 = vmatpush2.bf16.msra.mxu0 0
    %6661 = vmatprep.subr.bf16.mxu0 0
    %6662 = vmatpush2.bf16.msra.mxu0 0
    %6663 = vmatprep.subr.bf16.mxu0 0
    %6664 = vmatpush2.bf16.msra.mxu0 0
    %6665 = vmatprep.subr.bf16.mxu0 0
    %6666 = vmatpush2.bf16.msra.mxu0 0
    %6667 = vmatprep.subr.bf16.mxu0 0
    %6668 = vmatpush2.bf16.msra.mxu0 0
    %6669 = vmatprep.subr.bf16.mxu0 0
    %6670 = vmatpush2.bf16.msra.mxu0 0
    %6671 = vmatprep.mubr.bf16.mxu0 0
    %6672 = vmatmul.mubr.bf16.gmra.mxu0 %v5783
    %v6673 = vpop.f32.mrf.mxu0
    %v6674 = vadd.f32 %v5922, %v6673
    %v6675 = vpop.f32.mrf.mxu0
    %v6676 = vadd.f32 %v5926, %v6675
    %v6677 = vpop.f32.mrf.mxu0
    %v6678 = vadd.f32 %v5922, %v6677
    %v6679 = vpop.f32.mrf.mxu0
    %v6680 = vadd.f32 %v5926, %v6679
    %6681 = vmatprep.mubr.bf16.mxu0 0
    %6682 = vmatmul.mubr.bf16.gmra.mxu0 %v5784
    %v6683 = vpop.f32.mrf.mxu0
    %v6684 = vadd.f32 %v5922, %v6683
    %v6685 = vpop.f32.mrf.mxu0
    %v6686 = vadd.f32 %v5926, %v6685
    %v6687 = vpop.f32.mrf.mxu0
    %v6688 = vadd.f32 %v5922, %v6687
    %v6689 = vpop.f32.mrf.mxu0
    %v6690 = vadd.f32 %v5926, %v6689
    %6691 = vdwg.mxu0
    %6692 = vmatprep.subr.bf16.mxu0 %v6498
    %6693 = vmatpush1.bf16.msra.mxu0 %v6497
    %6694 = vmatprep.subr.bf16.mxu0 %v6482
    %6695 = vmatpush1.bf16.msra.mxu0 %v6481
    %6696 = vmatprep.subr.bf16.mxu0 %v6466
    %6697 = vmatpush1.bf16.msra.mxu0 %v6465
    %6698 = vmatprep.subr.bf16.mxu0 %v6450
    %6699 = vmatpush1.bf16.msra.mxu0 %v6449
    %6700 = vmatprep.subr.bf16.mxu0 %v6434
    %6701 = vmatpush1.bf16.msra.mxu0 %v6433
    %6702 = vmatprep.subr.bf16.mxu0 %v6418
    %6703 = vmatpush1.bf16.msra.mxu0 %v6417
    %6704 = vmatprep.subr.bf16.mxu0 %v6402
    %6705 = vmatpush1.bf16.msra.mxu0 %v6401
    %6706 = vmatprep.subr.bf16.mxu0 %v6386
    %6707 = vmatpush1.bf16.msra.mxu0 %v6385
    %6708 = vmatprep.subr.bf16.mxu0 0
    %6709 = vmatpush2.bf16.msra.mxu0 0
    %6710 = vmatprep.subr.bf16.mxu0 0
    %6711 = vmatpush2.bf16.msra.mxu0 0
    %6712 = vmatprep.subr.bf16.mxu0 0
    %6713 = vmatpush2.bf16.msra.mxu0 0
    %6714 = vmatprep.subr.bf16.mxu0 0
    %6715 = vmatpush2.bf16.msra.mxu0 0
    %6716 = vmatprep.subr.bf16.mxu0 0
    %6717 = vmatpush2.bf16.msra.mxu0 0
    %6718 = vmatprep.subr.bf16.mxu0 0
    %6719 = vmatpush2.bf16.msra.mxu0 0
    %6720 = vmatprep.subr.bf16.mxu0 0
    %6721 = vmatpush2.bf16.msra.mxu0 0
    %6722 = vmatprep.subr.bf16.mxu0 0
    %6723 = vmatpush2.bf16.msra.mxu0 0
    %6724 = vmatprep.mubr.bf16.mxu0 0
    %6725 = vmatmul.mubr.bf16.gmra.mxu0 %v5783
    %v6726 = vpop.f32.mrf.mxu0
    %v6727 = vadd.f32 %v5930, %v6726
    %v6728 = vpop.f32.mrf.mxu0
    %v6729 = vadd.f32 %v5934, %v6728
    %v6730 = vpop.f32.mrf.mxu0
    %v6731 = vadd.f32 %v5930, %v6730
    %v6732 = vpop.f32.mrf.mxu0
    %v6733 = vadd.f32 %v5934, %v6732
    %6734 = vmatprep.mubr.bf16.mxu0 0
    %6735 = vmatmul.mubr.bf16.gmra.mxu0 %v5784
    %v6736 = vpop.f32.mrf.mxu0
    %v6737 = vadd.f32 %v5930, %v6736
    %v6738 = vpop.f32.mrf.mxu0
    %v6739 = vadd.f32 %v5934, %v6738
    %v6740 = vpop.f32.mrf.mxu0
    %v6741 = vadd.f32 %v5930, %v6740
    %v6742 = vpop.f32.mrf.mxu0
    %v6743 = vadd.f32 %v5934, %v6742
    %6744 = vdwg.mxu0
    %6745 = vmatprep.subr.bf16.mxu0 %v6500
    %6746 = vmatpush1.bf16.msra.mxu0 %v6499
    %6747 = vmatprep.subr.bf16.mxu0 %v6484
    %6748 = vmatpush1.bf16.msra.mxu0 %v6483
    %6749 = vmatprep.subr.bf16.mxu0 %v6468
    %6750 = vmatpush1.bf16.msra.mxu0 %v6467
    %6751 = vmatprep.subr.bf16.mxu0 %v6452
    %6752 = vmatpush1.bf16.msra.mxu0 %v6451
    %6753 = vmatprep.subr.bf16.mxu0 %v6436
    %6754 = vmatpush1.bf16.msra.mxu0 %v6435
    %6755 = vmatprep.subr.bf16.mxu0 %v6420
    %6756 = vmatpush1.bf16.msra.mxu0 %v6419
    %6757 = vmatprep.subr.bf16.mxu0 %v6404
    %6758 = vmatpush1.bf16.msra.mxu0 %v6403
    %6759 = vmatprep.subr.bf16.mxu0 %v6388
    %6760 = vmatpush1.bf16.msra.mxu0 %v6387
    %6761 = vmatprep.subr.bf16.mxu0 0
    %6762 = vmatpush2.bf16.msra.mxu0 0
    %6763 = vmatprep.subr.bf16.mxu0 0
    %6764 = vmatpush2.bf16.msra.mxu0 0
    %6765 = vmatprep.subr.bf16.mxu0 0
    %6766 = vmatpush2.bf16.msra.mxu0 0
    %6767 = vmatprep.subr.bf16.mxu0 0
    %6768 = vmatpush2.bf16.msra.mxu0 0
    %6769 = vmatprep.subr.bf16.mxu0 0
    %6770 = vmatpush2.bf16.msra.mxu0 0
    %6771 = vmatprep.subr.bf16.mxu0 0
    %6772 = vmatpush2.bf16.msra.mxu0 0
    %6773 = vmatprep.subr.bf16.mxu0 0
    %6774 = vmatpush2.bf16.msra.mxu0 0
    %6775 = vmatprep.subr.bf16.mxu0 0
    %6776 = vmatpush2.bf16.msra.mxu0 0
    %6777 = vmatprep.mubr.bf16.mxu0 0
    %6778 = vmatmul.mubr.bf16.gmra.mxu0 %v5783
    %v6779 = vpop.f32.mrf.mxu0
    %v6780 = vadd.f32 %v5938, %v6779
    %v6781 = vpop.f32.mrf.mxu0
    %v6782 = vadd.f32 %v5942, %v6781
    %v6783 = vpop.f32.mrf.mxu0
    %v6784 = vadd.f32 %v5938, %v6783
    %v6785 = vpop.f32.mrf.mxu0
    %v6786 = vadd.f32 %v5942, %v6785
    %6787 = vmatprep.mubr.bf16.mxu0 0
    %6788 = vmatmul.mubr.bf16.gmra.mxu0 %v5784
    %v6789 = vpop.f32.mrf.mxu0
    %v6790 = vadd.f32 %v5938, %v6789
    %v6791 = vpop.f32.mrf.mxu0
    %v6792 = vadd.f32 %v5942, %v6791
    %v6793 = vpop.f32.mrf.mxu0
    %v6794 = vadd.f32 %v5938, %v6793
    %v6795 = vpop.f32.mrf.mxu0
    %v6796 = vadd.f32 %v5942, %v6795
    %6797 = vdwg.mxu0
    %6798 = vmatprep.subr.bf16.mxu0 %v6502
    %6799 = vmatpush1.bf16.msra.mxu0 %v6501
    %6800 = vmatprep.subr.bf16.mxu0 %v6486
    %6801 = vmatpush1.bf16.msra.mxu0 %v6485
    %6802 = vmatprep.subr.bf16.mxu0 %v6470
    %6803 = vmatpush1.bf16.msra.mxu0 %v6469
    %6804 = vmatprep.subr.bf16.mxu0 %v6454
    %6805 = vmatpush1.bf16.msra.mxu0 %v6453
    %6806 = vmatprep.subr.bf16.mxu0 %v6438
    %6807 = vmatpush1.bf16.msra.mxu0 %v6437
    %6808 = vmatprep.subr.bf16.mxu0 %v6422
    %6809 = vmatpush1.bf16.msra.mxu0 %v6421
    %6810 = vmatprep.subr.bf16.mxu0 %v6406
    %6811 = vmatpush1.bf16.msra.mxu0 %v6405
    %6812 = vmatprep.subr.bf16.mxu0 %v6390
    %6813 = vmatpush1.bf16.msra.mxu0 %v6389
    %6814 = vmatprep.subr.bf16.mxu0 0
    %6815 = vmatpush2.bf16.msra.mxu0 0
    %6816 = vmatprep.subr.bf16.mxu0 0
    %6817 = vmatpush2.bf16.msra.mxu0 0
    %6818 = vmatprep.subr.bf16.mxu0 0
    %6819 = vmatpush2.bf16.msra.mxu0 0
    %6820 = vmatprep.subr.bf16.mxu0 0
    %6821 = vmatpush2.bf16.msra.mxu0 0
    %6822 = vmatprep.subr.bf16.mxu0 0
    %6823 = vmatpush2.bf16.msra.mxu0 0
    %6824 = vmatprep.subr.bf16.mxu0 0
    %6825 = vmatpush2.bf16.msra.mxu0 0
    %6826 = vmatprep.subr.bf16.mxu0 0
    %6827 = vmatpush2.bf16.msra.mxu0 0
    %6828 = vmatprep.subr.bf16.mxu0 0
    %6829 = vmatpush2.bf16.msra.mxu0 0
    %6830 = vmatprep.mubr.bf16.mxu0 0
    %6831 = vmatmul.mubr.bf16.gmra.mxu0 %v5783
    %v6832 = vpop.f32.mrf.mxu0
    %v6833 = vadd.f32 %v5946, %v6832
    %v6834 = vpop.f32.mrf.mxu0
    %v6835 = vadd.f32 %v5950, %v6834
    %v6836 = vpop.f32.mrf.mxu0
    %v6837 = vadd.f32 %v5946, %v6836
    %v6838 = vpop.f32.mrf.mxu0
    %v6839 = vadd.f32 %v5950, %v6838
    %6840 = vmatprep.mubr.bf16.mxu0 0
    %6841 = vmatmul.mubr.bf16.gmra.mxu0 %v5784
    %v6842 = vpop.f32.mrf.mxu0
    %v6843 = vadd.f32 %v5946, %v6842
    %v6844 = vpop.f32.mrf.mxu0
    %v6845 = vadd.f32 %v5950, %v6844
    %v6846 = vpop.f32.mrf.mxu0
    %v6847 = vadd.f32 %v5946, %v6846
    %v6848 = vpop.f32.mrf.mxu0
    %v6849 = vadd.f32 %v5950, %v6848
    %6850 = vdwg.mxu0
    %6851 = vmatprep.subr.bf16.mxu0 %v6504
    %6852 = vmatpush1.bf16.msra.mxu0 %v6503
    %6853 = vmatprep.subr.bf16.mxu0 %v6488
    %6854 = vmatpush1.bf16.msra.mxu0 %v6487
    %6855 = vmatprep.subr.bf16.mxu0 %v6472
    %6856 = vmatpush1.bf16.msra.mxu0 %v6471
    %6857 = vmatprep.subr.bf16.mxu0 %v6456
    %6858 = vmatpush1.bf16.msra.mxu0 %v6455
    %6859 = vmatprep.subr.bf16.mxu0 %v6440
    %6860 = vmatpush1.bf16.msra.mxu0 %v6439
    %6861 = vmatprep.subr.bf16.mxu0 %v6424
    %6862 = vmatpush1.bf16.msra.mxu0 %v6423
    %6863 = vmatprep.subr.bf16.mxu0 %v6408
    %6864 = vmatpush1.bf16.msra.mxu0 %v6407
    %6865 = vmatprep.subr.bf16.mxu0 %v6392
    %6866 = vmatpush1.bf16.msra.mxu0 %v6391
    %6867 = vmatprep.subr.bf16.mxu0 0
    %6868 = vmatpush2.bf16.msra.mxu0 0
    %6869 = vmatprep.subr.bf16.mxu0 0
    %6870 = vmatpush2.bf16.msra.mxu0 0
    %6871 = vmatprep.subr.bf16.mxu0 0
    %6872 = vmatpush2.bf16.msra.mxu0 0
    %6873 = vmatprep.subr.bf16.mxu0 0
    %6874 = vmatpush2.bf16.msra.mxu0 0
    %6875 = vmatprep.subr.bf16.mxu0 0
    %6876 = vmatpush2.bf16.msra.mxu0 0
    %6877 = vmatprep.subr.bf16.mxu0 0
    %6878 = vmatpush2.bf16.msra.mxu0 0
    %6879 = vmatprep.subr.bf16.mxu0 0
    %6880 = vmatpush2.bf16.msra.mxu0 0
    %6881 = vmatprep.subr.bf16.mxu0 0
    %6882 = vmatpush2.bf16.msra.mxu0 0
    %6883 = vmatprep.mubr.bf16.mxu0 0
    %6884 = vmatmul.mubr.bf16.gmra.mxu0 %v5783
    %v6885 = vpop.f32.mrf.mxu0
    %v6886 = vadd.f32 %v5954, %v6885
    %v6887 = vpop.f32.mrf.mxu0
    %v6888 = vadd.f32 %v5958, %v6887
    %v6889 = vpop.f32.mrf.mxu0
    %v6890 = vadd.f32 %v5954, %v6889
    %v6891 = vpop.f32.mrf.mxu0
    %v6892 = vadd.f32 %v5958, %v6891
    %6893 = vmatprep.mubr.bf16.mxu0 0
    %6894 = vmatmul.mubr.bf16.gmra.mxu0 %v5784
    %v6895 = vpop.f32.mrf.mxu0
    %v6896 = vadd.f32 %v5954, %v6895
    %v6897 = vpop.f32.mrf.mxu0
    %v6898 = vadd.f32 %v5958, %v6897
    %v6899 = vpop.f32.mrf.mxu0
    %v6900 = vadd.f32 %v5954, %v6899
    %v6901 = vpop.f32.mrf.mxu0
    %v6902 = vadd.f32 %v5958, %v6901
    %6903 = vdwg.mxu0
    %6904 = vmatprep.subr.bf16.mxu0 %v6506
    %6905 = vmatpush1.bf16.msra.mxu0 %v6505
    %6906 = vmatprep.subr.bf16.mxu0 %v6490
    %6907 = vmatpush1.bf16.msra.mxu0 %v6489
    %6908 = vmatprep.subr.bf16.mxu0 %v6474
    %6909 = vmatpush1.bf16.msra.mxu0 %v6473
    %6910 = vmatprep.subr.bf16.mxu0 %v6458
    %6911 = vmatpush1.bf16.msra.mxu0 %v6457
    %6912 = vmatprep.subr.bf16.mxu0 %v6442
    %6913 = vmatpush1.bf16.msra.mxu0 %v6441
    %6914 = vmatprep.subr.bf16.mxu0 %v6426
    %6915 = vmatpush1.bf16.msra.mxu0 %v6425
    %6916 = vmatprep.subr.bf16.mxu0 %v6410
    %6917 = vmatpush1.bf16.msra.mxu0 %v6409
    %6918 = vmatprep.subr.bf16.mxu0 %v6394
    %6919 = vmatpush1.bf16.msra.mxu0 %v6393
    %6920 = vmatprep.subr.bf16.mxu0 0
    %6921 = vmatpush2.bf16.msra.mxu0 0
    %6922 = vmatprep.subr.bf16.mxu0 0
    %6923 = vmatpush2.bf16.msra.mxu0 0
    %6924 = vmatprep.subr.bf16.mxu0 0
    %6925 = vmatpush2.bf16.msra.mxu0 0
    %6926 = vmatprep.subr.bf16.mxu0 0
    %6927 = vmatpush2.bf16.msra.mxu0 0
    %6928 = vmatprep.subr.bf16.mxu0 0
    %6929 = vmatpush2.bf16.msra.mxu0 0
    %6930 = vmatprep.subr.bf16.mxu0 0
    %6931 = vmatpush2.bf16.msra.mxu0 0
    %6932 = vmatprep.subr.bf16.mxu0 0
    %6933 = vmatpush2.bf16.msra.mxu0 0
    %6934 = vmatprep.subr.bf16.mxu0 0
    %6935 = vmatpush2.bf16.msra.mxu0 0
    %6936 = vmatprep.mubr.bf16.mxu0 0
    %6937 = vmatmul.mubr.bf16.gmra.mxu0 %v5783
    %v6938 = vpop.f32.mrf.mxu0
    %v6939 = vadd.f32 %v5962, %v6938
    %v6940 = vpop.f32.mrf.mxu0
    %v6941 = vadd.f32 %v5966, %v6940
    %v6942 = vpop.f32.mrf.mxu0
    %v6943 = vadd.f32 %v5962, %v6942
    %v6944 = vpop.f32.mrf.mxu0
    %v6945 = vadd.f32 %v5966, %v6944
    %6946 = vmatprep.mubr.bf16.mxu0 0
    %6947 = vmatmul.mubr.bf16.gmra.mxu0 %v5784
    %v6948 = vpop.f32.mrf.mxu0
    %v6949 = vadd.f32 %v5962, %v6948
    %v6950 = vpop.f32.mrf.mxu0
    %v6951 = vadd.f32 %v5966, %v6950
    %v6952 = vpop.f32.mrf.mxu0
    %v6953 = vadd.f32 %v5962, %v6952
    %v6954 = vpop.f32.mrf.mxu0
    %v6955 = vadd.f32 %v5966, %v6954
    %6956 = vdwg.mxu0
    %6957 = vmatprep.subr.bf16.mxu0 %v6508
    %6958 = vmatpush1.bf16.msra.mxu0 %v6507
    %6959 = vmatprep.subr.bf16.mxu0 %v6492
    %6960 = vmatpush1.bf16.msra.mxu0 %v6491
    %6961 = vmatprep.subr.bf16.mxu0 %v6476
    %6962 = vmatpush1.bf16.msra.mxu0 %v6475
    %6963 = vmatprep.subr.bf16.mxu0 %v6460
    %6964 = vmatpush1.bf16.msra.mxu0 %v6459
    %6965 = vmatprep.subr.bf16.mxu0 %v6444
    %6966 = vmatpush1.bf16.msra.mxu0 %v6443
    %6967 = vmatprep.subr.bf16.mxu0 %v6428
    %6968 = vmatpush1.bf16.msra.mxu0 %v6427
    %6969 = vmatprep.subr.bf16.mxu0 %v6412
    %6970 = vmatpush1.bf16.msra.mxu0 %v6411
    %6971 = vmatprep.subr.bf16.mxu0 %v6396
    %6972 = vmatpush1.bf16.msra.mxu0 %v6395
    %6973 = vmatprep.subr.bf16.mxu0 0
    %6974 = vmatpush2.bf16.msra.mxu0 0
    %6975 = vmatprep.subr.bf16.mxu0 0
    %6976 = vmatpush2.bf16.msra.mxu0 0
    %6977 = vmatprep.subr.bf16.mxu0 0
    %6978 = vmatpush2.bf16.msra.mxu0 0
    %6979 = vmatprep.subr.bf16.mxu0 0
    %6980 = vmatpush2.bf16.msra.mxu0 0
    %6981 = vmatprep.subr.bf16.mxu0 0
    %6982 = vmatpush2.bf16.msra.mxu0 0
    %6983 = vmatprep.subr.bf16.mxu0 0
    %6984 = vmatpush2.bf16.msra.mxu0 0
    %6985 = vmatprep.subr.bf16.mxu0 0
    %6986 = vmatpush2.bf16.msra.mxu0 0
    %6987 = vmatprep.subr.bf16.mxu0 0
    %6988 = vmatpush2.bf16.msra.mxu0 0
    %6989 = vmatprep.mubr.bf16.mxu0 0
    %6990 = vmatmul.mubr.bf16.gmra.mxu0 %v5783
    %v6991 = vpop.f32.mrf.mxu0
    %v6992 = vadd.f32 %v5970, %v6991
    %v6993 = vpop.f32.mrf.mxu0
    %v6994 = vadd.f32 %v5974, %v6993
    %v6995 = vpop.f32.mrf.mxu0
    %v6996 = vadd.f32 %v5970, %v6995
    %v6997 = vpop.f32.mrf.mxu0
    %v6998 = vadd.f32 %v5974, %v6997
    %6999 = vmatprep.mubr.bf16.mxu0 0
    %7000 = vmatmul.mubr.bf16.gmra.mxu0 %v5784
    %v7001 = vpop.f32.mrf.mxu0
    %v7002 = vadd.f32 %v5970, %v7001
    %v7003 = vpop.f32.mrf.mxu0
    %v7004 = vadd.f32 %v5974, %v7003
    %v7005 = vpop.f32.mrf.mxu0
    %v7006 = vadd.f32 %v5970, %v7005
    %v7007 = vpop.f32.mrf.mxu0
    %v7008 = vadd.f32 %v5974, %v7007
    %7009 = vdwg.mxu0
    %7010 = vmatprep.subr.bf16.mxu0 %v6510
    %7011 = vmatpush1.bf16.msra.mxu0 %v6509
    %7012 = vmatprep.subr.bf16.mxu0 %v6494
    %7013 = vmatpush1.bf16.msra.mxu0 %v6493
    %7014 = vmatprep.subr.bf16.mxu0 %v6478
    %7015 = vmatpush1.bf16.msra.mxu0 %v6477
    %7016 = vmatprep.subr.bf16.mxu0 %v6462
    %7017 = vmatpush1.bf16.msra.mxu0 %v6461
    %7018 = vmatprep.subr.bf16.mxu0 %v6446
    %7019 = vmatpush1.bf16.msra.mxu0 %v6445
    %7020 = vmatprep.subr.bf16.mxu0 %v6430
    %7021 = vmatpush1.bf16.msra.mxu0 %v6429
    %7022 = vmatprep.subr.bf16.mxu0 %v6414
    %7023 = vmatpush1.bf16.msra.mxu0 %v6413
    %7024 = vmatprep.subr.bf16.mxu0 %v6398
    %7025 = vmatpush1.bf16.msra.mxu0 %v6397
    %7026 = vmatprep.subr.bf16.mxu0 0
    %7027 = vmatpush2.bf16.msra.mxu0 0
    %7028 = vmatprep.subr.bf16.mxu0 0
    %7029 = vmatpush2.bf16.msra.mxu0 0
    %7030 = vmatprep.subr.bf16.mxu0 0
    %7031 = vmatpush2.bf16.msra.mxu0 0
    %7032 = vmatprep.subr.bf16.mxu0 0
    %7033 = vmatpush2.bf16.msra.mxu0 0
    %7034 = vmatprep.subr.bf16.mxu0 0
    %7035 = vmatpush2.bf16.msra.mxu0 0
    %7036 = vmatprep.subr.bf16.mxu0 0
    %7037 = vmatpush2.bf16.msra.mxu0 0
    %7038 = vmatprep.subr.bf16.mxu0 0
    %7039 = vmatpush2.bf16.msra.mxu0 0
    %7040 = vmatprep.subr.bf16.mxu0 0
    %7041 = vmatpush2.bf16.msra.mxu0 0
    %7042 = vmatprep.mubr.bf16.mxu0 0
    %7043 = vmatmul.mubr.bf16.gmra.mxu0 %v5783
    %v7044 = vpop.f32.mrf.mxu0
    %v7045 = vadd.f32 %v5978, %v7044
    %v7046 = vpop.f32.mrf.mxu0
    %v7047 = vadd.f32 %v5982, %v7046
    %v7048 = vpop.f32.mrf.mxu0
    %v7049 = vadd.f32 %v5978, %v7048
    %v7050 = vpop.f32.mrf.mxu0
    %v7051 = vadd.f32 %v5982, %v7050
    %7052 = vmatprep.mubr.bf16.mxu0 0
    %7053 = vmatmul.mubr.bf16.gmra.mxu0 %v5784
    %v7054 = vpop.f32.mrf.mxu0
    %v7055 = vadd.f32 %v5978, %v7054
    %v7056 = vpop.f32.mrf.mxu0
    %v7057 = vadd.f32 %v5982, %v7056
    %v7058 = vpop.f32.mrf.mxu0
    %v7059 = vadd.f32 %v5978, %v7058
    %v7060 = vpop.f32.mrf.mxu0
    %v7061 = vadd.f32 %v5982, %v7060
    %7062 = vdwg.mxu0
    %v7063 = vmax.f32 %v6674, 0.0
    %v7064 = vmax.f32 %v6676, 0.0
    %v7065 = vmax.f32 %v6727, 0.0
    %v7066 = vmax.f32 %v6729, 0.0
    %v7067 = vmax.f32 %v6780, 0.0
    %v7068 = vmax.f32 %v6782, 0.0
    %v7069 = vmax.f32 %v6833, 0.0
    %v7070 = vmax.f32 %v6835, 0.0
    %v7071 = vmax.f32 %v6886, 0.0
    %v7072 = vmax.f32 %v6888, 0.0
    %v7073 = vmax.f32 %v6939, 0.0
    %v7074 = vmax.f32 %v6941, 0.0
    %v7075 = vmax.f32 %v6992, 0.0
    %v7076 = vmax.f32 %v6994, 0.0
    %v7077 = vmax.f32 %v7045, 0.0
    %v7078 = vmax.f32 %v7047, 0.0
    %v7079 = vmax.f32 %v6678, 0.0
    %v7080 = vmax.f32 %v6680, 0.0
    %v7081 = vmax.f32 %v6731, 0.0
    %v7082 = vmax.f32 %v6733, 0.0
    %v7083 = vmax.f32 %v6784, 0.0
    %v7084 = vmax.f32 %v6786, 0.0
    %v7085 = vmax.f32 %v6837, 0.0
    %v7086 = vmax.f32 %v6839, 0.0
    %v7087 = vmax.f32 %v6890, 0.0
    %v7088 = vmax.f32 %v6892, 0.0
    %v7089 = vmax.f32 %v6943, 0.0
    %v7090 = vmax.f32 %v6945, 0.0
    %v7091 = vmax.f32 %v6996, 0.0
    %v7092 = vmax.f32 %v6998, 0.0
    %v7093 = vmax.f32 %v7049, 0.0
    %v7094 = vmax.f32 %v7051, 0.0
    %v7095 = vmax.f32 %v6684, 0.0
    %v7096 = vmax.f32 %v6686, 0.0
    %v7097 = vmax.f32 %v6737, 0.0
    %v7098 = vmax.f32 %v6739, 0.0
    %v7099 = vmax.f32 %v6790, 0.0
    %v7100 = vmax.f32 %v6792, 0.0
    %v7101 = vmax.f32 %v6843, 0.0
    %v7102 = vmax.f32 %v6845, 0.0
    %v7103 = vmax.f32 %v6896, 0.0
    %v7104 = vmax.f32 %v6898, 0.0
    %v7105 = vmax.f32 %v6949, 0.0
    %v7106 = vmax.f32 %v6951, 0.0
    %v7107 = vmax.f32 %v7002, 0.0
    %v7108 = vmax.f32 %v7004, 0.0
    %v7109 = vmax.f32 %v7055, 0.0
    %v7110 = vmax.f32 %v7057, 0.0
    %v7111 = vmax.f32 %v6688, 0.0
    %v7112 = vmax.f32 %v6690, 0.0
    %v7113 = vmax.f32 %v6741, 0.0
    %v7114 = vmax.f32 %v6743, 0.0
    %v7115 = vmax.f32 %v6794, 0.0
    %v7116 = vmax.f32 %v6796, 0.0
    %v7117 = vmax.f32 %v6847, 0.0
    %v7118 = vmax.f32 %v6849, 0.0
    %v7119 = vmax.f32 %v6900, 0.0
    %v7120 = vmax.f32 %v6902, 0.0
    %v7121 = vmax.f32 %v6953, 0.0
    %v7122 = vmax.f32 %v6955, 0.0
    %v7123 = vmax.f32 %v7006, 0.0
    %v7124 = vmax.f32 %v7008, 0.0
    %v7125 = vmax.f32 %v7059, 0.0
    %v7126 = vmax.f32 %v7061, 0.0
    %v7127 = vpack.c.bf16 %v7079, %v7063
    %v7128 = vpack.c.bf16 %v7080, %v7064
    %v7129 = vpack.c.bf16 %v7081, %v7065
    %v7130 = vpack.c.bf16 %v7082, %v7066
    %v7131 = vpack.c.bf16 %v7083, %v7067
    %v7132 = vpack.c.bf16 %v7084, %v7068
    %v7133 = vpack.c.bf16 %v7085, %v7069
    %v7134 = vpack.c.bf16 %v7086, %v7070
    %v7135 = vpack.c.bf16 %v7087, %v7071
    %v7136 = vpack.c.bf16 %v7088, %v7072
    %v7137 = vpack.c.bf16 %v7089, %v7073
    %v7138 = vpack.c.bf16 %v7090, %v7074
    %v7139 = vpack.c.bf16 %v7091, %v7075
    %v7140 = vpack.c.bf16 %v7092, %v7076
    %v7141 = vpack.c.bf16 %v7093, %v7077
    %v7142 = vpack.c.bf16 %v7094, %v7078
    %v7143 = vpack.c.bf16 %v7111, %v7095
    %v7144 = vpack.c.bf16 %v7112, %v7096
    %v7145 = vpack.c.bf16 %v7113, %v7097
    %v7146 = vpack.c.bf16 %v7114, %v7098
    %v7147 = vpack.c.bf16 %v7115, %v7099
    %v7148 = vpack.c.bf16 %v7116, %v7100
    %v7149 = vpack.c.bf16 %v7117, %v7101
    %v7150 = vpack.c.bf16 %v7118, %v7102
    %v7151 = vpack.c.bf16 %v7119, %v7103
    %v7152 = vpack.c.bf16 %v7120, %v7104
    %v7153 = vpack.c.bf16 %v7121, %v7105
    %v7154 = vpack.c.bf16 %v7122, %v7106
    %v7155 = vpack.c.bf16 %v7123, %v7107
    %v7156 = vpack.c.bf16 %v7124, %v7108
    %v7157 = vpack.c.bf16 %v7125, %v7109
    %v7158 = vpack.c.bf16 %v7126, %v7110
    %s7159 = scalar_lea.vmem [#allocation14], 1024
    %v7160 = vld [vmem:[%s7159] sm:$0xf]
    %v7161 = vld [vmem:[%s7159 + $0x4] sm:$0xf]
    %v7162 = vld [vmem:[%s7159 + $0x8] sm:$0xf]
    %v7163 = vld [vmem:[%s7159 + $0xc] sm:$0xf]
    %v7164 = vld [vmem:[%s7159 + $0x10] sm:$0xf]
    %v7165 = vld [vmem:[%s7159 + $0x14] sm:$0xf]
    %v7166 = vld [vmem:[%s7159 + $0x18] sm:$0xf]
    %v7167 = vld [vmem:[%s7159 + $0x1c] sm:$0xf]
    %v7168 = vld [vmem:[%s7159 + $0x20] sm:$0xf]
    %v7169 = vld [vmem:[%s7159 + $0x24] sm:$0xf]
    %v7170 = vld [vmem:[%s7159 + $0x28] sm:$0xf]
    %v7171 = vld [vmem:[%s7159 + $0x2c] sm:$0xf]
    %v7172 = vld [vmem:[%s7159 + $0x30] sm:$0xf]
    %v7173 = vld [vmem:[%s7159 + $0x34] sm:$0xf]
    %v7174 = vld [vmem:[%s7159 + $0x38] sm:$0xf]
    %v7175 = vld [vmem:[%s7159 + $0x3c] sm:$0xf]
    %v7176 = vld [vmem:[%s7159 + $0x40] sm:$0xf]
    %v7177 = vld [vmem:[%s7159 + $0x44] sm:$0xf]
    %v7178 = vld [vmem:[%s7159 + $0x48] sm:$0xf]
    %v7179 = vld [vmem:[%s7159 + $0x4c] sm:$0xf]
    %v7180 = vld [vmem:[%s7159 + $0x50] sm:$0xf]
    %v7181 = vld [vmem:[%s7159 + $0x54] sm:$0xf]
    %v7182 = vld [vmem:[%s7159 + $0x58] sm:$0xf]
    %v7183 = vld [vmem:[%s7159 + $0x5c] sm:$0xf]
    %v7184 = vld [vmem:[%s7159 + $0x60] sm:$0xf]
    %v7185 = vld [vmem:[%s7159 + $0x64] sm:$0xf]
    %v7186 = vld [vmem:[%s7159 + $0x68] sm:$0xf]
    %v7187 = vld [vmem:[%s7159 + $0x6c] sm:$0xf]
    %v7188 = vld [vmem:[%s7159 + $0x70] sm:$0xf]
    %v7189 = vld [vmem:[%s7159 + $0x74] sm:$0xf]
    %v7190 = vld [vmem:[%s7159 + $0x78] sm:$0xf]
    %v7191 = vld [vmem:[%s7159 + $0x7c] sm:$0xf]
    %v7192 = vld [vmem:[%s7159 + $0x80] sm:$0xf]
    %v7193 = vld [vmem:[%s7159 + $0x84] sm:$0xf]
    %v7194 = vld [vmem:[%s7159 + $0x88] sm:$0xf]
    %v7195 = vld [vmem:[%s7159 + $0x8c] sm:$0xf]
    %v7196 = vld [vmem:[%s7159 + $0x90] sm:$0xf]
    %v7197 = vld [vmem:[%s7159 + $0x94] sm:$0xf]
    %v7198 = vld [vmem:[%s7159 + $0x98] sm:$0xf]
    %v7199 = vld [vmem:[%s7159 + $0x9c] sm:$0xf]
    %v7200 = vld [vmem:[%s7159 + $0xa0] sm:$0xf]
    %v7201 = vld [vmem:[%s7159 + $0xa4] sm:$0xf]
    %v7202 = vld [vmem:[%s7159 + $0xa8] sm:$0xf]
    %v7203 = vld [vmem:[%s7159 + $0xac] sm:$0xf]
    %v7204 = vld [vmem:[%s7159 + $0xb0] sm:$0xf]
    %v7205 = vld [vmem:[%s7159 + $0xb4] sm:$0xf]
    %v7206 = vld [vmem:[%s7159 + $0xb8] sm:$0xf]
    %v7207 = vld [vmem:[%s7159 + $0xbc] sm:$0xf]
    %v7208 = vld [vmem:[%s7159 + $0xc0] sm:$0xf]
    %v7209 = vld [vmem:[%s7159 + $0xc4] sm:$0xf]
    %v7210 = vld [vmem:[%s7159 + $0xc8] sm:$0xf]
    %v7211 = vld [vmem:[%s7159 + $0xcc] sm:$0xf]
    %v7212 = vld [vmem:[%s7159 + $0xd0] sm:$0xf]
    %v7213 = vld [vmem:[%s7159 + $0xd4] sm:$0xf]
    %v7214 = vld [vmem:[%s7159 + $0xd8] sm:$0xf]
    %v7215 = vld [vmem:[%s7159 + $0xdc] sm:$0xf]
    %v7216 = vld [vmem:[%s7159 + $0xe0] sm:$0xf]
    %v7217 = vld [vmem:[%s7159 + $0xe4] sm:$0xf]
    %v7218 = vld [vmem:[%s7159 + $0xe8] sm:$0xf]
    %v7219 = vld [vmem:[%s7159 + $0xec] sm:$0xf]
    %v7220 = vld [vmem:[%s7159 + $0xf0] sm:$0xf]
    %v7221 = vld [vmem:[%s7159 + $0xf4] sm:$0xf]
    %v7222 = vld [vmem:[%s7159 + $0xf8] sm:$0xf]
    %v7223 = vld [vmem:[%s7159 + $0xfc] sm:$0xf]
    %v7224 = vld [vmem:[%s7159 + $0x100] sm:$0xf]
    %v7225 = vld [vmem:[%s7159 + $0x104] sm:$0xf]
    %v7226 = vld [vmem:[%s7159 + $0x108] sm:$0xf]
    %v7227 = vld [vmem:[%s7159 + $0x10c] sm:$0xf]
    %v7228 = vld [vmem:[%s7159 + $0x110] sm:$0xf]
    %v7229 = vld [vmem:[%s7159 + $0x114] sm:$0xf]
    %v7230 = vld [vmem:[%s7159 + $0x118] sm:$0xf]
    %v7231 = vld [vmem:[%s7159 + $0x11c] sm:$0xf]
    %v7232 = vld [vmem:[%s7159 + $0x120] sm:$0xf]
    %v7233 = vld [vmem:[%s7159 + $0x124] sm:$0xf]
    %v7234 = vld [vmem:[%s7159 + $0x128] sm:$0xf]
    %v7235 = vld [vmem:[%s7159 + $0x12c] sm:$0xf]
    %v7236 = vld [vmem:[%s7159 + $0x130] sm:$0xf]
    %v7237 = vld [vmem:[%s7159 + $0x134] sm:$0xf]
    %v7238 = vld [vmem:[%s7159 + $0x138] sm:$0xf]
    %v7239 = vld [vmem:[%s7159 + $0x13c] sm:$0xf]
    %v7240 = vld [vmem:[%s7159 + $0x140] sm:$0xf]
    %v7241 = vld [vmem:[%s7159 + $0x144] sm:$0xf]
    %v7242 = vld [vmem:[%s7159 + $0x148] sm:$0xf]
    %v7243 = vld [vmem:[%s7159 + $0x14c] sm:$0xf]
    %v7244 = vld [vmem:[%s7159 + $0x150] sm:$0xf]
    %v7245 = vld [vmem:[%s7159 + $0x154] sm:$0xf]
    %v7246 = vld [vmem:[%s7159 + $0x158] sm:$0xf]
    %v7247 = vld [vmem:[%s7159 + $0x15c] sm:$0xf]
    %v7248 = vld [vmem:[%s7159 + $0x160] sm:$0xf]
    %v7249 = vld [vmem:[%s7159 + $0x164] sm:$0xf]
    %v7250 = vld [vmem:[%s7159 + $0x168] sm:$0xf]
    %v7251 = vld [vmem:[%s7159 + $0x16c] sm:$0xf]
    %v7252 = vld [vmem:[%s7159 + $0x170] sm:$0xf]
    %v7253 = vld [vmem:[%s7159 + $0x174] sm:$0xf]
    %v7254 = vld [vmem:[%s7159 + $0x178] sm:$0xf]
    %v7255 = vld [vmem:[%s7159 + $0x17c] sm:$0xf]
    %v7256 = vld [vmem:[%s7159 + $0x180] sm:$0xf]
    %v7257 = vld [vmem:[%s7159 + $0x184] sm:$0xf]
    %v7258 = vld [vmem:[%s7159 + $0x188] sm:$0xf]
    %v7259 = vld [vmem:[%s7159 + $0x18c] sm:$0xf]
    %v7260 = vld [vmem:[%s7159 + $0x190] sm:$0xf]
    %v7261 = vld [vmem:[%s7159 + $0x194] sm:$0xf]
    %v7262 = vld [vmem:[%s7159 + $0x198] sm:$0xf]
    %v7263 = vld [vmem:[%s7159 + $0x19c] sm:$0xf]
    %v7264 = vld [vmem:[%s7159 + $0x1a0] sm:$0xf]
    %v7265 = vld [vmem:[%s7159 + $0x1a4] sm:$0xf]
    %v7266 = vld [vmem:[%s7159 + $0x1a8] sm:$0xf]
    %v7267 = vld [vmem:[%s7159 + $0x1ac] sm:$0xf]
    %v7268 = vld [vmem:[%s7159 + $0x1b0] sm:$0xf]
    %v7269 = vld [vmem:[%s7159 + $0x1b4] sm:$0xf]
    %v7270 = vld [vmem:[%s7159 + $0x1b8] sm:$0xf]
    %v7271 = vld [vmem:[%s7159 + $0x1bc] sm:$0xf]
    %v7272 = vld [vmem:[%s7159 + $0x1c0] sm:$0xf]
    %v7273 = vld [vmem:[%s7159 + $0x1c4] sm:$0xf]
    %v7274 = vld [vmem:[%s7159 + $0x1c8] sm:$0xf]
    %v7275 = vld [vmem:[%s7159 + $0x1cc] sm:$0xf]
    %v7276 = vld [vmem:[%s7159 + $0x1d0] sm:$0xf]
    %v7277 = vld [vmem:[%s7159 + $0x1d4] sm:$0xf]
    %v7278 = vld [vmem:[%s7159 + $0x1d8] sm:$0xf]
    %v7279 = vld [vmem:[%s7159 + $0x1dc] sm:$0xf]
    %v7280 = vld [vmem:[%s7159 + $0x1e0] sm:$0xf]
    %v7281 = vld [vmem:[%s7159 + $0x1e4] sm:$0xf]
    %v7282 = vld [vmem:[%s7159 + $0x1e8] sm:$0xf]
    %v7283 = vld [vmem:[%s7159 + $0x1ec] sm:$0xf]
    %v7284 = vld [vmem:[%s7159 + $0x1f0] sm:$0xf]
    %v7285 = vld [vmem:[%s7159 + $0x1f4] sm:$0xf]
    %v7286 = vld [vmem:[%s7159 + $0x1f8] sm:$0xf]
    %v7287 = vld [vmem:[%s7159 + $0x1fc] sm:$0xf]
    %v7288 = vld [vmem:[%s7159 + $0x200] sm:$0xf]
    %v7289 = vld [vmem:[%s7159 + $0x204] sm:$0xf]
    %v7290 = vld [vmem:[%s7159 + $0x208] sm:$0xf]
    %v7291 = vld [vmem:[%s7159 + $0x20c] sm:$0xf]
    %v7292 = vld [vmem:[%s7159 + $0x210] sm:$0xf]
    %v7293 = vld [vmem:[%s7159 + $0x214] sm:$0xf]
    %v7294 = vld [vmem:[%s7159 + $0x218] sm:$0xf]
    %v7295 = vld [vmem:[%s7159 + $0x21c] sm:$0xf]
    %v7296 = vld [vmem:[%s7159 + $0x220] sm:$0xf]
    %v7297 = vld [vmem:[%s7159 + $0x224] sm:$0xf]
    %v7298 = vld [vmem:[%s7159 + $0x228] sm:$0xf]
    %v7299 = vld [vmem:[%s7159 + $0x22c] sm:$0xf]
    %v7300 = vld [vmem:[%s7159 + $0x230] sm:$0xf]
    %v7301 = vld [vmem:[%s7159 + $0x234] sm:$0xf]
    %v7302 = vld [vmem:[%s7159 + $0x238] sm:$0xf]
    %v7303 = vld [vmem:[%s7159 + $0x23c] sm:$0xf]
    %v7304 = vld [vmem:[%s7159 + $0x240] sm:$0xf]
    %v7305 = vld [vmem:[%s7159 + $0x244] sm:$0xf]
    %v7306 = vld [vmem:[%s7159 + $0x248] sm:$0xf]
    %v7307 = vld [vmem:[%s7159 + $0x24c] sm:$0xf]
    %v7308 = vld [vmem:[%s7159 + $0x250] sm:$0xf]
    %v7309 = vld [vmem:[%s7159 + $0x254] sm:$0xf]
    %v7310 = vld [vmem:[%s7159 + $0x258] sm:$0xf]
    %v7311 = vld [vmem:[%s7159 + $0x25c] sm:$0xf]
    %v7312 = vld [vmem:[%s7159 + $0x260] sm:$0xf]
    %v7313 = vld [vmem:[%s7159 + $0x264] sm:$0xf]
    %v7314 = vld [vmem:[%s7159 + $0x268] sm:$0xf]
    %v7315 = vld [vmem:[%s7159 + $0x26c] sm:$0xf]
    %v7316 = vld [vmem:[%s7159 + $0x270] sm:$0xf]
    %v7317 = vld [vmem:[%s7159 + $0x274] sm:$0xf]
    %v7318 = vld [vmem:[%s7159 + $0x278] sm:$0xf]
    %v7319 = vld [vmem:[%s7159 + $0x27c] sm:$0xf]
    %v7320 = vld [vmem:[%s7159 + $0x280] sm:$0xf]
    %v7321 = vld [vmem:[%s7159 + $0x284] sm:$0xf]
    %v7322 = vld [vmem:[%s7159 + $0x288] sm:$0xf]
    %v7323 = vld [vmem:[%s7159 + $0x28c] sm:$0xf]
    %v7324 = vld [vmem:[%s7159 + $0x290] sm:$0xf]
    %v7325 = vld [vmem:[%s7159 + $0x294] sm:$0xf]
    %v7326 = vld [vmem:[%s7159 + $0x298] sm:$0xf]
    %v7327 = vld [vmem:[%s7159 + $0x29c] sm:$0xf]
    %v7328 = vld [vmem:[%s7159 + $0x2a0] sm:$0xf]
    %v7329 = vld [vmem:[%s7159 + $0x2a4] sm:$0xf]
    %v7330 = vld [vmem:[%s7159 + $0x2a8] sm:$0xf]
    %v7331 = vld [vmem:[%s7159 + $0x2ac] sm:$0xf]
    %v7332 = vld [vmem:[%s7159 + $0x2b0] sm:$0xf]
    %v7333 = vld [vmem:[%s7159 + $0x2b4] sm:$0xf]
    %v7334 = vld [vmem:[%s7159 + $0x2b8] sm:$0xf]
    %v7335 = vld [vmem:[%s7159 + $0x2bc] sm:$0xf]
    %v7336 = vld [vmem:[%s7159 + $0x2c0] sm:$0xf]
    %v7337 = vld [vmem:[%s7159 + $0x2c4] sm:$0xf]
    %v7338 = vld [vmem:[%s7159 + $0x2c8] sm:$0xf]
    %v7339 = vld [vmem:[%s7159 + $0x2cc] sm:$0xf]
    %v7340 = vld [vmem:[%s7159 + $0x2d0] sm:$0xf]
    %v7341 = vld [vmem:[%s7159 + $0x2d4] sm:$0xf]
    %v7342 = vld [vmem:[%s7159 + $0x2d8] sm:$0xf]
    %v7343 = vld [vmem:[%s7159 + $0x2dc] sm:$0xf]
    %v7344 = vld [vmem:[%s7159 + $0x2e0] sm:$0xf]
    %v7345 = vld [vmem:[%s7159 + $0x2e4] sm:$0xf]
    %v7346 = vld [vmem:[%s7159 + $0x2e8] sm:$0xf]
    %v7347 = vld [vmem:[%s7159 + $0x2ec] sm:$0xf]
    %v7348 = vld [vmem:[%s7159 + $0x2f0] sm:$0xf]
    %v7349 = vld [vmem:[%s7159 + $0x2f4] sm:$0xf]
    %v7350 = vld [vmem:[%s7159 + $0x2f8] sm:$0xf]
    %v7351 = vld [vmem:[%s7159 + $0x2fc] sm:$0xf]
    %v7352 = vld [vmem:[%s7159 + $0x300] sm:$0xf]
    %v7353 = vld [vmem:[%s7159 + $0x304] sm:$0xf]
    %v7354 = vld [vmem:[%s7159 + $0x308] sm:$0xf]
    %v7355 = vld [vmem:[%s7159 + $0x30c] sm:$0xf]
    %v7356 = vld [vmem:[%s7159 + $0x310] sm:$0xf]
    %v7357 = vld [vmem:[%s7159 + $0x314] sm:$0xf]
    %v7358 = vld [vmem:[%s7159 + $0x318] sm:$0xf]
    %v7359 = vld [vmem:[%s7159 + $0x31c] sm:$0xf]
    %v7360 = vld [vmem:[%s7159 + $0x320] sm:$0xf]
    %v7361 = vld [vmem:[%s7159 + $0x324] sm:$0xf]
    %v7362 = vld [vmem:[%s7159 + $0x328] sm:$0xf]
    %v7363 = vld [vmem:[%s7159 + $0x32c] sm:$0xf]
    %v7364 = vld [vmem:[%s7159 + $0x330] sm:$0xf]
    %v7365 = vld [vmem:[%s7159 + $0x334] sm:$0xf]
    %v7366 = vld [vmem:[%s7159 + $0x338] sm:$0xf]
    %v7367 = vld [vmem:[%s7159 + $0x33c] sm:$0xf]
    %v7368 = vld [vmem:[%s7159 + $0x340] sm:$0xf]
    %v7369 = vld [vmem:[%s7159 + $0x344] sm:$0xf]
    %v7370 = vld [vmem:[%s7159 + $0x348] sm:$0xf]
    %v7371 = vld [vmem:[%s7159 + $0x34c] sm:$0xf]
    %v7372 = vld [vmem:[%s7159 + $0x350] sm:$0xf]
    %v7373 = vld [vmem:[%s7159 + $0x354] sm:$0xf]
    %v7374 = vld [vmem:[%s7159 + $0x358] sm:$0xf]
    %v7375 = vld [vmem:[%s7159 + $0x35c] sm:$0xf]
    %v7376 = vld [vmem:[%s7159 + $0x360] sm:$0xf]
    %v7377 = vld [vmem:[%s7159 + $0x364] sm:$0xf]
    %v7378 = vld [vmem:[%s7159 + $0x368] sm:$0xf]
    %v7379 = vld [vmem:[%s7159 + $0x36c] sm:$0xf]
    %v7380 = vld [vmem:[%s7159 + $0x370] sm:$0xf]
    %v7381 = vld [vmem:[%s7159 + $0x374] sm:$0xf]
    %v7382 = vld [vmem:[%s7159 + $0x378] sm:$0xf]
    %v7383 = vld [vmem:[%s7159 + $0x37c] sm:$0xf]
    %v7384 = vld [vmem:[%s7159 + $0x380] sm:$0xf]
    %v7385 = vld [vmem:[%s7159 + $0x384] sm:$0xf]
    %v7386 = vld [vmem:[%s7159 + $0x388] sm:$0xf]
    %v7387 = vld [vmem:[%s7159 + $0x38c] sm:$0xf]
    %v7388 = vld [vmem:[%s7159 + $0x390] sm:$0xf]
    %v7389 = vld [vmem:[%s7159 + $0x394] sm:$0xf]
    %v7390 = vld [vmem:[%s7159 + $0x398] sm:$0xf]
    %v7391 = vld [vmem:[%s7159 + $0x39c] sm:$0xf]
    %v7392 = vld [vmem:[%s7159 + $0x3a0] sm:$0xf]
    %v7393 = vld [vmem:[%s7159 + $0x3a4] sm:$0xf]
    %v7394 = vld [vmem:[%s7159 + $0x3a8] sm:$0xf]
    %v7395 = vld [vmem:[%s7159 + $0x3ac] sm:$0xf]
    %v7396 = vld [vmem:[%s7159 + $0x3b0] sm:$0xf]
    %v7397 = vld [vmem:[%s7159 + $0x3b4] sm:$0xf]
    %v7398 = vld [vmem:[%s7159 + $0x3b8] sm:$0xf]
    %v7399 = vld [vmem:[%s7159 + $0x3bc] sm:$0xf]
    %v7400 = vld [vmem:[%s7159 + $0x3c0] sm:$0xf]
    %v7401 = vld [vmem:[%s7159 + $0x3c4] sm:$0xf]
    %v7402 = vld [vmem:[%s7159 + $0x3c8] sm:$0xf]
    %v7403 = vld [vmem:[%s7159 + $0x3cc] sm:$0xf]
    %v7404 = vld [vmem:[%s7159 + $0x3d0] sm:$0xf]
    %v7405 = vld [vmem:[%s7159 + $0x3d4] sm:$0xf]
    %v7406 = vld [vmem:[%s7159 + $0x3d8] sm:$0xf]
    %v7407 = vld [vmem:[%s7159 + $0x3dc] sm:$0xf]
    %v7408 = vld [vmem:[%s7159 + $0x3e0] sm:$0xf]
    %v7409 = vld [vmem:[%s7159 + $0x3e4] sm:$0xf]
    %v7410 = vld [vmem:[%s7159 + $0x3e8] sm:$0xf]
    %v7411 = vld [vmem:[%s7159 + $0x3ec] sm:$0xf]
    %v7412 = vld [vmem:[%s7159 + $0x3f0] sm:$0xf]
    %v7413 = vld [vmem:[%s7159 + $0x3f4] sm:$0xf]
    %v7414 = vld [vmem:[%s7159 + $0x3f8] sm:$0xf]
    %v7415 = vld [vmem:[%s7159 + $0x3fc] sm:$0xf]
    %s7416 = scalar_lea.vmem %s15, 1
    %v7417 = vld [vmem:[%s7416] sm:$0x1]
    %v7419 = vlaneseq
    %v7420 = vshrl.u32 %v7419, 7
    %v7421 = vsub.s32 0, %v7420
    %v7422 = vrot.slane %v7417, %v7421
    %v7680 = vunpack.c.l.b16 %v7160
    %v7681 = vunpack.c.l.b16 %v7161
    %v7682 = vunpack.c.l.b16 %v7162
    %v7683 = vunpack.c.l.b16 %v7163
    %v7684 = vunpack.c.l.b16 %v7164
    %v7685 = vunpack.c.l.b16 %v7165
    %v7686 = vunpack.c.l.b16 %v7166
    %v7687 = vunpack.c.l.b16 %v7167
    %v7688 = vunpack.c.l.b16 %v7168
    %v7689 = vunpack.c.l.b16 %v7169
    %v7690 = vunpack.c.l.b16 %v7170
    %v7691 = vunpack.c.l.b16 %v7171
    %v7692 = vunpack.c.l.b16 %v7172
    %v7693 = vunpack.c.l.b16 %v7173
    %v7694 = vunpack.c.l.b16 %v7174
    %v7695 = vunpack.c.l.b16 %v7175
    %v7696 = vunpack.c.l.b16 %v7176
    %v7697 = vunpack.c.l.b16 %v7177
    %v7698 = vunpack.c.l.b16 %v7178
    %v7699 = vunpack.c.l.b16 %v7179
    %v7700 = vunpack.c.l.b16 %v7180
    %v7701 = vunpack.c.l.b16 %v7181
    %v7702 = vunpack.c.l.b16 %v7182
    %v7703 = vunpack.c.l.b16 %v7183
    %v7704 = vunpack.c.l.b16 %v7184
    %v7705 = vunpack.c.l.b16 %v7185
    %v7706 = vunpack.c.l.b16 %v7186
    %v7707 = vunpack.c.l.b16 %v7187
    %v7708 = vunpack.c.l.b16 %v7188
    %v7709 = vunpack.c.l.b16 %v7189
    %v7710 = vunpack.c.l.b16 %v7190
    %v7711 = vunpack.c.l.b16 %v7191
    %v7712 = vunpack.c.l.b16 %v7192
    %v7713 = vunpack.c.l.b16 %v7193
    %v7714 = vunpack.c.l.b16 %v7194
    %v7715 = vunpack.c.l.b16 %v7195
    %v7716 = vunpack.c.l.b16 %v7196
    %v7717 = vunpack.c.l.b16 %v7197
    %v7718 = vunpack.c.l.b16 %v7198
    %v7719 = vunpack.c.l.b16 %v7199
    %v7720 = vunpack.c.l.b16 %v7200
    %v7721 = vunpack.c.l.b16 %v7201
    %v7722 = vunpack.c.l.b16 %v7202
    %v7723 = vunpack.c.l.b16 %v7203
    %v7724 = vunpack.c.l.b16 %v7204
    %v7725 = vunpack.c.l.b16 %v7205
    %v7726 = vunpack.c.l.b16 %v7206
    %v7727 = vunpack.c.l.b16 %v7207
    %v7728 = vunpack.c.l.b16 %v7208
    %v7729 = vunpack.c.l.b16 %v7209
    %v7730 = vunpack.c.l.b16 %v7210
    %v7731 = vunpack.c.l.b16 %v7211
    %v7732 = vunpack.c.l.b16 %v7212
    %v7733 = vunpack.c.l.b16 %v7213
    %v7734 = vunpack.c.l.b16 %v7214
    %v7735 = vunpack.c.l.b16 %v7215
    %v7736 = vunpack.c.l.b16 %v7216
    %v7737 = vunpack.c.l.b16 %v7217
    %v7738 = vunpack.c.l.b16 %v7218
    %v7739 = vunpack.c.l.b16 %v7219
    %v7740 = vunpack.c.l.b16 %v7220
    %v7741 = vunpack.c.l.b16 %v7221
    %v7742 = vunpack.c.l.b16 %v7222
    %v7743 = vunpack.c.l.b16 %v7223
    %v7744 = vunpack.c.l.b16 %v7224
    %v7745 = vunpack.c.l.b16 %v7225
    %v7746 = vunpack.c.l.b16 %v7226
    %v7747 = vunpack.c.l.b16 %v7227
    %v7748 = vunpack.c.l.b16 %v7228
    %v7749 = vunpack.c.l.b16 %v7229
    %v7750 = vunpack.c.l.b16 %v7230
    %v7751 = vunpack.c.l.b16 %v7231
    %v7752 = vunpack.c.l.b16 %v7232
    %v7753 = vunpack.c.l.b16 %v7233
    %v7754 = vunpack.c.l.b16 %v7234
    %v7755 = vunpack.c.l.b16 %v7235
    %v7756 = vunpack.c.l.b16 %v7236
    %v7757 = vunpack.c.l.b16 %v7237
    %v7758 = vunpack.c.l.b16 %v7238
    %v7759 = vunpack.c.l.b16 %v7239
    %v7760 = vunpack.c.l.b16 %v7240
    %v7761 = vunpack.c.l.b16 %v7241
    %v7762 = vunpack.c.l.b16 %v7242
    %v7763 = vunpack.c.l.b16 %v7243
    %v7764 = vunpack.c.l.b16 %v7244
    %v7765 = vunpack.c.l.b16 %v7245
    %v7766 = vunpack.c.l.b16 %v7246
    %v7767 = vunpack.c.l.b16 %v7247
    %v7768 = vunpack.c.l.b16 %v7248
    %v7769 = vunpack.c.l.b16 %v7249
    %v7770 = vunpack.c.l.b16 %v7250
    %v7771 = vunpack.c.l.b16 %v7251
    %v7772 = vunpack.c.l.b16 %v7252
    %v7773 = vunpack.c.l.b16 %v7253
    %v7774 = vunpack.c.l.b16 %v7254
    %v7775 = vunpack.c.l.b16 %v7255
    %v7776 = vunpack.c.l.b16 %v7256
    %v7777 = vunpack.c.l.b16 %v7257
    %v7778 = vunpack.c.l.b16 %v7258
    %v7779 = vunpack.c.l.b16 %v7259
    %v7780 = vunpack.c.l.b16 %v7260
    %v7781 = vunpack.c.l.b16 %v7261
    %v7782 = vunpack.c.l.b16 %v7262
    %v7783 = vunpack.c.l.b16 %v7263
    %v7784 = vunpack.c.l.b16 %v7264
    %v7785 = vunpack.c.l.b16 %v7265
    %v7786 = vunpack.c.l.b16 %v7266
    %v7787 = vunpack.c.l.b16 %v7267
    %v7788 = vunpack.c.l.b16 %v7268
    %v7789 = vunpack.c.l.b16 %v7269
    %v7790 = vunpack.c.l.b16 %v7270
    %v7791 = vunpack.c.l.b16 %v7271
    %v7792 = vunpack.c.l.b16 %v7272
    %v7793 = vunpack.c.l.b16 %v7273
    %v7794 = vunpack.c.l.b16 %v7274
    %v7795 = vunpack.c.l.b16 %v7275
    %v7796 = vunpack.c.l.b16 %v7276
    %v7797 = vunpack.c.l.b16 %v7277
    %v7798 = vunpack.c.l.b16 %v7278
    %v7799 = vunpack.c.l.b16 %v7279
    %v7800 = vunpack.c.l.b16 %v7280
    %v7801 = vunpack.c.l.b16 %v7281
    %v7802 = vunpack.c.l.b16 %v7282
    %v7803 = vunpack.c.l.b16 %v7283
    %v7804 = vunpack.c.l.b16 %v7284
    %v7805 = vunpack.c.l.b16 %v7285
    %v7806 = vunpack.c.l.b16 %v7286
    %v7807 = vunpack.c.l.b16 %v7287
    %v7808 = vunpack.c.l.b16 %v7288
    %v7809 = vunpack.c.l.b16 %v7289
    %v7810 = vunpack.c.l.b16 %v7290
    %v7811 = vunpack.c.l.b16 %v7291
    %v7812 = vunpack.c.l.b16 %v7292
    %v7813 = vunpack.c.l.b16 %v7293
    %v7814 = vunpack.c.l.b16 %v7294
    %v7815 = vunpack.c.l.b16 %v7295
    %v7816 = vunpack.c.l.b16 %v7296
    %v7817 = vunpack.c.l.b16 %v7297
    %v7818 = vunpack.c.l.b16 %v7298
    %v7819 = vunpack.c.l.b16 %v7299
    %v7820 = vunpack.c.l.b16 %v7300
    %v7821 = vunpack.c.l.b16 %v7301
    %v7822 = vunpack.c.l.b16 %v7302
    %v7823 = vunpack.c.l.b16 %v7303
    %v7824 = vunpack.c.l.b16 %v7304
    %v7825 = vunpack.c.l.b16 %v7305
    %v7826 = vunpack.c.l.b16 %v7306
    %v7827 = vunpack.c.l.b16 %v7307
    %v7828 = vunpack.c.l.b16 %v7308
    %v7829 = vunpack.c.l.b16 %v7309
    %v7830 = vunpack.c.l.b16 %v7310
    %v7831 = vunpack.c.l.b16 %v7311
    %v7832 = vunpack.c.l.b16 %v7312
    %v7833 = vunpack.c.l.b16 %v7313
    %v7834 = vunpack.c.l.b16 %v7314
    %v7835 = vunpack.c.l.b16 %v7315
    %v7836 = vunpack.c.l.b16 %v7316
    %v7837 = vunpack.c.l.b16 %v7317
    %v7838 = vunpack.c.l.b16 %v7318
    %v7839 = vunpack.c.l.b16 %v7319
    %v7840 = vunpack.c.l.b16 %v7320
    %v7841 = vunpack.c.l.b16 %v7321
    %v7842 = vunpack.c.l.b16 %v7322
    %v7843 = vunpack.c.l.b16 %v7323
    %v7844 = vunpack.c.l.b16 %v7324
    %v7845 = vunpack.c.l.b16 %v7325
    %v7846 = vunpack.c.l.b16 %v7326
    %v7847 = vunpack.c.l.b16 %v7327
    %v7848 = vunpack.c.l.b16 %v7328
    %v7849 = vunpack.c.l.b16 %v7329
    %v7850 = vunpack.c.l.b16 %v7330
    %v7851 = vunpack.c.l.b16 %v7331
    %v7852 = vunpack.c.l.b16 %v7332
    %v7853 = vunpack.c.l.b16 %v7333
    %v7854 = vunpack.c.l.b16 %v7334
    %v7855 = vunpack.c.l.b16 %v7335
    %v7856 = vunpack.c.l.b16 %v7336
    %v7857 = vunpack.c.l.b16 %v7337
    %v7858 = vunpack.c.l.b16 %v7338
    %v7859 = vunpack.c.l.b16 %v7339
    %v7860 = vunpack.c.l.b16 %v7340
    %v7861 = vunpack.c.l.b16 %v7341
    %v7862 = vunpack.c.l.b16 %v7342
    %v7863 = vunpack.c.l.b16 %v7343
    %v7864 = vunpack.c.l.b16 %v7344
    %v7865 = vunpack.c.l.b16 %v7345
    %v7866 = vunpack.c.l.b16 %v7346
    %v7867 = vunpack.c.l.b16 %v7347
    %v7868 = vunpack.c.l.b16 %v7348
    %v7869 = vunpack.c.l.b16 %v7349
    %v7870 = vunpack.c.l.b16 %v7350
    %v7871 = vunpack.c.l.b16 %v7351
    %v7872 = vunpack.c.l.b16 %v7352
    %v7873 = vunpack.c.l.b16 %v7353
    %v7874 = vunpack.c.l.b16 %v7354
    %v7875 = vunpack.c.l.b16 %v7355
    %v7876 = vunpack.c.l.b16 %v7356
    %v7877 = vunpack.c.l.b16 %v7357
    %v7878 = vunpack.c.l.b16 %v7358
    %v7879 = vunpack.c.l.b16 %v7359
    %v7880 = vunpack.c.l.b16 %v7360
    %v7881 = vunpack.c.l.b16 %v7361
    %v7882 = vunpack.c.l.b16 %v7362
    %v7883 = vunpack.c.l.b16 %v7363
    %v7884 = vunpack.c.l.b16 %v7364
    %v7885 = vunpack.c.l.b16 %v7365
    %v7886 = vunpack.c.l.b16 %v7366
    %v7887 = vunpack.c.l.b16 %v7367
    %v7888 = vunpack.c.l.b16 %v7368
    %v7889 = vunpack.c.l.b16 %v7369
    %v7890 = vunpack.c.l.b16 %v7370
    %v7891 = vunpack.c.l.b16 %v7371
    %v7892 = vunpack.c.l.b16 %v7372
    %v7893 = vunpack.c.l.b16 %v7373
    %v7894 = vunpack.c.l.b16 %v7374
    %v7895 = vunpack.c.l.b16 %v7375
    %v7896 = vunpack.c.l.b16 %v7376
    %v7897 = vunpack.c.l.b16 %v7377
    %v7898 = vunpack.c.l.b16 %v7378
    %v7899 = vunpack.c.l.b16 %v7379
    %v7900 = vunpack.c.l.b16 %v7380
    %v7901 = vunpack.c.l.b16 %v7381
    %v7902 = vunpack.c.l.b16 %v7382
    %v7903 = vunpack.c.l.b16 %v7383
    %v7904 = vunpack.c.l.b16 %v7384
    %v7905 = vunpack.c.l.b16 %v7385
    %v7906 = vunpack.c.l.b16 %v7386
    %v7907 = vunpack.c.l.b16 %v7387
    %v7908 = vunpack.c.l.b16 %v7388
    %v7909 = vunpack.c.l.b16 %v7389
    %v7910 = vunpack.c.l.b16 %v7390
    %v7911 = vunpack.c.l.b16 %v7391
    %v7912 = vunpack.c.l.b16 %v7392
    %v7913 = vunpack.c.l.b16 %v7393
    %v7914 = vunpack.c.l.b16 %v7394
    %v7915 = vunpack.c.l.b16 %v7395
    %v7916 = vunpack.c.l.b16 %v7396
    %v7917 = vunpack.c.l.b16 %v7397
    %v7918 = vunpack.c.l.b16 %v7398
    %v7919 = vunpack.c.l.b16 %v7399
    %v7920 = vunpack.c.l.b16 %v7400
    %v7921 = vunpack.c.l.b16 %v7401
    %v7922 = vunpack.c.l.b16 %v7402
    %v7923 = vunpack.c.l.b16 %v7403
    %v7924 = vunpack.c.l.b16 %v7404
    %v7925 = vunpack.c.l.b16 %v7405
    %v7926 = vunpack.c.l.b16 %v7406
    %v7927 = vunpack.c.l.b16 %v7407
    %v7928 = vunpack.c.l.b16 %v7408
    %v7929 = vunpack.c.l.b16 %v7409
    %v7930 = vunpack.c.l.b16 %v7410
    %v7931 = vunpack.c.l.b16 %v7411
    %v7932 = vunpack.c.l.b16 %v7412
    %v7933 = vunpack.c.l.b16 %v7413
    %v7934 = vunpack.c.l.b16 %v7414
    %v7935 = vunpack.c.l.b16 %v7415
    %v7936 = vpack.c.b16 %v7681, %v7680
    %v7937 = vpack.c.b16 %v7683, %v7682
    %v7938 = vpack.c.b16 %v7685, %v7684
    %v7939 = vpack.c.b16 %v7687, %v7686
    %v7940 = vpack.c.b16 %v7689, %v7688
    %v7941 = vpack.c.b16 %v7691, %v7690
    %v7942 = vpack.c.b16 %v7693, %v7692
    %v7943 = vpack.c.b16 %v7695, %v7694
    %v7944 = vpack.c.b16 %v7697, %v7696
    %v7945 = vpack.c.b16 %v7699, %v7698
    %v7946 = vpack.c.b16 %v7701, %v7700
    %v7947 = vpack.c.b16 %v7703, %v7702
    %v7948 = vpack.c.b16 %v7705, %v7704
    %v7949 = vpack.c.b16 %v7707, %v7706
    %v7950 = vpack.c.b16 %v7709, %v7708
    %v7951 = vpack.c.b16 %v7711, %v7710
    %v7952 = vpack.c.b16 %v7713, %v7712
    %v7953 = vpack.c.b16 %v7715, %v7714
    %v7954 = vpack.c.b16 %v7717, %v7716
    %v7955 = vpack.c.b16 %v7719, %v7718
    %v7956 = vpack.c.b16 %v7721, %v7720
    %v7957 = vpack.c.b16 %v7723, %v7722
    %v7958 = vpack.c.b16 %v7725, %v7724
    %v7959 = vpack.c.b16 %v7727, %v7726
    %v7960 = vpack.c.b16 %v7729, %v7728
    %v7961 = vpack.c.b16 %v7731, %v7730
    %v7962 = vpack.c.b16 %v7733, %v7732
    %v7963 = vpack.c.b16 %v7735, %v7734
    %v7964 = vpack.c.b16 %v7737, %v7736
    %v7965 = vpack.c.b16 %v7739, %v7738
    %v7966 = vpack.c.b16 %v7741, %v7740
    %v7967 = vpack.c.b16 %v7743, %v7742
    %v7968 = vpack.c.b16 %v7745, %v7744
    %v7969 = vpack.c.b16 %v7747, %v7746
    %v7970 = vpack.c.b16 %v7749, %v7748
    %v7971 = vpack.c.b16 %v7751, %v7750
    %v7972 = vpack.c.b16 %v7753, %v7752
    %v7973 = vpack.c.b16 %v7755, %v7754
    %v7974 = vpack.c.b16 %v7757, %v7756
    %v7975 = vpack.c.b16 %v7759, %v7758
    %v7976 = vpack.c.b16 %v7761, %v7760
    %v7977 = vpack.c.b16 %v7763, %v7762
    %v7978 = vpack.c.b16 %v7765, %v7764
    %v7979 = vpack.c.b16 %v7767, %v7766
    %v7980 = vpack.c.b16 %v7769, %v7768
    %v7981 = vpack.c.b16 %v7771, %v7770
    %v7982 = vpack.c.b16 %v7773, %v7772
    %v7983 = vpack.c.b16 %v7775, %v7774
    %v7984 = vpack.c.b16 %v7777, %v7776
    %v7985 = vpack.c.b16 %v7779, %v7778
    %v7986 = vpack.c.b16 %v7781, %v7780
    %v7987 = vpack.c.b16 %v7783, %v7782
    %v7988 = vpack.c.b16 %v7785, %v7784
    %v7989 = vpack.c.b16 %v7787, %v7786
    %v7990 = vpack.c.b16 %v7789, %v7788
    %v7991 = vpack.c.b16 %v7791, %v7790
    %v7992 = vpack.c.b16 %v7793, %v7792
    %v7993 = vpack.c.b16 %v7795, %v7794
    %v7994 = vpack.c.b16 %v7797, %v7796
    %v7995 = vpack.c.b16 %v7799, %v7798
    %v7996 = vpack.c.b16 %v7801, %v7800
    %v7997 = vpack.c.b16 %v7803, %v7802
    %v7998 = vpack.c.b16 %v7805, %v7804
    %v7999 = vpack.c.b16 %v7807, %v7806
    %v8000 = vpack.c.b16 %v7809, %v7808
    %v8001 = vpack.c.b16 %v7811, %v7810
    %v8002 = vpack.c.b16 %v7813, %v7812
    %v8003 = vpack.c.b16 %v7815, %v7814
    %v8004 = vpack.c.b16 %v7817, %v7816
    %v8005 = vpack.c.b16 %v7819, %v7818
    %v8006 = vpack.c.b16 %v7821, %v7820
    %v8007 = vpack.c.b16 %v7823, %v7822
    %v8008 = vpack.c.b16 %v7825, %v7824
    %v8009 = vpack.c.b16 %v7827, %v7826
    %v8010 = vpack.c.b16 %v7829, %v7828
    %v8011 = vpack.c.b16 %v7831, %v7830
    %v8012 = vpack.c.b16 %v7833, %v7832
    %v8013 = vpack.c.b16 %v7835, %v7834
    %v8014 = vpack.c.b16 %v7837, %v7836
    %v8015 = vpack.c.b16 %v7839, %v7838
    %v8016 = vpack.c.b16 %v7841, %v7840
    %v8017 = vpack.c.b16 %v7843, %v7842
    %v8018 = vpack.c.b16 %v7845, %v7844
    %v8019 = vpack.c.b16 %v7847, %v7846
    %v8020 = vpack.c.b16 %v7849, %v7848
    %v8021 = vpack.c.b16 %v7851, %v7850
    %v8022 = vpack.c.b16 %v7853, %v7852
    %v8023 = vpack.c.b16 %v7855, %v7854
    %v8024 = vpack.c.b16 %v7857, %v7856
    %v8025 = vpack.c.b16 %v7859, %v7858
    %v8026 = vpack.c.b16 %v7861, %v7860
    %v8027 = vpack.c.b16 %v7863, %v7862
    %v8028 = vpack.c.b16 %v7865, %v7864
    %v8029 = vpack.c.b16 %v7867, %v7866
    %v8030 = vpack.c.b16 %v7869, %v7868
    %v8031 = vpack.c.b16 %v7871, %v7870
    %v8032 = vpack.c.b16 %v7873, %v7872
    %v8033 = vpack.c.b16 %v7875, %v7874
    %v8034 = vpack.c.b16 %v7877, %v7876
    %v8035 = vpack.c.b16 %v7879, %v7878
    %v8036 = vpack.c.b16 %v7881, %v7880
    %v8037 = vpack.c.b16 %v7883, %v7882
    %v8038 = vpack.c.b16 %v7885, %v7884
    %v8039 = vpack.c.b16 %v7887, %v7886
    %v8040 = vpack.c.b16 %v7889, %v7888
    %v8041 = vpack.c.b16 %v7891, %v7890
    %v8042 = vpack.c.b16 %v7893, %v7892
    %v8043 = vpack.c.b16 %v7895, %v7894
    %v8044 = vpack.c.b16 %v7897, %v7896
    %v8045 = vpack.c.b16 %v7899, %v7898
    %v8046 = vpack.c.b16 %v7901, %v7900
    %v8047 = vpack.c.b16 %v7903, %v7902
    %v8048 = vpack.c.b16 %v7905, %v7904
    %v8049 = vpack.c.b16 %v7907, %v7906
    %v8050 = vpack.c.b16 %v7909, %v7908
    %v8051 = vpack.c.b16 %v7911, %v7910
    %v8052 = vpack.c.b16 %v7913, %v7912
    %v8053 = vpack.c.b16 %v7915, %v7914
    %v8054 = vpack.c.b16 %v7917, %v7916
    %v8055 = vpack.c.b16 %v7919, %v7918
    %v8056 = vpack.c.b16 %v7921, %v7920
    %v8057 = vpack.c.b16 %v7923, %v7922
    %v8058 = vpack.c.b16 %v7925, %v7924
    %v8059 = vpack.c.b16 %v7927, %v7926
    %v8060 = vpack.c.b16 %v7929, %v7928
    %v8061 = vpack.c.b16 %v7931, %v7930
    %v8062 = vpack.c.b16 %v7933, %v7932
    %v8063 = vpack.c.b16 %v7935, %v7934
    %8192 = vmatprep.subr.bf16.mxu0 0
    %8193 = vmatpush1.bf16.msra.mxu0 %v7943
    %8194 = vmatprep.subr.bf16.mxu0 0
    %8195 = vmatpush1.bf16.msra.mxu0 %v7942
    %8196 = vmatprep.subr.bf16.mxu0 0
    %8197 = vmatpush1.bf16.msra.mxu0 %v7941
    %8198 = vmatprep.subr.bf16.mxu0 0
    %8199 = vmatpush1.bf16.msra.mxu0 %v7940
    %8200 = vmatprep.subr.bf16.mxu0 0
    %8201 = vmatpush1.bf16.msra.mxu0 %v7939
    %8202 = vmatprep.subr.bf16.mxu0 0
    %8203 = vmatpush1.bf16.msra.mxu0 %v7938
    %8204 = vmatprep.subr.bf16.mxu0 0
    %8205 = vmatpush1.bf16.msra.mxu0 %v7937
    %8206 = vmatprep.subr.bf16.mxu0 0
    %8207 = vmatpush1.bf16.msra.mxu0 %v7936
    %8208 = vmatprep.subr.bf16.mxu0 0
    %8209 = vmatpush2.bf16.msra.mxu0 %v7951
    %8210 = vmatprep.subr.bf16.mxu0 0
    %8211 = vmatpush2.bf16.msra.mxu0 %v7950
    %8212 = vmatprep.subr.bf16.mxu0 0
    %8213 = vmatpush2.bf16.msra.mxu0 %v7949
    %8214 = vmatprep.subr.bf16.mxu0 0
    %8215 = vmatpush2.bf16.msra.mxu0 %v7948
    %8216 = vmatprep.subr.bf16.mxu0 0
    %8217 = vmatpush2.bf16.msra.mxu0 %v7947
    %8218 = vmatprep.subr.bf16.mxu0 0
    %8219 = vmatpush2.bf16.msra.mxu0 %v7946
    %8220 = vmatprep.subr.bf16.mxu0 0
    %8221 = vmatpush2.bf16.msra.mxu0 %v7945
    %8222 = vmatprep.subr.bf16.mxu0 0
    %8223 = vmatpush2.bf16.msra.mxu0 %v7944
    %8224 = vmatprep.mubr.bf16.mxu0 %v7128
    %8225 = vmatmul.mubr.bf16.gmra.mxu0 %v7127
    %v8226 = vpop.f32.mrf.mxu0
    %v8227 = vadd.f32 %v7422, %v8226
    %v8228 = vpop.f32.mrf.mxu0
    %v8229 = vpop.f32.mrf.mxu0
    %v8230 = vadd.f32 %v7422, %v8229
    %v8231 = vpop.f32.mrf.mxu0
    %8232 = vmatprep.mubr.bf16.mxu0 %v7144
    %8233 = vmatmul.mubr.bf16.gmra.mxu0 %v7143
    %v8234 = vpop.f32.mrf.mxu0
    %v8235 = vadd.f32 %v7422, %v8234
    %v8236 = vpop.f32.mrf.mxu0
    %v8237 = vpop.f32.mrf.mxu0
    %v8238 = vadd.f32 %v7422, %v8237
    %v8239 = vpop.f32.mrf.mxu0
    %8240 = vdwg.mxu0
    %8241 = vmatprep.subr.bf16.mxu0 0
    %8242 = vmatpush1.bf16.msra.mxu0 %v7959
    %8243 = vmatprep.subr.bf16.mxu0 0
    %8244 = vmatpush1.bf16.msra.mxu0 %v7958
    %8245 = vmatprep.subr.bf16.mxu0 0
    %8246 = vmatpush1.bf16.msra.mxu0 %v7957
    %8247 = vmatprep.subr.bf16.mxu0 0
    %8248 = vmatpush1.bf16.msra.mxu0 %v7956
    %8249 = vmatprep.subr.bf16.mxu0 0
    %8250 = vmatpush1.bf16.msra.mxu0 %v7955
    %8251 = vmatprep.subr.bf16.mxu0 0
    %8252 = vmatpush1.bf16.msra.mxu0 %v7954
    %8253 = vmatprep.subr.bf16.mxu0 0
    %8254 = vmatpush1.bf16.msra.mxu0 %v7953
    %8255 = vmatprep.subr.bf16.mxu0 0
    %8256 = vmatpush1.bf16.msra.mxu0 %v7952
    %8257 = vmatprep.subr.bf16.mxu0 0
    %8258 = vmatpush2.bf16.msra.mxu0 %v7967
    %8259 = vmatprep.subr.bf16.mxu0 0
    %8260 = vmatpush2.bf16.msra.mxu0 %v7966
    %8261 = vmatprep.subr.bf16.mxu0 0
    %8262 = vmatpush2.bf16.msra.mxu0 %v7965
    %8263 = vmatprep.subr.bf16.mxu0 0
    %8264 = vmatpush2.bf16.msra.mxu0 %v7964
    %8265 = vmatprep.subr.bf16.mxu0 0
    %8266 = vmatpush2.bf16.msra.mxu0 %v7963
    %8267 = vmatprep.subr.bf16.mxu0 0
    %8268 = vmatpush2.bf16.msra.mxu0 %v7962
    %8269 = vmatprep.subr.bf16.mxu0 0
    %8270 = vmatpush2.bf16.msra.mxu0 %v7961
    %8271 = vmatprep.subr.bf16.mxu0 0
    %8272 = vmatpush2.bf16.msra.mxu0 %v7960
    %8273 = vmatprep.mubr.bf16.mxu0 %v7130
    %8274 = vmatmul.mubr.bf16.gmra.mxu0 %v7129
    %v8275 = vpop.f32.mrf.mxu0
    %v8276 = vadd.f32 %v8227, %v8275
    %v8277 = vpop.f32.mrf.mxu0
    %v8278 = vpop.f32.mrf.mxu0
    %v8279 = vadd.f32 %v8230, %v8278
    %v8280 = vpop.f32.mrf.mxu0
    %8281 = vmatprep.mubr.bf16.mxu0 %v7146
    %8282 = vmatmul.mubr.bf16.gmra.mxu0 %v7145
    %v8283 = vpop.f32.mrf.mxu0
    %v8284 = vadd.f32 %v8235, %v8283
    %v8285 = vpop.f32.mrf.mxu0
    %v8286 = vpop.f32.mrf.mxu0
    %v8287 = vadd.f32 %v8238, %v8286
    %v8288 = vpop.f32.mrf.mxu0
    %8289 = vdwg.mxu0
    %8290 = vmatprep.subr.bf16.mxu0 0
    %8291 = vmatpush1.bf16.msra.mxu0 %v7975
    %8292 = vmatprep.subr.bf16.mxu0 0
    %8293 = vmatpush1.bf16.msra.mxu0 %v7974
    %8294 = vmatprep.subr.bf16.mxu0 0
    %8295 = vmatpush1.bf16.msra.mxu0 %v7973
    %8296 = vmatprep.subr.bf16.mxu0 0
    %8297 = vmatpush1.bf16.msra.mxu0 %v7972
    %8298 = vmatprep.subr.bf16.mxu0 0
    %8299 = vmatpush1.bf16.msra.mxu0 %v7971
    %8300 = vmatprep.subr.bf16.mxu0 0
    %8301 = vmatpush1.bf16.msra.mxu0 %v7970
    %8302 = vmatprep.subr.bf16.mxu0 0
    %8303 = vmatpush1.bf16.msra.mxu0 %v7969
    %8304 = vmatprep.subr.bf16.mxu0 0
    %8305 = vmatpush1.bf16.msra.mxu0 %v7968
    %8306 = vmatprep.subr.bf16.mxu0 0
    %8307 = vmatpush2.bf16.msra.mxu0 %v7983
    %8308 = vmatprep.subr.bf16.mxu0 0
    %8309 = vmatpush2.bf16.msra.mxu0 %v7982
    %8310 = vmatprep.subr.bf16.mxu0 0
    %8311 = vmatpush2.bf16.msra.mxu0 %v7981
    %8312 = vmatprep.subr.bf16.mxu0 0
    %8313 = vmatpush2.bf16.msra.mxu0 %v7980
    %8314 = vmatprep.subr.bf16.mxu0 0
    %8315 = vmatpush2.bf16.msra.mxu0 %v7979
    %8316 = vmatprep.subr.bf16.mxu0 0
    %8317 = vmatpush2.bf16.msra.mxu0 %v7978
    %8318 = vmatprep.subr.bf16.mxu0 0
    %8319 = vmatpush2.bf16.msra.mxu0 %v7977
    %8320 = vmatprep.subr.bf16.mxu0 0
    %8321 = vmatpush2.bf16.msra.mxu0 %v7976
    %8322 = vmatprep.mubr.bf16.mxu0 %v7132
    %8323 = vmatmul.mubr.bf16.gmra.mxu0 %v7131
    %v8324 = vpop.f32.mrf.mxu0
    %v8325 = vadd.f32 %v8276, %v8324
    %v8326 = vpop.f32.mrf.mxu0
    %v8327 = vpop.f32.mrf.mxu0
    %v8328 = vadd.f32 %v8279, %v8327
    %v8329 = vpop.f32.mrf.mxu0
    %8330 = vmatprep.mubr.bf16.mxu0 %v7148
    %8331 = vmatmul.mubr.bf16.gmra.mxu0 %v7147
    %v8332 = vpop.f32.mrf.mxu0
    %v8333 = vadd.f32 %v8284, %v8332
    %v8334 = vpop.f32.mrf.mxu0
    %v8335 = vpop.f32.mrf.mxu0
    %v8336 = vadd.f32 %v8287, %v8335
    %v8337 = vpop.f32.mrf.mxu0
    %8338 = vdwg.mxu0
    %8339 = vmatprep.subr.bf16.mxu0 0
    %8340 = vmatpush1.bf16.msra.mxu0 %v7991
    %8341 = vmatprep.subr.bf16.mxu0 0
    %8342 = vmatpush1.bf16.msra.mxu0 %v7990
    %8343 = vmatprep.subr.bf16.mxu0 0
    %8344 = vmatpush1.bf16.msra.mxu0 %v7989
    %8345 = vmatprep.subr.bf16.mxu0 0
    %8346 = vmatpush1.bf16.msra.mxu0 %v7988
    %8347 = vmatprep.subr.bf16.mxu0 0
    %8348 = vmatpush1.bf16.msra.mxu0 %v7987
    %8349 = vmatprep.subr.bf16.mxu0 0
    %8350 = vmatpush1.bf16.msra.mxu0 %v7986
    %8351 = vmatprep.subr.bf16.mxu0 0
    %8352 = vmatpush1.bf16.msra.mxu0 %v7985
    %8353 = vmatprep.subr.bf16.mxu0 0
    %8354 = vmatpush1.bf16.msra.mxu0 %v7984
    %8355 = vmatprep.subr.bf16.mxu0 0
    %8356 = vmatpush2.bf16.msra.mxu0 %v7999
    %8357 = vmatprep.subr.bf16.mxu0 0
    %8358 = vmatpush2.bf16.msra.mxu0 %v7998
    %8359 = vmatprep.subr.bf16.mxu0 0
    %8360 = vmatpush2.bf16.msra.mxu0 %v7997
    %8361 = vmatprep.subr.bf16.mxu0 0
    %8362 = vmatpush2.bf16.msra.mxu0 %v7996
    %8363 = vmatprep.subr.bf16.mxu0 0
    %8364 = vmatpush2.bf16.msra.mxu0 %v7995
    %8365 = vmatprep.subr.bf16.mxu0 0
    %8366 = vmatpush2.bf16.msra.mxu0 %v7994
    %8367 = vmatprep.subr.bf16.mxu0 0
    %8368 = vmatpush2.bf16.msra.mxu0 %v7993
    %8369 = vmatprep.subr.bf16.mxu0 0
    %8370 = vmatpush2.bf16.msra.mxu0 %v7992
    %8371 = vmatprep.mubr.bf16.mxu0 %v7134
    %8372 = vmatmul.mubr.bf16.gmra.mxu0 %v7133
    %v8373 = vpop.f32.mrf.mxu0
    %v8374 = vadd.f32 %v8325, %v8373
    %v8375 = vpop.f32.mrf.mxu0
    %v8376 = vpop.f32.mrf.mxu0
    %v8377 = vadd.f32 %v8328, %v8376
    %v8378 = vpop.f32.mrf.mxu0
    %8379 = vmatprep.mubr.bf16.mxu0 %v7150
    %8380 = vmatmul.mubr.bf16.gmra.mxu0 %v7149
    %v8381 = vpop.f32.mrf.mxu0
    %v8382 = vadd.f32 %v8333, %v8381
    %v8383 = vpop.f32.mrf.mxu0
    %v8384 = vpop.f32.mrf.mxu0
    %v8385 = vadd.f32 %v8336, %v8384
    %v8386 = vpop.f32.mrf.mxu0
    %8387 = vdwg.mxu0
    %8388 = vmatprep.subr.bf16.mxu0 0
    %8389 = vmatpush1.bf16.msra.mxu0 %v8007
    %8390 = vmatprep.subr.bf16.mxu0 0
    %8391 = vmatpush1.bf16.msra.mxu0 %v8006
    %8392 = vmatprep.subr.bf16.mxu0 0
    %8393 = vmatpush1.bf16.msra.mxu0 %v8005
    %8394 = vmatprep.subr.bf16.mxu0 0
    %8395 = vmatpush1.bf16.msra.mxu0 %v8004
    %8396 = vmatprep.subr.bf16.mxu0 0
    %8397 = vmatpush1.bf16.msra.mxu0 %v8003
    %8398 = vmatprep.subr.bf16.mxu0 0
    %8399 = vmatpush1.bf16.msra.mxu0 %v8002
    %8400 = vmatprep.subr.bf16.mxu0 0
    %8401 = vmatpush1.bf16.msra.mxu0 %v8001
    %8402 = vmatprep.subr.bf16.mxu0 0
    %8403 = vmatpush1.bf16.msra.mxu0 %v8000
    %8404 = vmatprep.subr.bf16.mxu0 0
    %8405 = vmatpush2.bf16.msra.mxu0 %v8015
    %8406 = vmatprep.subr.bf16.mxu0 0
    %8407 = vmatpush2.bf16.msra.mxu0 %v8014
    %8408 = vmatprep.subr.bf16.mxu0 0
    %8409 = vmatpush2.bf16.msra.mxu0 %v8013
    %8410 = vmatprep.subr.bf16.mxu0 0
    %8411 = vmatpush2.bf16.msra.mxu0 %v8012
    %8412 = vmatprep.subr.bf16.mxu0 0
    %8413 = vmatpush2.bf16.msra.mxu0 %v8011
    %8414 = vmatprep.subr.bf16.mxu0 0
    %8415 = vmatpush2.bf16.msra.mxu0 %v8010
    %8416 = vmatprep.subr.bf16.mxu0 0
    %8417 = vmatpush2.bf16.msra.mxu0 %v8009
    %8418 = vmatprep.subr.bf16.mxu0 0
    %8419 = vmatpush2.bf16.msra.mxu0 %v8008
    %8420 = vmatprep.mubr.bf16.mxu0 %v7136
    %8421 = vmatmul.mubr.bf16.gmra.mxu0 %v7135
    %v8422 = vpop.f32.mrf.mxu0
    %v8423 = vadd.f32 %v8374, %v8422
    %v8424 = vpop.f32.mrf.mxu0
    %v8425 = vpop.f32.mrf.mxu0
    %v8426 = vadd.f32 %v8377, %v8425
    %v8427 = vpop.f32.mrf.mxu0
    %8428 = vmatprep.mubr.bf16.mxu0 %v7152
    %8429 = vmatmul.mubr.bf16.gmra.mxu0 %v7151
    %v8430 = vpop.f32.mrf.mxu0
    %v8431 = vadd.f32 %v8382, %v8430
    %v8432 = vpop.f32.mrf.mxu0
    %v8433 = vpop.f32.mrf.mxu0
    %v8434 = vadd.f32 %v8385, %v8433
    %v8435 = vpop.f32.mrf.mxu0
    %8436 = vdwg.mxu0
    %8437 = vmatprep.subr.bf16.mxu0 0
    %8438 = vmatpush1.bf16.msra.mxu0 %v8023
    %8439 = vmatprep.subr.bf16.mxu0 0
    %8440 = vmatpush1.bf16.msra.mxu0 %v8022
    %8441 = vmatprep.subr.bf16.mxu0 0
    %8442 = vmatpush1.bf16.msra.mxu0 %v8021
    %8443 = vmatprep.subr.bf16.mxu0 0
    %8444 = vmatpush1.bf16.msra.mxu0 %v8020
    %8445 = vmatprep.subr.bf16.mxu0 0
    %8446 = vmatpush1.bf16.msra.mxu0 %v8019
    %8447 = vmatprep.subr.bf16.mxu0 0
    %8448 = vmatpush1.bf16.msra.mxu0 %v8018
    %8449 = vmatprep.subr.bf16.mxu0 0
    %8450 = vmatpush1.bf16.msra.mxu0 %v8017
    %8451 = vmatprep.subr.bf16.mxu0 0
    %8452 = vmatpush1.bf16.msra.mxu0 %v8016
    %8453 = vmatprep.subr.bf16.mxu0 0
    %8454 = vmatpush2.bf16.msra.mxu0 %v8031
    %8455 = vmatprep.subr.bf16.mxu0 0
    %8456 = vmatpush2.bf16.msra.mxu0 %v8030
    %8457 = vmatprep.subr.bf16.mxu0 0
    %8458 = vmatpush2.bf16.msra.mxu0 %v8029
    %8459 = vmatprep.subr.bf16.mxu0 0
    %8460 = vmatpush2.bf16.msra.mxu0 %v8028
    %8461 = vmatprep.subr.bf16.mxu0 0
    %8462 = vmatpush2.bf16.msra.mxu0 %v8027
    %8463 = vmatprep.subr.bf16.mxu0 0
    %8464 = vmatpush2.bf16.msra.mxu0 %v8026
    %8465 = vmatprep.subr.bf16.mxu0 0
    %8466 = vmatpush2.bf16.msra.mxu0 %v8025
    %8467 = vmatprep.subr.bf16.mxu0 0
    %8468 = vmatpush2.bf16.msra.mxu0 %v8024
    %8469 = vmatprep.mubr.bf16.mxu0 %v7138
    %8470 = vmatmul.mubr.bf16.gmra.mxu0 %v7137
    %v8471 = vpop.f32.mrf.mxu0
    %v8472 = vadd.f32 %v8423, %v8471
    %v8473 = vpop.f32.mrf.mxu0
    %v8474 = vpop.f32.mrf.mxu0
    %v8475 = vadd.f32 %v8426, %v8474
    %v8476 = vpop.f32.mrf.mxu0
    %8477 = vmatprep.mubr.bf16.mxu0 %v7154
    %8478 = vmatmul.mubr.bf16.gmra.mxu0 %v7153
    %v8479 = vpop.f32.mrf.mxu0
    %v8480 = vadd.f32 %v8431, %v8479
    %v8481 = vpop.f32.mrf.mxu0
    %v8482 = vpop.f32.mrf.mxu0
    %v8483 = vadd.f32 %v8434, %v8482
    %v8484 = vpop.f32.mrf.mxu0
    %8485 = vdwg.mxu0
    %8486 = vmatprep.subr.bf16.mxu0 0
    %8487 = vmatpush1.bf16.msra.mxu0 %v8039
    %8488 = vmatprep.subr.bf16.mxu0 0
    %8489 = vmatpush1.bf16.msra.mxu0 %v8038
    %8490 = vmatprep.subr.bf16.mxu0 0
    %8491 = vmatpush1.bf16.msra.mxu0 %v8037
    %8492 = vmatprep.subr.bf16.mxu0 0
    %8493 = vmatpush1.bf16.msra.mxu0 %v8036
    %8494 = vmatprep.subr.bf16.mxu0 0
    %8495 = vmatpush1.bf16.msra.mxu0 %v8035
    %8496 = vmatprep.subr.bf16.mxu0 0
    %8497 = vmatpush1.bf16.msra.mxu0 %v8034
    %8498 = vmatprep.subr.bf16.mxu0 0
    %8499 = vmatpush1.bf16.msra.mxu0 %v8033
    %8500 = vmatprep.subr.bf16.mxu0 0
    %8501 = vmatpush1.bf16.msra.mxu0 %v8032
    %8502 = vmatprep.subr.bf16.mxu0 0
    %8503 = vmatpush2.bf16.msra.mxu0 %v8047
    %8504 = vmatprep.subr.bf16.mxu0 0
    %8505 = vmatpush2.bf16.msra.mxu0 %v8046
    %8506 = vmatprep.subr.bf16.mxu0 0
    %8507 = vmatpush2.bf16.msra.mxu0 %v8045
    %8508 = vmatprep.subr.bf16.mxu0 0
    %8509 = vmatpush2.bf16.msra.mxu0 %v8044
    %8510 = vmatprep.subr.bf16.mxu0 0
    %8511 = vmatpush2.bf16.msra.mxu0 %v8043
    %8512 = vmatprep.subr.bf16.mxu0 0
    %8513 = vmatpush2.bf16.msra.mxu0 %v8042
    %8514 = vmatprep.subr.bf16.mxu0 0
    %8515 = vmatpush2.bf16.msra.mxu0 %v8041
    %8516 = vmatprep.subr.bf16.mxu0 0
    %8517 = vmatpush2.bf16.msra.mxu0 %v8040
    %8518 = vmatprep.mubr.bf16.mxu0 %v7140
    %8519 = vmatmul.mubr.bf16.gmra.mxu0 %v7139
    %v8520 = vpop.f32.mrf.mxu0
    %v8521 = vadd.f32 %v8472, %v8520
    %v8522 = vpop.f32.mrf.mxu0
    %v8523 = vpop.f32.mrf.mxu0
    %v8524 = vadd.f32 %v8475, %v8523
    %v8525 = vpop.f32.mrf.mxu0
    %8526 = vmatprep.mubr.bf16.mxu0 %v7156
    %8527 = vmatmul.mubr.bf16.gmra.mxu0 %v7155
    %v8528 = vpop.f32.mrf.mxu0
    %v8529 = vadd.f32 %v8480, %v8528
    %v8530 = vpop.f32.mrf.mxu0
    %v8531 = vpop.f32.mrf.mxu0
    %v8532 = vadd.f32 %v8483, %v8531
    %v8533 = vpop.f32.mrf.mxu0
    %8534 = vdwg.mxu0
    %8535 = vmatprep.subr.bf16.mxu0 0
    %8536 = vmatpush1.bf16.msra.mxu0 %v8055
    %8537 = vmatprep.subr.bf16.mxu0 0
    %8538 = vmatpush1.bf16.msra.mxu0 %v8054
    %8539 = vmatprep.subr.bf16.mxu0 0
    %8540 = vmatpush1.bf16.msra.mxu0 %v8053
    %8541 = vmatprep.subr.bf16.mxu0 0
    %8542 = vmatpush1.bf16.msra.mxu0 %v8052
    %8543 = vmatprep.subr.bf16.mxu0 0
    %8544 = vmatpush1.bf16.msra.mxu0 %v8051
    %8545 = vmatprep.subr.bf16.mxu0 0
    %8546 = vmatpush1.bf16.msra.mxu0 %v8050
    %8547 = vmatprep.subr.bf16.mxu0 0
    %8548 = vmatpush1.bf16.msra.mxu0 %v8049
    %8549 = vmatprep.subr.bf16.mxu0 0
    %8550 = vmatpush1.bf16.msra.mxu0 %v8048
    %8551 = vmatprep.subr.bf16.mxu0 0
    %8552 = vmatpush2.bf16.msra.mxu0 %v8063
    %8553 = vmatprep.subr.bf16.mxu0 0
    %8554 = vmatpush2.bf16.msra.mxu0 %v8062
    %8555 = vmatprep.subr.bf16.mxu0 0
    %8556 = vmatpush2.bf16.msra.mxu0 %v8061
    %8557 = vmatprep.subr.bf16.mxu0 0
    %8558 = vmatpush2.bf16.msra.mxu0 %v8060
    %8559 = vmatprep.subr.bf16.mxu0 0
    %8560 = vmatpush2.bf16.msra.mxu0 %v8059
    %8561 = vmatprep.subr.bf16.mxu0 0
    %8562 = vmatpush2.bf16.msra.mxu0 %v8058
    %8563 = vmatprep.subr.bf16.mxu0 0
    %8564 = vmatpush2.bf16.msra.mxu0 %v8057
    %8565 = vmatprep.subr.bf16.mxu0 0
    %8566 = vmatpush2.bf16.msra.mxu0 %v8056
    %8567 = vmatprep.mubr.bf16.mxu0 %v7142
    %8568 = vmatmul.mubr.bf16.gmra.mxu0 %v7141
    %v8569 = vpop.f32.mrf.mxu0
    %v8570 = vadd.f32 %v8521, %v8569
    %v8571 = vpop.f32.mrf.mxu0
    %v8572 = vpop.f32.mrf.mxu0
    %v8573 = vadd.f32 %v8524, %v8572
    %v8574 = vpop.f32.mrf.mxu0
    %8575 = vmatprep.mubr.bf16.mxu0 %v7158
    %8576 = vmatmul.mubr.bf16.gmra.mxu0 %v7157
    %v8577 = vpop.f32.mrf.mxu0
    %v8578 = vadd.f32 %v8529, %v8577
    %v8579 = vpop.f32.mrf.mxu0
    %v8580 = vpop.f32.mrf.mxu0
    %v8581 = vadd.f32 %v8532, %v8580
    %v8582 = vpop.f32.mrf.mxu0
    %8583 = vdwg.mxu0
    %v8584 = vadd.f32 %v5779, %v8570
    %v8585 = vadd.f32 %v5780, %v8573
    %v8586 = vadd.f32 %v5781, %v8578
    %v8587 = vadd.f32 %v5782, %v8581
    %s8588 = scalar_lea.vmem %s16, 1
    %v8589 = vld [vmem:[%s8588] sm:$0x1]
    %s8590 = scalar_lea.vmem %s17, 1
    %v8591 = vld [vmem:[%s8590] sm:$0x1]
    %8592 = vadd.xlane.f32.xlu0 %v8584
    %v8593 = vpop.xlane.xlu0 %8592
    %8594 = vadd.xlane.f32.xlu0 %v8585
    %v8595 = vpop.xlane.xlu0 %8594
    %8596 = vadd.xlane.f32.xlu0 %v8586
    %v8597 = vpop.xlane.xlu0 %8596
    %8598 = vadd.xlane.f32.xlu0 %v8587
    %v8599 = vpop.xlane.xlu0 %8598
    %v8600 = vmul.f32 %v8593, %v1586
    %v8601 = vmul.f32 %v8595, %v1586
    %v8602 = vmul.f32 %v8597, %v1586
    %v8603 = vmul.f32 %v8599, %v1586
    %v8604 = vsub.f32 %v8584, %v8600
    %v8605 = vsub.f32 %v8585, %v8601
    %v8606 = vsub.f32 %v8586, %v8602
    %v8607 = vsub.f32 %v8587, %v8603
    %v8608 = vmul.f32 %v8604, %v8604
    %v8609 = vmul.f32 %v8605, %v8605
    %v8610 = vmul.f32 %v8606, %v8606
    %v8611 = vmul.f32 %v8607, %v8607
    %8612 = vadd.xlane.f32.xlu0 %v8608
    %v8613 = vpop.xlane.xlu0 %8612
    %8614 = vadd.xlane.f32.xlu0 %v8609
    %v8615 = vpop.xlane.xlu0 %8614
    %8616 = vadd.xlane.f32.xlu0 %v8610
    %v8617 = vpop.xlane.xlu0 %8616
    %8618 = vadd.xlane.f32.xlu0 %v8611
    %v8619 = vpop.xlane.xlu0 %8618
    %v8620 = vmul.f32 %v8613, %v1586
    %v8621 = vmul.f32 %v8615, %v1586
    %v8622 = vmul.f32 %v8617, %v1586
    %v8623 = vmul.f32 %v8619, %v1586
    %v8624 = vadd.f32 %v8620, 1e-05
    %v8625 = vadd.f32 %v8621, 1e-05
    %v8626 = vadd.f32 %v8622, 1e-05
    %v8627 = vadd.f32 %v8623, 1e-05
    %v8628 = vrsqrt.pop %v8624
    %v8629 = vrsqrt.pop %v8625
    %v8630 = vrsqrt.pop %v8626
    %v8631 = vrsqrt.pop %v8627
    %v8632 = vmul.f32 %v8604, %v8628
    %v8633 = vmul.f32 %v8605, %v8629
    %v8634 = vmul.f32 %v8606, %v8630
    %v8635 = vmul.f32 %v8607, %v8631
    %v8637 = vlaneseq
    %v8638 = vshrl.u32 %v8637, 7
    %v8639 = vsub.s32 0, %v8638
    %v8640 = vrot.slane %v8589, %v8639
    %v8642 = vmul.f32 %v8632, %v8640
    %v8643 = vmul.f32 %v8633, %v8640
    %v8644 = vmul.f32 %v8634, %v8640
    %v8645 = vmul.f32 %v8635, %v8640
    %v8647 = vlaneseq
    %v8648 = vshrl.u32 %v8647, 7
    %v8649 = vsub.s32 0, %v8648
    %v8650 = vrot.slane %v8591, %v8649
    %v8652 = vadd.f32 %v8642, %v8650
    %v8653 = vadd.f32 %v8643, %v8650
    %v8654 = vadd.f32 %v8644, %v8650
    %v8655 = vadd.f32 %v8645, %v8650
    %v8656 = vrot.slane %v8652, 4
    %v8657 = vadd.f32 %v8652, %v8656
    %v8658 = vrot.slane %v8657, 2
    %v8659 = vadd.f32 %v8657, %v8658
    %v8660 = vrot.slane %v8659, 1
    %v8661 = vadd.f32 %v8659, %v8660
    %v8662 = vrot.slane %v8653, 4
    %v8663 = vadd.f32 %v8653, %v8662
    %v8664 = vrot.slane %v8663, 2
    %v8665 = vadd.f32 %v8663, %v8664
    %v8666 = vrot.slane %v8665, 1
    %v8667 = vadd.f32 %v8665, %v8666
    %v8668 = vrot.slane %v8654, 4
    %v8669 = vadd.f32 %v8654, %v8668
    %v8670 = vrot.slane %v8669, 2
    %v8671 = vadd.f32 %v8669, %v8670
    %v8672 = vrot.slane %v8671, 1
    %v8673 = vadd.f32 %v8671, %v8672
    %v8674 = vrot.slane %v8655, 4
    %v8675 = vadd.f32 %v8655, %v8674
    %v8676 = vrot.slane %v8675, 2
    %v8677 = vadd.f32 %v8675, %v8676
    %v8678 = vrot.slane %v8677, 1
    %v8679 = vadd.f32 %v8677, %v8678
    %v8680 = vrcp.pop 8.0
    %v8681 = vmul.f32 %v8661, %v8680
    %v8682 = vmul.f32 %v8667, %v8680
    %v8683 = vmul.f32 %v8673, %v8680
    %v8684 = vmul.f32 %v8679, %v8680
    %vm8689 = vcmask 1041409
    %v8690 = vsel %vm8689, %v8682, %v8681
    %vm8691 = vcmask 1042434
    %v8692 = vsel %vm8691, %v8683, %v8690
    %vm8693 = vcmask 1043459
    %v8694 = vsel %vm8693, %v8684, %v8692
    %8696 = vst [vmem:[#allocation16] sm:$0xf] %v8694
    // Predicated region
    $region106: #{tpu_custom_call.1} parent=1 // pred_check
      _
    $region107: #{tpu_custom_call.1} parent=1 // pred_check_branch
      %8698 = sbr.rel (0) target = $region109
    $region108: #{tpu_custom_call.1} parent=1 // pred_region
      %s8700 = ssub.s32 64, 64
      %8701 = vsyncadd [#allocation4], %s8700
      %s8703 = sshll.u32 [#allocation16], 4
      %s8704 = int_to_ptr.vmem [resolvable:$true] %s8703
      %8706 = dma.vmem_to_hbm [thread:$0]  %s8704, 64, %s18, [#allocation4]
    $region109: #{tpu_custom_call.1} parent=1 // pred_fallthru
      _
    // Predicated region
    $region110: #{tpu_custom_call.1} parent=1 // pred_check
      _
    $region111: #{tpu_custom_call.1} parent=1 // pred_check_branch
      %8708 = sbr.rel (0) target = $region113
    $region112: #{tpu_custom_call.1} parent=1 // pred_region
      %8709 = dma.done [#allocation4], 64
    $region113: #{tpu_custom_call.1} parent=1 // pred_fallthru
      _
    %8710 = vsyncpa [#allocation3], 1
    %8711 = vsyncpa [#allocation6], 1
    %8712 = vsyncpa [#allocation9], 1
    %8713 = vsyncpa [#allocation12], 1
    %8714 = vsyncpa [#allocation15], 1
    %8715 = vsyncpa [#allocation4], 1

</llo_original>
